<compile_context>
chip_gen: v5e
topology: v5e:2x2
jax: 0.10.0
libtpu: 0.0.40
codegen_flags: <defaults>
</compile_context>

<pallas_src>
import functools

import jax
import jax.numpy as jnp
from jax.experimental import pallas as pl
from jax.experimental.pallas import tpu as pltpu


# ----------------------------------------------------------------------------
# In-kernel helpers
# ----------------------------------------------------------------------------
def _patch_matrix(slab_ref, H, W, c):
    """(H*W, 9*c) f32 im2col patch matrix from the zero-padded (H+2, W+2, >=c)
    VMEM slab.  Tap order (dy, dx) major / channel minor matches the HWIO
    weight reshape (9*c, Cout) done in the wrapper."""
    taps = []
    for dy in range(3):
        for dx in range(3):
            taps.append(slab_ref[dy:dy + H, dx:dx + W, 0:c].reshape(H * W, c))
    return jnp.concatenate(taps, axis=-1)


# ----------------------------------------------------------------------------
# Fused RDB kernel: L x (conv3x3 + ReLU + channel-grow) -> conv1x1 -> +residual
# ----------------------------------------------------------------------------
def _rdb_kernel(*refs, H, W, Cin, growth, L):
    x_ref = refs[0]
    w3 = refs[1:1 + L]                 # (9*c_l, growth) bf16
    b3 = refs[1 + L:1 + 2 * L]         # (1, growth) f32
    w1_ref = refs[1 + 2 * L]           # (cfin, Cin) bf16
    b1_ref = refs[2 + 2 * L]           # (1, Cin) f32
    o_ref = refs[3 + 2 * L]            # (1, H*W, Cin)
    slab = refs[4 + 2 * L]             # VMEM (H+2, W+2, cfin) f32

    HW = H * W
    cfin = Cin + L * growth

    # Zero-init the padded slab (this provides the conv3x3 pad=1 border) and
    # drop the block input into channels [0, Cin).
    slab[...] = jnp.zeros_like(slab)
    x2d = x_ref[0].astype(jnp.float32)                       # (HW, Cin)
    slab[1:H + 1, 1:W + 1, 0:Cin] = x2d.reshape(H, W, Cin)

    # Dense layers: one K = 9*c MXU dot each, fused bias + ReLU, write the new
    # `growth` channels into their slice of the VMEM slab (no HBM traffic).
    c = Cin
    for l in range(L):
        patches = _patch_matrix(slab, H, W, c).astype(jnp.bfloat16)   # (HW, 9c)
        acc = jnp.dot(patches, w3[l][...], preferred_element_type=jnp.float32)
        acc = jnp.maximum(acc + b3[l][...].astype(jnp.float32), 0.0)  # (HW, g)
        slab[1:H + 1, 1:W + 1, c:c + growth] = acc.reshape(H, W, growth)
        c += growth

    # Fused conv1x1 over the full grown slab + bias + residual add.
    flat = slab[1:H + 1, 1:W + 1, 0:cfin].reshape(HW, cfin).astype(jnp.bfloat16)
    y = jnp.dot(flat, w1_ref[...], preferred_element_type=jnp.float32)
    y = y + b1_ref[...].astype(jnp.float32) + x2d                     # (HW, Cin)
    o_ref[...] = y.reshape(1, HW, Cin).astype(o_ref.dtype)


# ----------------------------------------------------------------------------
# Fused tail kernel: cat(block outputs) -> conv1x1 -> conv3x3
# ----------------------------------------------------------------------------
def _tail_kernel(*refs, H, W, Cin, NB):
    blk = refs[:NB]                                    # each (1, H*W, Cin)
    wf_ref, bf_ref, wo_ref, bo_ref, o_ref, slab = refs[NB:]
    HW = H * W

    # Channel concat of the block outputs happens on-chip (no HBM concat copy).
    cat = jnp.concatenate([blk[i][0].astype(jnp.float32) for i in range(NB)],
                          axis=-1).astype(jnp.bfloat16)                # (HW, NB*Cin)
    y1 = jnp.dot(cat, wf_ref[...], preferred_element_type=jnp.float32)
    y1 = y1 + bf_ref[...].astype(jnp.float32)                          # (HW, Cin)

    # Final conv3x3 via the same zero-padded slab + single K=9*Cin dot.
    slab[...] = jnp.zeros_like(slab)
    slab[1:H + 1, 1:W + 1, 0:Cin] = y1.reshape(H, W, Cin)
    patches = _patch_matrix(slab, H, W, Cin).astype(jnp.bfloat16)      # (HW, 9Cin)
    y2 = jnp.dot(patches, wo_ref[...], preferred_element_type=jnp.float32)
    y2 = y2 + bo_ref[...].astype(jnp.float32)
    o_ref[...] = y2.reshape(1, HW, Cin).astype(o_ref.dtype)


# ----------------------------------------------------------------------------
# Wrappers
# ----------------------------------------------------------------------------
def _prep_w3(w):
    """HWIO (3, 3, ci, co) -> (9*ci, co) bf16 (matches _patch_matrix ordering)."""
    kh, kw, ci, co = w.shape
    return w.reshape(kh * kw * ci, co).astype(jnp.bfloat16)


def _prep_b(b):
    return b.reshape(1, -1).astype(jnp.float32)


def _compiler_params(per_step_bytes):
    # Footprint-derived scoped VMEM limit with headroom; capped at 48 MiB so it
    # stays safe on v7x (64 MiB physical) while never dropping below default.
    vmem = int(min(48 * 1024 * 1024, max(32 * 1024 * 1024, 4 * per_step_bytes)))
    return pltpu.CompilerParams(dimension_semantics=("parallel",),
                                vmem_limit_bytes=vmem)


def rdb_pallas(h, dense_params, w1, b1, *, H, W):
    """One fused residual-dense block.

    h: (N, H*W, Cin) f32.  dense_params: [(w3 HWIO (3,3,c_l,growth), b3), ...].
    w1: (Cin + L*growth, Cin).  b1: (Cin,).  Returns (N, H*W, Cin).
    """
    N, HW, Cin = h.shape
    assert HW == H * W
    L = len(dense_params)
    growth = dense_params[0][0].shape[-1]
    cfin = Cin + L * growth

    w3s = [_prep_w3(w) for (w, _) in dense_params]
    b3s = [_prep_b(b) for (_, b) in dense_params]
    w1p = w1.astype(jnp.bfloat16)
    b1p = _prep_b(b1)

    flops = N * (sum(2 * HW * w.shape[0] * w.shape[1] for w in w3s)
                 + 2 * HW * cfin * Cin)
    bytes_accessed = int(2 * N * HW * Cin * 4
                         + (sum(w.size for w in w3s) + w1p.size) * 2
                         + (sum(b.size for b in b3s) + b1p.size) * 4)
    per_step_bytes = int(2 * HW * Cin * 4
                         + (sum(w.size for w in w3s) + w1p.size) * 2
                         + (H + 2) * (W + 2) * cfin * 4)

    kernel = functools.partial(_rdb_kernel, H=H, W=W, Cin=Cin,
                               growth=growth, L=L)
    in_specs = ([pl.BlockSpec((1, HW, Cin), lambda n: (n, 0, 0))]
                + [pl.BlockSpec(w.shape, lambda n: (0, 0)) for w in w3s]
                + [pl.BlockSpec(b.shape, lambda n: (0, 0)) for b in b3s]
                + [pl.BlockSpec(w1p.shape, lambda n: (0, 0)),
                   pl.BlockSpec(b1p.shape, lambda n: (0, 0))])

    return pl.pallas_call(
        kernel,
        out_shape=jax.ShapeDtypeStruct((N, HW, Cin), h.dtype),
        grid=(N,),
        in_specs=in_specs,
        out_specs=pl.BlockSpec((1, HW, Cin), lambda n: (n, 0, 0)),
        scratch_shapes=[pltpu.VMEM((H + 2, W + 2, cfin), jnp.float32)],
        compiler_params=_compiler_params(per_step_bytes),
        cost_estimate=pl.CostEstimate(flops=flops, transcendentals=0,
                                      bytes_accessed=bytes_accessed),
    )(h, *w3s, *b3s, w1p, b1p)


def tail_pallas(block_outs, w_fuse, b_fuse, w_out3, b_out3, *, H, W):
    """Fused torch.cat(block_outs, dim=1) -> conv1x1 -> conv3x3."""
    NB = len(block_outs)
    N, HW, Cin = block_outs[0].shape
    assert HW == H * W
    wf = w_fuse.astype(jnp.bfloat16)        # (NB*Cin, Cin)
    bf = _prep_b(b_fuse)
    wo = _prep_w3(w_out3)                   # (9*Cin, Cin)
    bo = _prep_b(b_out3)

    flops = N * (2 * HW * NB * Cin * Cin + 2 * HW * 9 * Cin * Cin)
    bytes_accessed = int((NB + 1) * N * HW * Cin * 4
                         + (wf.size + wo.size) * 2 + (bf.size + bo.size) * 4)
    per_step_bytes = int((NB + 1) * HW * Cin * 4 + (wf.size + wo.size) * 2
                         + (H + 2) * (W + 2) * Cin * 4)

    kernel = functools.partial(_tail_kernel, H=H, W=W, Cin=Cin, NB=NB)
    in_specs = ([pl.BlockSpec((1, HW, Cin), lambda n: (n, 0, 0))
                 for _ in range(NB)]
                + [pl.BlockSpec(wf.shape, lambda n: (0, 0)),
                   pl.BlockSpec(bf.shape, lambda n: (0, 0)),
                   pl.BlockSpec(wo.shape, lambda n: (0, 0)),
                   pl.BlockSpec(bo.shape, lambda n: (0, 0))])

    return pl.pallas_call(
        kernel,
        out_shape=jax.ShapeDtypeStruct((N, HW, Cin), block_outs[0].dtype),
        grid=(N,),
        in_specs=in_specs,
        out_specs=pl.BlockSpec((1, HW, Cin), lambda n: (n, 0, 0)),
        scratch_shapes=[pltpu.VMEM((H + 2, W + 2, Cin), jnp.float32)],
        compiler_params=_compiler_params(per_step_bytes),
        cost_estimate=pl.CostEstimate(flops=flops, transcendentals=0,
                                      bytes_accessed=bytes_accessed),
    )(*block_outs, wf, bf, wo, bo)


# ----------------------------------------------------------------------------
# RDNet forward (num_blocks + 1 pallas_calls, NHWC/(N, H*W, C) activations)
# ----------------------------------------------------------------------------
def rdnet_forward(x_nchw, params):
    N, Cin, H, W = x_nchw.shape
    # NCHW -> NHWC -> (N, H*W, C).  Reshapes of contiguous dims, no data shuffle.
    h = jnp.transpose(x_nchw, (0, 2, 3, 1)).reshape(N, H * W, Cin)
    block_outs = []
    for blk in params["rdbs"]:
        h = rdb_pallas(h, blk["dense"], blk["w1x1"], blk["b1x1"], H=H, W=W)
        block_outs.append(h)
    y = tail_pallas(block_outs, params["w_fuse1x1"], params["b_fuse1x1"],
                    params["w_out3x3"], params["b_out3x3"], H=H, W=W)
    return jnp.transpose(y.reshape(N, H, W, Cin), (0, 3, 1, 2))


# ----------------------------------------------------------------------------
# Pure-JAX reference mirroring the PyTorch forward (precision-matched: bf16
# conv/matmul operands, f32 accumulation + f32 bias/ReLU/residual).
# ----------------------------------------------------------------------------
def _conv3x3_ref(x, w, b):
    y = jax.lax.conv_general_dilated(
        x.astype(jnp.bfloat16), w.astype(jnp.bfloat16),
        window_strides=(1, 1), padding=((1, 1), (1, 1)),
        dimension_numbers=("NHWC", "HWIO", "NHWC"),
        preferred_element_type=jnp.float32)
    return y + b


def _conv1x1_ref(x, w, b):
    y = jax.lax.dot_general(
        x.astype(jnp.bfloat16), w.astype(jnp.bfloat16),
        dimension_numbers=(((3,), (0,)), ((), ())),
        preferred_element_type=jnp.float32)
    return y + b


def rdnet_reference(x_nchw, params):
    x = jnp.transpose(x_nchw, (0, 2, 3, 1))
    h = x
    block_outs = []
    for blk in params["rdbs"]:
        h_in = h
        for (w3, b3) in blk["dense"]:
            grown = jnp.maximum(_conv3x3_ref(h, w3, b3), 0.0)
            h = jnp.concatenate([h, grown], axis=-1)        # torch.cat((x, out), 1)
        h = _conv1x1_ref(h, blk["w1x1"], blk["b1x1"]) + h_in  # RDB out + x
        block_outs.append(h)
    cat = jnp.concatenate(block_outs, axis=-1)               # torch.cat(out, dim=1)
    y = _conv1x1_ref(cat, params["w_fuse1x1"], params["b_fuse1x1"])
    y = _conv3x3_ref(y, params["w_out3x3"], params["b_out3x3"])
    return jnp.transpose(y, (0, 3, 1, 2))


# ----------------------------------------------------------------------------
# Parameter construction (HWIO conv3x3 weights, (Cin, Cout) 1x1 weights)
# ----------------------------------------------------------------------------
def init_rdnet_params(key, in_channels, growth, num_layer, num_blocks):
    params = {"rdbs": []}
    for _ in range(num_blocks):
        dense = []
        c = in_channels
        for _ in range(num_layer):
            key, k1, k2 = jax.random.split(key, 3)
            w3 = jax.random.normal(k1, (3, 3, c, growth), jnp.float32) * 0.1
            b3 = jax.random.normal(k2, (growth,), jnp.float32) * 0.1
            dense.append((w3, b3))
            c += growth
        key, k1, k2 = jax.random.split(key, 3)
        w1 = jax.random.normal(k1, (c, in_channels), jnp.float32) * 0.1
        b1 = jax.random.normal(k2, (in_channels,), jnp.float32) * 0.1
        params["rdbs"].append({"dense": dense, "w1x1": w1, "b1x1": b1})

    key, k1, k2, k3, k4 = jax.random.split(key, 5)
    params["w_fuse1x1"] = jax.random.normal(
        k1, (num_blocks * in_channels, in_channels), jnp.float32) * 0.1
    params["b_fuse1x1"] = jax.random.normal(k2, (in_channels,), jnp.float32) * 0.1
    params["w_out3x3"] = jax.random.normal(
        k3, (3, 3, in_channels, in_channels), jnp.float32) * 0.1
    params["b_out3x3"] = jax.random.normal(k4, (in_channels,), jnp.float32) * 0.1
    return params


if __name__ == "__main__":
    key = jax.random.PRNGKey(0)
    key, kx = jax.random.split(key)

    # Small shapes consistent with the module.
    N, in_channels, H, W = 2, 8, 16, 16
    growth, num_layer, num_blocks = 4, 2, 2

    x = jax.random.normal(kx, (N, in_channels, H, W), dtype=jnp.float32)
    params = init_rdnet_params(key, in_channels, growth, num_layer, num_blocks)

    fwd = jax.jit(rdnet_forward)
    out = fwd(x, params)
    jax.block_until_ready(out)

    ref = rdnet_reference(x, params)
    assert out.shape == (N, in_channels, H, W)
    max_err = float(jnp.max(jnp.abs(out - ref)))
    assert jnp.allclose(out, ref, atol=2e-3, rtol=2e-3), (
        f"mismatch vs reference (max abs err {max_err})")

    print("KERNEL_OK")
</pallas_src>

<mosaic_0001>
module attributes {stable_mosaic.version = 11 : i64} {
  func.func @_tail_kernel(%arg0: i32, %arg1: memref<1x256x8xf32, #tpu.memory_space<vmem>>, %arg2: memref<1x256x8xf32, #tpu.memory_space<vmem>>, %arg3: memref<16x8xbf16, #tpu.memory_space<vmem>>, %arg4: memref<1x8xf32, #tpu.memory_space<vmem>>, %arg5: memref<72x8xbf16, #tpu.memory_space<vmem>>, %arg6: memref<1x8xf32, #tpu.memory_space<vmem>>, %arg7: memref<1x256x8xf32, #tpu.memory_space<vmem>>, %arg8: memref<18x18x8xf32, #tpu.memory_space<vmem>>) attributes {dimension_semantics = [#tpu.dimension_semantics<parallel>], iteration_bounds = array<i64: 2>, scalar_prefetch = 0 : i64, scratch_operands = 1 : i64, tpu.core_type = #tpu.core_type<tc>, window_params = [{transform_indices = @transform_0, window_bounds = array<i64: 1, 256, 8>}, {transform_indices = @transform_1, window_bounds = array<i64: 1, 256, 8>}, {pipeline_mode = #tpu.pipeline_mode<synchronous>, transform_indices = @transform_2, window_bounds = array<i64: 16, 8>}, {pipeline_mode = #tpu.pipeline_mode<synchronous>, transform_indices = @transform_3, window_bounds = array<i64: 1, 8>}, {pipeline_mode = #tpu.pipeline_mode<synchronous>, transform_indices = @transform_4, window_bounds = array<i64: 72, 8>}, {pipeline_mode = #tpu.pipeline_mode<synchronous>, transform_indices = @transform_5, window_bounds = array<i64: 1, 8>}, {transform_indices = @transform_6, window_bounds = array<i64: 1, 256, 8>}]} {
    %c0 = arith.constant 0 : index
    %c0_0 = arith.constant 0 : index
    %c0_1 = arith.constant 0 : index
    %0 = vector.load %arg1[%c0, %c0_0, %c0_1] : memref<1x256x8xf32, #tpu.memory_space<vmem>>, vector<1x256x8xf32>
    %1 = vector.shape_cast %0 : vector<1x256x8xf32> to vector<256x8xf32>
    %c0_2 = arith.constant 0 : index
    %c0_3 = arith.constant 0 : index
    %c0_4 = arith.constant 0 : index
    %2 = vector.load %arg2[%c0_2, %c0_3, %c0_4] : memref<1x256x8xf32, #tpu.memory_space<vmem>>, vector<1x256x8xf32>
    %3 = vector.shape_cast %2 : vector<1x256x8xf32> to vector<256x8xf32>
    %4 = tpu.concatenate %1, %3 in 1 : vector<256x8xf32>, vector<256x8xf32> -> vector<256x16xf32>
    %5 = arith.truncf %4 : vector<256x16xf32> to vector<256x16xbf16>
    %c0_5 = arith.constant 0 : index
    %c0_6 = arith.constant 0 : index
    %6 = vector.load %arg3[%c0_5, %c0_6] : memref<16x8xbf16, #tpu.memory_space<vmem>>, vector<16x8xbf16>
    %cst = arith.constant dense<0.000000e+00> : vector<256x8xf32>
    %7 = tpu.matmul %5, %6, %cst {dimension_numbers = #tpu.dot_dimension_numbers<[1], [0], [0], [1], [0, 0, 1, 1], [], []>} : vector<256x16xbf16>, vector<16x8xbf16>, vector<256x8xf32> -> vector<256x8xf32>
    %c0_7 = arith.constant 0 : index
    %c0_8 = arith.constant 0 : index
    %8 = vector.load %arg4[%c0_7, %c0_8] : memref<1x8xf32, #tpu.memory_space<vmem>>, vector<1x8xf32>
    %9 = vector.broadcast %8 : vector<1x8xf32> to vector<256x8xf32>
    %10 = arith.addf %7, %9 : vector<256x8xf32>
    %cst_9 = arith.constant 0.000000e+00 : f32
    %11 = vector.broadcast %cst_9 : f32 to vector<18x18x8xf32>
    %c0_10 = arith.constant 0 : index
    %c0_11 = arith.constant 0 : index
    %c0_12 = arith.constant 0 : index
    %12 = vector.load %arg8[%c0_10, %c0_11, %c0_12] : memref<18x18x8xf32, #tpu.memory_space<vmem>>, vector<18x18x8xf32>
    tpu.vector_store %arg8[%c0_10, %c0_11, %c0_12], %11 {strides = array<i32>} : memref<18x18x8xf32, #tpu.memory_space<vmem>>, vector<18x18x8xf32>,
    %13 = vector.shape_cast %10 : vector<256x8xf32> to vector<16x16x8xf32>
    %c1 = arith.constant 1 : index
    %c1_13 = arith.constant 1 : index
    %c0_14 = arith.constant 0 : index
    %14 = vector.load %arg8[%c1, %c1_13, %c0_14] : memref<18x18x8xf32, #tpu.memory_space<vmem>>, vector<16x16x8xf32>
    tpu.vector_store %arg8[%c1, %c1_13, %c0_14], %13 {strides = array<i32>} : memref<18x18x8xf32, #tpu.memory_space<vmem>>, vector<16x16x8xf32>,
    %c0_15 = arith.constant 0 : index
    %c0_16 = arith.constant 0 : index
    %c0_17 = arith.constant 0 : index
    %15 = vector.load %arg8[%c0_15, %c0_16, %c0_17] : memref<18x18x8xf32, #tpu.memory_space<vmem>>, vector<16x16x8xf32>
    %16 = vector.shape_cast %15 : vector<16x16x8xf32> to vector<256x8xf32>
    %c0_18 = arith.constant 0 : index
    %c1_19 = arith.constant 1 : index
    %c0_20 = arith.constant 0 : index
    %17 = vector.load %arg8[%c0_18, %c1_19, %c0_20] : memref<18x18x8xf32, #tpu.memory_space<vmem>>, vector<16x16x8xf32>
    %18 = vector.shape_cast %17 : vector<16x16x8xf32> to vector<256x8xf32>
    %c0_21 = arith.constant 0 : index
    %c2 = arith.constant 2 : index
    %c0_22 = arith.constant 0 : index
    %19 = vector.load %arg8[%c0_21, %c2, %c0_22] : memref<18x18x8xf32, #tpu.memory_space<vmem>>, vector<16x16x8xf32>
    %20 = vector.shape_cast %19 : vector<16x16x8xf32> to vector<256x8xf32>
    %c1_23 = arith.constant 1 : index
    %c0_24 = arith.constant 0 : index
    %c0_25 = arith.constant 0 : index
    %21 = vector.load %arg8[%c1_23, %c0_24, %c0_25] : memref<18x18x8xf32, #tpu.memory_space<vmem>>, vector<16x16x8xf32>
    %22 = vector.shape_cast %21 : vector<16x16x8xf32> to vector<256x8xf32>
    %c1_26 = arith.constant 1 : index
    %c1_27 = arith.constant 1 : index
    %c0_28 = arith.constant 0 : index
    %23 = vector.load %arg8[%c1_26, %c1_27, %c0_28] : memref<18x18x8xf32, #tpu.memory_space<vmem>>, vector<16x16x8xf32>
    %24 = vector.shape_cast %23 : vector<16x16x8xf32> to vector<256x8xf32>
    %c1_29 = arith.constant 1 : index
    %c2_30 = arith.constant 2 : index
    %c0_31 = arith.constant 0 : index
    %25 = vector.load %arg8[%c1_29, %c2_30, %c0_31] : memref<18x18x8xf32, #tpu.memory_space<vmem>>, vector<16x16x8xf32>
    %26 = vector.shape_cast %25 : vector<16x16x8xf32> to vector<256x8xf32>
    %c2_32 = arith.constant 2 : index
    %c0_33 = arith.constant 0 : index
    %c0_34 = arith.constant 0 : index
    %27 = vector.load %arg8[%c2_32, %c0_33, %c0_34] : memref<18x18x8xf32, #tpu.memory_space<vmem>>, vector<16x16x8xf32>
    %28 = vector.shape_cast %27 : vector<16x16x8xf32> to vector<256x8xf32>
    %c2_35 = arith.constant 2 : index
    %c1_36 = arith.constant 1 : index
    %c0_37 = arith.constant 0 : index
    %29 = vector.load %arg8[%c2_35, %c1_36, %c0_37] : memref<18x18x8xf32, #tpu.memory_space<vmem>>, vector<16x16x8xf32>
    %30 = vector.shape_cast %29 : vector<16x16x8xf32> to vector<256x8xf32>
    %c2_38 = arith.constant 2 : index
    %c2_39 = arith.constant 2 : index
    %c0_40 = arith.constant 0 : index
    %31 = vector.load %arg8[%c2_38, %c2_39, %c0_40] : memref<18x18x8xf32, #tpu.memory_space<vmem>>, vector<16x16x8xf32>
    %32 = vector.shape_cast %31 : vector<16x16x8xf32> to vector<256x8xf32>
    %33 = tpu.concatenate %16, %18, %20, %22, %24, %26, %28, %30, %32 in 1 : vector<256x8xf32>, vector<256x8xf32>, vector<256x8xf32>, vector<256x8xf32>, vector<256x8xf32>, vector<256x8xf32>, vector<256x8xf32>, vector<256x8xf32>, vector<256x8xf32> -> vector<256x72xf32>
    %34 = arith.truncf %33 : vector<256x72xf32> to vector<256x72xbf16>
    %c0_41 = arith.constant 0 : index
    %c0_42 = arith.constant 0 : index
    %35 = vector.load %arg5[%c0_41, %c0_42] : memref<72x8xbf16, #tpu.memory_space<vmem>>, vector<72x8xbf16>
    %cst_43 = arith.constant dense<0.000000e+00> : vector<256x8xf32>
    %36 = tpu.matmul %34, %35, %cst_43 {dimension_numbers = #tpu.dot_dimension_numbers<[1], [0], [0], [1], [0, 0, 1, 1], [], []>} : vector<256x72xbf16>, vector<72x8xbf16>, vector<256x8xf32> -> vector<256x8xf32>
    %c0_44 = arith.constant 0 : index
    %c0_45 = arith.constant 0 : index
    %37 = vector.load %arg6[%c0_44, %c0_45] : memref<1x8xf32, #tpu.memory_space<vmem>>, vector<1x8xf32>
    %38 = vector.broadcast %37 : vector<1x8xf32> to vector<256x8xf32>
    %39 = arith.addf %36, %38 : vector<256x8xf32>
    %40 = vector.shape_cast %39 : vector<256x8xf32> to vector<1x256x8xf32>
    %c0_46 = arith.constant 0 : index
    %c0_47 = arith.constant 0 : index
    %c0_48 = arith.constant 0 : index
    %41 = vector.load %arg7[%c0_46, %c0_47, %c0_48] : memref<1x256x8xf32, #tpu.memory_space<vmem>>, vector<1x256x8xf32>
    tpu.vector_store %arg7[%c0_46, %c0_47, %c0_48], %40 {strides = array<i32>} : memref<1x256x8xf32, #tpu.memory_space<vmem>>, vector<1x256x8xf32>,
    return
  }
  func.func @transform_0(%arg0: i32) -> (i32, i32, i32) {
    %c0_i32 = arith.constant 0 : i32
    %c0_i32_0 = arith.constant 0 : i32
    %c0_i32_1 = arith.constant 0 : i32
    return %arg0, %c0_i32, %c0_i32_0 : i32, i32, i32
  }
  func.func @transform_1(%arg0: i32) -> (i32, i32, i32) {
    %c0_i32 = arith.constant 0 : i32
    %c0_i32_0 = arith.constant 0 : i32
    %c0_i32_1 = arith.constant 0 : i32
    return %arg0, %c0_i32, %c0_i32_0 : i32, i32, i32
  }
  func.func @transform_2(%arg0: i32) -> (i32, i32) {
    %c0_i32 = arith.constant 0 : i32
    %c0_i32_0 = arith.constant 0 : i32
    %c0_i32_1 = arith.constant 0 : i32
    return %c0_i32, %c0_i32_0 : i32, i32
  }
  func.func @transform_3(%arg0: i32) -> (i32, i32) {
    %c0_i32 = arith.constant 0 : i32
    %c0_i32_0 = arith.constant 0 : i32
    %c0_i32_1 = arith.constant 0 : i32
    return %c0_i32, %c0_i32_0 : i32, i32
  }
  func.func @transform_4(%arg0: i32) -> (i32, i32) {
    %c0_i32 = arith.constant 0 : i32
    %c0_i32_0 = arith.constant 0 : i32
    %c0_i32_1 = arith.constant 0 : i32
    return %c0_i32, %c0_i32_0 : i32, i32
  }
  func.func @transform_5(%arg0: i32) -> (i32, i32) {
    %c0_i32 = arith.constant 0 : i32
    %c0_i32_0 = arith.constant 0 : i32
    %c0_i32_1 = arith.constant 0 : i32
    return %c0_i32, %c0_i32_0 : i32, i32
  }
  func.func @transform_6(%arg0: i32) -> (i32, i32, i32) {
    %c0_i32 = arith.constant 0 : i32
    %c0_i32_0 = arith.constant 0 : i32
    %c0_i32_1 = arith.constant 0 : i32
    return %arg0, %c0_i32, %c0_i32_0 : i32, i32, i32
  }
}

module attributes {stable_mosaic.version = 11 : i64} {
  func.func @_rdb_kernel(%arg0: i32, %arg1: memref<1x256x8xf32, #tpu.memory_space<vmem>>, %arg2: memref<72x4xbf16, #tpu.memory_space<vmem>>, %arg3: memref<108x4xbf16, #tpu.memory_space<vmem>>, %arg4: memref<1x4xf32, #tpu.memory_space<vmem>>, %arg5: memref<1x4xf32, #tpu.memory_space<vmem>>, %arg6: memref<16x8xbf16, #tpu.memory_space<vmem>>, %arg7: memref<1x8xf32, #tpu.memory_space<vmem>>, %arg8: memref<1x256x8xf32, #tpu.memory_space<vmem>>, %arg9: memref<18x18x16xf32, #tpu.memory_space<vmem>>) attributes {dimension_semantics = [#tpu.dimension_semantics<parallel>], iteration_bounds = array<i64: 2>, scalar_prefetch = 0 : i64, scratch_operands = 1 : i64, tpu.core_type = #tpu.core_type<tc>, window_params = [{transform_indices = @transform_0, window_bounds = array<i64: 1, 256, 8>}, {pipeline_mode = #tpu.pipeline_mode<synchronous>, transform_indices = @transform_1, window_bounds = array<i64: 72, 4>}, {pipeline_mode = #tpu.pipeline_mode<synchronous>, transform_indices = @transform_2, window_bounds = array<i64: 108, 4>}, {pipeline_mode = #tpu.pipeline_mode<synchronous>, transform_indices = @transform_3, window_bounds = array<i64: 1, 4>}, {pipeline_mode = #tpu.pipeline_mode<synchronous>, transform_indices = @transform_4, window_bounds = array<i64: 1, 4>}, {pipeline_mode = #tpu.pipeline_mode<synchronous>, transform_indices = @transform_5, window_bounds = array<i64: 16, 8>}, {pipeline_mode = #tpu.pipeline_mode<synchronous>, transform_indices = @transform_6, window_bounds = array<i64: 1, 8>}, {transform_indices = @transform_7, window_bounds = array<i64: 1, 256, 8>}]} {
    %cst = arith.constant 0.000000e+00 : f32
    %0 = vector.broadcast %cst : f32 to vector<18x18x16xf32>
    %c0 = arith.constant 0 : index
    %c0_0 = arith.constant 0 : index
    %c0_1 = arith.constant 0 : index
    %1 = vector.load %arg9[%c0, %c0_0, %c0_1] : memref<18x18x16xf32, #tpu.memory_space<vmem>>, vector<18x18x16xf32>
    tpu.vector_store %arg9[%c0, %c0_0, %c0_1], %0 {strides = array<i32>} : memref<18x18x16xf32, #tpu.memory_space<vmem>>, vector<18x18x16xf32>,
    %c0_2 = arith.constant 0 : index
    %c0_3 = arith.constant 0 : index
    %c0_4 = arith.constant 0 : index
    %2 = vector.load %arg1[%c0_2, %c0_3, %c0_4] : memref<1x256x8xf32, #tpu.memory_space<vmem>>, vector<1x256x8xf32>
    %3 = vector.shape_cast %2 : vector<1x256x8xf32> to vector<256x8xf32>
    %4 = vector.shape_cast %3 : vector<256x8xf32> to vector<16x16x8xf32>
    %c1 = arith.constant 1 : index
    %c1_5 = arith.constant 1 : index
    %c0_6 = arith.constant 0 : index
    %5 = vector.load %arg9[%c1, %c1_5, %c0_6] : memref<18x18x16xf32, #tpu.memory_space<vmem>>, vector<16x16x8xf32>
    tpu.vector_store %arg9[%c1, %c1_5, %c0_6], %4 {strides = array<i32>} : memref<18x18x16xf32, #tpu.memory_space<vmem>>, vector<16x16x8xf32>,
    %c0_7 = arith.constant 0 : index
    %c0_8 = arith.constant 0 : index
    %c0_9 = arith.constant 0 : index
    %6 = vector.load %arg9[%c0_7, %c0_8, %c0_9] : memref<18x18x16xf32, #tpu.memory_space<vmem>>, vector<16x16x8xf32>
    %7 = vector.shape_cast %6 : vector<16x16x8xf32> to vector<256x8xf32>
    %c0_10 = arith.constant 0 : index
    %c1_11 = arith.constant 1 : index
    %c0_12 = arith.constant 0 : index
    %8 = vector.load %arg9[%c0_10, %c1_11, %c0_12] : memref<18x18x16xf32, #tpu.memory_space<vmem>>, vector<16x16x8xf32>
    %9 = vector.shape_cast %8 : vector<16x16x8xf32> to vector<256x8xf32>
    %c0_13 = arith.constant 0 : index
    %c2 = arith.constant 2 : index
    %c0_14 = arith.constant 0 : index
    %10 = vector.load %arg9[%c0_13, %c2, %c0_14] : memref<18x18x16xf32, #tpu.memory_space<vmem>>, vector<16x16x8xf32>
    %11 = vector.shape_cast %10 : vector<16x16x8xf32> to vector<256x8xf32>
    %c1_15 = arith.constant 1 : index
    %c0_16 = arith.constant 0 : index
    %c0_17 = arith.constant 0 : index
    %12 = vector.load %arg9[%c1_15, %c0_16, %c0_17] : memref<18x18x16xf32, #tpu.memory_space<vmem>>, vector<16x16x8xf32>
    %13 = vector.shape_cast %12 : vector<16x16x8xf32> to vector<256x8xf32>
    %c1_18 = arith.constant 1 : index
    %c1_19 = arith.constant 1 : index
    %c0_20 = arith.constant 0 : index
    %14 = vector.load %arg9[%c1_18, %c1_19, %c0_20] : memref<18x18x16xf32, #tpu.memory_space<vmem>>, vector<16x16x8xf32>
    %15 = vector.shape_cast %14 : vector<16x16x8xf32> to vector<256x8xf32>
    %c1_21 = arith.constant 1 : index
    %c2_22 = arith.constant 2 : index
    %c0_23 = arith.constant 0 : index
    %16 = vector.load %arg9[%c1_21, %c2_22, %c0_23] : memref<18x18x16xf32, #tpu.memory_space<vmem>>, vector<16x16x8xf32>
    %17 = vector.shape_cast %16 : vector<16x16x8xf32> to vector<256x8xf32>
    %c2_24 = arith.constant 2 : index
    %c0_25 = arith.constant 0 : index
    %c0_26 = arith.constant 0 : index
    %18 = vector.load %arg9[%c2_24, %c0_25, %c0_26] : memref<18x18x16xf32, #tpu.memory_space<vmem>>, vector<16x16x8xf32>
    %19 = vector.shape_cast %18 : vector<16x16x8xf32> to vector<256x8xf32>
    %c2_27 = arith.constant 2 : index
    %c1_28 = arith.constant 1 : index
    %c0_29 = arith.constant 0 : index
    %20 = vector.load %arg9[%c2_27, %c1_28, %c0_29] : memref<18x18x16xf32, #tpu.memory_space<vmem>>, vector<16x16x8xf32>
    %21 = vector.shape_cast %20 : vector<16x16x8xf32> to vector<256x8xf32>
    %c2_30 = arith.constant 2 : index
    %c2_31 = arith.constant 2 : index
    %c0_32 = arith.constant 0 : index
    %22 = vector.load %arg9[%c2_30, %c2_31, %c0_32] : memref<18x18x16xf32, #tpu.memory_space<vmem>>, vector<16x16x8xf32>
    %23 = vector.shape_cast %22 : vector<16x16x8xf32> to vector<256x8xf32>
    %24 = tpu.concatenate %7, %9, %11, %13, %15, %17, %19, %21, %23 in 1 : vector<256x8xf32>, vector<256x8xf32>, vector<256x8xf32>, vector<256x8xf32>, vector<256x8xf32>, vector<256x8xf32>, vector<256x8xf32>, vector<256x8xf32>, vector<256x8xf32> -> vector<256x72xf32>
    %25 = arith.truncf %24 : vector<256x72xf32> to vector<256x72xbf16>
    %c0_33 = arith.constant 0 : index
    %c0_34 = arith.constant 0 : index
    %26 = vector.load %arg2[%c0_33, %c0_34] : memref<72x4xbf16, #tpu.memory_space<vmem>>, vector<72x4xbf16>
    %cst_35 = arith.constant dense<0.000000e+00> : vector<256x4xf32>
    %27 = tpu.matmul %25, %26, %cst_35 {dimension_numbers = #tpu.dot_dimension_numbers<[1], [0], [0], [1], [0, 0, 1, 1], [], []>} : vector<256x72xbf16>, vector<72x4xbf16>, vector<256x4xf32> -> vector<256x4xf32>
    %c0_36 = arith.constant 0 : index
    %c0_37 = arith.constant 0 : index
    %28 = vector.load %arg4[%c0_36, %c0_37] : memref<1x4xf32, #tpu.memory_space<vmem>>, vector<1x4xf32>
    %29 = vector.broadcast %28 : vector<1x4xf32> to vector<256x4xf32>
    %30 = arith.addf %27, %29 : vector<256x4xf32>
    %cst_38 = arith.constant 0.000000e+00 : f32
    %31 = vector.broadcast %cst_38 : f32 to vector<256x4xf32>
    %32 = arith.maximumf %30, %31 : vector<256x4xf32>
    %33 = vector.shape_cast %32 : vector<256x4xf32> to vector<16x16x4xf32>
    %c1_39 = arith.constant 1 : index
    %c1_40 = arith.constant 1 : index
    %c8 = arith.constant 8 : index
    %34 = vector.load %arg9[%c1_39, %c1_40, %c8] : memref<18x18x16xf32, #tpu.memory_space<vmem>>, vector<16x16x4xf32>
    tpu.vector_store %arg9[%c1_39, %c1_40, %c8], %33 {strides = array<i32>} : memref<18x18x16xf32, #tpu.memory_space<vmem>>, vector<16x16x4xf32>,
    %c0_41 = arith.constant 0 : index
    %c0_42 = arith.constant 0 : index
    %c0_43 = arith.constant 0 : index
    %35 = vector.load %arg9[%c0_41, %c0_42, %c0_43] : memref<18x18x16xf32, #tpu.memory_space<vmem>>, vector<16x16x12xf32>
    %36 = vector.shape_cast %35 : vector<16x16x12xf32> to vector<256x12xf32>
    %c0_44 = arith.constant 0 : index
    %c1_45 = arith.constant 1 : index
    %c0_46 = arith.constant 0 : index
    %37 = vector.load %arg9[%c0_44, %c1_45, %c0_46] : memref<18x18x16xf32, #tpu.memory_space<vmem>>, vector<16x16x12xf32>
    %38 = vector.shape_cast %37 : vector<16x16x12xf32> to vector<256x12xf32>
    %c0_47 = arith.constant 0 : index
    %c2_48 = arith.constant 2 : index
    %c0_49 = arith.constant 0 : index
    %39 = vector.load %arg9[%c0_47, %c2_48, %c0_49] : memref<18x18x16xf32, #tpu.memory_space<vmem>>, vector<16x16x12xf32>
    %40 = vector.shape_cast %39 : vector<16x16x12xf32> to vector<256x12xf32>
    %c1_50 = arith.constant 1 : index
    %c0_51 = arith.constant 0 : index
    %c0_52 = arith.constant 0 : index
    %41 = vector.load %arg9[%c1_50, %c0_51, %c0_52] : memref<18x18x16xf32, #tpu.memory_space<vmem>>, vector<16x16x12xf32>
    %42 = vector.shape_cast %41 : vector<16x16x12xf32> to vector<256x12xf32>
    %c1_53 = arith.constant 1 : index
    %c1_54 = arith.constant 1 : index
    %c0_55 = arith.constant 0 : index
    %43 = vector.load %arg9[%c1_53, %c1_54, %c0_55] : memref<18x18x16xf32, #tpu.memory_space<vmem>>, vector<16x16x12xf32>
    %44 = vector.shape_cast %43 : vector<16x16x12xf32> to vector<256x12xf32>
    %c1_56 = arith.constant 1 : index
    %c2_57 = arith.constant 2 : index
    %c0_58 = arith.constant 0 : index
    %45 = vector.load %arg9[%c1_56, %c2_57, %c0_58] : memref<18x18x16xf32, #tpu.memory_space<vmem>>, vector<16x16x12xf32>
    %46 = vector.shape_cast %45 : vector<16x16x12xf32> to vector<256x12xf32>
    %c2_59 = arith.constant 2 : index
    %c0_60 = arith.constant 0 : index
    %c0_61 = arith.constant 0 : index
    %47 = vector.load %arg9[%c2_59, %c0_60, %c0_61] : memref<18x18x16xf32, #tpu.memory_space<vmem>>, vector<16x16x12xf32>
    %48 = vector.shape_cast %47 : vector<16x16x12xf32> to vector<256x12xf32>
    %c2_62 = arith.constant 2 : index
    %c1_63 = arith.constant 1 : index
    %c0_64 = arith.constant 0 : index
    %49 = vector.load %arg9[%c2_62, %c1_63, %c0_64] : memref<18x18x16xf32, #tpu.memory_space<vmem>>, vector<16x16x12xf32>
    %50 = vector.shape_cast %49 : vector<16x16x12xf32> to vector<256x12xf32>
    %c2_65 = arith.constant 2 : index
    %c2_66 = arith.constant 2 : index
    %c0_67 = arith.constant 0 : index
    %51 = vector.load %arg9[%c2_65, %c2_66, %c0_67] : memref<18x18x16xf32, #tpu.memory_space<vmem>>, vector<16x16x12xf32>
    %52 = vector.shape_cast %51 : vector<16x16x12xf32> to vector<256x12xf32>
    %53 = tpu.concatenate %36, %38, %40, %42, %44, %46, %48, %50, %52 in 1 : vector<256x12xf32>, vector<256x12xf32>, vector<256x12xf32>, vector<256x12xf32>, vector<256x12xf32>, vector<256x12xf32>, vector<256x12xf32>, vector<256x12xf32>, vector<256x12xf32> -> vector<256x108xf32>
    %54 = arith.truncf %53 : vector<256x108xf32> to vector<256x108xbf16>
    %c0_68 = arith.constant 0 : index
    %c0_69 = arith.constant 0 : index
    %55 = vector.load %arg3[%c0_68, %c0_69] : memref<108x4xbf16, #tpu.memory_space<vmem>>, vector<108x4xbf16>
    %cst_70 = arith.constant dense<0.000000e+00> : vector<256x4xf32>
    %56 = tpu.matmul %54, %55, %cst_70 {dimension_numbers = #tpu.dot_dimension_numbers<[1], [0], [0], [1], [0, 0, 1, 1], [], []>} : vector<256x108xbf16>, vector<108x4xbf16>, vector<256x4xf32> -> vector<256x4xf32>
    %c0_71 = arith.constant 0 : index
    %c0_72 = arith.constant 0 : index
    %57 = vector.load %arg5[%c0_71, %c0_72] : memref<1x4xf32, #tpu.memory_space<vmem>>, vector<1x4xf32>
    %58 = vector.broadcast %57 : vector<1x4xf32> to vector<256x4xf32>
    %59 = arith.addf %56, %58 : vector<256x4xf32>
    %cst_73 = arith.constant 0.000000e+00 : f32
    %60 = vector.broadcast %cst_73 : f32 to vector<256x4xf32>
    %61 = arith.maximumf %59, %60 : vector<256x4xf32>
    %62 = vector.shape_cast %61 : vector<256x4xf32> to vector<16x16x4xf32>
    %c1_74 = arith.constant 1 : index
    %c1_75 = arith.constant 1 : index
    %c12 = arith.constant 12 : index
    %63 = vector.load %arg9[%c1_74, %c1_75, %c12] : memref<18x18x16xf32, #tpu.memory_space<vmem>>, vector<16x16x4xf32>
    tpu.vector_store %arg9[%c1_74, %c1_75, %c12], %62 {strides = array<i32>} : memref<18x18x16xf32, #tpu.memory_space<vmem>>, vector<16x16x4xf32>,
    %c1_76 = arith.constant 1 : index
    %c1_77 = arith.constant 1 : index
    %c0_78 = arith.constant 0 : index
    %64 = vector.load %arg9[%c1_76, %c1_77, %c0_78] : memref<18x18x16xf32, #tpu.memory_space<vmem>>, vector<16x16x16xf32>
    %65 = vector.shape_cast %64 : vector<16x16x16xf32> to vector<256x16xf32>
    %66 = arith.truncf %65 : vector<256x16xf32> to vector<256x16xbf16>
    %c0_79 = arith.constant 0 : index
    %c0_80 = arith.constant 0 : index
    %67 = vector.load %arg6[%c0_79, %c0_80] : memref<16x8xbf16, #tpu.memory_space<vmem>>, vector<16x8xbf16>
    %cst_81 = arith.constant dense<0.000000e+00> : vector<256x8xf32>
    %68 = tpu.matmul %66, %67, %cst_81 {dimension_numbers = #tpu.dot_dimension_numbers<[1], [0], [0], [1], [0, 0, 1, 1], [], []>} : vector<256x16xbf16>, vector<16x8xbf16>, vector<256x8xf32> -> vector<256x8xf32>
    %c0_82 = arith.constant 0 : index
    %c0_83 = arith.constant 0 : index
    %69 = vector.load %arg7[%c0_82, %c0_83] : memref<1x8xf32, #tpu.memory_space<vmem>>, vector<1x8xf32>
    %70 = vector.broadcast %69 : vector<1x8xf32> to vector<256x8xf32>
    %71 = arith.addf %68, %70 : vector<256x8xf32>
    %72 = arith.addf %71, %3 : vector<256x8xf32>
    %73 = vector.shape_cast %72 : vector<256x8xf32> to vector<1x256x8xf32>
    %c0_84 = arith.constant 0 : index
    %c0_85 = arith.constant 0 : index
    %c0_86 = arith.constant 0 : index
    %74 = vector.load %arg8[%c0_84, %c0_85, %c0_86] : memref<1x256x8xf32, #tpu.memory_space<vmem>>, vector<1x256x8xf32>
    tpu.vector_store %arg8[%c0_84, %c0_85, %c0_86], %73 {strides = array<i32>} : memref<1x256x8xf32, #tpu.memory_space<vmem>>, vector<1x256x8xf32>,
    return
  }
  func.func @transform_0(%arg0: i32) -> (i32, i32, i32) {
    %c0_i32 = arith.constant 0 : i32
    %c0_i32_0 = arith.constant 0 : i32
    %c0_i32_1 = arith.constant 0 : i32
    return %arg0, %c0_i32, %c0_i32_0 : i32, i32, i32
  }
  func.func @transform_1(%arg0: i32) -> (i32, i32) {
    %c0_i32 = arith.constant 0 : i32
    %c0_i32_0 = arith.constant 0 : i32
    %c0_i32_1 = arith.constant 0 : i32
    return %c0_i32, %c0_i32_0 : i32, i32
  }
  func.func @transform_2(%arg0: i32) -> (i32, i32) {
    %c0_i32 = arith.constant 0 : i32
    %c0_i32_0 = arith.constant 0 : i32
    %c0_i32_1 = arith.constant 0 : i32
    return %c0_i32, %c0_i32_0 : i32, i32
  }
  func.func @transform_3(%arg0: i32) -> (i32, i32) {
    %c0_i32 = arith.constant 0 : i32
    %c0_i32_0 = arith.constant 0 : i32
    %c0_i32_1 = arith.constant 0 : i32
    return %c0_i32, %c0_i32_0 : i32, i32
  }
  func.func @transform_4(%arg0: i32) -> (i32, i32) {
    %c0_i32 = arith.constant 0 : i32
    %c0_i32_0 = arith.constant 0 : i32
    %c0_i32_1 = arith.constant 0 : i32
    return %c0_i32, %c0_i32_0 : i32, i32
  }
  func.func @transform_5(%arg0: i32) -> (i32, i32) {
    %c0_i32 = arith.constant 0 : i32
    %c0_i32_0 = arith.constant 0 : i32
    %c0_i32_1 = arith.constant 0 : i32
    return %c0_i32, %c0_i32_0 : i32, i32
  }
  func.func @transform_6(%arg0: i32) -> (i32, i32) {
    %c0_i32 = arith.constant 0 : i32
    %c0_i32_0 = arith.constant 0 : i32
    %c0_i32_1 = arith.constant 0 : i32
    return %c0_i32, %c0_i32_0 : i32, i32
  }
  func.func @transform_7(%arg0: i32) -> (i32, i32, i32) {
    %c0_i32 = arith.constant 0 : i32
    %c0_i32_0 = arith.constant 0 : i32
    %c0_i32_1 = arith.constant 0 : i32
    return %arg0, %c0_i32, %c0_i32_0 : i32, i32, i32
  }
}

</mosaic_0001>

<llo_original>
// kernel: rdnet_forward.5
$region0: #{rdnet_forward.5}
  #allocation0 [shape = 'u32[]', space=smem, size = 0x4, offset = 0x4, fixed_abs, tag = 'smem constant byte address 0x4 - core index']
  #allocation1 [shape = 'u32[72,128]{1,0:T(1,128)}', space=vmem, size = 0x9000, scoped, tag = 'internal scratch']
  #allocation2 [shape = 'f32[18,18,8]{2,1,0:T(8,128)}', space=vmem, size = 0x36000, scoped, tag = 'scratch operand']
  %s0 = inlined_call_operand.vmem [shape: f32[2,256,8], index: 0, kind: input, shape index: {}]
  %s1 = inlined_call_operand.vmem [shape: f32[2,256,8], index: 1, kind: input, shape index: {}]
  %s2 = inlined_call_operand.vmem [shape: bf16[16,8], index: 2, kind: input, shape index: {}]
  %s3 = inlined_call_operand.vmem [shape: f32[1,8], index: 3, kind: input, shape index: {}]
  %s4 = inlined_call_operand.vmem [shape: bf16[72,8], index: 4, kind: input, shape index: {}]
  %s5 = inlined_call_operand.vmem [shape: f32[1,8], index: 5, kind: input, shape index: {}]
  %s6 = inlined_call_operand.vmem [shape: f32[2,256,8], index: 6, kind: output, shape index: {}]
  %s7 = sld [smem:[#allocation0]]
  $region57: #{rdnet_forward.5} parent=0
    _
  %s9 = ssub.s32 1, %s7
  %s10 = scalar_select 0, %s9, %s7
  loop: start=0, step=1, limit=4
  $region2: #{rdnet_forward.5} parent=0 // loop_pre_header
    _
  $region3: #{rdnet_forward.5} parent=0 // loop_header
    %s12 = sphi 0, %s16
    %p13 = scmp.ge.s32.totalorder %s12, 4
    %s22 = sphi 0, %s24
    %s25 = sphi 0, %s22
    %s26 = sphi 0, %s25
    %s42 = sphi 0, %s26
    %s48 = sphi 0, %s50
    %s51 = sphi 0, %s48
    %s52 = sphi 0, %s51
    %s68 = sphi 0, %s52
    %s72 = sphi 0, %s72
    %s74 = sphi 0, %s72
    %s75 = sphi 0, %s74
    %s89 = sphi 0, %s75
    %s93 = sphi 0, %s93
    %s95 = sphi 0, %s93
    %s96 = sphi 0, %s95
    %s110 = sphi 0, %s96
    %s114 = sphi 0, %s114
    %s116 = sphi 0, %s114
    %s117 = sphi 0, %s116
    %s131 = sphi 0, %s117
    %s135 = sphi 0, %s135
    %s137 = sphi 0, %s135
    %s138 = sphi 0, %s137
    %s152 = sphi 0, %s138
    %s158 = sphi 0, %s160
    %s161 = sphi 0, %s158
    %s162 = sphi 0, %s161
    %s178 = sphi 0, %s162
  $region4: #{rdnet_forward.5} parent=0 // loop_header_branch
    %15 = sbr.rel (%p13) target = $region8
  $region5: #{rdnet_forward.5} parent=0 // loop_body
    %s17 = ssub.s32 %s12, 1
    %s18 = ssub.s32 %s12, 2
    %s19 = sadd.s32 %s12, 1
    %s20 = ssub.s32 %s12, %s19
    %p21 = scmp.eq.s32.totalorder %s20, 0
    %s23 = sadd.s32 %s22, 1
    %s24 = scalar_select %p21, %s22, %s23
    %p27 = pneg %p21
    %p28 = scmp.eq.s32.totalorder %s12, 1
    %p29 = por %p27, %p28
    %p30 = scmp.ne.s32.totalorder %s22, %s25
    %p31 = scmp.eq.s32.totalorder %s12, 0
    %p32 = por %p30, %p31
    %p33 = scmp.ne.s32.totalorder %s22, %s25
    %p34 = scmp.eq.s32.totalorder %s17, 1
    %p35 = por %p33, %p34
    %p36 = scmp.ne.s32.totalorder %s25, %s26
    %p37 = scmp.eq.s32.totalorder %s17, 0
    %p38 = por %p36, %p37
    %p39 = scmp.ne.s32.totalorder %s25, %s26
    %p40 = scmp.eq.s32.totalorder %s18, 1
    %p41 = por %p39, %p40
    %p43 = scmp.ne.s32.totalorder %s26, %s42
    %p44 = scmp.eq.s32.totalorder %s18, 0
    %p45 = por %p43, %p44
    %s46 = ssub.s32 %s12, %s19
    %p47 = scmp.eq.s32.totalorder %s46, 0
    %s49 = sadd.s32 %s48, 1
    %s50 = scalar_select %p47, %s48, %s49
    %p53 = pneg %p47
    %p54 = scmp.eq.s32.totalorder %s12, 1
    %p55 = por %p53, %p54
    %p56 = scmp.ne.s32.totalorder %s48, %s51
    %p57 = scmp.eq.s32.totalorder %s12, 0
    %p58 = por %p56, %p57
    %p59 = scmp.ne.s32.totalorder %s48, %s51
    %p60 = scmp.eq.s32.totalorder %s17, 1
    %p61 = por %p59, %p60
    %p62 = scmp.ne.s32.totalorder %s51, %s52
    %p63 = scmp.eq.s32.totalorder %s17, 0
    %p64 = por %p62, %p63
    %p65 = scmp.ne.s32.totalorder %s51, %s52
    %p66 = scmp.eq.s32.totalorder %s18, 1
    %p67 = por %p65, %p66
    %p69 = scmp.ne.s32.totalorder %s52, %s68
    %p70 = scmp.eq.s32.totalorder %s18, 0
    %p71 = por %p69, %p70
    %s73 = sadd.s32 %s72, 1
    %p76 = scmp.eq.s32.totalorder %s12, 1
    %p77 = scmp.ne.s32.totalorder %s72, %s74
    %p78 = scmp.eq.s32.totalorder %s12, 0
    %p79 = por %p77, %p78
    %p80 = scmp.ne.s32.totalorder %s72, %s74
    %p81 = scmp.eq.s32.totalorder %s17, 1
    %p82 = por %p80, %p81
    %p83 = scmp.ne.s32.totalorder %s74, %s75
    %p84 = scmp.eq.s32.totalorder %s17, 0
    %p85 = por %p83, %p84
    %p86 = scmp.ne.s32.totalorder %s74, %s75
    %p87 = scmp.eq.s32.totalorder %s18, 1
    %p88 = por %p86, %p87
    %p90 = scmp.ne.s32.totalorder %s75, %s89
    %p91 = scmp.eq.s32.totalorder %s18, 0
    %p92 = por %p90, %p91
    %s94 = sadd.s32 %s93, 1
    %p97 = scmp.eq.s32.totalorder %s12, 1
    %p98 = scmp.ne.s32.totalorder %s93, %s95
    %p99 = scmp.eq.s32.totalorder %s12, 0
    %p100 = por %p98, %p99
    %p101 = scmp.ne.s32.totalorder %s93, %s95
    %p102 = scmp.eq.s32.totalorder %s17, 1
    %p103 = por %p101, %p102
    %p104 = scmp.ne.s32.totalorder %s95, %s96
    %p105 = scmp.eq.s32.totalorder %s17, 0
    %p106 = por %p104, %p105
    %p107 = scmp.ne.s32.totalorder %s95, %s96
    %p108 = scmp.eq.s32.totalorder %s18, 1
    %p109 = por %p107, %p108
    %p111 = scmp.ne.s32.totalorder %s96, %s110
    %p112 = scmp.eq.s32.totalorder %s18, 0
    %p113 = por %p111, %p112
    %s115 = sadd.s32 %s114, 1
    %p118 = scmp.eq.s32.totalorder %s12, 1
    %p119 = scmp.ne.s32.totalorder %s114, %s116
    %p120 = scmp.eq.s32.totalorder %s12, 0
    %p121 = por %p119, %p120
    %p122 = scmp.ne.s32.totalorder %s114, %s116
    %p123 = scmp.eq.s32.totalorder %s17, 1
    %p124 = por %p122, %p123
    %p125 = scmp.ne.s32.totalorder %s116, %s117
    %p126 = scmp.eq.s32.totalorder %s17, 0
    %p127 = por %p125, %p126
    %p128 = scmp.ne.s32.totalorder %s116, %s117
    %p129 = scmp.eq.s32.totalorder %s18, 1
    %p130 = por %p128, %p129
    %p132 = scmp.ne.s32.totalorder %s117, %s131
    %p133 = scmp.eq.s32.totalorder %s18, 0
    %p134 = por %p132, %p133
    %s136 = sadd.s32 %s135, 1
    %p139 = scmp.eq.s32.totalorder %s12, 1
    %p140 = scmp.ne.s32.totalorder %s135, %s137
    %p141 = scmp.eq.s32.totalorder %s12, 0
    %p142 = por %p140, %p141
    %p143 = scmp.ne.s32.totalorder %s135, %s137
    %p144 = scmp.eq.s32.totalorder %s17, 1
    %p145 = por %p143, %p144
    %p146 = scmp.ne.s32.totalorder %s137, %s138
    %p147 = scmp.eq.s32.totalorder %s17, 0
    %p148 = por %p146, %p147
    %p149 = scmp.ne.s32.totalorder %s137, %s138
    %p150 = scmp.eq.s32.totalorder %s18, 1
    %p151 = por %p149, %p150
    %p153 = scmp.ne.s32.totalorder %s138, %s152
    %p154 = scmp.eq.s32.totalorder %s18, 0
    %p155 = por %p153, %p154
    %s156 = ssub.s32 %s12, %s19
    %p157 = scmp.eq.s32.totalorder %s156, 0
    %s159 = sadd.s32 %s158, 1
    %s160 = scalar_select %p157, %s158, %s159
    %p163 = pneg %p157
    %p164 = scmp.eq.s32.totalorder %s12, 1
    %p165 = por %p163, %p164
    %p166 = scmp.ne.s32.totalorder %s158, %s161
    %p167 = scmp.eq.s32.totalorder %s12, 0
    %p168 = por %p166, %p167
    %p169 = scmp.ne.s32.totalorder %s158, %s161
    %p170 = scmp.eq.s32.totalorder %s17, 1
    %p171 = por %p169, %p170
    %p172 = scmp.ne.s32.totalorder %s161, %s162
    %p173 = scmp.eq.s32.totalorder %s17, 0
    %p174 = por %p172, %p173
    %p175 = scmp.ne.s32.totalorder %s161, %s162
    %p176 = scmp.eq.s32.totalorder %s18, 1
    %p177 = por %p175, %p176
    %p179 = scmp.ne.s32.totalorder %s162, %s178
    %p180 = scmp.eq.s32.totalorder %s18, 0
    %p181 = por %p179, %p180
    %p182 = scmp.le.s32.totalorder 1, %s12
    %p183 = scmp.lt.s32.totalorder %s12, 3
    %p184 = pnand %p182, %p183
    %p185 = pneg %p184
    // Predicated region
    $region9: #{rdnet_forward.5} parent=5 // pred_check
      _
    $region10: #{rdnet_forward.5} parent=5 // pred_check_branch
      %187 = sbr.rel (%p184) target = $region12
    $region11: #{rdnet_forward.5} parent=5 // pred_region
      %s188 = ssub.s32 %s12, 1
      // Predicated region
      $region13: #{rdnet_forward.5} parent=11 // pred_check
        %p189 = pneg %p85
      $region14: #{rdnet_forward.5} parent=11 // pred_check_branch
        %191 = sbr.rel (%p189) target = $region16
      $region15: #{rdnet_forward.5} parent=11 // pred_region
        _
      $region16: #{rdnet_forward.5} parent=11 // pred_fallthru
        _
      // Predicated region
      $region17: #{rdnet_forward.5} parent=11 // pred_check
        %p192 = pneg %p106
      $region18: #{rdnet_forward.5} parent=11 // pred_check_branch
        %194 = sbr.rel (%p192) target = $region20
      $region19: #{rdnet_forward.5} parent=11 // pred_region
        _
      $region20: #{rdnet_forward.5} parent=11 // pred_fallthru
        _
      // Predicated region
      $region21: #{rdnet_forward.5} parent=11 // pred_check
        %p195 = pneg %p127
      $region22: #{rdnet_forward.5} parent=11 // pred_check_branch
        %197 = sbr.rel (%p195) target = $region24
      $region23: #{rdnet_forward.5} parent=11 // pred_region
        _
      $region24: #{rdnet_forward.5} parent=11 // pred_fallthru
        _
      // Predicated region
      $region25: #{rdnet_forward.5} parent=11 // pred_check
        %p198 = pneg %p148
      $region26: #{rdnet_forward.5} parent=11 // pred_check_branch
        %200 = sbr.rel (%p198) target = $region28
      $region27: #{rdnet_forward.5} parent=11 // pred_region
        _
      $region28: #{rdnet_forward.5} parent=11 // pred_fallthru
        _
    $region12: #{rdnet_forward.5} parent=5 // pred_fallthru
      _
    %p201 = scmp.lt.s32.totalorder %s12, 2
    // Predicated region
    $region29: #{rdnet_forward.5} parent=5 // pred_check
      %p202 = pneg %p201
    $region30: #{rdnet_forward.5} parent=5 // pred_check_branch
      %204 = sbr.rel (%p202) target = $region32
    $region31: #{rdnet_forward.5} parent=5 // pred_region
      // Predicated region
      $region33: #{rdnet_forward.5} parent=31 // pred_check
        %p205 = pneg %p32
      $region34: #{rdnet_forward.5} parent=31 // pred_check_branch
        %207 = sbr.rel (%p205) target = $region36
      $region35: #{rdnet_forward.5} parent=31 // pred_region
        %p208 = scmp.lt.s32.totalorder %s12, 1
        %s209 = scalar_select %p208, %s12, 1
        %s210 = smul.addr %s209, 32
        %s211 = smul.addr %s210, 8
        %s212 = scalar_lea.vmem %s0, %s211
      $region36: #{rdnet_forward.5} parent=31 // pred_fallthru
        _
      // Predicated region
      $region37: #{rdnet_forward.5} parent=31 // pred_check
        %p213 = pneg %p58
      $region38: #{rdnet_forward.5} parent=31 // pred_check_branch
        %215 = sbr.rel (%p213) target = $region40
      $region39: #{rdnet_forward.5} parent=31 // pred_region
        %p216 = scmp.lt.s32.totalorder %s12, 1
        %s217 = scalar_select %p216, %s12, 1
        %s218 = smul.addr %s217, 32
        %s219 = smul.addr %s218, 8
        %s220 = scalar_lea.vmem %s1, %s219
      $region40: #{rdnet_forward.5} parent=31 // pred_fallthru
        _
    $region32: #{rdnet_forward.5} parent=5 // pred_fallthru
      _
    %p221 = scmp.le.s32.totalorder 1, %s12
    %p222 = scmp.lt.s32.totalorder %s12, 3
    %p223 = pnand %p221, %p222
    %p224 = pneg %p223
    // Predicated region
    $region41: #{rdnet_forward.5} parent=5 // pred_check
      _
    $region42: #{rdnet_forward.5} parent=5 // pred_check_branch
      %226 = sbr.rel (%p223) target = $region44
    $region43: #{rdnet_forward.5} parent=5 // pred_region
      %s227 = ssub.s32 %s12, 1
      %p228 = scmp.lt.s32.totalorder %s17, 1
      %s229 = scalar_select %p228, %s17, 1
      %s230 = smul.addr %s229, 32
      %s231 = smul.addr %s230, 8
      %s232 = scalar_lea.vmem %s0, %s231
      %p233 = pneg %p38
      %p234 = pneg %p35
      %p235 = scmp.lt.s32.totalorder %s17, 1
      %s236 = scalar_select %p235, %s17, 1
      %s237 = smul.addr %s236, 32
      %s238 = smul.addr %s237, 8
      %s239 = scalar_lea.vmem %s1, %s238
      %p240 = pneg %p64
      %p241 = pneg %p61
      %p242 = pneg %p85
      %p243 = pneg %p82
      %p244 = pneg %p106
      %p245 = pneg %p103
      %p246 = pneg %p127
      %p247 = pneg %p124
      %p248 = pneg %p148
      %p249 = pneg %p145
      %p250 = pneg %p174
      %p251 = pneg %p171
      %p252 = scmp.lt.s32.totalorder %s17, 1
      %s253 = scalar_select %p252, %s17, 1
      %s254 = smul.addr %s253, 32
      %s255 = smul.addr %s254, 8
      %s256 = scalar_lea.vmem %s6, %s255
      %p257 = scmp.lt.s32.totalorder %s17, 1
      %s258 = scalar_select %p257, %s17, 1
      %s259 = smul.addr %s258, 32
      %s260 = smul.addr %s259, 8
      %s261 = scalar_lea.vmem %s0, %s260
      %p262 = scmp.lt.s32.totalorder %s17, 1
      %s263 = scalar_select %p262, %s17, 1
      %s264 = smul.addr %s263, 32
      %s265 = smul.addr %s264, 8
      %s266 = scalar_lea.vmem %s1, %s265
      %p267 = scmp.lt.s32.totalorder %s17, 1
      %s268 = scalar_select %p267, %s17, 1
      %s269 = smul.addr %s268, 32
      %s270 = smul.addr %s269, 8
      %s271 = scalar_lea.vmem %s6, %s270
      %v273 = vld [vmem:[%s261] sm:$0xff]
      %v274 = vld [vmem:[%s261 + $0x8] sm:$0xff]
      %v275 = vld [vmem:[%s261 + $0x10] sm:$0xff]
      %v276 = vld [vmem:[%s261 + $0x18] sm:$0xff]
      %v277 = vld [vmem:[%s261 + $0x20] sm:$0xff]
      %v278 = vld [vmem:[%s261 + $0x28] sm:$0xff]
      %v279 = vld [vmem:[%s261 + $0x30] sm:$0xff]
      %v280 = vld [vmem:[%s261 + $0x38] sm:$0xff]
      %v281 = vld [vmem:[%s261 + $0x40] sm:$0xff]
      %v282 = vld [vmem:[%s261 + $0x48] sm:$0xff]
      %v283 = vld [vmem:[%s261 + $0x50] sm:$0xff]
      %v284 = vld [vmem:[%s261 + $0x58] sm:$0xff]
      %v285 = vld [vmem:[%s261 + $0x60] sm:$0xff]
      %v286 = vld [vmem:[%s261 + $0x68] sm:$0xff]
      %v287 = vld [vmem:[%s261 + $0x70] sm:$0xff]
      %v288 = vld [vmem:[%s261 + $0x78] sm:$0xff]
      %v289 = vld [vmem:[%s261 + $0x80] sm:$0xff]
      %v290 = vld [vmem:[%s261 + $0x88] sm:$0xff]
      %v291 = vld [vmem:[%s261 + $0x90] sm:$0xff]
      %v292 = vld [vmem:[%s261 + $0x98] sm:$0xff]
      %v293 = vld [vmem:[%s261 + $0xa0] sm:$0xff]
      %v294 = vld [vmem:[%s261 + $0xa8] sm:$0xff]
      %v295 = vld [vmem:[%s261 + $0xb0] sm:$0xff]
      %v296 = vld [vmem:[%s261 + $0xb8] sm:$0xff]
      %v297 = vld [vmem:[%s261 + $0xc0] sm:$0xff]
      %v298 = vld [vmem:[%s261 + $0xc8] sm:$0xff]
      %v299 = vld [vmem:[%s261 + $0xd0] sm:$0xff]
      %v300 = vld [vmem:[%s261 + $0xd8] sm:$0xff]
      %v301 = vld [vmem:[%s261 + $0xe0] sm:$0xff]
      %v302 = vld [vmem:[%s261 + $0xe8] sm:$0xff]
      %v303 = vld [vmem:[%s261 + $0xf0] sm:$0xff]
      %v304 = vld [vmem:[%s261 + $0xf8] sm:$0xff]
      %v305 = vld [vmem:[%s266] sm:$0xff]
      %v306 = vld [vmem:[%s266 + $0x8] sm:$0xff]
      %v307 = vld [vmem:[%s266 + $0x10] sm:$0xff]
      %v308 = vld [vmem:[%s266 + $0x18] sm:$0xff]
      %v309 = vld [vmem:[%s266 + $0x20] sm:$0xff]
      %v310 = vld [vmem:[%s266 + $0x28] sm:$0xff]
      %v311 = vld [vmem:[%s266 + $0x30] sm:$0xff]
      %v312 = vld [vmem:[%s266 + $0x38] sm:$0xff]
      %v313 = vld [vmem:[%s266 + $0x40] sm:$0xff]
      %v314 = vld [vmem:[%s266 + $0x48] sm:$0xff]
      %v315 = vld [vmem:[%s266 + $0x50] sm:$0xff]
      %v316 = vld [vmem:[%s266 + $0x58] sm:$0xff]
      %v317 = vld [vmem:[%s266 + $0x60] sm:$0xff]
      %v318 = vld [vmem:[%s266 + $0x68] sm:$0xff]
      %v319 = vld [vmem:[%s266 + $0x70] sm:$0xff]
      %v320 = vld [vmem:[%s266 + $0x78] sm:$0xff]
      %v321 = vld [vmem:[%s266 + $0x80] sm:$0xff]
      %v322 = vld [vmem:[%s266 + $0x88] sm:$0xff]
      %v323 = vld [vmem:[%s266 + $0x90] sm:$0xff]
      %v324 = vld [vmem:[%s266 + $0x98] sm:$0xff]
      %v325 = vld [vmem:[%s266 + $0xa0] sm:$0xff]
      %v326 = vld [vmem:[%s266 + $0xa8] sm:$0xff]
      %v327 = vld [vmem:[%s266 + $0xb0] sm:$0xff]
      %v328 = vld [vmem:[%s266 + $0xb8] sm:$0xff]
      %v329 = vld [vmem:[%s266 + $0xc0] sm:$0xff]
      %v330 = vld [vmem:[%s266 + $0xc8] sm:$0xff]
      %v331 = vld [vmem:[%s266 + $0xd0] sm:$0xff]
      %v332 = vld [vmem:[%s266 + $0xd8] sm:$0xff]
      %v333 = vld [vmem:[%s266 + $0xe0] sm:$0xff]
      %v334 = vld [vmem:[%s266 + $0xe8] sm:$0xff]
      %v335 = vld [vmem:[%s266 + $0xf0] sm:$0xff]
      %v336 = vld [vmem:[%s266 + $0xf8] sm:$0xff]
      %369 = vrot.lane.b32.xlu0 %v305, 8
      %v370 = vpop.permute.xlu0 %369
      %371 = vrot.lane.b32.xlu0 %v306, 8
      %v372 = vpop.permute.xlu0 %371
      %373 = vrot.lane.b32.xlu0 %v307, 8
      %v374 = vpop.permute.xlu0 %373
      %375 = vrot.lane.b32.xlu0 %v308, 8
      %v376 = vpop.permute.xlu0 %375
      %377 = vrot.lane.b32.xlu0 %v309, 8
      %v378 = vpop.permute.xlu0 %377
      %379 = vrot.lane.b32.xlu0 %v310, 8
      %v380 = vpop.permute.xlu0 %379
      %381 = vrot.lane.b32.xlu0 %v311, 8
      %v382 = vpop.permute.xlu0 %381
      %383 = vrot.lane.b32.xlu0 %v312, 8
      %v384 = vpop.permute.xlu0 %383
      %385 = vrot.lane.b32.xlu0 %v313, 8
      %v386 = vpop.permute.xlu0 %385
      %387 = vrot.lane.b32.xlu0 %v314, 8
      %v388 = vpop.permute.xlu0 %387
      %389 = vrot.lane.b32.xlu0 %v315, 8
      %v390 = vpop.permute.xlu0 %389
      %391 = vrot.lane.b32.xlu0 %v316, 8
      %v392 = vpop.permute.xlu0 %391
      %393 = vrot.lane.b32.xlu0 %v317, 8
      %v394 = vpop.permute.xlu0 %393
      %395 = vrot.lane.b32.xlu0 %v318, 8
      %v396 = vpop.permute.xlu0 %395
      %397 = vrot.lane.b32.xlu0 %v319, 8
      %v398 = vpop.permute.xlu0 %397
      %399 = vrot.lane.b32.xlu0 %v320, 8
      %v400 = vpop.permute.xlu0 %399
      %401 = vrot.lane.b32.xlu0 %v321, 8
      %v402 = vpop.permute.xlu0 %401
      %403 = vrot.lane.b32.xlu0 %v322, 8
      %v404 = vpop.permute.xlu0 %403
      %405 = vrot.lane.b32.xlu0 %v323, 8
      %v406 = vpop.permute.xlu0 %405
      %407 = vrot.lane.b32.xlu0 %v324, 8
      %v408 = vpop.permute.xlu0 %407
      %409 = vrot.lane.b32.xlu0 %v325, 8
      %v410 = vpop.permute.xlu0 %409
      %411 = vrot.lane.b32.xlu0 %v326, 8
      %v412 = vpop.permute.xlu0 %411
      %413 = vrot.lane.b32.xlu0 %v327, 8
      %v414 = vpop.permute.xlu0 %413
      %415 = vrot.lane.b32.xlu0 %v328, 8
      %v416 = vpop.permute.xlu0 %415
      %417 = vrot.lane.b32.xlu0 %v329, 8
      %v418 = vpop.permute.xlu0 %417
      %419 = vrot.lane.b32.xlu0 %v330, 8
      %v420 = vpop.permute.xlu0 %419
      %421 = vrot.lane.b32.xlu0 %v331, 8
      %v422 = vpop.permute.xlu0 %421
      %423 = vrot.lane.b32.xlu0 %v332, 8
      %v424 = vpop.permute.xlu0 %423
      %425 = vrot.lane.b32.xlu0 %v333, 8
      %v426 = vpop.permute.xlu0 %425
      %427 = vrot.lane.b32.xlu0 %v334, 8
      %v428 = vpop.permute.xlu0 %427
      %429 = vrot.lane.b32.xlu0 %v335, 8
      %v430 = vpop.permute.xlu0 %429
      %431 = vrot.lane.b32.xlu0 %v336, 8
      %v432 = vpop.permute.xlu0 %431
      %vm465 = vcmask 64512
      %v466 = vsel %vm465, %v273, %v370
      %v467 = vsel %vm465, %v274, %v372
      %v468 = vsel %vm465, %v275, %v374
      %v469 = vsel %vm465, %v276, %v376
      %v470 = vsel %vm465, %v277, %v378
      %v471 = vsel %vm465, %v278, %v380
      %v472 = vsel %vm465, %v279, %v382
      %v473 = vsel %vm465, %v280, %v384
      %v474 = vsel %vm465, %v281, %v386
      %v475 = vsel %vm465, %v282, %v388
      %v476 = vsel %vm465, %v283, %v390
      %v477 = vsel %vm465, %v284, %v392
      %v478 = vsel %vm465, %v285, %v394
      %v479 = vsel %vm465, %v286, %v396
      %v480 = vsel %vm465, %v287, %v398
      %v481 = vsel %vm465, %v288, %v400
      %v482 = vsel %vm465, %v289, %v402
      %v483 = vsel %vm465, %v290, %v404
      %v484 = vsel %vm465, %v291, %v406
      %v485 = vsel %vm465, %v292, %v408
      %v486 = vsel %vm465, %v293, %v410
      %v487 = vsel %vm465, %v294, %v412
      %v488 = vsel %vm465, %v295, %v414
      %v489 = vsel %vm465, %v296, %v416
      %v490 = vsel %vm465, %v297, %v418
      %v491 = vsel %vm465, %v298, %v420
      %v492 = vsel %vm465, %v299, %v422
      %v493 = vsel %vm465, %v300, %v424
      %v494 = vsel %vm465, %v301, %v426
      %v495 = vsel %vm465, %v302, %v428
      %v496 = vsel %vm465, %v303, %v430
      %v497 = vsel %vm465, %v304, %v432
      %v498 = vpack.c.bf16 %v467, %v466
      %v499 = vpack.c.bf16 %v469, %v468
      %v500 = vpack.c.bf16 %v471, %v470
      %v501 = vpack.c.bf16 %v473, %v472
      %v502 = vpack.c.bf16 %v475, %v474
      %v503 = vpack.c.bf16 %v477, %v476
      %v504 = vpack.c.bf16 %v479, %v478
      %v505 = vpack.c.bf16 %v481, %v480
      %v506 = vpack.c.bf16 %v483, %v482
      %v507 = vpack.c.bf16 %v485, %v484
      %v508 = vpack.c.bf16 %v487, %v486
      %v509 = vpack.c.bf16 %v489, %v488
      %v510 = vpack.c.bf16 %v491, %v490
      %v511 = vpack.c.bf16 %v493, %v492
      %v512 = vpack.c.bf16 %v495, %v494
      %v513 = vpack.c.bf16 %v497, %v496
      %v514 = vld [vmem:[%s2] sm:$0xf]
      %v515 = vld [vmem:[%s2 + $0x4] sm:$0xf]
      %v516 = vld [vmem:[%s3] sm:$0x1]
      %v518 = vperm.slane %v516, 0
      %v522 = vunpack.c.l.b16 %v514
      %v523 = vunpack.c.l.b16 %v515
      %v524 = vpack.c.b16 %v523, %v522
      %vm526 = vcmask 130048
      %v528 = vsel %vm526, %v498, 0
      %v531 = vsel %vm526, %v499, 0
      %v534 = vsel %vm526, %v500, 0
      %v537 = vsel %vm526, %v501, 0
      %v540 = vsel %vm526, %v502, 0
      %v543 = vsel %vm526, %v503, 0
      %v546 = vsel %vm526, %v504, 0
      %v549 = vsel %vm526, %v505, 0
      %v552 = vsel %vm526, %v506, 0
      %v555 = vsel %vm526, %v507, 0
      %v558 = vsel %vm526, %v508, 0
      %v561 = vsel %vm526, %v509, 0
      %v564 = vsel %vm526, %v510, 0
      %v567 = vsel %vm526, %v511, 0
      %v570 = vsel %vm526, %v512, 0
      %v573 = vsel %vm526, %v513, 0
      %575 = vmatpush.bf16.msra.mxu0 0
      %576 = vmatpush.bf16.msra.mxu0 0
      %577 = vmatpush.bf16.msra.mxu0 0
      %578 = vmatpush.bf16.msra.mxu0 0
      %579 = vmatpush.bf16.msra.mxu0 0
      %580 = vmatpush.bf16.msra.mxu0 0
      %581 = vmatpush.bf16.msra.mxu0 0
      %582 = vmatpush.bf16.msra.mxu0 %v524
      %583 = vmatmul.bf16.gmra.mxu0 %v528
      %v584 = vpop.f32.mrf.mxu0
      %v585 = vadd.f32 %v518, %v584
      %v586 = vpop.f32.mrf.mxu0
      %v587 = vadd.f32 %v518, %v586
      %588 = vmatmul.bf16.gmra.mxu0 %v531
      %v589 = vpop.f32.mrf.mxu0
      %v590 = vadd.f32 %v518, %v589
      %v591 = vpop.f32.mrf.mxu0
      %v592 = vadd.f32 %v518, %v591
      %593 = vmatmul.bf16.gmra.mxu0 %v534
      %v594 = vpop.f32.mrf.mxu0
      %v595 = vadd.f32 %v518, %v594
      %v596 = vpop.f32.mrf.mxu0
      %v597 = vadd.f32 %v518, %v596
      %598 = vmatmul.bf16.gmra.mxu0 %v537
      %v599 = vpop.f32.mrf.mxu0
      %v600 = vadd.f32 %v518, %v599
      %v601 = vpop.f32.mrf.mxu0
      %v602 = vadd.f32 %v518, %v601
      %603 = vmatmul.bf16.gmra.mxu0 %v540
      %v604 = vpop.f32.mrf.mxu0
      %v605 = vadd.f32 %v518, %v604
      %v606 = vpop.f32.mrf.mxu0
      %v607 = vadd.f32 %v518, %v606
      %608 = vmatmul.bf16.gmra.mxu0 %v543
      %v609 = vpop.f32.mrf.mxu0
      %v610 = vadd.f32 %v518, %v609
      %v611 = vpop.f32.mrf.mxu0
      %v612 = vadd.f32 %v518, %v611
      %613 = vmatmul.bf16.gmra.mxu0 %v546
      %v614 = vpop.f32.mrf.mxu0
      %v615 = vadd.f32 %v518, %v614
      %v616 = vpop.f32.mrf.mxu0
      %v617 = vadd.f32 %v518, %v616
      %618 = vmatmul.bf16.gmra.mxu0 %v549
      %v619 = vpop.f32.mrf.mxu0
      %v620 = vadd.f32 %v518, %v619
      %v621 = vpop.f32.mrf.mxu0
      %v622 = vadd.f32 %v518, %v621
      %623 = vmatmul.bf16.gmra.mxu0 %v552
      %v624 = vpop.f32.mrf.mxu0
      %v625 = vadd.f32 %v518, %v624
      %v626 = vpop.f32.mrf.mxu0
      %v627 = vadd.f32 %v518, %v626
      %628 = vmatmul.bf16.gmra.mxu0 %v555
      %v629 = vpop.f32.mrf.mxu0
      %v630 = vadd.f32 %v518, %v629
      %v631 = vpop.f32.mrf.mxu0
      %v632 = vadd.f32 %v518, %v631
      %633 = vmatmul.bf16.gmra.mxu0 %v558
      %v634 = vpop.f32.mrf.mxu0
      %v635 = vadd.f32 %v518, %v634
      %v636 = vpop.f32.mrf.mxu0
      %v637 = vadd.f32 %v518, %v636
      %638 = vmatmul.bf16.gmra.mxu0 %v561
      %v639 = vpop.f32.mrf.mxu0
      %v640 = vadd.f32 %v518, %v639
      %v641 = vpop.f32.mrf.mxu0
      %v642 = vadd.f32 %v518, %v641
      %643 = vmatmul.bf16.gmra.mxu0 %v564
      %v644 = vpop.f32.mrf.mxu0
      %v645 = vadd.f32 %v518, %v644
      %v646 = vpop.f32.mrf.mxu0
      %v647 = vadd.f32 %v518, %v646
      %648 = vmatmul.bf16.gmra.mxu0 %v567
      %v649 = vpop.f32.mrf.mxu0
      %v650 = vadd.f32 %v518, %v649
      %v651 = vpop.f32.mrf.mxu0
      %v652 = vadd.f32 %v518, %v651
      %653 = vmatmul.bf16.gmra.mxu0 %v570
      %v654 = vpop.f32.mrf.mxu0
      %v655 = vadd.f32 %v518, %v654
      %v656 = vpop.f32.mrf.mxu0
      %v657 = vadd.f32 %v518, %v656
      %658 = vmatmul.bf16.gmra.mxu0 %v573
      %v659 = vpop.f32.mrf.mxu0
      %v660 = vadd.f32 %v518, %v659
      %v661 = vpop.f32.mrf.mxu0
      %v662 = vadd.f32 %v518, %v661
      %663 = vdwg.mxu0
      %664 = vst.msk [vmem:[#allocation2] sm:$0xff] %vm465, 0.0
      %665 = vst.msk [vmem:[#allocation2 + $0x8] sm:$0xff] %vm465, 0.0
      %vm666 = vcmask 58368
      %667 = vst.msk [vmem:[#allocation2 + $0x10] sm:$0x3] %vm666, 0.0
      %668 = vst.msk [vmem:[#allocation2 + $0x18] sm:$0xff] %vm465, 0.0
      %669 = vst.msk [vmem:[#allocation2 + $0x20] sm:$0xff] %vm465, 0.0
      %670 = vst.msk [vmem:[#allocation2 + $0x28] sm:$0x3] %vm666, 0.0
      %671 = vst.msk [vmem:[#allocation2 + $0x30] sm:$0xff] %vm465, 0.0
      %672 = vst.msk [vmem:[#allocation2 + $0x38] sm:$0xff] %vm465, 0.0
      %673 = vst.msk [vmem:[#allocation2 + $0x40] sm:$0x3] %vm666, 0.0
      %674 = vst.msk [vmem:[#allocation2 + $0x48] sm:$0xff] %vm465, 0.0
      %675 = vst.msk [vmem:[#allocation2 + $0x50] sm:$0xff] %vm465, 0.0
      %676 = vst.msk [vmem:[#allocation2 + $0x58] sm:$0x3] %vm666, 0.0
      %677 = vst.msk [vmem:[#allocation2 + $0x60] sm:$0xff] %vm465, 0.0
      %678 = vst.msk [vmem:[#allocation2 + $0x68] sm:$0xff] %vm465, 0.0
      %679 = vst.msk [vmem:[#allocation2 + $0x70] sm:$0x3] %vm666, 0.0
      %680 = vst.msk [vmem:[#allocation2 + $0x78] sm:$0xff] %vm465, 0.0
      %681 = vst.msk [vmem:[#allocation2 + $0x80] sm:$0xff] %vm465, 0.0
      %682 = vst.msk [vmem:[#allocation2 + $0x88] sm:$0x3] %vm666, 0.0
      %683 = vst.msk [vmem:[#allocation2 + $0x90] sm:$0xff] %vm465, 0.0
      %684 = vst.msk [vmem:[#allocation2 + $0x98] sm:$0xff] %vm465, 0.0
      %685 = vst.msk [vmem:[#allocation2 + $0xa0] sm:$0x3] %vm666, 0.0
      %686 = vst.msk [vmem:[#allocation2 + $0xa8] sm:$0xff] %vm465, 0.0
      %687 = vst.msk [vmem:[#allocation2 + $0xb0] sm:$0xff] %vm465, 0.0
      %688 = vst.msk [vmem:[#allocation2 + $0xb8] sm:$0x3] %vm666, 0.0
      %689 = vst.msk [vmem:[#allocation2 + $0xc0] sm:$0xff] %vm465, 0.0
      %690 = vst.msk [vmem:[#allocation2 + $0xc8] sm:$0xff] %vm465, 0.0
      %691 = vst.msk [vmem:[#allocation2 + $0xd0] sm:$0x3] %vm666, 0.0
      %692 = vst.msk [vmem:[#allocation2 + $0xd8] sm:$0xff] %vm465, 0.0
      %693 = vst.msk [vmem:[#allocation2 + $0xe0] sm:$0xff] %vm465, 0.0
      %694 = vst.msk [vmem:[#allocation2 + $0xe8] sm:$0x3] %vm666, 0.0
      %695 = vst.msk [vmem:[#allocation2 + $0xf0] sm:$0xff] %vm465, 0.0
      %696 = vst.msk [vmem:[#allocation2 + $0xf8] sm:$0xff] %vm465, 0.0
      %697 = vst.msk [vmem:[#allocation2 + $0x100] sm:$0x3] %vm666, 0.0
      %698 = vst.msk [vmem:[#allocation2 + $0x108] sm:$0xff] %vm465, 0.0
      %699 = vst.msk [vmem:[#allocation2 + $0x110] sm:$0xff] %vm465, 0.0
      %700 = vst.msk [vmem:[#allocation2 + $0x118] sm:$0x3] %vm666, 0.0
      %701 = vst.msk [vmem:[#allocation2 + $0x120] sm:$0xff] %vm465, 0.0
      %702 = vst.msk [vmem:[#allocation2 + $0x128] sm:$0xff] %vm465, 0.0
      %703 = vst.msk [vmem:[#allocation2 + $0x130] sm:$0x3] %vm666, 0.0
      %704 = vst.msk [vmem:[#allocation2 + $0x138] sm:$0xff] %vm465, 0.0
      %705 = vst.msk [vmem:[#allocation2 + $0x140] sm:$0xff] %vm465, 0.0
      %706 = vst.msk [vmem:[#allocation2 + $0x148] sm:$0x3] %vm666, 0.0
      %707 = vst.msk [vmem:[#allocation2 + $0x150] sm:$0xff] %vm465, 0.0
      %708 = vst.msk [vmem:[#allocation2 + $0x158] sm:$0xff] %vm465, 0.0
      %709 = vst.msk [vmem:[#allocation2 + $0x160] sm:$0x3] %vm666, 0.0
      %710 = vst.msk [vmem:[#allocation2 + $0x168] sm:$0xff] %vm465, 0.0
      %711 = vst.msk [vmem:[#allocation2 + $0x170] sm:$0xff] %vm465, 0.0
      %712 = vst.msk [vmem:[#allocation2 + $0x178] sm:$0x3] %vm666, 0.0
      %713 = vst.msk [vmem:[#allocation2 + $0x180] sm:$0xff] %vm465, 0.0
      %714 = vst.msk [vmem:[#allocation2 + $0x188] sm:$0xff] %vm465, 0.0
      %715 = vst.msk [vmem:[#allocation2 + $0x190] sm:$0x3] %vm666, 0.0
      %716 = vst.msk [vmem:[#allocation2 + $0x198] sm:$0xff] %vm465, 0.0
      %717 = vst.msk [vmem:[#allocation2 + $0x1a0] sm:$0xff] %vm465, 0.0
      %718 = vst.msk [vmem:[#allocation2 + $0x1a8] sm:$0x3] %vm666, 0.0
      %s719 = scalar_lea.vmem [#allocation2], 24
      %720 = vst.msk [vmem:[%s719 + $0x1] sm:$0xff] %vm465, %v585
      %721 = vst.msk [vmem:[%s719 + $0x9] sm:$0xff] %vm465, %v587
      %722 = vst.msk [vmem:[%s719 + $0x19] sm:$0xff] %vm465, %v590
      %723 = vst.msk [vmem:[%s719 + $0x21] sm:$0xff] %vm465, %v592
      %724 = vst.msk [vmem:[%s719 + $0x31] sm:$0xff] %vm465, %v595
      %725 = vst.msk [vmem:[%s719 + $0x39] sm:$0xff] %vm465, %v597
      %726 = vst.msk [vmem:[%s719 + $0x49] sm:$0xff] %vm465, %v600
      %727 = vst.msk [vmem:[%s719 + $0x51] sm:$0xff] %vm465, %v602
      %728 = vst.msk [vmem:[%s719 + $0x61] sm:$0xff] %vm465, %v605
      %729 = vst.msk [vmem:[%s719 + $0x69] sm:$0xff] %vm465, %v607
      %730 = vst.msk [vmem:[%s719 + $0x79] sm:$0xff] %vm465, %v610
      %731 = vst.msk [vmem:[%s719 + $0x81] sm:$0xff] %vm465, %v612
      %732 = vst.msk [vmem:[%s719 + $0x91] sm:$0xff] %vm465, %v615
      %733 = vst.msk [vmem:[%s719 + $0x99] sm:$0xff] %vm465, %v617
      %734 = vst.msk [vmem:[%s719 + $0xa9] sm:$0xff] %vm465, %v620
      %735 = vst.msk [vmem:[%s719 + $0xb1] sm:$0xff] %vm465, %v622
      %736 = vst.msk [vmem:[%s719 + $0xc1] sm:$0xff] %vm465, %v625
      %737 = vst.msk [vmem:[%s719 + $0xc9] sm:$0xff] %vm465, %v627
      %738 = vst.msk [vmem:[%s719 + $0xd9] sm:$0xff] %vm465, %v630
      %739 = vst.msk [vmem:[%s719 + $0xe1] sm:$0xff] %vm465, %v632
      %740 = vst.msk [vmem:[%s719 + $0xf1] sm:$0xff] %vm465, %v635
      %741 = vst.msk [vmem:[%s719 + $0xf9] sm:$0xff] %vm465, %v637
      %742 = vst.msk [vmem:[%s719 + $0x109] sm:$0xff] %vm465, %v640
      %743 = vst.msk [vmem:[%s719 + $0x111] sm:$0xff] %vm465, %v642
      %744 = vst.msk [vmem:[%s719 + $0x121] sm:$0xff] %vm465, %v645
      %745 = vst.msk [vmem:[%s719 + $0x129] sm:$0xff] %vm465, %v647
      %746 = vst.msk [vmem:[%s719 + $0x139] sm:$0xff] %vm465, %v650
      %747 = vst.msk [vmem:[%s719 + $0x141] sm:$0xff] %vm465, %v652
      %748 = vst.msk [vmem:[%s719 + $0x151] sm:$0xff] %vm465, %v655
      %749 = vst.msk [vmem:[%s719 + $0x159] sm:$0xff] %vm465, %v657
      %750 = vst.msk [vmem:[%s719 + $0x169] sm:$0xff] %vm465, %v660
      %751 = vst.msk [vmem:[%s719 + $0x171] sm:$0xff] %vm465, %v662
      %v752 = vld [vmem:[#allocation2] sm:$0xff]
      %v753 = vld [vmem:[#allocation2 + $0x8] sm:$0xff]
      %v754 = vld [vmem:[#allocation2 + $0x18] sm:$0xff]
      %v755 = vld [vmem:[#allocation2 + $0x20] sm:$0xff]
      %v756 = vld [vmem:[#allocation2 + $0x30] sm:$0xff]
      %v757 = vld [vmem:[#allocation2 + $0x38] sm:$0xff]
      %v758 = vld [vmem:[#allocation2 + $0x48] sm:$0xff]
      %v759 = vld [vmem:[#allocation2 + $0x50] sm:$0xff]
      %v760 = vld [vmem:[#allocation2 + $0x60] sm:$0xff]
      %v761 = vld [vmem:[#allocation2 + $0x68] sm:$0xff]
      %v762 = vld [vmem:[#allocation2 + $0x78] sm:$0xff]
      %v763 = vld [vmem:[#allocation2 + $0x80] sm:$0xff]
      %v764 = vld [vmem:[#allocation2 + $0x90] sm:$0xff]
      %v765 = vld [vmem:[#allocation2 + $0x98] sm:$0xff]
      %v766 = vld [vmem:[#allocation2 + $0xa8] sm:$0xff]
      %v767 = vld [vmem:[#allocation2 + $0xb0] sm:$0xff]
      %v768 = vld [vmem:[#allocation2 + $0xc0] sm:$0xff]
      %v769 = vld [vmem:[#allocation2 + $0xc8] sm:$0xff]
      %v770 = vld [vmem:[#allocation2 + $0xd8] sm:$0xff]
      %v771 = vld [vmem:[#allocation2 + $0xe0] sm:$0xff]
      %v772 = vld [vmem:[#allocation2 + $0xf0] sm:$0xff]
      %v773 = vld [vmem:[#allocation2 + $0xf8] sm:$0xff]
      %v774 = vld [vmem:[#allocation2 + $0x108] sm:$0xff]
      %v775 = vld [vmem:[#allocation2 + $0x110] sm:$0xff]
      %v776 = vld [vmem:[#allocation2 + $0x120] sm:$0xff]
      %v777 = vld [vmem:[#allocation2 + $0x128] sm:$0xff]
      %v778 = vld [vmem:[#allocation2 + $0x138] sm:$0xff]
      %v779 = vld [vmem:[#allocation2 + $0x140] sm:$0xff]
      %v780 = vld [vmem:[#allocation2 + $0x150] sm:$0xff]
      %v781 = vld [vmem:[#allocation2 + $0x158] sm:$0xff]
      %v782 = vld [vmem:[#allocation2 + $0x168] sm:$0xff]
      %v783 = vld [vmem:[#allocation2 + $0x170] sm:$0xff]
      %v784 = vld [vmem:[#allocation2 + $0x1] sm:$0xff]
      %v785 = vld [vmem:[#allocation2 + $0x9] sm:$0xff]
      %v786 = vld [vmem:[#allocation2 + $0x19] sm:$0xff]
      %v787 = vld [vmem:[#allocation2 + $0x21] sm:$0xff]
      %v788 = vld [vmem:[#allocation2 + $0x31] sm:$0xff]
      %v789 = vld [vmem:[#allocation2 + $0x39] sm:$0xff]
      %v790 = vld [vmem:[#allocation2 + $0x49] sm:$0xff]
      %v791 = vld [vmem:[#allocation2 + $0x51] sm:$0xff]
      %v792 = vld [vmem:[#allocation2 + $0x61] sm:$0xff]
      %v793 = vld [vmem:[#allocation2 + $0x69] sm:$0xff]
      %v794 = vld [vmem:[#allocation2 + $0x79] sm:$0xff]
      %v795 = vld [vmem:[#allocation2 + $0x81] sm:$0xff]
      %v796 = vld [vmem:[#allocation2 + $0x91] sm:$0xff]
      %v797 = vld [vmem:[#allocation2 + $0x99] sm:$0xff]
      %v798 = vld [vmem:[#allocation2 + $0xa9] sm:$0xff]
      %v799 = vld [vmem:[#allocation2 + $0xb1] sm:$0xff]
      %v800 = vld [vmem:[#allocation2 + $0xc1] sm:$0xff]
      %v801 = vld [vmem:[#allocation2 + $0xc9] sm:$0xff]
      %v802 = vld [vmem:[#allocation2 + $0xd9] sm:$0xff]
      %v803 = vld [vmem:[#allocation2 + $0xe1] sm:$0xff]
      %v804 = vld [vmem:[#allocation2 + $0xf1] sm:$0xff]
      %v805 = vld [vmem:[#allocation2 + $0xf9] sm:$0xff]
      %v806 = vld [vmem:[#allocation2 + $0x109] sm:$0xff]
      %v807 = vld [vmem:[#allocation2 + $0x111] sm:$0xff]
      %v808 = vld [vmem:[#allocation2 + $0x121] sm:$0xff]
      %v809 = vld [vmem:[#allocation2 + $0x129] sm:$0xff]
      %v810 = vld [vmem:[#allocation2 + $0x139] sm:$0xff]
      %v811 = vld [vmem:[#allocation2 + $0x141] sm:$0xff]
      %v812 = vld [vmem:[#allocation2 + $0x151] sm:$0xff]
      %v813 = vld [vmem:[#allocation2 + $0x159] sm:$0xff]
      %v814 = vld [vmem:[#allocation2 + $0x169] sm:$0xff]
      %v815 = vld [vmem:[#allocation2 + $0x171] sm:$0xff]
      %v816 = vld [vmem:[#allocation2 + $0x2] sm:$0xff]
      %v817 = vld [vmem:[#allocation2 + $0xa] sm:$0xff]
      %v818 = vld [vmem:[#allocation2 + $0x1a] sm:$0xff]
      %v819 = vld [vmem:[#allocation2 + $0x22] sm:$0xff]
      %v820 = vld [vmem:[#allocation2 + $0x32] sm:$0xff]
      %v821 = vld [vmem:[#allocation2 + $0x3a] sm:$0xff]
      %v822 = vld [vmem:[#allocation2 + $0x4a] sm:$0xff]
      %v823 = vld [vmem:[#allocation2 + $0x52] sm:$0xff]
      %v824 = vld [vmem:[#allocation2 + $0x62] sm:$0xff]
      %v825 = vld [vmem:[#allocation2 + $0x6a] sm:$0xff]
      %v826 = vld [vmem:[#allocation2 + $0x7a] sm:$0xff]
      %v827 = vld [vmem:[#allocation2 + $0x82] sm:$0xff]
      %v828 = vld [vmem:[#allocation2 + $0x92] sm:$0xff]
      %v829 = vld [vmem:[#allocation2 + $0x9a] sm:$0xff]
      %v830 = vld [vmem:[#allocation2 + $0xaa] sm:$0xff]
      %v831 = vld [vmem:[#allocation2 + $0xb2] sm:$0xff]
      %v832 = vld [vmem:[#allocation2 + $0xc2] sm:$0xff]
      %v833 = vld [vmem:[#allocation2 + $0xca] sm:$0xff]
      %v834 = vld [vmem:[#allocation2 + $0xda] sm:$0xff]
      %v835 = vld [vmem:[#allocation2 + $0xe2] sm:$0xff]
      %v836 = vld [vmem:[#allocation2 + $0xf2] sm:$0xff]
      %v837 = vld [vmem:[#allocation2 + $0xfa] sm:$0xff]
      %v838 = vld [vmem:[#allocation2 + $0x10a] sm:$0xff]
      %v839 = vld [vmem:[#allocation2 + $0x112] sm:$0xff]
      %v840 = vld [vmem:[#allocation2 + $0x122] sm:$0xff]
      %v841 = vld [vmem:[#allocation2 + $0x12a] sm:$0xff]
      %v842 = vld [vmem:[#allocation2 + $0x13a] sm:$0xff]
      %v843 = vld [vmem:[#allocation2 + $0x142] sm:$0xff]
      %v844 = vld [vmem:[#allocation2 + $0x152] sm:$0xff]
      %v845 = vld [vmem:[#allocation2 + $0x15a] sm:$0xff]
      %v846 = vld [vmem:[#allocation2 + $0x16a] sm:$0xff]
      %v847 = vld [vmem:[#allocation2 + $0x172] sm:$0xff]
      %v848 = vld [vmem:[%s719] sm:$0xff]
      %v849 = vld [vmem:[%s719 + $0x8] sm:$0xff]
      %v850 = vld [vmem:[%s719 + $0x18] sm:$0xff]
      %v851 = vld [vmem:[%s719 + $0x20] sm:$0xff]
      %v852 = vld [vmem:[%s719 + $0x30] sm:$0xff]
      %v853 = vld [vmem:[%s719 + $0x38] sm:$0xff]
      %v854 = vld [vmem:[%s719 + $0x48] sm:$0xff]
      %v855 = vld [vmem:[%s719 + $0x50] sm:$0xff]
      %v856 = vld [vmem:[%s719 + $0x60] sm:$0xff]
      %v857 = vld [vmem:[%s719 + $0x68] sm:$0xff]
      %v858 = vld [vmem:[%s719 + $0x78] sm:$0xff]
      %v859 = vld [vmem:[%s719 + $0x80] sm:$0xff]
      %v860 = vld [vmem:[%s719 + $0x90] sm:$0xff]
      %v861 = vld [vmem:[%s719 + $0x98] sm:$0xff]
      %v862 = vld [vmem:[%s719 + $0xa8] sm:$0xff]
      %v863 = vld [vmem:[%s719 + $0xb0] sm:$0xff]
      %v864 = vld [vmem:[%s719 + $0xc0] sm:$0xff]
      %v865 = vld [vmem:[%s719 + $0xc8] sm:$0xff]
      %v866 = vld [vmem:[%s719 + $0xd8] sm:$0xff]
      %v867 = vld [vmem:[%s719 + $0xe0] sm:$0xff]
      %v868 = vld [vmem:[%s719 + $0xf0] sm:$0xff]
      %v869 = vld [vmem:[%s719 + $0xf8] sm:$0xff]
      %v870 = vld [vmem:[%s719 + $0x108] sm:$0xff]
      %v871 = vld [vmem:[%s719 + $0x110] sm:$0xff]
      %v872 = vld [vmem:[%s719 + $0x120] sm:$0xff]
      %v873 = vld [vmem:[%s719 + $0x128] sm:$0xff]
      %v874 = vld [vmem:[%s719 + $0x138] sm:$0xff]
      %v875 = vld [vmem:[%s719 + $0x140] sm:$0xff]
      %v876 = vld [vmem:[%s719 + $0x150] sm:$0xff]
      %v877 = vld [vmem:[%s719 + $0x158] sm:$0xff]
      %v878 = vld [vmem:[%s719 + $0x168] sm:$0xff]
      %v879 = vld [vmem:[%s719 + $0x170] sm:$0xff]
      %v880 = vld [vmem:[%s719 + $0x1] sm:$0xff]
      %v881 = vld [vmem:[%s719 + $0x9] sm:$0xff]
      %v882 = vld [vmem:[%s719 + $0x19] sm:$0xff]
      %v883 = vld [vmem:[%s719 + $0x21] sm:$0xff]
      %v884 = vld [vmem:[%s719 + $0x31] sm:$0xff]
      %v885 = vld [vmem:[%s719 + $0x39] sm:$0xff]
      %v886 = vld [vmem:[%s719 + $0x49] sm:$0xff]
      %v887 = vld [vmem:[%s719 + $0x51] sm:$0xff]
      %v888 = vld [vmem:[%s719 + $0x61] sm:$0xff]
      %v889 = vld [vmem:[%s719 + $0x69] sm:$0xff]
      %v890 = vld [vmem:[%s719 + $0x79] sm:$0xff]
      %v891 = vld [vmem:[%s719 + $0x81] sm:$0xff]
      %v892 = vld [vmem:[%s719 + $0x91] sm:$0xff]
      %v893 = vld [vmem:[%s719 + $0x99] sm:$0xff]
      %v894 = vld [vmem:[%s719 + $0xa9] sm:$0xff]
      %v895 = vld [vmem:[%s719 + $0xb1] sm:$0xff]
      %v896 = vld [vmem:[%s719 + $0xc1] sm:$0xff]
      %v897 = vld [vmem:[%s719 + $0xc9] sm:$0xff]
      %v898 = vld [vmem:[%s719 + $0xd9] sm:$0xff]
      %v899 = vld [vmem:[%s719 + $0xe1] sm:$0xff]
      %v900 = vld [vmem:[%s719 + $0xf1] sm:$0xff]
      %v901 = vld [vmem:[%s719 + $0xf9] sm:$0xff]
      %v902 = vld [vmem:[%s719 + $0x109] sm:$0xff]
      %v903 = vld [vmem:[%s719 + $0x111] sm:$0xff]
      %v904 = vld [vmem:[%s719 + $0x121] sm:$0xff]
      %v905 = vld [vmem:[%s719 + $0x129] sm:$0xff]
      %v906 = vld [vmem:[%s719 + $0x139] sm:$0xff]
      %v907 = vld [vmem:[%s719 + $0x141] sm:$0xff]
      %v908 = vld [vmem:[%s719 + $0x151] sm:$0xff]
      %v909 = vld [vmem:[%s719 + $0x159] sm:$0xff]
      %v910 = vld [vmem:[%s719 + $0x169] sm:$0xff]
      %v911 = vld [vmem:[%s719 + $0x171] sm:$0xff]
      %v912 = vld [vmem:[%s719 + $0x2] sm:$0xff]
      %v913 = vld [vmem:[%s719 + $0xa] sm:$0xff]
      %v914 = vld [vmem:[%s719 + $0x1a] sm:$0xff]
      %v915 = vld [vmem:[%s719 + $0x22] sm:$0xff]
      %v916 = vld [vmem:[%s719 + $0x32] sm:$0xff]
      %v917 = vld [vmem:[%s719 + $0x3a] sm:$0xff]
      %v918 = vld [vmem:[%s719 + $0x4a] sm:$0xff]
      %v919 = vld [vmem:[%s719 + $0x52] sm:$0xff]
      %v920 = vld [vmem:[%s719 + $0x62] sm:$0xff]
      %v921 = vld [vmem:[%s719 + $0x6a] sm:$0xff]
      %v922 = vld [vmem:[%s719 + $0x7a] sm:$0xff]
      %v923 = vld [vmem:[%s719 + $0x82] sm:$0xff]
      %v924 = vld [vmem:[%s719 + $0x92] sm:$0xff]
      %v925 = vld [vmem:[%s719 + $0x9a] sm:$0xff]
      %v926 = vld [vmem:[%s719 + $0xaa] sm:$0xff]
      %v927 = vld [vmem:[%s719 + $0xb2] sm:$0xff]
      %v928 = vld [vmem:[%s719 + $0xc2] sm:$0xff]
      %v929 = vld [vmem:[%s719 + $0xca] sm:$0xff]
      %v930 = vld [vmem:[%s719 + $0xda] sm:$0xff]
      %v931 = vld [vmem:[%s719 + $0xe2] sm:$0xff]
      %v932 = vld [vmem:[%s719 + $0xf2] sm:$0xff]
      %v933 = vld [vmem:[%s719 + $0xfa] sm:$0xff]
      %v934 = vld [vmem:[%s719 + $0x10a] sm:$0xff]
      %v935 = vld [vmem:[%s719 + $0x112] sm:$0xff]
      %v936 = vld [vmem:[%s719 + $0x122] sm:$0xff]
      %v937 = vld [vmem:[%s719 + $0x12a] sm:$0xff]
      %v938 = vld [vmem:[%s719 + $0x13a] sm:$0xff]
      %v939 = vld [vmem:[%s719 + $0x142] sm:$0xff]
      %v940 = vld [vmem:[%s719 + $0x152] sm:$0xff]
      %v941 = vld [vmem:[%s719 + $0x15a] sm:$0xff]
      %v942 = vld [vmem:[%s719 + $0x16a] sm:$0xff]
      %v943 = vld [vmem:[%s719 + $0x172] sm:$0xff]
      %s944 = scalar_lea.vmem [#allocation2], 48
      %v945 = vld [vmem:[%s944] sm:$0xff]
      %v946 = vld [vmem:[%s944 + $0x8] sm:$0xff]
      %v947 = vld [vmem:[%s944 + $0x18] sm:$0xff]
      %v948 = vld [vmem:[%s944 + $0x20] sm:$0xff]
      %v949 = vld [vmem:[%s944 + $0x30] sm:$0xff]
      %v950 = vld [vmem:[%s944 + $0x38] sm:$0xff]
      %v951 = vld [vmem:[%s944 + $0x48] sm:$0xff]
      %v952 = vld [vmem:[%s944 + $0x50] sm:$0xff]
      %v953 = vld [vmem:[%s944 + $0x60] sm:$0xff]
      %v954 = vld [vmem:[%s944 + $0x68] sm:$0xff]
      %v955 = vld [vmem:[%s944 + $0x78] sm:$0xff]
      %v956 = vld [vmem:[%s944 + $0x80] sm:$0xff]
      %v957 = vld [vmem:[%s944 + $0x90] sm:$0xff]
      %v958 = vld [vmem:[%s944 + $0x98] sm:$0xff]
      %v959 = vld [vmem:[%s944 + $0xa8] sm:$0xff]
      %v960 = vld [vmem:[%s944 + $0xb0] sm:$0xff]
      %v961 = vld [vmem:[%s944 + $0xc0] sm:$0xff]
      %v962 = vld [vmem:[%s944 + $0xc8] sm:$0xff]
      %v963 = vld [vmem:[%s944 + $0xd8] sm:$0xff]
      %v964 = vld [vmem:[%s944 + $0xe0] sm:$0xff]
      %v965 = vld [vmem:[%s944 + $0xf0] sm:$0xff]
      %v966 = vld [vmem:[%s944 + $0xf8] sm:$0xff]
      %v967 = vld [vmem:[%s944 + $0x108] sm:$0xff]
      %v968 = vld [vmem:[%s944 + $0x110] sm:$0xff]
      %v969 = vld [vmem:[%s944 + $0x120] sm:$0xff]
      %v970 = vld [vmem:[%s944 + $0x128] sm:$0xff]
      %v971 = vld [vmem:[%s944 + $0x138] sm:$0xff]
      %v972 = vld [vmem:[%s944 + $0x140] sm:$0xff]
      %v973 = vld [vmem:[%s944 + $0x150] sm:$0xff]
      %v974 = vld [vmem:[%s944 + $0x158] sm:$0xff]
      %v975 = vld [vmem:[%s944 + $0x168] sm:$0xff]
      %v976 = vld [vmem:[%s944 + $0x170] sm:$0xff]
      %v977 = vld [vmem:[%s944 + $0x1] sm:$0xff]
      %v978 = vld [vmem:[%s944 + $0x9] sm:$0xff]
      %v979 = vld [vmem:[%s944 + $0x19] sm:$0xff]
      %v980 = vld [vmem:[%s944 + $0x21] sm:$0xff]
      %v981 = vld [vmem:[%s944 + $0x31] sm:$0xff]
      %v982 = vld [vmem:[%s944 + $0x39] sm:$0xff]
      %v983 = vld [vmem:[%s944 + $0x49] sm:$0xff]
      %v984 = vld [vmem:[%s944 + $0x51] sm:$0xff]
      %v985 = vld [vmem:[%s944 + $0x61] sm:$0xff]
      %v986 = vld [vmem:[%s944 + $0x69] sm:$0xff]
      %v987 = vld [vmem:[%s944 + $0x79] sm:$0xff]
      %v988 = vld [vmem:[%s944 + $0x81] sm:$0xff]
      %v989 = vld [vmem:[%s944 + $0x91] sm:$0xff]
      %v990 = vld [vmem:[%s944 + $0x99] sm:$0xff]
      %v991 = vld [vmem:[%s944 + $0xa9] sm:$0xff]
      %v992 = vld [vmem:[%s944 + $0xb1] sm:$0xff]
      %v993 = vld [vmem:[%s944 + $0xc1] sm:$0xff]
      %v994 = vld [vmem:[%s944 + $0xc9] sm:$0xff]
      %v995 = vld [vmem:[%s944 + $0xd9] sm:$0xff]
      %v996 = vld [vmem:[%s944 + $0xe1] sm:$0xff]
      %v997 = vld [vmem:[%s944 + $0xf1] sm:$0xff]
      %v998 = vld [vmem:[%s944 + $0xf9] sm:$0xff]
      %v999 = vld [vmem:[%s944 + $0x109] sm:$0xff]
      %v1000 = vld [vmem:[%s944 + $0x111] sm:$0xff]
      %v1001 = vld [vmem:[%s944 + $0x121] sm:$0xff]
      %v1002 = vld [vmem:[%s944 + $0x129] sm:$0xff]
      %v1003 = vld [vmem:[%s944 + $0x139] sm:$0xff]
      %v1004 = vld [vmem:[%s944 + $0x141] sm:$0xff]
      %v1005 = vld [vmem:[%s944 + $0x151] sm:$0xff]
      %v1006 = vld [vmem:[%s944 + $0x159] sm:$0xff]
      %v1007 = vld [vmem:[%s944 + $0x169] sm:$0xff]
      %v1008 = vld [vmem:[%s944 + $0x171] sm:$0xff]
      %v1009 = vld [vmem:[%s944 + $0x2] sm:$0xff]
      %v1010 = vld [vmem:[%s944 + $0xa] sm:$0xff]
      %v1011 = vld [vmem:[%s944 + $0x1a] sm:$0xff]
      %v1012 = vld [vmem:[%s944 + $0x22] sm:$0xff]
      %v1013 = vld [vmem:[%s944 + $0x32] sm:$0xff]
      %v1014 = vld [vmem:[%s944 + $0x3a] sm:$0xff]
      %v1015 = vld [vmem:[%s944 + $0x4a] sm:$0xff]
      %v1016 = vld [vmem:[%s944 + $0x52] sm:$0xff]
      %v1017 = vld [vmem:[%s944 + $0x62] sm:$0xff]
      %v1018 = vld [vmem:[%s944 + $0x6a] sm:$0xff]
      %v1019 = vld [vmem:[%s944 + $0x7a] sm:$0xff]
      %v1020 = vld [vmem:[%s944 + $0x82] sm:$0xff]
      %v1021 = vld [vmem:[%s944 + $0x92] sm:$0xff]
      %v1022 = vld [vmem:[%s944 + $0x9a] sm:$0xff]
      %v1023 = vld [vmem:[%s944 + $0xaa] sm:$0xff]
      %v1024 = vld [vmem:[%s944 + $0xb2] sm:$0xff]
      %v1025 = vld [vmem:[%s944 + $0xc2] sm:$0xff]
      %v1026 = vld [vmem:[%s944 + $0xca] sm:$0xff]
      %v1027 = vld [vmem:[%s944 + $0xda] sm:$0xff]
      %v1028 = vld [vmem:[%s944 + $0xe2] sm:$0xff]
      %v1029 = vld [vmem:[%s944 + $0xf2] sm:$0xff]
      %v1030 = vld [vmem:[%s944 + $0xfa] sm:$0xff]
      %v1031 = vld [vmem:[%s944 + $0x10a] sm:$0xff]
      %v1032 = vld [vmem:[%s944 + $0x112] sm:$0xff]
      %v1033 = vld [vmem:[%s944 + $0x122] sm:$0xff]
      %v1034 = vld [vmem:[%s944 + $0x12a] sm:$0xff]
      %v1035 = vld [vmem:[%s944 + $0x13a] sm:$0xff]
      %v1036 = vld [vmem:[%s944 + $0x142] sm:$0xff]
      %v1037 = vld [vmem:[%s944 + $0x152] sm:$0xff]
      %v1038 = vld [vmem:[%s944 + $0x15a] sm:$0xff]
      %v1039 = vld [vmem:[%s944 + $0x16a] sm:$0xff]
      %v1040 = vld [vmem:[%s944 + $0x172] sm:$0xff]
      %1073 = vrot.lane.b32.xlu0 %v784, 8
      %v1074 = vpop.permute.xlu0 %1073
      %1075 = vrot.lane.b32.xlu0 %v785, 8
      %v1076 = vpop.permute.xlu0 %1075
      %1077 = vrot.lane.b32.xlu0 %v786, 8
      %v1078 = vpop.permute.xlu0 %1077
      %1079 = vrot.lane.b32.xlu0 %v787, 8
      %v1080 = vpop.permute.xlu0 %1079
      %1081 = vrot.lane.b32.xlu0 %v788, 8
      %v1082 = vpop.permute.xlu0 %1081
      %1083 = vrot.lane.b32.xlu0 %v789, 8
      %v1084 = vpop.permute.xlu0 %1083
      %1085 = vrot.lane.b32.xlu0 %v790, 8
      %v1086 = vpop.permute.xlu0 %1085
      %1087 = vrot.lane.b32.xlu0 %v791, 8
      %v1088 = vpop.permute.xlu0 %1087
      %1089 = vrot.lane.b32.xlu0 %v792, 8
      %v1090 = vpop.permute.xlu0 %1089
      %1091 = vrot.lane.b32.xlu0 %v793, 8
      %v1092 = vpop.permute.xlu0 %1091
      %1093 = vrot.lane.b32.xlu0 %v794, 8
      %v1094 = vpop.permute.xlu0 %1093
      %1095 = vrot.lane.b32.xlu0 %v795, 8
      %v1096 = vpop.permute.xlu0 %1095
      %1097 = vrot.lane.b32.xlu0 %v796, 8
      %v1098 = vpop.permute.xlu0 %1097
      %1099 = vrot.lane.b32.xlu0 %v797, 8
      %v1100 = vpop.permute.xlu0 %1099
      %1101 = vrot.lane.b32.xlu0 %v798, 8
      %v1102 = vpop.permute.xlu0 %1101
      %1103 = vrot.lane.b32.xlu0 %v799, 8
      %v1104 = vpop.permute.xlu0 %1103
      %1105 = vrot.lane.b32.xlu0 %v800, 8
      %v1106 = vpop.permute.xlu0 %1105
      %1107 = vrot.lane.b32.xlu0 %v801, 8
      %v1108 = vpop.permute.xlu0 %1107
      %1109 = vrot.lane.b32.xlu0 %v802, 8
      %v1110 = vpop.permute.xlu0 %1109
      %1111 = vrot.lane.b32.xlu0 %v803, 8
      %v1112 = vpop.permute.xlu0 %1111
      %1113 = vrot.lane.b32.xlu0 %v804, 8
      %v1114 = vpop.permute.xlu0 %1113
      %1115 = vrot.lane.b32.xlu0 %v805, 8
      %v1116 = vpop.permute.xlu0 %1115
      %1117 = vrot.lane.b32.xlu0 %v806, 8
      %v1118 = vpop.permute.xlu0 %1117
      %1119 = vrot.lane.b32.xlu0 %v807, 8
      %v1120 = vpop.permute.xlu0 %1119
      %1121 = vrot.lane.b32.xlu0 %v808, 8
      %v1122 = vpop.permute.xlu0 %1121
      %1123 = vrot.lane.b32.xlu0 %v809, 8
      %v1124 = vpop.permute.xlu0 %1123
      %1125 = vrot.lane.b32.xlu0 %v810, 8
      %v1126 = vpop.permute.xlu0 %1125
      %1127 = vrot.lane.b32.xlu0 %v811, 8
      %v1128 = vpop.permute.xlu0 %1127
      %1129 = vrot.lane.b32.xlu0 %v812, 8
      %v1130 = vpop.permute.xlu0 %1129
      %1131 = vrot.lane.b32.xlu0 %v813, 8
      %v1132 = vpop.permute.xlu0 %1131
      %1133 = vrot.lane.b32.xlu0 %v814, 8
      %v1134 = vpop.permute.xlu0 %1133
      %1135 = vrot.lane.b32.xlu0 %v815, 8
      %v1136 = vpop.permute.xlu0 %1135
      %1201 = vrot.lane.b32.xlu0 %v816, 16
      %v1202 = vpop.permute.xlu0 %1201
      %1203 = vrot.lane.b32.xlu0 %v817, 16
      %v1204 = vpop.permute.xlu0 %1203
      %1205 = vrot.lane.b32.xlu0 %v818, 16
      %v1206 = vpop.permute.xlu0 %1205
      %1207 = vrot.lane.b32.xlu0 %v819, 16
      %v1208 = vpop.permute.xlu0 %1207
      %1209 = vrot.lane.b32.xlu0 %v820, 16
      %v1210 = vpop.permute.xlu0 %1209
      %1211 = vrot.lane.b32.xlu0 %v821, 16
      %v1212 = vpop.permute.xlu0 %1211
      %1213 = vrot.lane.b32.xlu0 %v822, 16
      %v1214 = vpop.permute.xlu0 %1213
      %1215 = vrot.lane.b32.xlu0 %v823, 16
      %v1216 = vpop.permute.xlu0 %1215
      %1217 = vrot.lane.b32.xlu0 %v824, 16
      %v1218 = vpop.permute.xlu0 %1217
      %1219 = vrot.lane.b32.xlu0 %v825, 16
      %v1220 = vpop.permute.xlu0 %1219
      %1221 = vrot.lane.b32.xlu0 %v826, 16
      %v1222 = vpop.permute.xlu0 %1221
      %1223 = vrot.lane.b32.xlu0 %v827, 16
      %v1224 = vpop.permute.xlu0 %1223
      %1225 = vrot.lane.b32.xlu0 %v828, 16
      %v1226 = vpop.permute.xlu0 %1225
      %1227 = vrot.lane.b32.xlu0 %v829, 16
      %v1228 = vpop.permute.xlu0 %1227
      %1229 = vrot.lane.b32.xlu0 %v830, 16
      %v1230 = vpop.permute.xlu0 %1229
      %1231 = vrot.lane.b32.xlu0 %v831, 16
      %v1232 = vpop.permute.xlu0 %1231
      %1233 = vrot.lane.b32.xlu0 %v832, 16
      %v1234 = vpop.permute.xlu0 %1233
      %1235 = vrot.lane.b32.xlu0 %v833, 16
      %v1236 = vpop.permute.xlu0 %1235
      %1237 = vrot.lane.b32.xlu0 %v834, 16
      %v1238 = vpop.permute.xlu0 %1237
      %1239 = vrot.lane.b32.xlu0 %v835, 16
      %v1240 = vpop.permute.xlu0 %1239
      %1241 = vrot.lane.b32.xlu0 %v836, 16
      %v1242 = vpop.permute.xlu0 %1241
      %1243 = vrot.lane.b32.xlu0 %v837, 16
      %v1244 = vpop.permute.xlu0 %1243
      %1245 = vrot.lane.b32.xlu0 %v838, 16
      %v1246 = vpop.permute.xlu0 %1245
      %1247 = vrot.lane.b32.xlu0 %v839, 16
      %v1248 = vpop.permute.xlu0 %1247
      %1249 = vrot.lane.b32.xlu0 %v840, 16
      %v1250 = vpop.permute.xlu0 %1249
      %1251 = vrot.lane.b32.xlu0 %v841, 16
      %v1252 = vpop.permute.xlu0 %1251
      %1253 = vrot.lane.b32.xlu0 %v842, 16
      %v1254 = vpop.permute.xlu0 %1253
      %1255 = vrot.lane.b32.xlu0 %v843, 16
      %v1256 = vpop.permute.xlu0 %1255
      %1257 = vrot.lane.b32.xlu0 %v844, 16
      %v1258 = vpop.permute.xlu0 %1257
      %1259 = vrot.lane.b32.xlu0 %v845, 16
      %v1260 = vpop.permute.xlu0 %1259
      %1261 = vrot.lane.b32.xlu0 %v846, 16
      %v1262 = vpop.permute.xlu0 %1261
      %1263 = vrot.lane.b32.xlu0 %v847, 16
      %v1264 = vpop.permute.xlu0 %1263
      %1329 = vrot.lane.b32.xlu0 %v848, 24
      %v1330 = vpop.permute.xlu0 %1329
      %1331 = vrot.lane.b32.xlu0 %v849, 24
      %v1332 = vpop.permute.xlu0 %1331
      %1333 = vrot.lane.b32.xlu0 %v850, 24
      %v1334 = vpop.permute.xlu0 %1333
      %1335 = vrot.lane.b32.xlu0 %v851, 24
      %v1336 = vpop.permute.xlu0 %1335
      %1337 = vrot.lane.b32.xlu0 %v852, 24
      %v1338 = vpop.permute.xlu0 %1337
      %1339 = vrot.lane.b32.xlu0 %v853, 24
      %v1340 = vpop.permute.xlu0 %1339
      %1341 = vrot.lane.b32.xlu0 %v854, 24
      %v1342 = vpop.permute.xlu0 %1341
      %1343 = vrot.lane.b32.xlu0 %v855, 24
      %v1344 = vpop.permute.xlu0 %1343
      %1345 = vrot.lane.b32.xlu0 %v856, 24
      %v1346 = vpop.permute.xlu0 %1345
      %1347 = vrot.lane.b32.xlu0 %v857, 24
      %v1348 = vpop.permute.xlu0 %1347
      %1349 = vrot.lane.b32.xlu0 %v858, 24
      %v1350 = vpop.permute.xlu0 %1349
      %1351 = vrot.lane.b32.xlu0 %v859, 24
      %v1352 = vpop.permute.xlu0 %1351
      %1353 = vrot.lane.b32.xlu0 %v860, 24
      %v1354 = vpop.permute.xlu0 %1353
      %1355 = vrot.lane.b32.xlu0 %v861, 24
      %v1356 = vpop.permute.xlu0 %1355
      %1357 = vrot.lane.b32.xlu0 %v862, 24
      %v1358 = vpop.permute.xlu0 %1357
      %1359 = vrot.lane.b32.xlu0 %v863, 24
      %v1360 = vpop.permute.xlu0 %1359
      %1361 = vrot.lane.b32.xlu0 %v864, 24
      %v1362 = vpop.permute.xlu0 %1361
      %1363 = vrot.lane.b32.xlu0 %v865, 24
      %v1364 = vpop.permute.xlu0 %1363
      %1365 = vrot.lane.b32.xlu0 %v866, 24
      %v1366 = vpop.permute.xlu0 %1365
      %1367 = vrot.lane.b32.xlu0 %v867, 24
      %v1368 = vpop.permute.xlu0 %1367
      %1369 = vrot.lane.b32.xlu0 %v868, 24
      %v1370 = vpop.permute.xlu0 %1369
      %1371 = vrot.lane.b32.xlu0 %v869, 24
      %v1372 = vpop.permute.xlu0 %1371
      %1373 = vrot.lane.b32.xlu0 %v870, 24
      %v1374 = vpop.permute.xlu0 %1373
      %1375 = vrot.lane.b32.xlu0 %v871, 24
      %v1376 = vpop.permute.xlu0 %1375
      %1377 = vrot.lane.b32.xlu0 %v872, 24
      %v1378 = vpop.permute.xlu0 %1377
      %1379 = vrot.lane.b32.xlu0 %v873, 24
      %v1380 = vpop.permute.xlu0 %1379
      %1381 = vrot.lane.b32.xlu0 %v874, 24
      %v1382 = vpop.permute.xlu0 %1381
      %1383 = vrot.lane.b32.xlu0 %v875, 24
      %v1384 = vpop.permute.xlu0 %1383
      %1385 = vrot.lane.b32.xlu0 %v876, 24
      %v1386 = vpop.permute.xlu0 %1385
      %1387 = vrot.lane.b32.xlu0 %v877, 24
      %v1388 = vpop.permute.xlu0 %1387
      %1389 = vrot.lane.b32.xlu0 %v878, 24
      %v1390 = vpop.permute.xlu0 %1389
      %1391 = vrot.lane.b32.xlu0 %v879, 24
      %v1392 = vpop.permute.xlu0 %1391
      %1457 = vrot.lane.b32.xlu0 %v880, 32
      %v1458 = vpop.permute.xlu0 %1457
      %1459 = vrot.lane.b32.xlu0 %v881, 32
      %v1460 = vpop.permute.xlu0 %1459
      %1461 = vrot.lane.b32.xlu0 %v882, 32
      %v1462 = vpop.permute.xlu0 %1461
      %1463 = vrot.lane.b32.xlu0 %v883, 32
      %v1464 = vpop.permute.xlu0 %1463
      %1465 = vrot.lane.b32.xlu0 %v884, 32
      %v1466 = vpop.permute.xlu0 %1465
      %1467 = vrot.lane.b32.xlu0 %v885, 32
      %v1468 = vpop.permute.xlu0 %1467
      %1469 = vrot.lane.b32.xlu0 %v886, 32
      %v1470 = vpop.permute.xlu0 %1469
      %1471 = vrot.lane.b32.xlu0 %v887, 32
      %v1472 = vpop.permute.xlu0 %1471
      %1473 = vrot.lane.b32.xlu0 %v888, 32
      %v1474 = vpop.permute.xlu0 %1473
      %1475 = vrot.lane.b32.xlu0 %v889, 32
      %v1476 = vpop.permute.xlu0 %1475
      %1477 = vrot.lane.b32.xlu0 %v890, 32
      %v1478 = vpop.permute.xlu0 %1477
      %1479 = vrot.lane.b32.xlu0 %v891, 32
      %v1480 = vpop.permute.xlu0 %1479
      %1481 = vrot.lane.b32.xlu0 %v892, 32
      %v1482 = vpop.permute.xlu0 %1481
      %1483 = vrot.lane.b32.xlu0 %v893, 32
      %v1484 = vpop.permute.xlu0 %1483
      %1485 = vrot.lane.b32.xlu0 %v894, 32
      %v1486 = vpop.permute.xlu0 %1485
      %1487 = vrot.lane.b32.xlu0 %v895, 32
      %v1488 = vpop.permute.xlu0 %1487
      %1489 = vrot.lane.b32.xlu0 %v896, 32
      %v1490 = vpop.permute.xlu0 %1489
      %1491 = vrot.lane.b32.xlu0 %v897, 32
      %v1492 = vpop.permute.xlu0 %1491
      %1493 = vrot.lane.b32.xlu0 %v898, 32
      %v1494 = vpop.permute.xlu0 %1493
      %1495 = vrot.lane.b32.xlu0 %v899, 32
      %v1496 = vpop.permute.xlu0 %1495
      %1497 = vrot.lane.b32.xlu0 %v900, 32
      %v1498 = vpop.permute.xlu0 %1497
      %1499 = vrot.lane.b32.xlu0 %v901, 32
      %v1500 = vpop.permute.xlu0 %1499
      %1501 = vrot.lane.b32.xlu0 %v902, 32
      %v1502 = vpop.permute.xlu0 %1501
      %1503 = vrot.lane.b32.xlu0 %v903, 32
      %v1504 = vpop.permute.xlu0 %1503
      %1505 = vrot.lane.b32.xlu0 %v904, 32
      %v1506 = vpop.permute.xlu0 %1505
      %1507 = vrot.lane.b32.xlu0 %v905, 32
      %v1508 = vpop.permute.xlu0 %1507
      %1509 = vrot.lane.b32.xlu0 %v906, 32
      %v1510 = vpop.permute.xlu0 %1509
      %1511 = vrot.lane.b32.xlu0 %v907, 32
      %v1512 = vpop.permute.xlu0 %1511
      %1513 = vrot.lane.b32.xlu0 %v908, 32
      %v1514 = vpop.permute.xlu0 %1513
      %1515 = vrot.lane.b32.xlu0 %v909, 32
      %v1516 = vpop.permute.xlu0 %1515
      %1517 = vrot.lane.b32.xlu0 %v910, 32
      %v1518 = vpop.permute.xlu0 %1517
      %1519 = vrot.lane.b32.xlu0 %v911, 32
      %v1520 = vpop.permute.xlu0 %1519
      %1585 = vrot.lane.b32.xlu0 %v912, 40
      %v1586 = vpop.permute.xlu0 %1585
      %1587 = vrot.lane.b32.xlu0 %v913, 40
      %v1588 = vpop.permute.xlu0 %1587
      %1589 = vrot.lane.b32.xlu0 %v914, 40
      %v1590 = vpop.permute.xlu0 %1589
      %1591 = vrot.lane.b32.xlu0 %v915, 40
      %v1592 = vpop.permute.xlu0 %1591
      %1593 = vrot.lane.b32.xlu0 %v916, 40
      %v1594 = vpop.permute.xlu0 %1593
      %1595 = vrot.lane.b32.xlu0 %v917, 40
      %v1596 = vpop.permute.xlu0 %1595
      %1597 = vrot.lane.b32.xlu0 %v918, 40
      %v1598 = vpop.permute.xlu0 %1597
      %1599 = vrot.lane.b32.xlu0 %v919, 40
      %v1600 = vpop.permute.xlu0 %1599
      %1601 = vrot.lane.b32.xlu0 %v920, 40
      %v1602 = vpop.permute.xlu0 %1601
      %1603 = vrot.lane.b32.xlu0 %v921, 40
      %v1604 = vpop.permute.xlu0 %1603
      %1605 = vrot.lane.b32.xlu0 %v922, 40
      %v1606 = vpop.permute.xlu0 %1605
      %1607 = vrot.lane.b32.xlu0 %v923, 40
      %v1608 = vpop.permute.xlu0 %1607
      %1609 = vrot.lane.b32.xlu0 %v924, 40
      %v1610 = vpop.permute.xlu0 %1609
      %1611 = vrot.lane.b32.xlu0 %v925, 40
      %v1612 = vpop.permute.xlu0 %1611
      %1613 = vrot.lane.b32.xlu0 %v926, 40
      %v1614 = vpop.permute.xlu0 %1613
      %1615 = vrot.lane.b32.xlu0 %v927, 40
      %v1616 = vpop.permute.xlu0 %1615
      %1617 = vrot.lane.b32.xlu0 %v928, 40
      %v1618 = vpop.permute.xlu0 %1617
      %1619 = vrot.lane.b32.xlu0 %v929, 40
      %v1620 = vpop.permute.xlu0 %1619
      %1621 = vrot.lane.b32.xlu0 %v930, 40
      %v1622 = vpop.permute.xlu0 %1621
      %1623 = vrot.lane.b32.xlu0 %v931, 40
      %v1624 = vpop.permute.xlu0 %1623
      %1625 = vrot.lane.b32.xlu0 %v932, 40
      %v1626 = vpop.permute.xlu0 %1625
      %1627 = vrot.lane.b32.xlu0 %v933, 40
      %v1628 = vpop.permute.xlu0 %1627
      %1629 = vrot.lane.b32.xlu0 %v934, 40
      %v1630 = vpop.permute.xlu0 %1629
      %1631 = vrot.lane.b32.xlu0 %v935, 40
      %v1632 = vpop.permute.xlu0 %1631
      %1633 = vrot.lane.b32.xlu0 %v936, 40
      %v1634 = vpop.permute.xlu0 %1633
      %1635 = vrot.lane.b32.xlu0 %v937, 40
      %v1636 = vpop.permute.xlu0 %1635
      %1637 = vrot.lane.b32.xlu0 %v938, 40
      %v1638 = vpop.permute.xlu0 %1637
      %1639 = vrot.lane.b32.xlu0 %v939, 40
      %v1640 = vpop.permute.xlu0 %1639
      %1641 = vrot.lane.b32.xlu0 %v940, 40
      %v1642 = vpop.permute.xlu0 %1641
      %1643 = vrot.lane.b32.xlu0 %v941, 40
      %v1644 = vpop.permute.xlu0 %1643
      %1645 = vrot.lane.b32.xlu0 %v942, 40
      %v1646 = vpop.permute.xlu0 %1645
      %1647 = vrot.lane.b32.xlu0 %v943, 40
      %v1648 = vpop.permute.xlu0 %1647
      %1713 = vrot.lane.b32.xlu0 %v945, 48
      %v1714 = vpop.permute.xlu0 %1713
      %1715 = vrot.lane.b32.xlu0 %v946, 48
      %v1716 = vpop.permute.xlu0 %1715
      %1717 = vrot.lane.b32.xlu0 %v947, 48
      %v1718 = vpop.permute.xlu0 %1717
      %1719 = vrot.lane.b32.xlu0 %v948, 48
      %v1720 = vpop.permute.xlu0 %1719
      %1721 = vrot.lane.b32.xlu0 %v949, 48
      %v1722 = vpop.permute.xlu0 %1721
      %1723 = vrot.lane.b32.xlu0 %v950, 48
      %v1724 = vpop.permute.xlu0 %1723
      %1725 = vrot.lane.b32.xlu0 %v951, 48
      %v1726 = vpop.permute.xlu0 %1725
      %1727 = vrot.lane.b32.xlu0 %v952, 48
      %v1728 = vpop.permute.xlu0 %1727
      %1729 = vrot.lane.b32.xlu0 %v953, 48
      %v1730 = vpop.permute.xlu0 %1729
      %1731 = vrot.lane.b32.xlu0 %v954, 48
      %v1732 = vpop.permute.xlu0 %1731
      %1733 = vrot.lane.b32.xlu0 %v955, 48
      %v1734 = vpop.permute.xlu0 %1733
      %1735 = vrot.lane.b32.xlu0 %v956, 48
      %v1736 = vpop.permute.xlu0 %1735
      %1737 = vrot.lane.b32.xlu0 %v957, 48
      %v1738 = vpop.permute.xlu0 %1737
      %1739 = vrot.lane.b32.xlu0 %v958, 48
      %v1740 = vpop.permute.xlu0 %1739
      %1741 = vrot.lane.b32.xlu0 %v959, 48
      %v1742 = vpop.permute.xlu0 %1741
      %1743 = vrot.lane.b32.xlu0 %v960, 48
      %v1744 = vpop.permute.xlu0 %1743
      %1745 = vrot.lane.b32.xlu0 %v961, 48
      %v1746 = vpop.permute.xlu0 %1745
      %1747 = vrot.lane.b32.xlu0 %v962, 48
      %v1748 = vpop.permute.xlu0 %1747
      %1749 = vrot.lane.b32.xlu0 %v963, 48
      %v1750 = vpop.permute.xlu0 %1749
      %1751 = vrot.lane.b32.xlu0 %v964, 48
      %v1752 = vpop.permute.xlu0 %1751
      %1753 = vrot.lane.b32.xlu0 %v965, 48
      %v1754 = vpop.permute.xlu0 %1753
      %1755 = vrot.lane.b32.xlu0 %v966, 48
      %v1756 = vpop.permute.xlu0 %1755
      %1757 = vrot.lane.b32.xlu0 %v967, 48
      %v1758 = vpop.permute.xlu0 %1757
      %1759 = vrot.lane.b32.xlu0 %v968, 48
      %v1760 = vpop.permute.xlu0 %1759
      %1761 = vrot.lane.b32.xlu0 %v969, 48
      %v1762 = vpop.permute.xlu0 %1761
      %1763 = vrot.lane.b32.xlu0 %v970, 48
      %v1764 = vpop.permute.xlu0 %1763
      %1765 = vrot.lane.b32.xlu0 %v971, 48
      %v1766 = vpop.permute.xlu0 %1765
      %1767 = vrot.lane.b32.xlu0 %v972, 48
      %v1768 = vpop.permute.xlu0 %1767
      %1769 = vrot.lane.b32.xlu0 %v973, 48
      %v1770 = vpop.permute.xlu0 %1769
      %1771 = vrot.lane.b32.xlu0 %v974, 48
      %v1772 = vpop.permute.xlu0 %1771
      %1773 = vrot.lane.b32.xlu0 %v975, 48
      %v1774 = vpop.permute.xlu0 %1773
      %1775 = vrot.lane.b32.xlu0 %v976, 48
      %v1776 = vpop.permute.xlu0 %1775
      %1841 = vrot.lane.b32.xlu0 %v977, 56
      %v1842 = vpop.permute.xlu0 %1841
      %1843 = vrot.lane.b32.xlu0 %v978, 56
      %v1844 = vpop.permute.xlu0 %1843
      %1845 = vrot.lane.b32.xlu0 %v979, 56
      %v1846 = vpop.permute.xlu0 %1845
      %1847 = vrot.lane.b32.xlu0 %v980, 56
      %v1848 = vpop.permute.xlu0 %1847
      %1849 = vrot.lane.b32.xlu0 %v981, 56
      %v1850 = vpop.permute.xlu0 %1849
      %1851 = vrot.lane.b32.xlu0 %v982, 56
      %v1852 = vpop.permute.xlu0 %1851
      %1853 = vrot.lane.b32.xlu0 %v983, 56
      %v1854 = vpop.permute.xlu0 %1853
      %1855 = vrot.lane.b32.xlu0 %v984, 56
      %v1856 = vpop.permute.xlu0 %1855
      %1857 = vrot.lane.b32.xlu0 %v985, 56
      %v1858 = vpop.permute.xlu0 %1857
      %1859 = vrot.lane.b32.xlu0 %v986, 56
      %v1860 = vpop.permute.xlu0 %1859
      %1861 = vrot.lane.b32.xlu0 %v987, 56
      %v1862 = vpop.permute.xlu0 %1861
      %1863 = vrot.lane.b32.xlu0 %v988, 56
      %v1864 = vpop.permute.xlu0 %1863
      %1865 = vrot.lane.b32.xlu0 %v989, 56
      %v1866 = vpop.permute.xlu0 %1865
      %1867 = vrot.lane.b32.xlu0 %v990, 56
      %v1868 = vpop.permute.xlu0 %1867
      %1869 = vrot.lane.b32.xlu0 %v991, 56
      %v1870 = vpop.permute.xlu0 %1869
      %1871 = vrot.lane.b32.xlu0 %v992, 56
      %v1872 = vpop.permute.xlu0 %1871
      %1873 = vrot.lane.b32.xlu0 %v993, 56
      %v1874 = vpop.permute.xlu0 %1873
      %1875 = vrot.lane.b32.xlu0 %v994, 56
      %v1876 = vpop.permute.xlu0 %1875
      %1877 = vrot.lane.b32.xlu0 %v995, 56
      %v1878 = vpop.permute.xlu0 %1877
      %1879 = vrot.lane.b32.xlu0 %v996, 56
      %v1880 = vpop.permute.xlu0 %1879
      %1881 = vrot.lane.b32.xlu0 %v997, 56
      %v1882 = vpop.permute.xlu0 %1881
      %1883 = vrot.lane.b32.xlu0 %v998, 56
      %v1884 = vpop.permute.xlu0 %1883
      %1885 = vrot.lane.b32.xlu0 %v999, 56
      %v1886 = vpop.permute.xlu0 %1885
      %1887 = vrot.lane.b32.xlu0 %v1000, 56
      %v1888 = vpop.permute.xlu0 %1887
      %1889 = vrot.lane.b32.xlu0 %v1001, 56
      %v1890 = vpop.permute.xlu0 %1889
      %1891 = vrot.lane.b32.xlu0 %v1002, 56
      %v1892 = vpop.permute.xlu0 %1891
      %1893 = vrot.lane.b32.xlu0 %v1003, 56
      %v1894 = vpop.permute.xlu0 %1893
      %1895 = vrot.lane.b32.xlu0 %v1004, 56
      %v1896 = vpop.permute.xlu0 %1895
      %1897 = vrot.lane.b32.xlu0 %v1005, 56
      %v1898 = vpop.permute.xlu0 %1897
      %1899 = vrot.lane.b32.xlu0 %v1006, 56
      %v1900 = vpop.permute.xlu0 %1899
      %1901 = vrot.lane.b32.xlu0 %v1007, 56
      %v1902 = vpop.permute.xlu0 %1901
      %1903 = vrot.lane.b32.xlu0 %v1008, 56
      %v1904 = vpop.permute.xlu0 %1903
      %1969 = vrot.lane.b32.xlu0 %v1009, 64
      %v1970 = vpop.permute.xlu0 %1969
      %1971 = vrot.lane.b32.xlu0 %v1010, 64
      %v1972 = vpop.permute.xlu0 %1971
      %1973 = vrot.lane.b32.xlu0 %v1011, 64
      %v1974 = vpop.permute.xlu0 %1973
      %1975 = vrot.lane.b32.xlu0 %v1012, 64
      %v1976 = vpop.permute.xlu0 %1975
      %1977 = vrot.lane.b32.xlu0 %v1013, 64
      %v1978 = vpop.permute.xlu0 %1977
      %1979 = vrot.lane.b32.xlu0 %v1014, 64
      %v1980 = vpop.permute.xlu0 %1979
      %1981 = vrot.lane.b32.xlu0 %v1015, 64
      %v1982 = vpop.permute.xlu0 %1981
      %1983 = vrot.lane.b32.xlu0 %v1016, 64
      %v1984 = vpop.permute.xlu0 %1983
      %1985 = vrot.lane.b32.xlu0 %v1017, 64
      %v1986 = vpop.permute.xlu0 %1985
      %1987 = vrot.lane.b32.xlu0 %v1018, 64
      %v1988 = vpop.permute.xlu0 %1987
      %1989 = vrot.lane.b32.xlu0 %v1019, 64
      %v1990 = vpop.permute.xlu0 %1989
      %1991 = vrot.lane.b32.xlu0 %v1020, 64
      %v1992 = vpop.permute.xlu0 %1991
      %1993 = vrot.lane.b32.xlu0 %v1021, 64
      %v1994 = vpop.permute.xlu0 %1993
      %1995 = vrot.lane.b32.xlu0 %v1022, 64
      %v1996 = vpop.permute.xlu0 %1995
      %1997 = vrot.lane.b32.xlu0 %v1023, 64
      %v1998 = vpop.permute.xlu0 %1997
      %1999 = vrot.lane.b32.xlu0 %v1024, 64
      %v2000 = vpop.permute.xlu0 %1999
      %2001 = vrot.lane.b32.xlu0 %v1025, 64
      %v2002 = vpop.permute.xlu0 %2001
      %2003 = vrot.lane.b32.xlu0 %v1026, 64
      %v2004 = vpop.permute.xlu0 %2003
      %2005 = vrot.lane.b32.xlu0 %v1027, 64
      %v2006 = vpop.permute.xlu0 %2005
      %2007 = vrot.lane.b32.xlu0 %v1028, 64
      %v2008 = vpop.permute.xlu0 %2007
      %2009 = vrot.lane.b32.xlu0 %v1029, 64
      %v2010 = vpop.permute.xlu0 %2009
      %2011 = vrot.lane.b32.xlu0 %v1030, 64
      %v2012 = vpop.permute.xlu0 %2011
      %2013 = vrot.lane.b32.xlu0 %v1031, 64
      %v2014 = vpop.permute.xlu0 %2013
      %2015 = vrot.lane.b32.xlu0 %v1032, 64
      %v2016 = vpop.permute.xlu0 %2015
      %2017 = vrot.lane.b32.xlu0 %v1033, 64
      %v2018 = vpop.permute.xlu0 %2017
      %2019 = vrot.lane.b32.xlu0 %v1034, 64
      %v2020 = vpop.permute.xlu0 %2019
      %2021 = vrot.lane.b32.xlu0 %v1035, 64
      %v2022 = vpop.permute.xlu0 %2021
      %2023 = vrot.lane.b32.xlu0 %v1036, 64
      %v2024 = vpop.permute.xlu0 %2023
      %2025 = vrot.lane.b32.xlu0 %v1037, 64
      %v2026 = vpop.permute.xlu0 %2025
      %2027 = vrot.lane.b32.xlu0 %v1038, 64
      %v2028 = vpop.permute.xlu0 %2027
      %2029 = vrot.lane.b32.xlu0 %v1039, 64
      %v2030 = vpop.permute.xlu0 %2029
      %2031 = vrot.lane.b32.xlu0 %v1040, 64
      %v2032 = vpop.permute.xlu0 %2031
      %v2065 = vsel %vm465, %v752, %v1074
      %v2066 = vsel %vm465, %v753, %v1076
      %v2067 = vsel %vm465, %v754, %v1078
      %v2068 = vsel %vm465, %v755, %v1080
      %v2069 = vsel %vm465, %v756, %v1082
      %v2070 = vsel %vm465, %v757, %v1084
      %v2071 = vsel %vm465, %v758, %v1086
      %v2072 = vsel %vm465, %v759, %v1088
      %v2073 = vsel %vm465, %v760, %v1090
      %v2074 = vsel %vm465, %v761, %v1092
      %v2075 = vsel %vm465, %v762, %v1094
      %v2076 = vsel %vm465, %v763, %v1096
      %v2077 = vsel %vm465, %v764, %v1098
      %v2078 = vsel %vm465, %v765, %v1100
      %v2079 = vsel %vm465, %v766, %v1102
      %v2080 = vsel %vm465, %v767, %v1104
      %v2081 = vsel %vm465, %v768, %v1106
      %v2082 = vsel %vm465, %v769, %v1108
      %v2083 = vsel %vm465, %v770, %v1110
      %v2084 = vsel %vm465, %v771, %v1112
      %v2085 = vsel %vm465, %v772, %v1114
      %v2086 = vsel %vm465, %v773, %v1116
      %v2087 = vsel %vm465, %v774, %v1118
      %v2088 = vsel %vm465, %v775, %v1120
      %v2089 = vsel %vm465, %v776, %v1122
      %v2090 = vsel %vm465, %v777, %v1124
      %v2091 = vsel %vm465, %v778, %v1126
      %v2092 = vsel %vm465, %v779, %v1128
      %v2093 = vsel %vm465, %v780, %v1130
      %v2094 = vsel %vm465, %v781, %v1132
      %v2095 = vsel %vm465, %v782, %v1134
      %v2096 = vsel %vm465, %v783, %v1136
      %v2097 = vsel %vm526, %v2065, %v1202
      %v2098 = vsel %vm526, %v2066, %v1204
      %v2099 = vsel %vm526, %v2067, %v1206
      %v2100 = vsel %vm526, %v2068, %v1208
      %v2101 = vsel %vm526, %v2069, %v1210
      %v2102 = vsel %vm526, %v2070, %v1212
      %v2103 = vsel %vm526, %v2071, %v1214
      %v2104 = vsel %vm526, %v2072, %v1216
      %v2105 = vsel %vm526, %v2073, %v1218
      %v2106 = vsel %vm526, %v2074, %v1220
      %v2107 = vsel %vm526, %v2075, %v1222
      %v2108 = vsel %vm526, %v2076, %v1224
      %v2109 = vsel %vm526, %v2077, %v1226
      %v2110 = vsel %vm526, %v2078, %v1228
      %v2111 = vsel %vm526, %v2079, %v1230
      %v2112 = vsel %vm526, %v2080, %v1232
      %v2113 = vsel %vm526, %v2081, %v1234
      %v2114 = vsel %vm526, %v2082, %v1236
      %v2115 = vsel %vm526, %v2083, %v1238
      %v2116 = vsel %vm526, %v2084, %v1240
      %v2117 = vsel %vm526, %v2085, %v1242
      %v2118 = vsel %vm526, %v2086, %v1244
      %v2119 = vsel %vm526, %v2087, %v1246
      %v2120 = vsel %vm526, %v2088, %v1248
      %v2121 = vsel %vm526, %v2089, %v1250
      %v2122 = vsel %vm526, %v2090, %v1252
      %v2123 = vsel %vm526, %v2091, %v1254
      %v2124 = vsel %vm526, %v2092, %v1256
      %v2125 = vsel %vm526, %v2093, %v1258
      %v2126 = vsel %vm526, %v2094, %v1260
      %v2127 = vsel %vm526, %v2095, %v1262
      %v2128 = vsel %vm526, %v2096, %v1264
      %vm2129 = vcmask 195584
      %v2130 = vsel %vm2129, %v2097, %v1330
      %v2131 = vsel %vm2129, %v2098, %v1332
      %v2132 = vsel %vm2129, %v2099, %v1334
      %v2133 = vsel %vm2129, %v2100, %v1336
      %v2134 = vsel %vm2129, %v2101, %v1338
      %v2135 = vsel %vm2129, %v2102, %v1340
      %v2136 = vsel %vm2129, %v2103, %v1342
      %v2137 = vsel %vm2129, %v2104, %v1344
      %v2138 = vsel %vm2129, %v2105, %v1346
      %v2139 = vsel %vm2129, %v2106, %v1348
      %v2140 = vsel %vm2129, %v2107, %v1350
      %v2141 = vsel %vm2129, %v2108, %v1352
      %v2142 = vsel %vm2129, %v2109, %v1354
      %v2143 = vsel %vm2129, %v2110, %v1356
      %v2144 = vsel %vm2129, %v2111, %v1358
      %v2145 = vsel %vm2129, %v2112, %v1360
      %v2146 = vsel %vm2129, %v2113, %v1362
      %v2147 = vsel %vm2129, %v2114, %v1364
      %v2148 = vsel %vm2129, %v2115, %v1366
      %v2149 = vsel %vm2129, %v2116, %v1368
      %v2150 = vsel %vm2129, %v2117, %v1370
      %v2151 = vsel %vm2129, %v2118, %v1372
      %v2152 = vsel %vm2129, %v2119, %v1374
      %v2153 = vsel %vm2129, %v2120, %v1376
      %v2154 = vsel %vm2129, %v2121, %v1378
      %v2155 = vsel %vm2129, %v2122, %v1380
      %v2156 = vsel %vm2129, %v2123, %v1382
      %v2157 = vsel %vm2129, %v2124, %v1384
      %v2158 = vsel %vm2129, %v2125, %v1386
      %v2159 = vsel %vm2129, %v2126, %v1388
      %v2160 = vsel %vm2129, %v2127, %v1390
      %v2161 = vsel %vm2129, %v2128, %v1392
      %vm2162 = vcmask 261120
      %v2163 = vsel %vm2162, %v2130, %v1458
      %v2164 = vsel %vm2162, %v2131, %v1460
      %v2165 = vsel %vm2162, %v2132, %v1462
      %v2166 = vsel %vm2162, %v2133, %v1464
      %v2167 = vsel %vm2162, %v2134, %v1466
      %v2168 = vsel %vm2162, %v2135, %v1468
      %v2169 = vsel %vm2162, %v2136, %v1470
      %v2170 = vsel %vm2162, %v2137, %v1472
      %v2171 = vsel %vm2162, %v2138, %v1474
      %v2172 = vsel %vm2162, %v2139, %v1476
      %v2173 = vsel %vm2162, %v2140, %v1478
      %v2174 = vsel %vm2162, %v2141, %v1480
      %v2175 = vsel %vm2162, %v2142, %v1482
      %v2176 = vsel %vm2162, %v2143, %v1484
      %v2177 = vsel %vm2162, %v2144, %v1486
      %v2178 = vsel %vm2162, %v2145, %v1488
      %v2179 = vsel %vm2162, %v2146, %v1490
      %v2180 = vsel %vm2162, %v2147, %v1492
      %v2181 = vsel %vm2162, %v2148, %v1494
      %v2182 = vsel %vm2162, %v2149, %v1496
      %v2183 = vsel %vm2162, %v2150, %v1498
      %v2184 = vsel %vm2162, %v2151, %v1500
      %v2185 = vsel %vm2162, %v2152, %v1502
      %v2186 = vsel %vm2162, %v2153, %v1504
      %v2187 = vsel %vm2162, %v2154, %v1506
      %v2188 = vsel %vm2162, %v2155, %v1508
      %v2189 = vsel %vm2162, %v2156, %v1510
      %v2190 = vsel %vm2162, %v2157, %v1512
      %v2191 = vsel %vm2162, %v2158, %v1514
      %v2192 = vsel %vm2162, %v2159, %v1516
      %v2193 = vsel %vm2162, %v2160, %v1518
      %v2194 = vsel %vm2162, %v2161, %v1520
      %vm2195 = vcmask 326656
      %v2196 = vsel %vm2195, %v2163, %v1586
      %v2197 = vsel %vm2195, %v2164, %v1588
      %v2198 = vsel %vm2195, %v2165, %v1590
      %v2199 = vsel %vm2195, %v2166, %v1592
      %v2200 = vsel %vm2195, %v2167, %v1594
      %v2201 = vsel %vm2195, %v2168, %v1596
      %v2202 = vsel %vm2195, %v2169, %v1598
      %v2203 = vsel %vm2195, %v2170, %v1600
      %v2204 = vsel %vm2195, %v2171, %v1602
      %v2205 = vsel %vm2195, %v2172, %v1604
      %v2206 = vsel %vm2195, %v2173, %v1606
      %v2207 = vsel %vm2195, %v2174, %v1608
      %v2208 = vsel %vm2195, %v2175, %v1610
      %v2209 = vsel %vm2195, %v2176, %v1612
      %v2210 = vsel %vm2195, %v2177, %v1614
      %v2211 = vsel %vm2195, %v2178, %v1616
      %v2212 = vsel %vm2195, %v2179, %v1618
      %v2213 = vsel %vm2195, %v2180, %v1620
      %v2214 = vsel %vm2195, %v2181, %v1622
      %v2215 = vsel %vm2195, %v2182, %v1624
      %v2216 = vsel %vm2195, %v2183, %v1626
      %v2217 = vsel %vm2195, %v2184, %v1628
      %v2218 = vsel %vm2195, %v2185, %v1630
      %v2219 = vsel %vm2195, %v2186, %v1632
      %v2220 = vsel %vm2195, %v2187, %v1634
      %v2221 = vsel %vm2195, %v2188, %v1636
      %v2222 = vsel %vm2195, %v2189, %v1638
      %v2223 = vsel %vm2195, %v2190, %v1640
      %v2224 = vsel %vm2195, %v2191, %v1642
      %v2225 = vsel %vm2195, %v2192, %v1644
      %v2226 = vsel %vm2195, %v2193, %v1646
      %v2227 = vsel %vm2195, %v2194, %v1648
      %vm2228 = vcmask 392192
      %v2229 = vsel %vm2228, %v2196, %v1714
      %v2230 = vsel %vm2228, %v2197, %v1716
      %v2231 = vsel %vm2228, %v2198, %v1718
      %v2232 = vsel %vm2228, %v2199, %v1720
      %v2233 = vsel %vm2228, %v2200, %v1722
      %v2234 = vsel %vm2228, %v2201, %v1724
      %v2235 = vsel %vm2228, %v2202, %v1726
      %v2236 = vsel %vm2228, %v2203, %v1728
      %v2237 = vsel %vm2228, %v2204, %v1730
      %v2238 = vsel %vm2228, %v2205, %v1732
      %v2239 = vsel %vm2228, %v2206, %v1734
      %v2240 = vsel %vm2228, %v2207, %v1736
      %v2241 = vsel %vm2228, %v2208, %v1738
      %v2242 = vsel %vm2228, %v2209, %v1740
      %v2243 = vsel %vm2228, %v2210, %v1742
      %v2244 = vsel %vm2228, %v2211, %v1744
      %v2245 = vsel %vm2228, %v2212, %v1746
      %v2246 = vsel %vm2228, %v2213, %v1748
      %v2247 = vsel %vm2228, %v2214, %v1750
      %v2248 = vsel %vm2228, %v2215, %v1752
      %v2249 = vsel %vm2228, %v2216, %v1754
      %v2250 = vsel %vm2228, %v2217, %v1756
      %v2251 = vsel %vm2228, %v2218, %v1758
      %v2252 = vsel %vm2228, %v2219, %v1760
      %v2253 = vsel %vm2228, %v2220, %v1762
      %v2254 = vsel %vm2228, %v2221, %v1764
      %v2255 = vsel %vm2228, %v2222, %v1766
      %v2256 = vsel %vm2228, %v2223, %v1768
      %v2257 = vsel %vm2228, %v2224, %v1770
      %v2258 = vsel %vm2228, %v2225, %v1772
      %v2259 = vsel %vm2228, %v2226, %v1774
      %v2260 = vsel %vm2228, %v2227, %v1776
      %vm2261 = vcmask 457728
      %v2262 = vsel %vm2261, %v2229, %v1842
      %v2263 = vsel %vm2261, %v2230, %v1844
      %v2264 = vsel %vm2261, %v2231, %v1846
      %v2265 = vsel %vm2261, %v2232, %v1848
      %v2266 = vsel %vm2261, %v2233, %v1850
      %v2267 = vsel %vm2261, %v2234, %v1852
      %v2268 = vsel %vm2261, %v2235, %v1854
      %v2269 = vsel %vm2261, %v2236, %v1856
      %v2270 = vsel %vm2261, %v2237, %v1858
      %v2271 = vsel %vm2261, %v2238, %v1860
      %v2272 = vsel %vm2261, %v2239, %v1862
      %v2273 = vsel %vm2261, %v2240, %v1864
      %v2274 = vsel %vm2261, %v2241, %v1866
      %v2275 = vsel %vm2261, %v2242, %v1868
      %v2276 = vsel %vm2261, %v2243, %v1870
      %v2277 = vsel %vm2261, %v2244, %v1872
      %v2278 = vsel %vm2261, %v2245, %v1874
      %v2279 = vsel %vm2261, %v2246, %v1876
      %v2280 = vsel %vm2261, %v2247, %v1878
      %v2281 = vsel %vm2261, %v2248, %v1880
      %v2282 = vsel %vm2261, %v2249, %v1882
      %v2283 = vsel %vm2261, %v2250, %v1884
      %v2284 = vsel %vm2261, %v2251, %v1886
      %v2285 = vsel %vm2261, %v2252, %v1888
      %v2286 = vsel %vm2261, %v2253, %v1890
      %v2287 = vsel %vm2261, %v2254, %v1892
      %v2288 = vsel %vm2261, %v2255, %v1894
      %v2289 = vsel %vm2261, %v2256, %v1896
      %v2290 = vsel %vm2261, %v2257, %v1898
      %v2291 = vsel %vm2261, %v2258, %v1900
      %v2292 = vsel %vm2261, %v2259, %v1902
      %v2293 = vsel %vm2261, %v2260, %v1904
      %vm2294 = vcmask 523264
      %v2295 = vsel %vm2294, %v2262, %v1970
      %v2296 = vsel %vm2294, %v2263, %v1972
      %v2297 = vsel %vm2294, %v2264, %v1974
      %v2298 = vsel %vm2294, %v2265, %v1976
      %v2299 = vsel %vm2294, %v2266, %v1978
      %v2300 = vsel %vm2294, %v2267, %v1980
      %v2301 = vsel %vm2294, %v2268, %v1982
      %v2302 = vsel %vm2294, %v2269, %v1984
      %v2303 = vsel %vm2294, %v2270, %v1986
      %v2304 = vsel %vm2294, %v2271, %v1988
      %v2305 = vsel %vm2294, %v2272, %v1990
      %v2306 = vsel %vm2294, %v2273, %v1992
      %v2307 = vsel %vm2294, %v2274, %v1994
      %v2308 = vsel %vm2294, %v2275, %v1996
      %v2309 = vsel %vm2294, %v2276, %v1998
      %v2310 = vsel %vm2294, %v2277, %v2000
      %v2311 = vsel %vm2294, %v2278, %v2002
      %v2312 = vsel %vm2294, %v2279, %v2004
      %v2313 = vsel %vm2294, %v2280, %v2006
      %v2314 = vsel %vm2294, %v2281, %v2008
      %v2315 = vsel %vm2294, %v2282, %v2010
      %v2316 = vsel %vm2294, %v2283, %v2012
      %v2317 = vsel %vm2294, %v2284, %v2014
      %v2318 = vsel %vm2294, %v2285, %v2016
      %v2319 = vsel %vm2294, %v2286, %v2018
      %v2320 = vsel %vm2294, %v2287, %v2020
      %v2321 = vsel %vm2294, %v2288, %v2022
      %v2322 = vsel %vm2294, %v2289, %v2024
      %v2323 = vsel %vm2294, %v2290, %v2026
      %v2324 = vsel %vm2294, %v2291, %v2028
      %v2325 = vsel %vm2294, %v2292, %v2030
      %v2326 = vsel %vm2294, %v2293, %v2032
      %v2327 = vpack.c.bf16 %v2296, %v2295
      %v2328 = vpack.c.bf16 %v2298, %v2297
      %v2329 = vpack.c.bf16 %v2300, %v2299
      %v2330 = vpack.c.bf16 %v2302, %v2301
      %v2331 = vpack.c.bf16 %v2304, %v2303
      %v2332 = vpack.c.bf16 %v2306, %v2305
      %v2333 = vpack.c.bf16 %v2308, %v2307
      %v2334 = vpack.c.bf16 %v2310, %v2309
      %v2335 = vpack.c.bf16 %v2312, %v2311
      %v2336 = vpack.c.bf16 %v2314, %v2313
      %v2337 = vpack.c.bf16 %v2316, %v2315
      %v2338 = vpack.c.bf16 %v2318, %v2317
      %v2339 = vpack.c.bf16 %v2320, %v2319
      %v2340 = vpack.c.bf16 %v2322, %v2321
      %v2341 = vpack.c.bf16 %v2324, %v2323
      %v2342 = vpack.c.bf16 %v2326, %v2325
      %v2343 = vld [vmem:[%s4] sm:$0xf]
      %v2344 = vld [vmem:[%s4 + $0x4] sm:$0xf]
      %v2345 = vld [vmem:[%s4 + $0x8] sm:$0xf]
      %v2346 = vld [vmem:[%s4 + $0xc] sm:$0xf]
      %v2347 = vld [vmem:[%s4 + $0x10] sm:$0xf]
      %v2348 = vld [vmem:[%s4 + $0x14] sm:$0xf]
      %v2349 = vld [vmem:[%s4 + $0x18] sm:$0xf]
      %v2350 = vld [vmem:[%s4 + $0x1c] sm:$0xf]
      %v2351 = vld [vmem:[%s4 + $0x20] sm:$0xf]
      %v2352 = vld [vmem:[%s5] sm:$0x1]
      %v2354 = vperm.slane %v2352, 0
      %v2365 = vunpack.c.l.b16 %v2343
      %v2366 = vunpack.c.l.b16 %v2344
      %v2367 = vunpack.c.l.b16 %v2345
      %v2368 = vunpack.c.l.b16 %v2346
      %v2369 = vunpack.c.l.b16 %v2347
      %v2370 = vunpack.c.l.b16 %v2348
      %v2371 = vunpack.c.l.b16 %v2349
      %v2372 = vunpack.c.l.b16 %v2350
      %v2373 = vunpack.c.l.b16 %v2351
      %v2374 = vpack.c.b16 %v2366, %v2365
      %v2375 = vpack.c.b16 %v2368, %v2367
      %v2376 = vpack.c.b16 %v2370, %v2369
      %v2377 = vpack.c.b16 %v2372, %v2371
      %v2378 = vpack.c.b16 %v2373, %v2373
      %vm2383 = vcmask 588800
      %v2385 = vsel %vm2383, %v2327, 0
      %v2388 = vsel %vm2383, %v2328, 0
      %v2391 = vsel %vm2383, %v2329, 0
      %v2394 = vsel %vm2383, %v2330, 0
      %v2397 = vsel %vm2383, %v2331, 0
      %v2400 = vsel %vm2383, %v2332, 0
      %v2403 = vsel %vm2383, %v2333, 0
      %v2406 = vsel %vm2383, %v2334, 0
      %v2409 = vsel %vm2383, %v2335, 0
      %v2412 = vsel %vm2383, %v2336, 0
      %v2415 = vsel %vm2383, %v2337, 0
      %v2418 = vsel %vm2383, %v2338, 0
      %v2421 = vsel %vm2383, %v2339, 0
      %v2424 = vsel %vm2383, %v2340, 0
      %v2427 = vsel %vm2383, %v2341, 0
      %v2430 = vsel %vm2383, %v2342, 0
      %vm2432 = vcmask 1043456
      %v2434 = vsel %vm2432, %v2378, 0
      %2436 = vmatpush.bf16.msra.mxu0 0
      %2437 = vmatpush.bf16.msra.mxu0 0
      %2438 = vmatpush.bf16.msra.mxu0 0
      %2439 = vmatpush.bf16.msra.mxu0 %v2434
      %2440 = vmatpush.bf16.msra.mxu0 %v2377
      %2441 = vmatpush.bf16.msra.mxu0 %v2376
      %2442 = vmatpush.bf16.msra.mxu0 %v2375
      %2443 = vmatpush.bf16.msra.mxu0 %v2374
      %2444 = vmatmul.bf16.gmra.mxu0 %v2385
      %v2445 = vpop.f32.mrf.mxu0
      %v2446 = vadd.f32 %v2354, %v2445
      %v2447 = vpop.f32.mrf.mxu0
      %v2448 = vadd.f32 %v2354, %v2447
      %2449 = vmatmul.bf16.gmra.mxu0 %v2388
      %v2450 = vpop.f32.mrf.mxu0
      %v2451 = vadd.f32 %v2354, %v2450
      %v2452 = vpop.f32.mrf.mxu0
      %v2453 = vadd.f32 %v2354, %v2452
      %2454 = vmatmul.bf16.gmra.mxu0 %v2391
      %v2455 = vpop.f32.mrf.mxu0
      %v2456 = vadd.f32 %v2354, %v2455
      %v2457 = vpop.f32.mrf.mxu0
      %v2458 = vadd.f32 %v2354, %v2457
      %2459 = vmatmul.bf16.gmra.mxu0 %v2394
      %v2460 = vpop.f32.mrf.mxu0
      %v2461 = vadd.f32 %v2354, %v2460
      %v2462 = vpop.f32.mrf.mxu0
      %v2463 = vadd.f32 %v2354, %v2462
      %2464 = vmatmul.bf16.gmra.mxu0 %v2397
      %v2465 = vpop.f32.mrf.mxu0
      %v2466 = vadd.f32 %v2354, %v2465
      %v2467 = vpop.f32.mrf.mxu0
      %v2468 = vadd.f32 %v2354, %v2467
      %2469 = vmatmul.bf16.gmra.mxu0 %v2400
      %v2470 = vpop.f32.mrf.mxu0
      %v2471 = vadd.f32 %v2354, %v2470
      %v2472 = vpop.f32.mrf.mxu0
      %v2473 = vadd.f32 %v2354, %v2472
      %2474 = vmatmul.bf16.gmra.mxu0 %v2403
      %v2475 = vpop.f32.mrf.mxu0
      %v2476 = vadd.f32 %v2354, %v2475
      %v2477 = vpop.f32.mrf.mxu0
      %v2478 = vadd.f32 %v2354, %v2477
      %2479 = vmatmul.bf16.gmra.mxu0 %v2406
      %v2480 = vpop.f32.mrf.mxu0
      %v2481 = vadd.f32 %v2354, %v2480
      %v2482 = vpop.f32.mrf.mxu0
      %v2483 = vadd.f32 %v2354, %v2482
      %2484 = vmatmul.bf16.gmra.mxu0 %v2409
      %v2485 = vpop.f32.mrf.mxu0
      %v2486 = vadd.f32 %v2354, %v2485
      %v2487 = vpop.f32.mrf.mxu0
      %v2488 = vadd.f32 %v2354, %v2487
      %2489 = vmatmul.bf16.gmra.mxu0 %v2412
      %v2490 = vpop.f32.mrf.mxu0
      %v2491 = vadd.f32 %v2354, %v2490
      %v2492 = vpop.f32.mrf.mxu0
      %v2493 = vadd.f32 %v2354, %v2492
      %2494 = vmatmul.bf16.gmra.mxu0 %v2415
      %v2495 = vpop.f32.mrf.mxu0
      %v2496 = vadd.f32 %v2354, %v2495
      %v2497 = vpop.f32.mrf.mxu0
      %v2498 = vadd.f32 %v2354, %v2497
      %2499 = vmatmul.bf16.gmra.mxu0 %v2418
      %v2500 = vpop.f32.mrf.mxu0
      %v2501 = vadd.f32 %v2354, %v2500
      %v2502 = vpop.f32.mrf.mxu0
      %v2503 = vadd.f32 %v2354, %v2502
      %2504 = vmatmul.bf16.gmra.mxu0 %v2421
      %v2505 = vpop.f32.mrf.mxu0
      %v2506 = vadd.f32 %v2354, %v2505
      %v2507 = vpop.f32.mrf.mxu0
      %v2508 = vadd.f32 %v2354, %v2507
      %2509 = vmatmul.bf16.gmra.mxu0 %v2424
      %v2510 = vpop.f32.mrf.mxu0
      %v2511 = vadd.f32 %v2354, %v2510
      %v2512 = vpop.f32.mrf.mxu0
      %v2513 = vadd.f32 %v2354, %v2512
      %2514 = vmatmul.bf16.gmra.mxu0 %v2427
      %v2515 = vpop.f32.mrf.mxu0
      %v2516 = vadd.f32 %v2354, %v2515
      %v2517 = vpop.f32.mrf.mxu0
      %v2518 = vadd.f32 %v2354, %v2517
      %2519 = vmatmul.bf16.gmra.mxu0 %v2430
      %v2520 = vpop.f32.mrf.mxu0
      %v2521 = vadd.f32 %v2354, %v2520
      %v2522 = vpop.f32.mrf.mxu0
      %v2523 = vadd.f32 %v2354, %v2522
      %2524 = vdwg.mxu0
      %2525 = vst.msk [vmem:[%s271] sm:$0xff] %vm465, %v2446
      %2526 = vst.msk [vmem:[%s271 + $0x8] sm:$0xff] %vm465, %v2448
      %2527 = vst.msk [vmem:[%s271 + $0x10] sm:$0xff] %vm465, %v2451
      %2528 = vst.msk [vmem:[%s271 + $0x18] sm:$0xff] %vm465, %v2453
      %2529 = vst.msk [vmem:[%s271 + $0x20] sm:$0xff] %vm465, %v2456
      %2530 = vst.msk [vmem:[%s271 + $0x28] sm:$0xff] %vm465, %v2458
      %2531 = vst.msk [vmem:[%s271 + $0x30] sm:$0xff] %vm465, %v2461
      %2532 = vst.msk [vmem:[%s271 + $0x38] sm:$0xff] %vm465, %v2463
      %2533 = vst.msk [vmem:[%s271 + $0x40] sm:$0xff] %vm465, %v2466
      %2534 = vst.msk [vmem:[%s271 + $0x48] sm:$0xff] %vm465, %v2468
      %2535 = vst.msk [vmem:[%s271 + $0x50] sm:$0xff] %vm465, %v2471
      %2536 = vst.msk [vmem:[%s271 + $0x58] sm:$0xff] %vm465, %v2473
      %2537 = vst.msk [vmem:[%s271 + $0x60] sm:$0xff] %vm465, %v2476
      %2538 = vst.msk [vmem:[%s271 + $0x68] sm:$0xff] %vm465, %v2478
      %2539 = vst.msk [vmem:[%s271 + $0x70] sm:$0xff] %vm465, %v2481
      %2540 = vst.msk [vmem:[%s271 + $0x78] sm:$0xff] %vm465, %v2483
      %2541 = vst.msk [vmem:[%s271 + $0x80] sm:$0xff] %vm465, %v2486
      %2542 = vst.msk [vmem:[%s271 + $0x88] sm:$0xff] %vm465, %v2488
      %2543 = vst.msk [vmem:[%s271 + $0x90] sm:$0xff] %vm465, %v2491
      %2544 = vst.msk [vmem:[%s271 + $0x98] sm:$0xff] %vm465, %v2493
      %2545 = vst.msk [vmem:[%s271 + $0xa0] sm:$0xff] %vm465, %v2496
      %2546 = vst.msk [vmem:[%s271 + $0xa8] sm:$0xff] %vm465, %v2498
      %2547 = vst.msk [vmem:[%s271 + $0xb0] sm:$0xff] %vm465, %v2501
      %2548 = vst.msk [vmem:[%s271 + $0xb8] sm:$0xff] %vm465, %v2503
      %2549 = vst.msk [vmem:[%s271 + $0xc0] sm:$0xff] %vm465, %v2506
      %2550 = vst.msk [vmem:[%s271 + $0xc8] sm:$0xff] %vm465, %v2508
      %2551 = vst.msk [vmem:[%s271 + $0xd0] sm:$0xff] %vm465, %v2511
      %2552 = vst.msk [vmem:[%s271 + $0xd8] sm:$0xff] %vm465, %v2513
      %2553 = vst.msk [vmem:[%s271 + $0xe0] sm:$0xff] %vm465, %v2516
      %2554 = vst.msk [vmem:[%s271 + $0xe8] sm:$0xff] %vm465, %v2518
      %2555 = vst.msk [vmem:[%s271 + $0xf0] sm:$0xff] %vm465, %v2521
      %2556 = vst.msk [vmem:[%s271 + $0xf8] sm:$0xff] %vm465, %v2523
      %p2557 = scmp.lt.s32.totalorder %s17, 1
      %s2558 = scalar_select %p2557, %s17, 1
      %s2559 = smul.addr %s2558, 32
      %s2560 = smul.addr %s2559, 8
      %s2561 = scalar_lea.vmem %s6, %s2560
      // Predicated region
      $region45: #{rdnet_forward.5} parent=43 // pred_check
        %p2562 = pneg %p171
      $region46: #{rdnet_forward.5} parent=43 // pred_check_branch
        %2564 = sbr.rel (%p2562) target = $region48
      $region47: #{rdnet_forward.5} parent=43 // pred_region
        _
      $region48: #{rdnet_forward.5} parent=43 // pred_fallthru
        _
    $region44: #{rdnet_forward.5} parent=5 // pred_fallthru
      _
    %p2565 = scmp.le.s32.totalorder 2, %s12
    // Predicated region
    $region49: #{rdnet_forward.5} parent=5 // pred_check
      %p2566 = pneg %p2565
    $region50: #{rdnet_forward.5} parent=5 // pred_check_branch
      %2568 = sbr.rel (%p2566) target = $region52
    $region51: #{rdnet_forward.5} parent=5 // pred_region
      %s2569 = ssub.s32 %s12, 2
      // Predicated region
      $region53: #{rdnet_forward.5} parent=51 // pred_check
        %p2570 = pneg %p177
      $region54: #{rdnet_forward.5} parent=51 // pred_check_branch
        %2572 = sbr.rel (%p2570) target = $region56
      $region55: #{rdnet_forward.5} parent=51 // pred_region
        %p2573 = scmp.lt.s32.totalorder %s18, 1
        %s2574 = scalar_select %p2573, %s18, 1
        %s2575 = smul.addr %s2574, 32
        %s2576 = smul.addr %s2575, 8
        %s2577 = scalar_lea.vmem %s6, %s2576
      $region56: #{rdnet_forward.5} parent=51 // pred_fallthru
        _
    $region52: #{rdnet_forward.5} parent=5 // pred_fallthru
      _
  $region6: #{rdnet_forward.5} parent=0 // loop_footer
    %s16 = sadd.s32 1, %s12
  $region7: #{rdnet_forward.5} parent=0 // loop_footer_branch
    %11 = sbr.rel target = $region3
  $region8: #{rdnet_forward.5} parent=0 // loop_exit
    _

// kernel: rdnet_forward.3
$region0: #{rdnet_forward.3}
  #allocation0 [shape = 'u32[]', space=smem, size = 0x4, offset = 0x4, fixed_abs, tag = 'smem constant byte address 0x4 - core index']
  #allocation1 [shape = 'u32[72,128]{1,0:T(1,128)}', space=vmem, size = 0x9000, scoped, tag = 'internal scratch']
  #allocation2 [shape = 'f32[18,18,16]{2,1,0:T(8,128)}', space=vmem, size = 0x36000, scoped, tag = 'scratch operand']
  %s0 = inlined_call_operand.vmem [shape: f32[2,256,8], index: 0, kind: input, shape index: {}]
  %s1 = inlined_call_operand.vmem [shape: bf16[72,4], index: 1, kind: input, shape index: {}]
  %s2 = inlined_call_operand.vmem [shape: bf16[108,4], index: 2, kind: input, shape index: {}]
  %s3 = inlined_call_operand.vmem [shape: f32[1,4], index: 3, kind: input, shape index: {}]
  %s4 = inlined_call_operand.vmem [shape: f32[1,4], index: 4, kind: input, shape index: {}]
  %s5 = inlined_call_operand.vmem [shape: bf16[16,8], index: 5, kind: input, shape index: {}]
  %s6 = inlined_call_operand.vmem [shape: f32[1,8], index: 6, kind: input, shape index: {}]
  %s7 = inlined_call_operand.vmem [shape: f32[2,256,8], index: 7, kind: output, shape index: {}]
  %s8 = sld [smem:[#allocation0]]
  $region61: #{rdnet_forward.3} parent=0
    _
  %s10 = ssub.s32 1, %s8
  %s11 = scalar_select 0, %s10, %s8
  loop: start=0, step=1, limit=4
  $region2: #{rdnet_forward.3} parent=0 // loop_pre_header
    _
  $region3: #{rdnet_forward.3} parent=0 // loop_header
    %s13 = sphi 0, %s17
    %p14 = scmp.ge.s32.totalorder %s13, 4
    %s23 = sphi 0, %s25
    %s26 = sphi 0, %s23
    %s27 = sphi 0, %s26
    %s43 = sphi 0, %s27
    %s47 = sphi 0, %s47
    %s49 = sphi 0, %s47
    %s50 = sphi 0, %s49
    %s64 = sphi 0, %s50
    %s68 = sphi 0, %s68
    %s70 = sphi 0, %s68
    %s71 = sphi 0, %s70
    %s85 = sphi 0, %s71
    %s89 = sphi 0, %s89
    %s91 = sphi 0, %s89
    %s92 = sphi 0, %s91
    %s106 = sphi 0, %s92
    %s110 = sphi 0, %s110
    %s112 = sphi 0, %s110
    %s113 = sphi 0, %s112
    %s127 = sphi 0, %s113
    %s131 = sphi 0, %s131
    %s133 = sphi 0, %s131
    %s134 = sphi 0, %s133
    %s148 = sphi 0, %s134
    %s152 = sphi 0, %s152
    %s154 = sphi 0, %s152
    %s155 = sphi 0, %s154
    %s169 = sphi 0, %s155
    %s175 = sphi 0, %s177
    %s178 = sphi 0, %s175
    %s179 = sphi 0, %s178
    %s195 = sphi 0, %s179
  $region4: #{rdnet_forward.3} parent=0 // loop_header_branch
    %16 = sbr.rel (%p14) target = $region8
  $region5: #{rdnet_forward.3} parent=0 // loop_body
    %s18 = ssub.s32 %s13, 1
    %s19 = ssub.s32 %s13, 2
    %s20 = sadd.s32 %s13, 1
    %s21 = ssub.s32 %s13, %s20
    %p22 = scmp.eq.s32.totalorder %s21, 0
    %s24 = sadd.s32 %s23, 1
    %s25 = scalar_select %p22, %s23, %s24
    %p28 = pneg %p22
    %p29 = scmp.eq.s32.totalorder %s13, 1
    %p30 = por %p28, %p29
    %p31 = scmp.ne.s32.totalorder %s23, %s26
    %p32 = scmp.eq.s32.totalorder %s13, 0
    %p33 = por %p31, %p32
    %p34 = scmp.ne.s32.totalorder %s23, %s26
    %p35 = scmp.eq.s32.totalorder %s18, 1
    %p36 = por %p34, %p35
    %p37 = scmp.ne.s32.totalorder %s26, %s27
    %p38 = scmp.eq.s32.totalorder %s18, 0
    %p39 = por %p37, %p38
    %p40 = scmp.ne.s32.totalorder %s26, %s27
    %p41 = scmp.eq.s32.totalorder %s19, 1
    %p42 = por %p40, %p41
    %p44 = scmp.ne.s32.totalorder %s27, %s43
    %p45 = scmp.eq.s32.totalorder %s19, 0
    %p46 = por %p44, %p45
    %s48 = sadd.s32 %s47, 1
    %p51 = scmp.eq.s32.totalorder %s13, 1
    %p52 = scmp.ne.s32.totalorder %s47, %s49
    %p53 = scmp.eq.s32.totalorder %s13, 0
    %p54 = por %p52, %p53
    %p55 = scmp.ne.s32.totalorder %s47, %s49
    %p56 = scmp.eq.s32.totalorder %s18, 1
    %p57 = por %p55, %p56
    %p58 = scmp.ne.s32.totalorder %s49, %s50
    %p59 = scmp.eq.s32.totalorder %s18, 0
    %p60 = por %p58, %p59
    %p61 = scmp.ne.s32.totalorder %s49, %s50
    %p62 = scmp.eq.s32.totalorder %s19, 1
    %p63 = por %p61, %p62
    %p65 = scmp.ne.s32.totalorder %s50, %s64
    %p66 = scmp.eq.s32.totalorder %s19, 0
    %p67 = por %p65, %p66
    %s69 = sadd.s32 %s68, 1
    %p72 = scmp.eq.s32.totalorder %s13, 1
    %p73 = scmp.ne.s32.totalorder %s68, %s70
    %p74 = scmp.eq.s32.totalorder %s13, 0
    %p75 = por %p73, %p74
    %p76 = scmp.ne.s32.totalorder %s68, %s70
    %p77 = scmp.eq.s32.totalorder %s18, 1
    %p78 = por %p76, %p77
    %p79 = scmp.ne.s32.totalorder %s70, %s71
    %p80 = scmp.eq.s32.totalorder %s18, 0
    %p81 = por %p79, %p80
    %p82 = scmp.ne.s32.totalorder %s70, %s71
    %p83 = scmp.eq.s32.totalorder %s19, 1
    %p84 = por %p82, %p83
    %p86 = scmp.ne.s32.totalorder %s71, %s85
    %p87 = scmp.eq.s32.totalorder %s19, 0
    %p88 = por %p86, %p87
    %s90 = sadd.s32 %s89, 1
    %p93 = scmp.eq.s32.totalorder %s13, 1
    %p94 = scmp.ne.s32.totalorder %s89, %s91
    %p95 = scmp.eq.s32.totalorder %s13, 0
    %p96 = por %p94, %p95
    %p97 = scmp.ne.s32.totalorder %s89, %s91
    %p98 = scmp.eq.s32.totalorder %s18, 1
    %p99 = por %p97, %p98
    %p100 = scmp.ne.s32.totalorder %s91, %s92
    %p101 = scmp.eq.s32.totalorder %s18, 0
    %p102 = por %p100, %p101
    %p103 = scmp.ne.s32.totalorder %s91, %s92
    %p104 = scmp.eq.s32.totalorder %s19, 1
    %p105 = por %p103, %p104
    %p107 = scmp.ne.s32.totalorder %s92, %s106
    %p108 = scmp.eq.s32.totalorder %s19, 0
    %p109 = por %p107, %p108
    %s111 = sadd.s32 %s110, 1
    %p114 = scmp.eq.s32.totalorder %s13, 1
    %p115 = scmp.ne.s32.totalorder %s110, %s112
    %p116 = scmp.eq.s32.totalorder %s13, 0
    %p117 = por %p115, %p116
    %p118 = scmp.ne.s32.totalorder %s110, %s112
    %p119 = scmp.eq.s32.totalorder %s18, 1
    %p120 = por %p118, %p119
    %p121 = scmp.ne.s32.totalorder %s112, %s113
    %p122 = scmp.eq.s32.totalorder %s18, 0
    %p123 = por %p121, %p122
    %p124 = scmp.ne.s32.totalorder %s112, %s113
    %p125 = scmp.eq.s32.totalorder %s19, 1
    %p126 = por %p124, %p125
    %p128 = scmp.ne.s32.totalorder %s113, %s127
    %p129 = scmp.eq.s32.totalorder %s19, 0
    %p130 = por %p128, %p129
    %s132 = sadd.s32 %s131, 1
    %p135 = scmp.eq.s32.totalorder %s13, 1
    %p136 = scmp.ne.s32.totalorder %s131, %s133
    %p137 = scmp.eq.s32.totalorder %s13, 0
    %p138 = por %p136, %p137
    %p139 = scmp.ne.s32.totalorder %s131, %s133
    %p140 = scmp.eq.s32.totalorder %s18, 1
    %p141 = por %p139, %p140
    %p142 = scmp.ne.s32.totalorder %s133, %s134
    %p143 = scmp.eq.s32.totalorder %s18, 0
    %p144 = por %p142, %p143
    %p145 = scmp.ne.s32.totalorder %s133, %s134
    %p146 = scmp.eq.s32.totalorder %s19, 1
    %p147 = por %p145, %p146
    %p149 = scmp.ne.s32.totalorder %s134, %s148
    %p150 = scmp.eq.s32.totalorder %s19, 0
    %p151 = por %p149, %p150
    %s153 = sadd.s32 %s152, 1
    %p156 = scmp.eq.s32.totalorder %s13, 1
    %p157 = scmp.ne.s32.totalorder %s152, %s154
    %p158 = scmp.eq.s32.totalorder %s13, 0
    %p159 = por %p157, %p158
    %p160 = scmp.ne.s32.totalorder %s152, %s154
    %p161 = scmp.eq.s32.totalorder %s18, 1
    %p162 = por %p160, %p161
    %p163 = scmp.ne.s32.totalorder %s154, %s155
    %p164 = scmp.eq.s32.totalorder %s18, 0
    %p165 = por %p163, %p164
    %p166 = scmp.ne.s32.totalorder %s154, %s155
    %p167 = scmp.eq.s32.totalorder %s19, 1
    %p168 = por %p166, %p167
    %p170 = scmp.ne.s32.totalorder %s155, %s169
    %p171 = scmp.eq.s32.totalorder %s19, 0
    %p172 = por %p170, %p171
    %s173 = ssub.s32 %s13, %s20
    %p174 = scmp.eq.s32.totalorder %s173, 0
    %s176 = sadd.s32 %s175, 1
    %s177 = scalar_select %p174, %s175, %s176
    %p180 = pneg %p174
    %p181 = scmp.eq.s32.totalorder %s13, 1
    %p182 = por %p180, %p181
    %p183 = scmp.ne.s32.totalorder %s175, %s178
    %p184 = scmp.eq.s32.totalorder %s13, 0
    %p185 = por %p183, %p184
    %p186 = scmp.ne.s32.totalorder %s175, %s178
    %p187 = scmp.eq.s32.totalorder %s18, 1
    %p188 = por %p186, %p187
    %p189 = scmp.ne.s32.totalorder %s178, %s179
    %p190 = scmp.eq.s32.totalorder %s18, 0
    %p191 = por %p189, %p190
    %p192 = scmp.ne.s32.totalorder %s178, %s179
    %p193 = scmp.eq.s32.totalorder %s19, 1
    %p194 = por %p192, %p193
    %p196 = scmp.ne.s32.totalorder %s179, %s195
    %p197 = scmp.eq.s32.totalorder %s19, 0
    %p198 = por %p196, %p197
    %p199 = scmp.le.s32.totalorder 1, %s13
    %p200 = scmp.lt.s32.totalorder %s13, 3
    %p201 = pnand %p199, %p200
    %p202 = pneg %p201
    // Predicated region
    $region9: #{rdnet_forward.3} parent=5 // pred_check
      _
    $region10: #{rdnet_forward.3} parent=5 // pred_check_branch
      %204 = sbr.rel (%p201) target = $region12
    $region11: #{rdnet_forward.3} parent=5 // pred_region
      %s205 = ssub.s32 %s13, 1
      // Predicated region
      $region13: #{rdnet_forward.3} parent=11 // pred_check
        %p206 = pneg %p60
      $region14: #{rdnet_forward.3} parent=11 // pred_check_branch
        %208 = sbr.rel (%p206) target = $region16
      $region15: #{rdnet_forward.3} parent=11 // pred_region
        _
      $region16: #{rdnet_forward.3} parent=11 // pred_fallthru
        _
      // Predicated region
      $region17: #{rdnet_forward.3} parent=11 // pred_check
        %p209 = pneg %p81
      $region18: #{rdnet_forward.3} parent=11 // pred_check_branch
        %211 = sbr.rel (%p209) target = $region20
      $region19: #{rdnet_forward.3} parent=11 // pred_region
        _
      $region20: #{rdnet_forward.3} parent=11 // pred_fallthru
        _
      // Predicated region
      $region21: #{rdnet_forward.3} parent=11 // pred_check
        %p212 = pneg %p102
      $region22: #{rdnet_forward.3} parent=11 // pred_check_branch
        %214 = sbr.rel (%p212) target = $region24
      $region23: #{rdnet_forward.3} parent=11 // pred_region
        _
      $region24: #{rdnet_forward.3} parent=11 // pred_fallthru
        _
      // Predicated region
      $region25: #{rdnet_forward.3} parent=11 // pred_check
        %p215 = pneg %p123
      $region26: #{rdnet_forward.3} parent=11 // pred_check_branch
        %217 = sbr.rel (%p215) target = $region28
      $region27: #{rdnet_forward.3} parent=11 // pred_region
        _
      $region28: #{rdnet_forward.3} parent=11 // pred_fallthru
        _
      // Predicated region
      $region29: #{rdnet_forward.3} parent=11 // pred_check
        %p218 = pneg %p144
      $region30: #{rdnet_forward.3} parent=11 // pred_check_branch
        %220 = sbr.rel (%p218) target = $region32
      $region31: #{rdnet_forward.3} parent=11 // pred_region
        _
      $region32: #{rdnet_forward.3} parent=11 // pred_fallthru
        _
      // Predicated region
      $region33: #{rdnet_forward.3} parent=11 // pred_check
        %p221 = pneg %p165
      $region34: #{rdnet_forward.3} parent=11 // pred_check_branch
        %223 = sbr.rel (%p221) target = $region36
      $region35: #{rdnet_forward.3} parent=11 // pred_region
        _
      $region36: #{rdnet_forward.3} parent=11 // pred_fallthru
        _
    $region12: #{rdnet_forward.3} parent=5 // pred_fallthru
      _
    %p224 = scmp.lt.s32.totalorder %s13, 2
    // Predicated region
    $region37: #{rdnet_forward.3} parent=5 // pred_check
      %p225 = pneg %p224
    $region38: #{rdnet_forward.3} parent=5 // pred_check_branch
      %227 = sbr.rel (%p225) target = $region40
    $region39: #{rdnet_forward.3} parent=5 // pred_region
      // Predicated region
      $region41: #{rdnet_forward.3} parent=39 // pred_check
        %p228 = pneg %p33
      $region42: #{rdnet_forward.3} parent=39 // pred_check_branch
        %230 = sbr.rel (%p228) target = $region44
      $region43: #{rdnet_forward.3} parent=39 // pred_region
        %p231 = scmp.lt.s32.totalorder %s13, 1
        %s232 = scalar_select %p231, %s13, 1
        %s233 = smul.addr %s232, 32
        %s234 = smul.addr %s233, 8
        %s235 = scalar_lea.vmem %s0, %s234
      $region44: #{rdnet_forward.3} parent=39 // pred_fallthru
        _
    $region40: #{rdnet_forward.3} parent=5 // pred_fallthru
      _
    %p236 = scmp.le.s32.totalorder 1, %s13
    %p237 = scmp.lt.s32.totalorder %s13, 3
    %p238 = pnand %p236, %p237
    %p239 = pneg %p238
    // Predicated region
    $region45: #{rdnet_forward.3} parent=5 // pred_check
      _
    $region46: #{rdnet_forward.3} parent=5 // pred_check_branch
      %241 = sbr.rel (%p238) target = $region48
    $region47: #{rdnet_forward.3} parent=5 // pred_region
      %s242 = ssub.s32 %s13, 1
      %p243 = scmp.lt.s32.totalorder %s18, 1
      %s244 = scalar_select %p243, %s18, 1
      %s245 = smul.addr %s244, 32
      %s246 = smul.addr %s245, 8
      %s247 = scalar_lea.vmem %s0, %s246
      %p248 = pneg %p39
      %p249 = pneg %p36
      %p250 = pneg %p60
      %p251 = pneg %p57
      %p252 = pneg %p81
      %p253 = pneg %p78
      %p254 = pneg %p102
      %p255 = pneg %p99
      %p256 = pneg %p123
      %p257 = pneg %p120
      %p258 = pneg %p144
      %p259 = pneg %p141
      %p260 = pneg %p165
      %p261 = pneg %p162
      %p262 = pneg %p191
      %p263 = pneg %p188
      %p264 = scmp.lt.s32.totalorder %s18, 1
      %s265 = scalar_select %p264, %s18, 1
      %s266 = smul.addr %s265, 32
      %s267 = smul.addr %s266, 8
      %s268 = scalar_lea.vmem %s7, %s267
      %p269 = scmp.lt.s32.totalorder %s18, 1
      %s270 = scalar_select %p269, %s18, 1
      %s271 = smul.addr %s270, 32
      %s272 = smul.addr %s271, 8
      %s273 = scalar_lea.vmem %s0, %s272
      %p274 = scmp.lt.s32.totalorder %s18, 1
      %s275 = scalar_select %p274, %s18, 1
      %s276 = smul.addr %s275, 32
      %s277 = smul.addr %s276, 8
      %s278 = scalar_lea.vmem %s7, %s277
      %vm280 = vcmask 130048
      %281 = vst.msk [vmem:[#allocation2] sm:$0xff] %vm280, 0.0
      %282 = vst.msk [vmem:[#allocation2 + $0x8] sm:$0xff] %vm280, 0.0
      %vm283 = vcmask 123904
      %284 = vst.msk [vmem:[#allocation2 + $0x10] sm:$0x3] %vm283, 0.0
      %285 = vst.msk [vmem:[#allocation2 + $0x18] sm:$0xff] %vm280, 0.0
      %286 = vst.msk [vmem:[#allocation2 + $0x20] sm:$0xff] %vm280, 0.0
      %287 = vst.msk [vmem:[#allocation2 + $0x28] sm:$0x3] %vm283, 0.0
      %288 = vst.msk [vmem:[#allocation2 + $0x30] sm:$0xff] %vm280, 0.0
      %289 = vst.msk [vmem:[#allocation2 + $0x38] sm:$0xff] %vm280, 0.0
      %290 = vst.msk [vmem:[#allocation2 + $0x40] sm:$0x3] %vm283, 0.0
      %291 = vst.msk [vmem:[#allocation2 + $0x48] sm:$0xff] %vm280, 0.0
      %292 = vst.msk [vmem:[#allocation2 + $0x50] sm:$0xff] %vm280, 0.0
      %293 = vst.msk [vmem:[#allocation2 + $0x58] sm:$0x3] %vm283, 0.0
      %294 = vst.msk [vmem:[#allocation2 + $0x60] sm:$0xff] %vm280, 0.0
      %295 = vst.msk [vmem:[#allocation2 + $0x68] sm:$0xff] %vm280, 0.0
      %296 = vst.msk [vmem:[#allocation2 + $0x70] sm:$0x3] %vm283, 0.0
      %297 = vst.msk [vmem:[#allocation2 + $0x78] sm:$0xff] %vm280, 0.0
      %298 = vst.msk [vmem:[#allocation2 + $0x80] sm:$0xff] %vm280, 0.0
      %299 = vst.msk [vmem:[#allocation2 + $0x88] sm:$0x3] %vm283, 0.0
      %300 = vst.msk [vmem:[#allocation2 + $0x90] sm:$0xff] %vm280, 0.0
      %301 = vst.msk [vmem:[#allocation2 + $0x98] sm:$0xff] %vm280, 0.0
      %302 = vst.msk [vmem:[#allocation2 + $0xa0] sm:$0x3] %vm283, 0.0
      %303 = vst.msk [vmem:[#allocation2 + $0xa8] sm:$0xff] %vm280, 0.0
      %304 = vst.msk [vmem:[#allocation2 + $0xb0] sm:$0xff] %vm280, 0.0
      %305 = vst.msk [vmem:[#allocation2 + $0xb8] sm:$0x3] %vm283, 0.0
      %306 = vst.msk [vmem:[#allocation2 + $0xc0] sm:$0xff] %vm280, 0.0
      %307 = vst.msk [vmem:[#allocation2 + $0xc8] sm:$0xff] %vm280, 0.0
      %308 = vst.msk [vmem:[#allocation2 + $0xd0] sm:$0x3] %vm283, 0.0
      %309 = vst.msk [vmem:[#allocation2 + $0xd8] sm:$0xff] %vm280, 0.0
      %310 = vst.msk [vmem:[#allocation2 + $0xe0] sm:$0xff] %vm280, 0.0
      %311 = vst.msk [vmem:[#allocation2 + $0xe8] sm:$0x3] %vm283, 0.0
      %312 = vst.msk [vmem:[#allocation2 + $0xf0] sm:$0xff] %vm280, 0.0
      %313 = vst.msk [vmem:[#allocation2 + $0xf8] sm:$0xff] %vm280, 0.0
      %314 = vst.msk [vmem:[#allocation2 + $0x100] sm:$0x3] %vm283, 0.0
      %315 = vst.msk [vmem:[#allocation2 + $0x108] sm:$0xff] %vm280, 0.0
      %316 = vst.msk [vmem:[#allocation2 + $0x110] sm:$0xff] %vm280, 0.0
      %317 = vst.msk [vmem:[#allocation2 + $0x118] sm:$0x3] %vm283, 0.0
      %318 = vst.msk [vmem:[#allocation2 + $0x120] sm:$0xff] %vm280, 0.0
      %319 = vst.msk [vmem:[#allocation2 + $0x128] sm:$0xff] %vm280, 0.0
      %320 = vst.msk [vmem:[#allocation2 + $0x130] sm:$0x3] %vm283, 0.0
      %321 = vst.msk [vmem:[#allocation2 + $0x138] sm:$0xff] %vm280, 0.0
      %322 = vst.msk [vmem:[#allocation2 + $0x140] sm:$0xff] %vm280, 0.0
      %323 = vst.msk [vmem:[#allocation2 + $0x148] sm:$0x3] %vm283, 0.0
      %324 = vst.msk [vmem:[#allocation2 + $0x150] sm:$0xff] %vm280, 0.0
      %325 = vst.msk [vmem:[#allocation2 + $0x158] sm:$0xff] %vm280, 0.0
      %326 = vst.msk [vmem:[#allocation2 + $0x160] sm:$0x3] %vm283, 0.0
      %327 = vst.msk [vmem:[#allocation2 + $0x168] sm:$0xff] %vm280, 0.0
      %328 = vst.msk [vmem:[#allocation2 + $0x170] sm:$0xff] %vm280, 0.0
      %329 = vst.msk [vmem:[#allocation2 + $0x178] sm:$0x3] %vm283, 0.0
      %330 = vst.msk [vmem:[#allocation2 + $0x180] sm:$0xff] %vm280, 0.0
      %331 = vst.msk [vmem:[#allocation2 + $0x188] sm:$0xff] %vm280, 0.0
      %332 = vst.msk [vmem:[#allocation2 + $0x190] sm:$0x3] %vm283, 0.0
      %333 = vst.msk [vmem:[#allocation2 + $0x198] sm:$0xff] %vm280, 0.0
      %334 = vst.msk [vmem:[#allocation2 + $0x1a0] sm:$0xff] %vm280, 0.0
      %335 = vst.msk [vmem:[#allocation2 + $0x1a8] sm:$0x3] %vm283, 0.0
      %v336 = vld [vmem:[%s273] sm:$0xff]
      %v337 = vld [vmem:[%s273 + $0x8] sm:$0xff]
      %v338 = vld [vmem:[%s273 + $0x10] sm:$0xff]
      %v339 = vld [vmem:[%s273 + $0x18] sm:$0xff]
      %v340 = vld [vmem:[%s273 + $0x20] sm:$0xff]
      %v341 = vld [vmem:[%s273 + $0x28] sm:$0xff]
      %v342 = vld [vmem:[%s273 + $0x30] sm:$0xff]
      %v343 = vld [vmem:[%s273 + $0x38] sm:$0xff]
      %v344 = vld [vmem:[%s273 + $0x40] sm:$0xff]
      %v345 = vld [vmem:[%s273 + $0x48] sm:$0xff]
      %v346 = vld [vmem:[%s273 + $0x50] sm:$0xff]
      %v347 = vld [vmem:[%s273 + $0x58] sm:$0xff]
      %v348 = vld [vmem:[%s273 + $0x60] sm:$0xff]
      %v349 = vld [vmem:[%s273 + $0x68] sm:$0xff]
      %v350 = vld [vmem:[%s273 + $0x70] sm:$0xff]
      %v351 = vld [vmem:[%s273 + $0x78] sm:$0xff]
      %v352 = vld [vmem:[%s273 + $0x80] sm:$0xff]
      %v353 = vld [vmem:[%s273 + $0x88] sm:$0xff]
      %v354 = vld [vmem:[%s273 + $0x90] sm:$0xff]
      %v355 = vld [vmem:[%s273 + $0x98] sm:$0xff]
      %v356 = vld [vmem:[%s273 + $0xa0] sm:$0xff]
      %v357 = vld [vmem:[%s273 + $0xa8] sm:$0xff]
      %v358 = vld [vmem:[%s273 + $0xb0] sm:$0xff]
      %v359 = vld [vmem:[%s273 + $0xb8] sm:$0xff]
      %v360 = vld [vmem:[%s273 + $0xc0] sm:$0xff]
      %v361 = vld [vmem:[%s273 + $0xc8] sm:$0xff]
      %v362 = vld [vmem:[%s273 + $0xd0] sm:$0xff]
      %v363 = vld [vmem:[%s273 + $0xd8] sm:$0xff]
      %v364 = vld [vmem:[%s273 + $0xe0] sm:$0xff]
      %v365 = vld [vmem:[%s273 + $0xe8] sm:$0xff]
      %v366 = vld [vmem:[%s273 + $0xf0] sm:$0xff]
      %v367 = vld [vmem:[%s273 + $0xf8] sm:$0xff]
      %s368 = scalar_lea.vmem [#allocation2], 24
      %vm369 = vcmask 64512
      %370 = vst.msk [vmem:[%s368 + $0x1] sm:$0xff] %vm369, %v336
      %371 = vst.msk [vmem:[%s368 + $0x9] sm:$0xff] %vm369, %v337
      %372 = vst.msk [vmem:[%s368 + $0x19] sm:$0xff] %vm369, %v338
      %373 = vst.msk [vmem:[%s368 + $0x21] sm:$0xff] %vm369, %v339
      %374 = vst.msk [vmem:[%s368 + $0x31] sm:$0xff] %vm369, %v340
      %375 = vst.msk [vmem:[%s368 + $0x39] sm:$0xff] %vm369, %v341
      %376 = vst.msk [vmem:[%s368 + $0x49] sm:$0xff] %vm369, %v342
      %377 = vst.msk [vmem:[%s368 + $0x51] sm:$0xff] %vm369, %v343
      %378 = vst.msk [vmem:[%s368 + $0x61] sm:$0xff] %vm369, %v344
      %379 = vst.msk [vmem:[%s368 + $0x69] sm:$0xff] %vm369, %v345
      %380 = vst.msk [vmem:[%s368 + $0x79] sm:$0xff] %vm369, %v346
      %381 = vst.msk [vmem:[%s368 + $0x81] sm:$0xff] %vm369, %v347
      %382 = vst.msk [vmem:[%s368 + $0x91] sm:$0xff] %vm369, %v348
      %383 = vst.msk [vmem:[%s368 + $0x99] sm:$0xff] %vm369, %v349
      %384 = vst.msk [vmem:[%s368 + $0xa9] sm:$0xff] %vm369, %v350
      %385 = vst.msk [vmem:[%s368 + $0xb1] sm:$0xff] %vm369, %v351
      %386 = vst.msk [vmem:[%s368 + $0xc1] sm:$0xff] %vm369, %v352
      %387 = vst.msk [vmem:[%s368 + $0xc9] sm:$0xff] %vm369, %v353
      %388 = vst.msk [vmem:[%s368 + $0xd9] sm:$0xff] %vm369, %v354
      %389 = vst.msk [vmem:[%s368 + $0xe1] sm:$0xff] %vm369, %v355
      %390 = vst.msk [vmem:[%s368 + $0xf1] sm:$0xff] %vm369, %v356
      %391 = vst.msk [vmem:[%s368 + $0xf9] sm:$0xff] %vm369, %v357
      %392 = vst.msk [vmem:[%s368 + $0x109] sm:$0xff] %vm369, %v358
      %393 = vst.msk [vmem:[%s368 + $0x111] sm:$0xff] %vm369, %v359
      %394 = vst.msk [vmem:[%s368 + $0x121] sm:$0xff] %vm369, %v360
      %395 = vst.msk [vmem:[%s368 + $0x129] sm:$0xff] %vm369, %v361
      %396 = vst.msk [vmem:[%s368 + $0x139] sm:$0xff] %vm369, %v362
      %397 = vst.msk [vmem:[%s368 + $0x141] sm:$0xff] %vm369, %v363
      %398 = vst.msk [vmem:[%s368 + $0x151] sm:$0xff] %vm369, %v364
      %399 = vst.msk [vmem:[%s368 + $0x159] sm:$0xff] %vm369, %v365
      %400 = vst.msk [vmem:[%s368 + $0x169] sm:$0xff] %vm369, %v366
      %401 = vst.msk [vmem:[%s368 + $0x171] sm:$0xff] %vm369, %v367
      %v402 = vld [vmem:[#allocation2] sm:$0xff]
      %v403 = vld [vmem:[#allocation2 + $0x8] sm:$0xff]
      %v404 = vld [vmem:[#allocation2 + $0x18] sm:$0xff]
      %v405 = vld [vmem:[#allocation2 + $0x20] sm:$0xff]
      %v406 = vld [vmem:[#allocation2 + $0x30] sm:$0xff]
      %v407 = vld [vmem:[#allocation2 + $0x38] sm:$0xff]
      %v408 = vld [vmem:[#allocation2 + $0x48] sm:$0xff]
      %v409 = vld [vmem:[#allocation2 + $0x50] sm:$0xff]
      %v410 = vld [vmem:[#allocation2 + $0x60] sm:$0xff]
      %v411 = vld [vmem:[#allocation2 + $0x68] sm:$0xff]
      %v412 = vld [vmem:[#allocation2 + $0x78] sm:$0xff]
      %v413 = vld [vmem:[#allocation2 + $0x80] sm:$0xff]
      %v414 = vld [vmem:[#allocation2 + $0x90] sm:$0xff]
      %v415 = vld [vmem:[#allocation2 + $0x98] sm:$0xff]
      %v416 = vld [vmem:[#allocation2 + $0xa8] sm:$0xff]
      %v417 = vld [vmem:[#allocation2 + $0xb0] sm:$0xff]
      %v418 = vld [vmem:[#allocation2 + $0xc0] sm:$0xff]
      %v419 = vld [vmem:[#allocation2 + $0xc8] sm:$0xff]
      %v420 = vld [vmem:[#allocation2 + $0xd8] sm:$0xff]
      %v421 = vld [vmem:[#allocation2 + $0xe0] sm:$0xff]
      %v422 = vld [vmem:[#allocation2 + $0xf0] sm:$0xff]
      %v423 = vld [vmem:[#allocation2 + $0xf8] sm:$0xff]
      %v424 = vld [vmem:[#allocation2 + $0x108] sm:$0xff]
      %v425 = vld [vmem:[#allocation2 + $0x110] sm:$0xff]
      %v426 = vld [vmem:[#allocation2 + $0x120] sm:$0xff]
      %v427 = vld [vmem:[#allocation2 + $0x128] sm:$0xff]
      %v428 = vld [vmem:[#allocation2 + $0x138] sm:$0xff]
      %v429 = vld [vmem:[#allocation2 + $0x140] sm:$0xff]
      %v430 = vld [vmem:[#allocation2 + $0x150] sm:$0xff]
      %v431 = vld [vmem:[#allocation2 + $0x158] sm:$0xff]
      %v432 = vld [vmem:[#allocation2 + $0x168] sm:$0xff]
      %v433 = vld [vmem:[#allocation2 + $0x170] sm:$0xff]
      %v434 = vld [vmem:[#allocation2 + $0x1] sm:$0xff]
      %v435 = vld [vmem:[#allocation2 + $0x9] sm:$0xff]
      %v436 = vld [vmem:[#allocation2 + $0x19] sm:$0xff]
      %v437 = vld [vmem:[#allocation2 + $0x21] sm:$0xff]
      %v438 = vld [vmem:[#allocation2 + $0x31] sm:$0xff]
      %v439 = vld [vmem:[#allocation2 + $0x39] sm:$0xff]
      %v440 = vld [vmem:[#allocation2 + $0x49] sm:$0xff]
      %v441 = vld [vmem:[#allocation2 + $0x51] sm:$0xff]
      %v442 = vld [vmem:[#allocation2 + $0x61] sm:$0xff]
      %v443 = vld [vmem:[#allocation2 + $0x69] sm:$0xff]
      %v444 = vld [vmem:[#allocation2 + $0x79] sm:$0xff]
      %v445 = vld [vmem:[#allocation2 + $0x81] sm:$0xff]
      %v446 = vld [vmem:[#allocation2 + $0x91] sm:$0xff]
      %v447 = vld [vmem:[#allocation2 + $0x99] sm:$0xff]
      %v448 = vld [vmem:[#allocation2 + $0xa9] sm:$0xff]
      %v449 = vld [vmem:[#allocation2 + $0xb1] sm:$0xff]
      %v450 = vld [vmem:[#allocation2 + $0xc1] sm:$0xff]
      %v451 = vld [vmem:[#allocation2 + $0xc9] sm:$0xff]
      %v452 = vld [vmem:[#allocation2 + $0xd9] sm:$0xff]
      %v453 = vld [vmem:[#allocation2 + $0xe1] sm:$0xff]
      %v454 = vld [vmem:[#allocation2 + $0xf1] sm:$0xff]
      %v455 = vld [vmem:[#allocation2 + $0xf9] sm:$0xff]
      %v456 = vld [vmem:[#allocation2 + $0x109] sm:$0xff]
      %v457 = vld [vmem:[#allocation2 + $0x111] sm:$0xff]
      %v458 = vld [vmem:[#allocation2 + $0x121] sm:$0xff]
      %v459 = vld [vmem:[#allocation2 + $0x129] sm:$0xff]
      %v460 = vld [vmem:[#allocation2 + $0x139] sm:$0xff]
      %v461 = vld [vmem:[#allocation2 + $0x141] sm:$0xff]
      %v462 = vld [vmem:[#allocation2 + $0x151] sm:$0xff]
      %v463 = vld [vmem:[#allocation2 + $0x159] sm:$0xff]
      %v464 = vld [vmem:[#allocation2 + $0x169] sm:$0xff]
      %v465 = vld [vmem:[#allocation2 + $0x171] sm:$0xff]
      %v466 = vld [vmem:[#allocation2 + $0x2] sm:$0xff]
      %v467 = vld [vmem:[#allocation2 + $0xa] sm:$0xff]
      %v468 = vld [vmem:[#allocation2 + $0x1a] sm:$0xff]
      %v469 = vld [vmem:[#allocation2 + $0x22] sm:$0xff]
      %v470 = vld [vmem:[#allocation2 + $0x32] sm:$0xff]
      %v471 = vld [vmem:[#allocation2 + $0x3a] sm:$0xff]
      %v472 = vld [vmem:[#allocation2 + $0x4a] sm:$0xff]
      %v473 = vld [vmem:[#allocation2 + $0x52] sm:$0xff]
      %v474 = vld [vmem:[#allocation2 + $0x62] sm:$0xff]
      %v475 = vld [vmem:[#allocation2 + $0x6a] sm:$0xff]
      %v476 = vld [vmem:[#allocation2 + $0x7a] sm:$0xff]
      %v477 = vld [vmem:[#allocation2 + $0x82] sm:$0xff]
      %v478 = vld [vmem:[#allocation2 + $0x92] sm:$0xff]
      %v479 = vld [vmem:[#allocation2 + $0x9a] sm:$0xff]
      %v480 = vld [vmem:[#allocation2 + $0xaa] sm:$0xff]
      %v481 = vld [vmem:[#allocation2 + $0xb2] sm:$0xff]
      %v482 = vld [vmem:[#allocation2 + $0xc2] sm:$0xff]
      %v483 = vld [vmem:[#allocation2 + $0xca] sm:$0xff]
      %v484 = vld [vmem:[#allocation2 + $0xda] sm:$0xff]
      %v485 = vld [vmem:[#allocation2 + $0xe2] sm:$0xff]
      %v486 = vld [vmem:[#allocation2 + $0xf2] sm:$0xff]
      %v487 = vld [vmem:[#allocation2 + $0xfa] sm:$0xff]
      %v488 = vld [vmem:[#allocation2 + $0x10a] sm:$0xff]
      %v489 = vld [vmem:[#allocation2 + $0x112] sm:$0xff]
      %v490 = vld [vmem:[#allocation2 + $0x122] sm:$0xff]
      %v491 = vld [vmem:[#allocation2 + $0x12a] sm:$0xff]
      %v492 = vld [vmem:[#allocation2 + $0x13a] sm:$0xff]
      %v493 = vld [vmem:[#allocation2 + $0x142] sm:$0xff]
      %v494 = vld [vmem:[#allocation2 + $0x152] sm:$0xff]
      %v495 = vld [vmem:[#allocation2 + $0x15a] sm:$0xff]
      %v496 = vld [vmem:[#allocation2 + $0x16a] sm:$0xff]
      %v497 = vld [vmem:[#allocation2 + $0x172] sm:$0xff]
      %v498 = vld [vmem:[%s368] sm:$0xff]
      %v499 = vld [vmem:[%s368 + $0x8] sm:$0xff]
      %v500 = vld [vmem:[%s368 + $0x18] sm:$0xff]
      %v501 = vld [vmem:[%s368 + $0x20] sm:$0xff]
      %v502 = vld [vmem:[%s368 + $0x30] sm:$0xff]
      %v503 = vld [vmem:[%s368 + $0x38] sm:$0xff]
      %v504 = vld [vmem:[%s368 + $0x48] sm:$0xff]
      %v505 = vld [vmem:[%s368 + $0x50] sm:$0xff]
      %v506 = vld [vmem:[%s368 + $0x60] sm:$0xff]
      %v507 = vld [vmem:[%s368 + $0x68] sm:$0xff]
      %v508 = vld [vmem:[%s368 + $0x78] sm:$0xff]
      %v509 = vld [vmem:[%s368 + $0x80] sm:$0xff]
      %v510 = vld [vmem:[%s368 + $0x90] sm:$0xff]
      %v511 = vld [vmem:[%s368 + $0x98] sm:$0xff]
      %v512 = vld [vmem:[%s368 + $0xa8] sm:$0xff]
      %v513 = vld [vmem:[%s368 + $0xb0] sm:$0xff]
      %v514 = vld [vmem:[%s368 + $0xc0] sm:$0xff]
      %v515 = vld [vmem:[%s368 + $0xc8] sm:$0xff]
      %v516 = vld [vmem:[%s368 + $0xd8] sm:$0xff]
      %v517 = vld [vmem:[%s368 + $0xe0] sm:$0xff]
      %v518 = vld [vmem:[%s368 + $0xf0] sm:$0xff]
      %v519 = vld [vmem:[%s368 + $0xf8] sm:$0xff]
      %v520 = vld [vmem:[%s368 + $0x108] sm:$0xff]
      %v521 = vld [vmem:[%s368 + $0x110] sm:$0xff]
      %v522 = vld [vmem:[%s368 + $0x120] sm:$0xff]
      %v523 = vld [vmem:[%s368 + $0x128] sm:$0xff]
      %v524 = vld [vmem:[%s368 + $0x138] sm:$0xff]
      %v525 = vld [vmem:[%s368 + $0x140] sm:$0xff]
      %v526 = vld [vmem:[%s368 + $0x150] sm:$0xff]
      %v527 = vld [vmem:[%s368 + $0x158] sm:$0xff]
      %v528 = vld [vmem:[%s368 + $0x168] sm:$0xff]
      %v529 = vld [vmem:[%s368 + $0x170] sm:$0xff]
      %v530 = vld [vmem:[%s368 + $0x1] sm:$0xff]
      %v531 = vld [vmem:[%s368 + $0x9] sm:$0xff]
      %v532 = vld [vmem:[%s368 + $0x19] sm:$0xff]
      %v533 = vld [vmem:[%s368 + $0x21] sm:$0xff]
      %v534 = vld [vmem:[%s368 + $0x31] sm:$0xff]
      %v535 = vld [vmem:[%s368 + $0x39] sm:$0xff]
      %v536 = vld [vmem:[%s368 + $0x49] sm:$0xff]
      %v537 = vld [vmem:[%s368 + $0x51] sm:$0xff]
      %v538 = vld [vmem:[%s368 + $0x61] sm:$0xff]
      %v539 = vld [vmem:[%s368 + $0x69] sm:$0xff]
      %v540 = vld [vmem:[%s368 + $0x79] sm:$0xff]
      %v541 = vld [vmem:[%s368 + $0x81] sm:$0xff]
      %v542 = vld [vmem:[%s368 + $0x91] sm:$0xff]
      %v543 = vld [vmem:[%s368 + $0x99] sm:$0xff]
      %v544 = vld [vmem:[%s368 + $0xa9] sm:$0xff]
      %v545 = vld [vmem:[%s368 + $0xb1] sm:$0xff]
      %v546 = vld [vmem:[%s368 + $0xc1] sm:$0xff]
      %v547 = vld [vmem:[%s368 + $0xc9] sm:$0xff]
      %v548 = vld [vmem:[%s368 + $0xd9] sm:$0xff]
      %v549 = vld [vmem:[%s368 + $0xe1] sm:$0xff]
      %v550 = vld [vmem:[%s368 + $0xf1] sm:$0xff]
      %v551 = vld [vmem:[%s368 + $0xf9] sm:$0xff]
      %v552 = vld [vmem:[%s368 + $0x109] sm:$0xff]
      %v553 = vld [vmem:[%s368 + $0x111] sm:$0xff]
      %v554 = vld [vmem:[%s368 + $0x121] sm:$0xff]
      %v555 = vld [vmem:[%s368 + $0x129] sm:$0xff]
      %v556 = vld [vmem:[%s368 + $0x139] sm:$0xff]
      %v557 = vld [vmem:[%s368 + $0x141] sm:$0xff]
      %v558 = vld [vmem:[%s368 + $0x151] sm:$0xff]
      %v559 = vld [vmem:[%s368 + $0x159] sm:$0xff]
      %v560 = vld [vmem:[%s368 + $0x169] sm:$0xff]
      %v561 = vld [vmem:[%s368 + $0x171] sm:$0xff]
      %v562 = vld [vmem:[%s368 + $0x2] sm:$0xff]
      %v563 = vld [vmem:[%s368 + $0xa] sm:$0xff]
      %v564 = vld [vmem:[%s368 + $0x1a] sm:$0xff]
      %v565 = vld [vmem:[%s368 + $0x22] sm:$0xff]
      %v566 = vld [vmem:[%s368 + $0x32] sm:$0xff]
      %v567 = vld [vmem:[%s368 + $0x3a] sm:$0xff]
      %v568 = vld [vmem:[%s368 + $0x4a] sm:$0xff]
      %v569 = vld [vmem:[%s368 + $0x52] sm:$0xff]
      %v570 = vld [vmem:[%s368 + $0x62] sm:$0xff]
      %v571 = vld [vmem:[%s368 + $0x6a] sm:$0xff]
      %v572 = vld [vmem:[%s368 + $0x7a] sm:$0xff]
      %v573 = vld [vmem:[%s368 + $0x82] sm:$0xff]
      %v574 = vld [vmem:[%s368 + $0x92] sm:$0xff]
      %v575 = vld [vmem:[%s368 + $0x9a] sm:$0xff]
      %v576 = vld [vmem:[%s368 + $0xaa] sm:$0xff]
      %v577 = vld [vmem:[%s368 + $0xb2] sm:$0xff]
      %v578 = vld [vmem:[%s368 + $0xc2] sm:$0xff]
      %v579 = vld [vmem:[%s368 + $0xca] sm:$0xff]
      %v580 = vld [vmem:[%s368 + $0xda] sm:$0xff]
      %v581 = vld [vmem:[%s368 + $0xe2] sm:$0xff]
      %v582 = vld [vmem:[%s368 + $0xf2] sm:$0xff]
      %v583 = vld [vmem:[%s368 + $0xfa] sm:$0xff]
      %v584 = vld [vmem:[%s368 + $0x10a] sm:$0xff]
      %v585 = vld [vmem:[%s368 + $0x112] sm:$0xff]
      %v586 = vld [vmem:[%s368 + $0x122] sm:$0xff]
      %v587 = vld [vmem:[%s368 + $0x12a] sm:$0xff]
      %v588 = vld [vmem:[%s368 + $0x13a] sm:$0xff]
      %v589 = vld [vmem:[%s368 + $0x142] sm:$0xff]
      %v590 = vld [vmem:[%s368 + $0x152] sm:$0xff]
      %v591 = vld [vmem:[%s368 + $0x15a] sm:$0xff]
      %v592 = vld [vmem:[%s368 + $0x16a] sm:$0xff]
      %v593 = vld [vmem:[%s368 + $0x172] sm:$0xff]
      %s594 = scalar_lea.vmem [#allocation2], 48
      %v595 = vld [vmem:[%s594] sm:$0xff]
      %v596 = vld [vmem:[%s594 + $0x8] sm:$0xff]
      %v597 = vld [vmem:[%s594 + $0x18] sm:$0xff]
      %v598 = vld [vmem:[%s594 + $0x20] sm:$0xff]
      %v599 = vld [vmem:[%s594 + $0x30] sm:$0xff]
      %v600 = vld [vmem:[%s594 + $0x38] sm:$0xff]
      %v601 = vld [vmem:[%s594 + $0x48] sm:$0xff]
      %v602 = vld [vmem:[%s594 + $0x50] sm:$0xff]
      %v603 = vld [vmem:[%s594 + $0x60] sm:$0xff]
      %v604 = vld [vmem:[%s594 + $0x68] sm:$0xff]
      %v605 = vld [vmem:[%s594 + $0x78] sm:$0xff]
      %v606 = vld [vmem:[%s594 + $0x80] sm:$0xff]
      %v607 = vld [vmem:[%s594 + $0x90] sm:$0xff]
      %v608 = vld [vmem:[%s594 + $0x98] sm:$0xff]
      %v609 = vld [vmem:[%s594 + $0xa8] sm:$0xff]
      %v610 = vld [vmem:[%s594 + $0xb0] sm:$0xff]
      %v611 = vld [vmem:[%s594 + $0xc0] sm:$0xff]
      %v612 = vld [vmem:[%s594 + $0xc8] sm:$0xff]
      %v613 = vld [vmem:[%s594 + $0xd8] sm:$0xff]
      %v614 = vld [vmem:[%s594 + $0xe0] sm:$0xff]
      %v615 = vld [vmem:[%s594 + $0xf0] sm:$0xff]
      %v616 = vld [vmem:[%s594 + $0xf8] sm:$0xff]
      %v617 = vld [vmem:[%s594 + $0x108] sm:$0xff]
      %v618 = vld [vmem:[%s594 + $0x110] sm:$0xff]
      %v619 = vld [vmem:[%s594 + $0x120] sm:$0xff]
      %v620 = vld [vmem:[%s594 + $0x128] sm:$0xff]
      %v621 = vld [vmem:[%s594 + $0x138] sm:$0xff]
      %v622 = vld [vmem:[%s594 + $0x140] sm:$0xff]
      %v623 = vld [vmem:[%s594 + $0x150] sm:$0xff]
      %v624 = vld [vmem:[%s594 + $0x158] sm:$0xff]
      %v625 = vld [vmem:[%s594 + $0x168] sm:$0xff]
      %v626 = vld [vmem:[%s594 + $0x170] sm:$0xff]
      %v627 = vld [vmem:[%s594 + $0x1] sm:$0xff]
      %v628 = vld [vmem:[%s594 + $0x9] sm:$0xff]
      %v629 = vld [vmem:[%s594 + $0x19] sm:$0xff]
      %v630 = vld [vmem:[%s594 + $0x21] sm:$0xff]
      %v631 = vld [vmem:[%s594 + $0x31] sm:$0xff]
      %v632 = vld [vmem:[%s594 + $0x39] sm:$0xff]
      %v633 = vld [vmem:[%s594 + $0x49] sm:$0xff]
      %v634 = vld [vmem:[%s594 + $0x51] sm:$0xff]
      %v635 = vld [vmem:[%s594 + $0x61] sm:$0xff]
      %v636 = vld [vmem:[%s594 + $0x69] sm:$0xff]
      %v637 = vld [vmem:[%s594 + $0x79] sm:$0xff]
      %v638 = vld [vmem:[%s594 + $0x81] sm:$0xff]
      %v639 = vld [vmem:[%s594 + $0x91] sm:$0xff]
      %v640 = vld [vmem:[%s594 + $0x99] sm:$0xff]
      %v641 = vld [vmem:[%s594 + $0xa9] sm:$0xff]
      %v642 = vld [vmem:[%s594 + $0xb1] sm:$0xff]
      %v643 = vld [vmem:[%s594 + $0xc1] sm:$0xff]
      %v644 = vld [vmem:[%s594 + $0xc9] sm:$0xff]
      %v645 = vld [vmem:[%s594 + $0xd9] sm:$0xff]
      %v646 = vld [vmem:[%s594 + $0xe1] sm:$0xff]
      %v647 = vld [vmem:[%s594 + $0xf1] sm:$0xff]
      %v648 = vld [vmem:[%s594 + $0xf9] sm:$0xff]
      %v649 = vld [vmem:[%s594 + $0x109] sm:$0xff]
      %v650 = vld [vmem:[%s594 + $0x111] sm:$0xff]
      %v651 = vld [vmem:[%s594 + $0x121] sm:$0xff]
      %v652 = vld [vmem:[%s594 + $0x129] sm:$0xff]
      %v653 = vld [vmem:[%s594 + $0x139] sm:$0xff]
      %v654 = vld [vmem:[%s594 + $0x141] sm:$0xff]
      %v655 = vld [vmem:[%s594 + $0x151] sm:$0xff]
      %v656 = vld [vmem:[%s594 + $0x159] sm:$0xff]
      %v657 = vld [vmem:[%s594 + $0x169] sm:$0xff]
      %v658 = vld [vmem:[%s594 + $0x171] sm:$0xff]
      %v659 = vld [vmem:[%s594 + $0x2] sm:$0xff]
      %v660 = vld [vmem:[%s594 + $0xa] sm:$0xff]
      %v661 = vld [vmem:[%s594 + $0x1a] sm:$0xff]
      %v662 = vld [vmem:[%s594 + $0x22] sm:$0xff]
      %v663 = vld [vmem:[%s594 + $0x32] sm:$0xff]
      %v664 = vld [vmem:[%s594 + $0x3a] sm:$0xff]
      %v665 = vld [vmem:[%s594 + $0x4a] sm:$0xff]
      %v666 = vld [vmem:[%s594 + $0x52] sm:$0xff]
      %v667 = vld [vmem:[%s594 + $0x62] sm:$0xff]
      %v668 = vld [vmem:[%s594 + $0x6a] sm:$0xff]
      %v669 = vld [vmem:[%s594 + $0x7a] sm:$0xff]
      %v670 = vld [vmem:[%s594 + $0x82] sm:$0xff]
      %v671 = vld [vmem:[%s594 + $0x92] sm:$0xff]
      %v672 = vld [vmem:[%s594 + $0x9a] sm:$0xff]
      %v673 = vld [vmem:[%s594 + $0xaa] sm:$0xff]
      %v674 = vld [vmem:[%s594 + $0xb2] sm:$0xff]
      %v675 = vld [vmem:[%s594 + $0xc2] sm:$0xff]
      %v676 = vld [vmem:[%s594 + $0xca] sm:$0xff]
      %v677 = vld [vmem:[%s594 + $0xda] sm:$0xff]
      %v678 = vld [vmem:[%s594 + $0xe2] sm:$0xff]
      %v679 = vld [vmem:[%s594 + $0xf2] sm:$0xff]
      %v680 = vld [vmem:[%s594 + $0xfa] sm:$0xff]
      %v681 = vld [vmem:[%s594 + $0x10a] sm:$0xff]
      %v682 = vld [vmem:[%s594 + $0x112] sm:$0xff]
      %v683 = vld [vmem:[%s594 + $0x122] sm:$0xff]
      %v684 = vld [vmem:[%s594 + $0x12a] sm:$0xff]
      %v685 = vld [vmem:[%s594 + $0x13a] sm:$0xff]
      %v686 = vld [vmem:[%s594 + $0x142] sm:$0xff]
      %v687 = vld [vmem:[%s594 + $0x152] sm:$0xff]
      %v688 = vld [vmem:[%s594 + $0x15a] sm:$0xff]
      %v689 = vld [vmem:[%s594 + $0x16a] sm:$0xff]
      %v690 = vld [vmem:[%s594 + $0x172] sm:$0xff]
      %723 = vrot.lane.b32.xlu0 %v434, 8
      %v724 = vpop.permute.xlu0 %723
      %725 = vrot.lane.b32.xlu0 %v435, 8
      %v726 = vpop.permute.xlu0 %725
      %727 = vrot.lane.b32.xlu0 %v436, 8
      %v728 = vpop.permute.xlu0 %727
      %729 = vrot.lane.b32.xlu0 %v437, 8
      %v730 = vpop.permute.xlu0 %729
      %731 = vrot.lane.b32.xlu0 %v438, 8
      %v732 = vpop.permute.xlu0 %731
      %733 = vrot.lane.b32.xlu0 %v439, 8
      %v734 = vpop.permute.xlu0 %733
      %735 = vrot.lane.b32.xlu0 %v440, 8
      %v736 = vpop.permute.xlu0 %735
      %737 = vrot.lane.b32.xlu0 %v441, 8
      %v738 = vpop.permute.xlu0 %737
      %739 = vrot.lane.b32.xlu0 %v442, 8
      %v740 = vpop.permute.xlu0 %739
      %741 = vrot.lane.b32.xlu0 %v443, 8
      %v742 = vpop.permute.xlu0 %741
      %743 = vrot.lane.b32.xlu0 %v444, 8
      %v744 = vpop.permute.xlu0 %743
      %745 = vrot.lane.b32.xlu0 %v445, 8
      %v746 = vpop.permute.xlu0 %745
      %747 = vrot.lane.b32.xlu0 %v446, 8
      %v748 = vpop.permute.xlu0 %747
      %749 = vrot.lane.b32.xlu0 %v447, 8
      %v750 = vpop.permute.xlu0 %749
      %751 = vrot.lane.b32.xlu0 %v448, 8
      %v752 = vpop.permute.xlu0 %751
      %753 = vrot.lane.b32.xlu0 %v449, 8
      %v754 = vpop.permute.xlu0 %753
      %755 = vrot.lane.b32.xlu0 %v450, 8
      %v756 = vpop.permute.xlu0 %755
      %757 = vrot.lane.b32.xlu0 %v451, 8
      %v758 = vpop.permute.xlu0 %757
      %759 = vrot.lane.b32.xlu0 %v452, 8
      %v760 = vpop.permute.xlu0 %759
      %761 = vrot.lane.b32.xlu0 %v453, 8
      %v762 = vpop.permute.xlu0 %761
      %763 = vrot.lane.b32.xlu0 %v454, 8
      %v764 = vpop.permute.xlu0 %763
      %765 = vrot.lane.b32.xlu0 %v455, 8
      %v766 = vpop.permute.xlu0 %765
      %767 = vrot.lane.b32.xlu0 %v456, 8
      %v768 = vpop.permute.xlu0 %767
      %769 = vrot.lane.b32.xlu0 %v457, 8
      %v770 = vpop.permute.xlu0 %769
      %771 = vrot.lane.b32.xlu0 %v458, 8
      %v772 = vpop.permute.xlu0 %771
      %773 = vrot.lane.b32.xlu0 %v459, 8
      %v774 = vpop.permute.xlu0 %773
      %775 = vrot.lane.b32.xlu0 %v460, 8
      %v776 = vpop.permute.xlu0 %775
      %777 = vrot.lane.b32.xlu0 %v461, 8
      %v778 = vpop.permute.xlu0 %777
      %779 = vrot.lane.b32.xlu0 %v462, 8
      %v780 = vpop.permute.xlu0 %779
      %781 = vrot.lane.b32.xlu0 %v463, 8
      %v782 = vpop.permute.xlu0 %781
      %783 = vrot.lane.b32.xlu0 %v464, 8
      %v784 = vpop.permute.xlu0 %783
      %785 = vrot.lane.b32.xlu0 %v465, 8
      %v786 = vpop.permute.xlu0 %785
      %851 = vrot.lane.b32.xlu0 %v466, 16
      %v852 = vpop.permute.xlu0 %851
      %853 = vrot.lane.b32.xlu0 %v467, 16
      %v854 = vpop.permute.xlu0 %853
      %855 = vrot.lane.b32.xlu0 %v468, 16
      %v856 = vpop.permute.xlu0 %855
      %857 = vrot.lane.b32.xlu0 %v469, 16
      %v858 = vpop.permute.xlu0 %857
      %859 = vrot.lane.b32.xlu0 %v470, 16
      %v860 = vpop.permute.xlu0 %859
      %861 = vrot.lane.b32.xlu0 %v471, 16
      %v862 = vpop.permute.xlu0 %861
      %863 = vrot.lane.b32.xlu0 %v472, 16
      %v864 = vpop.permute.xlu0 %863
      %865 = vrot.lane.b32.xlu0 %v473, 16
      %v866 = vpop.permute.xlu0 %865
      %867 = vrot.lane.b32.xlu0 %v474, 16
      %v868 = vpop.permute.xlu0 %867
      %869 = vrot.lane.b32.xlu0 %v475, 16
      %v870 = vpop.permute.xlu0 %869
      %871 = vrot.lane.b32.xlu0 %v476, 16
      %v872 = vpop.permute.xlu0 %871
      %873 = vrot.lane.b32.xlu0 %v477, 16
      %v874 = vpop.permute.xlu0 %873
      %875 = vrot.lane.b32.xlu0 %v478, 16
      %v876 = vpop.permute.xlu0 %875
      %877 = vrot.lane.b32.xlu0 %v479, 16
      %v878 = vpop.permute.xlu0 %877
      %879 = vrot.lane.b32.xlu0 %v480, 16
      %v880 = vpop.permute.xlu0 %879
      %881 = vrot.lane.b32.xlu0 %v481, 16
      %v882 = vpop.permute.xlu0 %881
      %883 = vrot.lane.b32.xlu0 %v482, 16
      %v884 = vpop.permute.xlu0 %883
      %885 = vrot.lane.b32.xlu0 %v483, 16
      %v886 = vpop.permute.xlu0 %885
      %887 = vrot.lane.b32.xlu0 %v484, 16
      %v888 = vpop.permute.xlu0 %887
      %889 = vrot.lane.b32.xlu0 %v485, 16
      %v890 = vpop.permute.xlu0 %889
      %891 = vrot.lane.b32.xlu0 %v486, 16
      %v892 = vpop.permute.xlu0 %891
      %893 = vrot.lane.b32.xlu0 %v487, 16
      %v894 = vpop.permute.xlu0 %893
      %895 = vrot.lane.b32.xlu0 %v488, 16
      %v896 = vpop.permute.xlu0 %895
      %897 = vrot.lane.b32.xlu0 %v489, 16
      %v898 = vpop.permute.xlu0 %897
      %899 = vrot.lane.b32.xlu0 %v490, 16
      %v900 = vpop.permute.xlu0 %899
      %901 = vrot.lane.b32.xlu0 %v491, 16
      %v902 = vpop.permute.xlu0 %901
      %903 = vrot.lane.b32.xlu0 %v492, 16
      %v904 = vpop.permute.xlu0 %903
      %905 = vrot.lane.b32.xlu0 %v493, 16
      %v906 = vpop.permute.xlu0 %905
      %907 = vrot.lane.b32.xlu0 %v494, 16
      %v908 = vpop.permute.xlu0 %907
      %909 = vrot.lane.b32.xlu0 %v495, 16
      %v910 = vpop.permute.xlu0 %909
      %911 = vrot.lane.b32.xlu0 %v496, 16
      %v912 = vpop.permute.xlu0 %911
      %913 = vrot.lane.b32.xlu0 %v497, 16
      %v914 = vpop.permute.xlu0 %913
      %979 = vrot.lane.b32.xlu0 %v498, 24
      %v980 = vpop.permute.xlu0 %979
      %981 = vrot.lane.b32.xlu0 %v499, 24
      %v982 = vpop.permute.xlu0 %981
      %983 = vrot.lane.b32.xlu0 %v500, 24
      %v984 = vpop.permute.xlu0 %983
      %985 = vrot.lane.b32.xlu0 %v501, 24
      %v986 = vpop.permute.xlu0 %985
      %987 = vrot.lane.b32.xlu0 %v502, 24
      %v988 = vpop.permute.xlu0 %987
      %989 = vrot.lane.b32.xlu0 %v503, 24
      %v990 = vpop.permute.xlu0 %989
      %991 = vrot.lane.b32.xlu0 %v504, 24
      %v992 = vpop.permute.xlu0 %991
      %993 = vrot.lane.b32.xlu0 %v505, 24
      %v994 = vpop.permute.xlu0 %993
      %995 = vrot.lane.b32.xlu0 %v506, 24
      %v996 = vpop.permute.xlu0 %995
      %997 = vrot.lane.b32.xlu0 %v507, 24
      %v998 = vpop.permute.xlu0 %997
      %999 = vrot.lane.b32.xlu0 %v508, 24
      %v1000 = vpop.permute.xlu0 %999
      %1001 = vrot.lane.b32.xlu0 %v509, 24
      %v1002 = vpop.permute.xlu0 %1001
      %1003 = vrot.lane.b32.xlu0 %v510, 24
      %v1004 = vpop.permute.xlu0 %1003
      %1005 = vrot.lane.b32.xlu0 %v511, 24
      %v1006 = vpop.permute.xlu0 %1005
      %1007 = vrot.lane.b32.xlu0 %v512, 24
      %v1008 = vpop.permute.xlu0 %1007
      %1009 = vrot.lane.b32.xlu0 %v513, 24
      %v1010 = vpop.permute.xlu0 %1009
      %1011 = vrot.lane.b32.xlu0 %v514, 24
      %v1012 = vpop.permute.xlu0 %1011
      %1013 = vrot.lane.b32.xlu0 %v515, 24
      %v1014 = vpop.permute.xlu0 %1013
      %1015 = vrot.lane.b32.xlu0 %v516, 24
      %v1016 = vpop.permute.xlu0 %1015
      %1017 = vrot.lane.b32.xlu0 %v517, 24
      %v1018 = vpop.permute.xlu0 %1017
      %1019 = vrot.lane.b32.xlu0 %v518, 24
      %v1020 = vpop.permute.xlu0 %1019
      %1021 = vrot.lane.b32.xlu0 %v519, 24
      %v1022 = vpop.permute.xlu0 %1021
      %1023 = vrot.lane.b32.xlu0 %v520, 24
      %v1024 = vpop.permute.xlu0 %1023
      %1025 = vrot.lane.b32.xlu0 %v521, 24
      %v1026 = vpop.permute.xlu0 %1025
      %1027 = vrot.lane.b32.xlu0 %v522, 24
      %v1028 = vpop.permute.xlu0 %1027
      %1029 = vrot.lane.b32.xlu0 %v523, 24
      %v1030 = vpop.permute.xlu0 %1029
      %1031 = vrot.lane.b32.xlu0 %v524, 24
      %v1032 = vpop.permute.xlu0 %1031
      %1033 = vrot.lane.b32.xlu0 %v525, 24
      %v1034 = vpop.permute.xlu0 %1033
      %1035 = vrot.lane.b32.xlu0 %v526, 24
      %v1036 = vpop.permute.xlu0 %1035
      %1037 = vrot.lane.b32.xlu0 %v527, 24
      %v1038 = vpop.permute.xlu0 %1037
      %1039 = vrot.lane.b32.xlu0 %v528, 24
      %v1040 = vpop.permute.xlu0 %1039
      %1041 = vrot.lane.b32.xlu0 %v529, 24
      %v1042 = vpop.permute.xlu0 %1041
      %1107 = vrot.lane.b32.xlu0 %v530, 32
      %v1108 = vpop.permute.xlu0 %1107
      %1109 = vrot.lane.b32.xlu0 %v531, 32
      %v1110 = vpop.permute.xlu0 %1109
      %1111 = vrot.lane.b32.xlu0 %v532, 32
      %v1112 = vpop.permute.xlu0 %1111
      %1113 = vrot.lane.b32.xlu0 %v533, 32
      %v1114 = vpop.permute.xlu0 %1113
      %1115 = vrot.lane.b32.xlu0 %v534, 32
      %v1116 = vpop.permute.xlu0 %1115
      %1117 = vrot.lane.b32.xlu0 %v535, 32
      %v1118 = vpop.permute.xlu0 %1117
      %1119 = vrot.lane.b32.xlu0 %v536, 32
      %v1120 = vpop.permute.xlu0 %1119
      %1121 = vrot.lane.b32.xlu0 %v537, 32
      %v1122 = vpop.permute.xlu0 %1121
      %1123 = vrot.lane.b32.xlu0 %v538, 32
      %v1124 = vpop.permute.xlu0 %1123
      %1125 = vrot.lane.b32.xlu0 %v539, 32
      %v1126 = vpop.permute.xlu0 %1125
      %1127 = vrot.lane.b32.xlu0 %v540, 32
      %v1128 = vpop.permute.xlu0 %1127
      %1129 = vrot.lane.b32.xlu0 %v541, 32
      %v1130 = vpop.permute.xlu0 %1129
      %1131 = vrot.lane.b32.xlu0 %v542, 32
      %v1132 = vpop.permute.xlu0 %1131
      %1133 = vrot.lane.b32.xlu0 %v543, 32
      %v1134 = vpop.permute.xlu0 %1133
      %1135 = vrot.lane.b32.xlu0 %v544, 32
      %v1136 = vpop.permute.xlu0 %1135
      %1137 = vrot.lane.b32.xlu0 %v545, 32
      %v1138 = vpop.permute.xlu0 %1137
      %1139 = vrot.lane.b32.xlu0 %v546, 32
      %v1140 = vpop.permute.xlu0 %1139
      %1141 = vrot.lane.b32.xlu0 %v547, 32
      %v1142 = vpop.permute.xlu0 %1141
      %1143 = vrot.lane.b32.xlu0 %v548, 32
      %v1144 = vpop.permute.xlu0 %1143
      %1145 = vrot.lane.b32.xlu0 %v549, 32
      %v1146 = vpop.permute.xlu0 %1145
      %1147 = vrot.lane.b32.xlu0 %v550, 32
      %v1148 = vpop.permute.xlu0 %1147
      %1149 = vrot.lane.b32.xlu0 %v551, 32
      %v1150 = vpop.permute.xlu0 %1149
      %1151 = vrot.lane.b32.xlu0 %v552, 32
      %v1152 = vpop.permute.xlu0 %1151
      %1153 = vrot.lane.b32.xlu0 %v553, 32
      %v1154 = vpop.permute.xlu0 %1153
      %1155 = vrot.lane.b32.xlu0 %v554, 32
      %v1156 = vpop.permute.xlu0 %1155
      %1157 = vrot.lane.b32.xlu0 %v555, 32
      %v1158 = vpop.permute.xlu0 %1157
      %1159 = vrot.lane.b32.xlu0 %v556, 32
      %v1160 = vpop.permute.xlu0 %1159
      %1161 = vrot.lane.b32.xlu0 %v557, 32
      %v1162 = vpop.permute.xlu0 %1161
      %1163 = vrot.lane.b32.xlu0 %v558, 32
      %v1164 = vpop.permute.xlu0 %1163
      %1165 = vrot.lane.b32.xlu0 %v559, 32
      %v1166 = vpop.permute.xlu0 %1165
      %1167 = vrot.lane.b32.xlu0 %v560, 32
      %v1168 = vpop.permute.xlu0 %1167
      %1169 = vrot.lane.b32.xlu0 %v561, 32
      %v1170 = vpop.permute.xlu0 %1169
      %1235 = vrot.lane.b32.xlu0 %v562, 40
      %v1236 = vpop.permute.xlu0 %1235
      %1237 = vrot.lane.b32.xlu0 %v563, 40
      %v1238 = vpop.permute.xlu0 %1237
      %1239 = vrot.lane.b32.xlu0 %v564, 40
      %v1240 = vpop.permute.xlu0 %1239
      %1241 = vrot.lane.b32.xlu0 %v565, 40
      %v1242 = vpop.permute.xlu0 %1241
      %1243 = vrot.lane.b32.xlu0 %v566, 40
      %v1244 = vpop.permute.xlu0 %1243
      %1245 = vrot.lane.b32.xlu0 %v567, 40
      %v1246 = vpop.permute.xlu0 %1245
      %1247 = vrot.lane.b32.xlu0 %v568, 40
      %v1248 = vpop.permute.xlu0 %1247
      %1249 = vrot.lane.b32.xlu0 %v569, 40
      %v1250 = vpop.permute.xlu0 %1249
      %1251 = vrot.lane.b32.xlu0 %v570, 40
      %v1252 = vpop.permute.xlu0 %1251
      %1253 = vrot.lane.b32.xlu0 %v571, 40
      %v1254 = vpop.permute.xlu0 %1253
      %1255 = vrot.lane.b32.xlu0 %v572, 40
      %v1256 = vpop.permute.xlu0 %1255
      %1257 = vrot.lane.b32.xlu0 %v573, 40
      %v1258 = vpop.permute.xlu0 %1257
      %1259 = vrot.lane.b32.xlu0 %v574, 40
      %v1260 = vpop.permute.xlu0 %1259
      %1261 = vrot.lane.b32.xlu0 %v575, 40
      %v1262 = vpop.permute.xlu0 %1261
      %1263 = vrot.lane.b32.xlu0 %v576, 40
      %v1264 = vpop.permute.xlu0 %1263
      %1265 = vrot.lane.b32.xlu0 %v577, 40
      %v1266 = vpop.permute.xlu0 %1265
      %1267 = vrot.lane.b32.xlu0 %v578, 40
      %v1268 = vpop.permute.xlu0 %1267
      %1269 = vrot.lane.b32.xlu0 %v579, 40
      %v1270 = vpop.permute.xlu0 %1269
      %1271 = vrot.lane.b32.xlu0 %v580, 40
      %v1272 = vpop.permute.xlu0 %1271
      %1273 = vrot.lane.b32.xlu0 %v581, 40
      %v1274 = vpop.permute.xlu0 %1273
      %1275 = vrot.lane.b32.xlu0 %v582, 40
      %v1276 = vpop.permute.xlu0 %1275
      %1277 = vrot.lane.b32.xlu0 %v583, 40
      %v1278 = vpop.permute.xlu0 %1277
      %1279 = vrot.lane.b32.xlu0 %v584, 40
      %v1280 = vpop.permute.xlu0 %1279
      %1281 = vrot.lane.b32.xlu0 %v585, 40
      %v1282 = vpop.permute.xlu0 %1281
      %1283 = vrot.lane.b32.xlu0 %v586, 40
      %v1284 = vpop.permute.xlu0 %1283
      %1285 = vrot.lane.b32.xlu0 %v587, 40
      %v1286 = vpop.permute.xlu0 %1285
      %1287 = vrot.lane.b32.xlu0 %v588, 40
      %v1288 = vpop.permute.xlu0 %1287
      %1289 = vrot.lane.b32.xlu0 %v589, 40
      %v1290 = vpop.permute.xlu0 %1289
      %1291 = vrot.lane.b32.xlu0 %v590, 40
      %v1292 = vpop.permute.xlu0 %1291
      %1293 = vrot.lane.b32.xlu0 %v591, 40
      %v1294 = vpop.permute.xlu0 %1293
      %1295 = vrot.lane.b32.xlu0 %v592, 40
      %v1296 = vpop.permute.xlu0 %1295
      %1297 = vrot.lane.b32.xlu0 %v593, 40
      %v1298 = vpop.permute.xlu0 %1297
      %1363 = vrot.lane.b32.xlu0 %v595, 48
      %v1364 = vpop.permute.xlu0 %1363
      %1365 = vrot.lane.b32.xlu0 %v596, 48
      %v1366 = vpop.permute.xlu0 %1365
      %1367 = vrot.lane.b32.xlu0 %v597, 48
      %v1368 = vpop.permute.xlu0 %1367
      %1369 = vrot.lane.b32.xlu0 %v598, 48
      %v1370 = vpop.permute.xlu0 %1369
      %1371 = vrot.lane.b32.xlu0 %v599, 48
      %v1372 = vpop.permute.xlu0 %1371
      %1373 = vrot.lane.b32.xlu0 %v600, 48
      %v1374 = vpop.permute.xlu0 %1373
      %1375 = vrot.lane.b32.xlu0 %v601, 48
      %v1376 = vpop.permute.xlu0 %1375
      %1377 = vrot.lane.b32.xlu0 %v602, 48
      %v1378 = vpop.permute.xlu0 %1377
      %1379 = vrot.lane.b32.xlu0 %v603, 48
      %v1380 = vpop.permute.xlu0 %1379
      %1381 = vrot.lane.b32.xlu0 %v604, 48
      %v1382 = vpop.permute.xlu0 %1381
      %1383 = vrot.lane.b32.xlu0 %v605, 48
      %v1384 = vpop.permute.xlu0 %1383
      %1385 = vrot.lane.b32.xlu0 %v606, 48
      %v1386 = vpop.permute.xlu0 %1385
      %1387 = vrot.lane.b32.xlu0 %v607, 48
      %v1388 = vpop.permute.xlu0 %1387
      %1389 = vrot.lane.b32.xlu0 %v608, 48
      %v1390 = vpop.permute.xlu0 %1389
      %1391 = vrot.lane.b32.xlu0 %v609, 48
      %v1392 = vpop.permute.xlu0 %1391
      %1393 = vrot.lane.b32.xlu0 %v610, 48
      %v1394 = vpop.permute.xlu0 %1393
      %1395 = vrot.lane.b32.xlu0 %v611, 48
      %v1396 = vpop.permute.xlu0 %1395
      %1397 = vrot.lane.b32.xlu0 %v612, 48
      %v1398 = vpop.permute.xlu0 %1397
      %1399 = vrot.lane.b32.xlu0 %v613, 48
      %v1400 = vpop.permute.xlu0 %1399
      %1401 = vrot.lane.b32.xlu0 %v614, 48
      %v1402 = vpop.permute.xlu0 %1401
      %1403 = vrot.lane.b32.xlu0 %v615, 48
      %v1404 = vpop.permute.xlu0 %1403
      %1405 = vrot.lane.b32.xlu0 %v616, 48
      %v1406 = vpop.permute.xlu0 %1405
      %1407 = vrot.lane.b32.xlu0 %v617, 48
      %v1408 = vpop.permute.xlu0 %1407
      %1409 = vrot.lane.b32.xlu0 %v618, 48
      %v1410 = vpop.permute.xlu0 %1409
      %1411 = vrot.lane.b32.xlu0 %v619, 48
      %v1412 = vpop.permute.xlu0 %1411
      %1413 = vrot.lane.b32.xlu0 %v620, 48
      %v1414 = vpop.permute.xlu0 %1413
      %1415 = vrot.lane.b32.xlu0 %v621, 48
      %v1416 = vpop.permute.xlu0 %1415
      %1417 = vrot.lane.b32.xlu0 %v622, 48
      %v1418 = vpop.permute.xlu0 %1417
      %1419 = vrot.lane.b32.xlu0 %v623, 48
      %v1420 = vpop.permute.xlu0 %1419
      %1421 = vrot.lane.b32.xlu0 %v624, 48
      %v1422 = vpop.permute.xlu0 %1421
      %1423 = vrot.lane.b32.xlu0 %v625, 48
      %v1424 = vpop.permute.xlu0 %1423
      %1425 = vrot.lane.b32.xlu0 %v626, 48
      %v1426 = vpop.permute.xlu0 %1425
      %1491 = vrot.lane.b32.xlu0 %v627, 56
      %v1492 = vpop.permute.xlu0 %1491
      %1493 = vrot.lane.b32.xlu0 %v628, 56
      %v1494 = vpop.permute.xlu0 %1493
      %1495 = vrot.lane.b32.xlu0 %v629, 56
      %v1496 = vpop.permute.xlu0 %1495
      %1497 = vrot.lane.b32.xlu0 %v630, 56
      %v1498 = vpop.permute.xlu0 %1497
      %1499 = vrot.lane.b32.xlu0 %v631, 56
      %v1500 = vpop.permute.xlu0 %1499
      %1501 = vrot.lane.b32.xlu0 %v632, 56
      %v1502 = vpop.permute.xlu0 %1501
      %1503 = vrot.lane.b32.xlu0 %v633, 56
      %v1504 = vpop.permute.xlu0 %1503
      %1505 = vrot.lane.b32.xlu0 %v634, 56
      %v1506 = vpop.permute.xlu0 %1505
      %1507 = vrot.lane.b32.xlu0 %v635, 56
      %v1508 = vpop.permute.xlu0 %1507
      %1509 = vrot.lane.b32.xlu0 %v636, 56
      %v1510 = vpop.permute.xlu0 %1509
      %1511 = vrot.lane.b32.xlu0 %v637, 56
      %v1512 = vpop.permute.xlu0 %1511
      %1513 = vrot.lane.b32.xlu0 %v638, 56
      %v1514 = vpop.permute.xlu0 %1513
      %1515 = vrot.lane.b32.xlu0 %v639, 56
      %v1516 = vpop.permute.xlu0 %1515
      %1517 = vrot.lane.b32.xlu0 %v640, 56
      %v1518 = vpop.permute.xlu0 %1517
      %1519 = vrot.lane.b32.xlu0 %v641, 56
      %v1520 = vpop.permute.xlu0 %1519
      %1521 = vrot.lane.b32.xlu0 %v642, 56
      %v1522 = vpop.permute.xlu0 %1521
      %1523 = vrot.lane.b32.xlu0 %v643, 56
      %v1524 = vpop.permute.xlu0 %1523
      %1525 = vrot.lane.b32.xlu0 %v644, 56
      %v1526 = vpop.permute.xlu0 %1525
      %1527 = vrot.lane.b32.xlu0 %v645, 56
      %v1528 = vpop.permute.xlu0 %1527
      %1529 = vrot.lane.b32.xlu0 %v646, 56
      %v1530 = vpop.permute.xlu0 %1529
      %1531 = vrot.lane.b32.xlu0 %v647, 56
      %v1532 = vpop.permute.xlu0 %1531
      %1533 = vrot.lane.b32.xlu0 %v648, 56
      %v1534 = vpop.permute.xlu0 %1533
      %1535 = vrot.lane.b32.xlu0 %v649, 56
      %v1536 = vpop.permute.xlu0 %1535
      %1537 = vrot.lane.b32.xlu0 %v650, 56
      %v1538 = vpop.permute.xlu0 %1537
      %1539 = vrot.lane.b32.xlu0 %v651, 56
      %v1540 = vpop.permute.xlu0 %1539
      %1541 = vrot.lane.b32.xlu0 %v652, 56
      %v1542 = vpop.permute.xlu0 %1541
      %1543 = vrot.lane.b32.xlu0 %v653, 56
      %v1544 = vpop.permute.xlu0 %1543
      %1545 = vrot.lane.b32.xlu0 %v654, 56
      %v1546 = vpop.permute.xlu0 %1545
      %1547 = vrot.lane.b32.xlu0 %v655, 56
      %v1548 = vpop.permute.xlu0 %1547
      %1549 = vrot.lane.b32.xlu0 %v656, 56
      %v1550 = vpop.permute.xlu0 %1549
      %1551 = vrot.lane.b32.xlu0 %v657, 56
      %v1552 = vpop.permute.xlu0 %1551
      %1553 = vrot.lane.b32.xlu0 %v658, 56
      %v1554 = vpop.permute.xlu0 %1553
      %1619 = vrot.lane.b32.xlu0 %v659, 64
      %v1620 = vpop.permute.xlu0 %1619
      %1621 = vrot.lane.b32.xlu0 %v660, 64
      %v1622 = vpop.permute.xlu0 %1621
      %1623 = vrot.lane.b32.xlu0 %v661, 64
      %v1624 = vpop.permute.xlu0 %1623
      %1625 = vrot.lane.b32.xlu0 %v662, 64
      %v1626 = vpop.permute.xlu0 %1625
      %1627 = vrot.lane.b32.xlu0 %v663, 64
      %v1628 = vpop.permute.xlu0 %1627
      %1629 = vrot.lane.b32.xlu0 %v664, 64
      %v1630 = vpop.permute.xlu0 %1629
      %1631 = vrot.lane.b32.xlu0 %v665, 64
      %v1632 = vpop.permute.xlu0 %1631
      %1633 = vrot.lane.b32.xlu0 %v666, 64
      %v1634 = vpop.permute.xlu0 %1633
      %1635 = vrot.lane.b32.xlu0 %v667, 64
      %v1636 = vpop.permute.xlu0 %1635
      %1637 = vrot.lane.b32.xlu0 %v668, 64
      %v1638 = vpop.permute.xlu0 %1637
      %1639 = vrot.lane.b32.xlu0 %v669, 64
      %v1640 = vpop.permute.xlu0 %1639
      %1641 = vrot.lane.b32.xlu0 %v670, 64
      %v1642 = vpop.permute.xlu0 %1641
      %1643 = vrot.lane.b32.xlu0 %v671, 64
      %v1644 = vpop.permute.xlu0 %1643
      %1645 = vrot.lane.b32.xlu0 %v672, 64
      %v1646 = vpop.permute.xlu0 %1645
      %1647 = vrot.lane.b32.xlu0 %v673, 64
      %v1648 = vpop.permute.xlu0 %1647
      %1649 = vrot.lane.b32.xlu0 %v674, 64
      %v1650 = vpop.permute.xlu0 %1649
      %1651 = vrot.lane.b32.xlu0 %v675, 64
      %v1652 = vpop.permute.xlu0 %1651
      %1653 = vrot.lane.b32.xlu0 %v676, 64
      %v1654 = vpop.permute.xlu0 %1653
      %1655 = vrot.lane.b32.xlu0 %v677, 64
      %v1656 = vpop.permute.xlu0 %1655
      %1657 = vrot.lane.b32.xlu0 %v678, 64
      %v1658 = vpop.permute.xlu0 %1657
      %1659 = vrot.lane.b32.xlu0 %v679, 64
      %v1660 = vpop.permute.xlu0 %1659
      %1661 = vrot.lane.b32.xlu0 %v680, 64
      %v1662 = vpop.permute.xlu0 %1661
      %1663 = vrot.lane.b32.xlu0 %v681, 64
      %v1664 = vpop.permute.xlu0 %1663
      %1665 = vrot.lane.b32.xlu0 %v682, 64
      %v1666 = vpop.permute.xlu0 %1665
      %1667 = vrot.lane.b32.xlu0 %v683, 64
      %v1668 = vpop.permute.xlu0 %1667
      %1669 = vrot.lane.b32.xlu0 %v684, 64
      %v1670 = vpop.permute.xlu0 %1669
      %1671 = vrot.lane.b32.xlu0 %v685, 64
      %v1672 = vpop.permute.xlu0 %1671
      %1673 = vrot.lane.b32.xlu0 %v686, 64
      %v1674 = vpop.permute.xlu0 %1673
      %1675 = vrot.lane.b32.xlu0 %v687, 64
      %v1676 = vpop.permute.xlu0 %1675
      %1677 = vrot.lane.b32.xlu0 %v688, 64
      %v1678 = vpop.permute.xlu0 %1677
      %1679 = vrot.lane.b32.xlu0 %v689, 64
      %v1680 = vpop.permute.xlu0 %1679
      %1681 = vrot.lane.b32.xlu0 %v690, 64
      %v1682 = vpop.permute.xlu0 %1681
      %v1715 = vsel %vm369, %v402, %v724
      %v1716 = vsel %vm369, %v403, %v726
      %v1717 = vsel %vm369, %v404, %v728
      %v1718 = vsel %vm369, %v405, %v730
      %v1719 = vsel %vm369, %v406, %v732
      %v1720 = vsel %vm369, %v407, %v734
      %v1721 = vsel %vm369, %v408, %v736
      %v1722 = vsel %vm369, %v409, %v738
      %v1723 = vsel %vm369, %v410, %v740
      %v1724 = vsel %vm369, %v411, %v742
      %v1725 = vsel %vm369, %v412, %v744
      %v1726 = vsel %vm369, %v413, %v746
      %v1727 = vsel %vm369, %v414, %v748
      %v1728 = vsel %vm369, %v415, %v750
      %v1729 = vsel %vm369, %v416, %v752
      %v1730 = vsel %vm369, %v417, %v754
      %v1731 = vsel %vm369, %v418, %v756
      %v1732 = vsel %vm369, %v419, %v758
      %v1733 = vsel %vm369, %v420, %v760
      %v1734 = vsel %vm369, %v421, %v762
      %v1735 = vsel %vm369, %v422, %v764
      %v1736 = vsel %vm369, %v423, %v766
      %v1737 = vsel %vm369, %v424, %v768
      %v1738 = vsel %vm369, %v425, %v770
      %v1739 = vsel %vm369, %v426, %v772
      %v1740 = vsel %vm369, %v427, %v774
      %v1741 = vsel %vm369, %v428, %v776
      %v1742 = vsel %vm369, %v429, %v778
      %v1743 = vsel %vm369, %v430, %v780
      %v1744 = vsel %vm369, %v431, %v782
      %v1745 = vsel %vm369, %v432, %v784
      %v1746 = vsel %vm369, %v433, %v786
      %v1747 = vsel %vm280, %v1715, %v852
      %v1748 = vsel %vm280, %v1716, %v854
      %v1749 = vsel %vm280, %v1717, %v856
      %v1750 = vsel %vm280, %v1718, %v858
      %v1751 = vsel %vm280, %v1719, %v860
      %v1752 = vsel %vm280, %v1720, %v862
      %v1753 = vsel %vm280, %v1721, %v864
      %v1754 = vsel %vm280, %v1722, %v866
      %v1755 = vsel %vm280, %v1723, %v868
      %v1756 = vsel %vm280, %v1724, %v870
      %v1757 = vsel %vm280, %v1725, %v872
      %v1758 = vsel %vm280, %v1726, %v874
      %v1759 = vsel %vm280, %v1727, %v876
      %v1760 = vsel %vm280, %v1728, %v878
      %v1761 = vsel %vm280, %v1729, %v880
      %v1762 = vsel %vm280, %v1730, %v882
      %v1763 = vsel %vm280, %v1731, %v884
      %v1764 = vsel %vm280, %v1732, %v886
      %v1765 = vsel %vm280, %v1733, %v888
      %v1766 = vsel %vm280, %v1734, %v890
      %v1767 = vsel %vm280, %v1735, %v892
      %v1768 = vsel %vm280, %v1736, %v894
      %v1769 = vsel %vm280, %v1737, %v896
      %v1770 = vsel %vm280, %v1738, %v898
      %v1771 = vsel %vm280, %v1739, %v900
      %v1772 = vsel %vm280, %v1740, %v902
      %v1773 = vsel %vm280, %v1741, %v904
      %v1774 = vsel %vm280, %v1742, %v906
      %v1775 = vsel %vm280, %v1743, %v908
      %v1776 = vsel %vm280, %v1744, %v910
      %v1777 = vsel %vm280, %v1745, %v912
      %v1778 = vsel %vm280, %v1746, %v914
      %vm1779 = vcmask 195584
      %v1780 = vsel %vm1779, %v1747, %v980
      %v1781 = vsel %vm1779, %v1748, %v982
      %v1782 = vsel %vm1779, %v1749, %v984
      %v1783 = vsel %vm1779, %v1750, %v986
      %v1784 = vsel %vm1779, %v1751, %v988
      %v1785 = vsel %vm1779, %v1752, %v990
      %v1786 = vsel %vm1779, %v1753, %v992
      %v1787 = vsel %vm1779, %v1754, %v994
      %v1788 = vsel %vm1779, %v1755, %v996
      %v1789 = vsel %vm1779, %v1756, %v998
      %v1790 = vsel %vm1779, %v1757, %v1000
      %v1791 = vsel %vm1779, %v1758, %v1002
      %v1792 = vsel %vm1779, %v1759, %v1004
      %v1793 = vsel %vm1779, %v1760, %v1006
      %v1794 = vsel %vm1779, %v1761, %v1008
      %v1795 = vsel %vm1779, %v1762, %v1010
      %v1796 = vsel %vm1779, %v1763, %v1012
      %v1797 = vsel %vm1779, %v1764, %v1014
      %v1798 = vsel %vm1779, %v1765, %v1016
      %v1799 = vsel %vm1779, %v1766, %v1018
      %v1800 = vsel %vm1779, %v1767, %v1020
      %v1801 = vsel %vm1779, %v1768, %v1022
      %v1802 = vsel %vm1779, %v1769, %v1024
      %v1803 = vsel %vm1779, %v1770, %v1026
      %v1804 = vsel %vm1779, %v1771, %v1028
      %v1805 = vsel %vm1779, %v1772, %v1030
      %v1806 = vsel %vm1779, %v1773, %v1032
      %v1807 = vsel %vm1779, %v1774, %v1034
      %v1808 = vsel %vm1779, %v1775, %v1036
      %v1809 = vsel %vm1779, %v1776, %v1038
      %v1810 = vsel %vm1779, %v1777, %v1040
      %v1811 = vsel %vm1779, %v1778, %v1042
      %vm1812 = vcmask 261120
      %v1813 = vsel %vm1812, %v1780, %v1108
      %v1814 = vsel %vm1812, %v1781, %v1110
      %v1815 = vsel %vm1812, %v1782, %v1112
      %v1816 = vsel %vm1812, %v1783, %v1114
      %v1817 = vsel %vm1812, %v1784, %v1116
      %v1818 = vsel %vm1812, %v1785, %v1118
      %v1819 = vsel %vm1812, %v1786, %v1120
      %v1820 = vsel %vm1812, %v1787, %v1122
      %v1821 = vsel %vm1812, %v1788, %v1124
      %v1822 = vsel %vm1812, %v1789, %v1126
      %v1823 = vsel %vm1812, %v1790, %v1128
      %v1824 = vsel %vm1812, %v1791, %v1130
      %v1825 = vsel %vm1812, %v1792, %v1132
      %v1826 = vsel %vm1812, %v1793, %v1134
      %v1827 = vsel %vm1812, %v1794, %v1136
      %v1828 = vsel %vm1812, %v1795, %v1138
      %v1829 = vsel %vm1812, %v1796, %v1140
      %v1830 = vsel %vm1812, %v1797, %v1142
      %v1831 = vsel %vm1812, %v1798, %v1144
      %v1832 = vsel %vm1812, %v1799, %v1146
      %v1833 = vsel %vm1812, %v1800, %v1148
      %v1834 = vsel %vm1812, %v1801, %v1150
      %v1835 = vsel %vm1812, %v1802, %v1152
      %v1836 = vsel %vm1812, %v1803, %v1154
      %v1837 = vsel %vm1812, %v1804, %v1156
      %v1838 = vsel %vm1812, %v1805, %v1158
      %v1839 = vsel %vm1812, %v1806, %v1160
      %v1840 = vsel %vm1812, %v1807, %v1162
      %v1841 = vsel %vm1812, %v1808, %v1164
      %v1842 = vsel %vm1812, %v1809, %v1166
      %v1843 = vsel %vm1812, %v1810, %v1168
      %v1844 = vsel %vm1812, %v1811, %v1170
      %vm1845 = vcmask 326656
      %v1846 = vsel %vm1845, %v1813, %v1236
      %v1847 = vsel %vm1845, %v1814, %v1238
      %v1848 = vsel %vm1845, %v1815, %v1240
      %v1849 = vsel %vm1845, %v1816, %v1242
      %v1850 = vsel %vm1845, %v1817, %v1244
      %v1851 = vsel %vm1845, %v1818, %v1246
      %v1852 = vsel %vm1845, %v1819, %v1248
      %v1853 = vsel %vm1845, %v1820, %v1250
      %v1854 = vsel %vm1845, %v1821, %v1252
      %v1855 = vsel %vm1845, %v1822, %v1254
      %v1856 = vsel %vm1845, %v1823, %v1256
      %v1857 = vsel %vm1845, %v1824, %v1258
      %v1858 = vsel %vm1845, %v1825, %v1260
      %v1859 = vsel %vm1845, %v1826, %v1262
      %v1860 = vsel %vm1845, %v1827, %v1264
      %v1861 = vsel %vm1845, %v1828, %v1266
      %v1862 = vsel %vm1845, %v1829, %v1268
      %v1863 = vsel %vm1845, %v1830, %v1270
      %v1864 = vsel %vm1845, %v1831, %v1272
      %v1865 = vsel %vm1845, %v1832, %v1274
      %v1866 = vsel %vm1845, %v1833, %v1276
      %v1867 = vsel %vm1845, %v1834, %v1278
      %v1868 = vsel %vm1845, %v1835, %v1280
      %v1869 = vsel %vm1845, %v1836, %v1282
      %v1870 = vsel %vm1845, %v1837, %v1284
      %v1871 = vsel %vm1845, %v1838, %v1286
      %v1872 = vsel %vm1845, %v1839, %v1288
      %v1873 = vsel %vm1845, %v1840, %v1290
      %v1874 = vsel %vm1845, %v1841, %v1292
      %v1875 = vsel %vm1845, %v1842, %v1294
      %v1876 = vsel %vm1845, %v1843, %v1296
      %v1877 = vsel %vm1845, %v1844, %v1298
      %vm1878 = vcmask 392192
      %v1879 = vsel %vm1878, %v1846, %v1364
      %v1880 = vsel %vm1878, %v1847, %v1366
      %v1881 = vsel %vm1878, %v1848, %v1368
      %v1882 = vsel %vm1878, %v1849, %v1370
      %v1883 = vsel %vm1878, %v1850, %v1372
      %v1884 = vsel %vm1878, %v1851, %v1374
      %v1885 = vsel %vm1878, %v1852, %v1376
      %v1886 = vsel %vm1878, %v1853, %v1378
      %v1887 = vsel %vm1878, %v1854, %v1380
      %v1888 = vsel %vm1878, %v1855, %v1382
      %v1889 = vsel %vm1878, %v1856, %v1384
      %v1890 = vsel %vm1878, %v1857, %v1386
      %v1891 = vsel %vm1878, %v1858, %v1388
      %v1892 = vsel %vm1878, %v1859, %v1390
      %v1893 = vsel %vm1878, %v1860, %v1392
      %v1894 = vsel %vm1878, %v1861, %v1394
      %v1895 = vsel %vm1878, %v1862, %v1396
      %v1896 = vsel %vm1878, %v1863, %v1398
      %v1897 = vsel %vm1878, %v1864, %v1400
      %v1898 = vsel %vm1878, %v1865, %v1402
      %v1899 = vsel %vm1878, %v1866, %v1404
      %v1900 = vsel %vm1878, %v1867, %v1406
      %v1901 = vsel %vm1878, %v1868, %v1408
      %v1902 = vsel %vm1878, %v1869, %v1410
      %v1903 = vsel %vm1878, %v1870, %v1412
      %v1904 = vsel %vm1878, %v1871, %v1414
      %v1905 = vsel %vm1878, %v1872, %v1416
      %v1906 = vsel %vm1878, %v1873, %v1418
      %v1907 = vsel %vm1878, %v1874, %v1420
      %v1908 = vsel %vm1878, %v1875, %v1422
      %v1909 = vsel %vm1878, %v1876, %v1424
      %v1910 = vsel %vm1878, %v1877, %v1426
      %vm1911 = vcmask 457728
      %v1912 = vsel %vm1911, %v1879, %v1492
      %v1913 = vsel %vm1911, %v1880, %v1494
      %v1914 = vsel %vm1911, %v1881, %v1496
      %v1915 = vsel %vm1911, %v1882, %v1498
      %v1916 = vsel %vm1911, %v1883, %v1500
      %v1917 = vsel %vm1911, %v1884, %v1502
      %v1918 = vsel %vm1911, %v1885, %v1504
      %v1919 = vsel %vm1911, %v1886, %v1506
      %v1920 = vsel %vm1911, %v1887, %v1508
      %v1921 = vsel %vm1911, %v1888, %v1510
      %v1922 = vsel %vm1911, %v1889, %v1512
      %v1923 = vsel %vm1911, %v1890, %v1514
      %v1924 = vsel %vm1911, %v1891, %v1516
      %v1925 = vsel %vm1911, %v1892, %v1518
      %v1926 = vsel %vm1911, %v1893, %v1520
      %v1927 = vsel %vm1911, %v1894, %v1522
      %v1928 = vsel %vm1911, %v1895, %v1524
      %v1929 = vsel %vm1911, %v1896, %v1526
      %v1930 = vsel %vm1911, %v1897, %v1528
      %v1931 = vsel %vm1911, %v1898, %v1530
      %v1932 = vsel %vm1911, %v1899, %v1532
      %v1933 = vsel %vm1911, %v1900, %v1534
      %v1934 = vsel %vm1911, %v1901, %v1536
      %v1935 = vsel %vm1911, %v1902, %v1538
      %v1936 = vsel %vm1911, %v1903, %v1540
      %v1937 = vsel %vm1911, %v1904, %v1542
      %v1938 = vsel %vm1911, %v1905, %v1544
      %v1939 = vsel %vm1911, %v1906, %v1546
      %v1940 = vsel %vm1911, %v1907, %v1548
      %v1941 = vsel %vm1911, %v1908, %v1550
      %v1942 = vsel %vm1911, %v1909, %v1552
      %v1943 = vsel %vm1911, %v1910, %v1554
      %vm1944 = vcmask 523264
      %v1945 = vsel %vm1944, %v1912, %v1620
      %v1946 = vsel %vm1944, %v1913, %v1622
      %v1947 = vsel %vm1944, %v1914, %v1624
      %v1948 = vsel %vm1944, %v1915, %v1626
      %v1949 = vsel %vm1944, %v1916, %v1628
      %v1950 = vsel %vm1944, %v1917, %v1630
      %v1951 = vsel %vm1944, %v1918, %v1632
      %v1952 = vsel %vm1944, %v1919, %v1634
      %v1953 = vsel %vm1944, %v1920, %v1636
      %v1954 = vsel %vm1944, %v1921, %v1638
      %v1955 = vsel %vm1944, %v1922, %v1640
      %v1956 = vsel %vm1944, %v1923, %v1642
      %v1957 = vsel %vm1944, %v1924, %v1644
      %v1958 = vsel %vm1944, %v1925, %v1646
      %v1959 = vsel %vm1944, %v1926, %v1648
      %v1960 = vsel %vm1944, %v1927, %v1650
      %v1961 = vsel %vm1944, %v1928, %v1652
      %v1962 = vsel %vm1944, %v1929, %v1654
      %v1963 = vsel %vm1944, %v1930, %v1656
      %v1964 = vsel %vm1944, %v1931, %v1658
      %v1965 = vsel %vm1944, %v1932, %v1660
      %v1966 = vsel %vm1944, %v1933, %v1662
      %v1967 = vsel %vm1944, %v1934, %v1664
      %v1968 = vsel %vm1944, %v1935, %v1666
      %v1969 = vsel %vm1944, %v1936, %v1668
      %v1970 = vsel %vm1944, %v1937, %v1670
      %v1971 = vsel %vm1944, %v1938, %v1672
      %v1972 = vsel %vm1944, %v1939, %v1674
      %v1973 = vsel %vm1944, %v1940, %v1676
      %v1974 = vsel %vm1944, %v1941, %v1678
      %v1975 = vsel %vm1944, %v1942, %v1680
      %v1976 = vsel %vm1944, %v1943, %v1682
      %v1977 = vpack.c.bf16 %v1946, %v1945
      %v1978 = vpack.c.bf16 %v1948, %v1947
      %v1979 = vpack.c.bf16 %v1950, %v1949
      %v1980 = vpack.c.bf16 %v1952, %v1951
      %v1981 = vpack.c.bf16 %v1954, %v1953
      %v1982 = vpack.c.bf16 %v1956, %v1955
      %v1983 = vpack.c.bf16 %v1958, %v1957
      %v1984 = vpack.c.bf16 %v1960, %v1959
      %v1985 = vpack.c.bf16 %v1962, %v1961
      %v1986 = vpack.c.bf16 %v1964, %v1963
      %v1987 = vpack.c.bf16 %v1966, %v1965
      %v1988 = vpack.c.bf16 %v1968, %v1967
      %v1989 = vpack.c.bf16 %v1970, %v1969
      %v1990 = vpack.c.bf16 %v1972, %v1971
      %v1991 = vpack.c.bf16 %v1974, %v1973
      %v1992 = vpack.c.bf16 %v1976, %v1975
      %v1993 = vld [vmem:[%s1] sm:$0xf]
      %v1994 = vld [vmem:[%s1 + $0x4] sm:$0xf]
      %v1995 = vld [vmem:[%s1 + $0x8] sm:$0xf]
      %v1996 = vld [vmem:[%s1 + $0xc] sm:$0xf]
      %v1997 = vld [vmem:[%s1 + $0x10] sm:$0xf]
      %v1998 = vld [vmem:[%s1 + $0x14] sm:$0xf]
      %v1999 = vld [vmem:[%s1 + $0x18] sm:$0xf]
      %v2000 = vld [vmem:[%s1 + $0x1c] sm:$0xf]
      %v2001 = vld [vmem:[%s1 + $0x20] sm:$0xf]
      %v2002 = vld [vmem:[%s3] sm:$0x1]
      %v2004 = vperm.slane %v2002, 0
      %v2015 = vunpack.c.l.b16 %v1993
      %v2016 = vunpack.c.l.b16 %v1994
      %v2017 = vunpack.c.l.b16 %v1995
      %v2018 = vunpack.c.l.b16 %v1996
      %v2019 = vunpack.c.l.b16 %v1997
      %v2020 = vunpack.c.l.b16 %v1998
      %v2021 = vunpack.c.l.b16 %v1999
      %v2022 = vunpack.c.l.b16 %v2000
      %v2023 = vunpack.c.l.b16 %v2001
      %v2024 = vpack.c.b16 %v2016, %v2015
      %v2025 = vpack.c.b16 %v2018, %v2017
      %v2026 = vpack.c.b16 %v2020, %v2019
      %v2027 = vpack.c.b16 %v2022, %v2021
      %v2028 = vpack.c.b16 %v2023, %v2023
      %vm2033 = vcmask 588800
      %v2035 = vsel %vm2033, %v1977, 0
      %v2038 = vsel %vm2033, %v1978, 0
      %v2041 = vsel %vm2033, %v1979, 0
      %v2044 = vsel %vm2033, %v1980, 0
      %v2047 = vsel %vm2033, %v1981, 0
      %v2050 = vsel %vm2033, %v1982, 0
      %v2053 = vsel %vm2033, %v1983, 0
      %v2056 = vsel %vm2033, %v1984, 0
      %v2059 = vsel %vm2033, %v1985, 0
      %v2062 = vsel %vm2033, %v1986, 0
      %v2065 = vsel %vm2033, %v1987, 0
      %v2068 = vsel %vm2033, %v1988, 0
      %v2071 = vsel %vm2033, %v1989, 0
      %v2074 = vsel %vm2033, %v1990, 0
      %v2077 = vsel %vm2033, %v1991, 0
      %v2080 = vsel %vm2033, %v1992, 0
      %vm2082 = vcmask 1043456
      %v2084 = vsel %vm2082, %v2028, 0
      %2086 = vmatpush.bf16.msra.mxu0 0
      %2087 = vmatpush.bf16.msra.mxu0 0
      %2088 = vmatpush.bf16.msra.mxu0 0
      %2089 = vmatpush.bf16.msra.mxu0 %v2084
      %2090 = vmatpush.bf16.msra.mxu0 %v2027
      %2091 = vmatpush.bf16.msra.mxu0 %v2026
      %2092 = vmatpush.bf16.msra.mxu0 %v2025
      %2093 = vmatpush.bf16.msra.mxu0 %v2024
      %2094 = vmatmul.bf16.gmra.mxu0 %v2035
      %v2095 = vpop.f32.mrf.mxu0
      %v2096 = vadd.f32 %v2004, %v2095
      %v2097 = vpop.f32.mrf.mxu0
      %v2098 = vadd.f32 %v2004, %v2097
      %2099 = vmatmul.bf16.gmra.mxu0 %v2038
      %v2100 = vpop.f32.mrf.mxu0
      %v2101 = vadd.f32 %v2004, %v2100
      %v2102 = vpop.f32.mrf.mxu0
      %v2103 = vadd.f32 %v2004, %v2102
      %2104 = vmatmul.bf16.gmra.mxu0 %v2041
      %v2105 = vpop.f32.mrf.mxu0
      %v2106 = vadd.f32 %v2004, %v2105
      %v2107 = vpop.f32.mrf.mxu0
      %v2108 = vadd.f32 %v2004, %v2107
      %2109 = vmatmul.bf16.gmra.mxu0 %v2044
      %v2110 = vpop.f32.mrf.mxu0
      %v2111 = vadd.f32 %v2004, %v2110
      %v2112 = vpop.f32.mrf.mxu0
      %v2113 = vadd.f32 %v2004, %v2112
      %2114 = vmatmul.bf16.gmra.mxu0 %v2047
      %v2115 = vpop.f32.mrf.mxu0
      %v2116 = vadd.f32 %v2004, %v2115
      %v2117 = vpop.f32.mrf.mxu0
      %v2118 = vadd.f32 %v2004, %v2117
      %2119 = vmatmul.bf16.gmra.mxu0 %v2050
      %v2120 = vpop.f32.mrf.mxu0
      %v2121 = vadd.f32 %v2004, %v2120
      %v2122 = vpop.f32.mrf.mxu0
      %v2123 = vadd.f32 %v2004, %v2122
      %2124 = vmatmul.bf16.gmra.mxu0 %v2053
      %v2125 = vpop.f32.mrf.mxu0
      %v2126 = vadd.f32 %v2004, %v2125
      %v2127 = vpop.f32.mrf.mxu0
      %v2128 = vadd.f32 %v2004, %v2127
      %2129 = vmatmul.bf16.gmra.mxu0 %v2056
      %v2130 = vpop.f32.mrf.mxu0
      %v2131 = vadd.f32 %v2004, %v2130
      %v2132 = vpop.f32.mrf.mxu0
      %v2133 = vadd.f32 %v2004, %v2132
      %2134 = vmatmul.bf16.gmra.mxu0 %v2059
      %v2135 = vpop.f32.mrf.mxu0
      %v2136 = vadd.f32 %v2004, %v2135
      %v2137 = vpop.f32.mrf.mxu0
      %v2138 = vadd.f32 %v2004, %v2137
      %2139 = vmatmul.bf16.gmra.mxu0 %v2062
      %v2140 = vpop.f32.mrf.mxu0
      %v2141 = vadd.f32 %v2004, %v2140
      %v2142 = vpop.f32.mrf.mxu0
      %v2143 = vadd.f32 %v2004, %v2142
      %2144 = vmatmul.bf16.gmra.mxu0 %v2065
      %v2145 = vpop.f32.mrf.mxu0
      %v2146 = vadd.f32 %v2004, %v2145
      %v2147 = vpop.f32.mrf.mxu0
      %v2148 = vadd.f32 %v2004, %v2147
      %2149 = vmatmul.bf16.gmra.mxu0 %v2068
      %v2150 = vpop.f32.mrf.mxu0
      %v2151 = vadd.f32 %v2004, %v2150
      %v2152 = vpop.f32.mrf.mxu0
      %v2153 = vadd.f32 %v2004, %v2152
      %2154 = vmatmul.bf16.gmra.mxu0 %v2071
      %v2155 = vpop.f32.mrf.mxu0
      %v2156 = vadd.f32 %v2004, %v2155
      %v2157 = vpop.f32.mrf.mxu0
      %v2158 = vadd.f32 %v2004, %v2157
      %2159 = vmatmul.bf16.gmra.mxu0 %v2074
      %v2160 = vpop.f32.mrf.mxu0
      %v2161 = vadd.f32 %v2004, %v2160
      %v2162 = vpop.f32.mrf.mxu0
      %v2163 = vadd.f32 %v2004, %v2162
      %2164 = vmatmul.bf16.gmra.mxu0 %v2077
      %v2165 = vpop.f32.mrf.mxu0
      %v2166 = vadd.f32 %v2004, %v2165
      %v2167 = vpop.f32.mrf.mxu0
      %v2168 = vadd.f32 %v2004, %v2167
      %2169 = vmatmul.bf16.gmra.mxu0 %v2080
      %v2170 = vpop.f32.mrf.mxu0
      %v2171 = vadd.f32 %v2004, %v2170
      %v2172 = vpop.f32.mrf.mxu0
      %v2173 = vadd.f32 %v2004, %v2172
      %2174 = vdwg.mxu0
      %v2175 = vmax.f32 %v2096, 0.0
      %v2176 = vmax.f32 %v2098, 0.0
      %v2177 = vmax.f32 %v2101, 0.0
      %v2178 = vmax.f32 %v2103, 0.0
      %v2179 = vmax.f32 %v2106, 0.0
      %v2180 = vmax.f32 %v2108, 0.0
      %v2181 = vmax.f32 %v2111, 0.0
      %v2182 = vmax.f32 %v2113, 0.0
      %v2183 = vmax.f32 %v2116, 0.0
      %v2184 = vmax.f32 %v2118, 0.0
      %v2185 = vmax.f32 %v2121, 0.0
      %v2186 = vmax.f32 %v2123, 0.0
      %v2187 = vmax.f32 %v2126, 0.0
      %v2188 = vmax.f32 %v2128, 0.0
      %v2189 = vmax.f32 %v2131, 0.0
      %v2190 = vmax.f32 %v2133, 0.0
      %v2191 = vmax.f32 %v2136, 0.0
      %v2192 = vmax.f32 %v2138, 0.0
      %v2193 = vmax.f32 %v2141, 0.0
      %v2194 = vmax.f32 %v2143, 0.0
      %v2195 = vmax.f32 %v2146, 0.0
      %v2196 = vmax.f32 %v2148, 0.0
      %v2197 = vmax.f32 %v2151, 0.0
      %v2198 = vmax.f32 %v2153, 0.0
      %v2199 = vmax.f32 %v2156, 0.0
      %v2200 = vmax.f32 %v2158, 0.0
      %v2201 = vmax.f32 %v2161, 0.0
      %v2202 = vmax.f32 %v2163, 0.0
      %v2203 = vmax.f32 %v2166, 0.0
      %v2204 = vmax.f32 %v2168, 0.0
      %v2205 = vmax.f32 %v2171, 0.0
      %v2206 = vmax.f32 %v2173, 0.0
      %2239 = vrot.lane.b32.xlu0 %v2175, 8
      %v2240 = vpop.permute.xlu0 %2239
      %2241 = vrot.lane.b32.xlu0 %v2176, 8
      %v2242 = vpop.permute.xlu0 %2241
      %2243 = vrot.lane.b32.xlu0 %v2177, 8
      %v2244 = vpop.permute.xlu0 %2243
      %2245 = vrot.lane.b32.xlu0 %v2178, 8
      %v2246 = vpop.permute.xlu0 %2245
      %2247 = vrot.lane.b32.xlu0 %v2179, 8
      %v2248 = vpop.permute.xlu0 %2247
      %2249 = vrot.lane.b32.xlu0 %v2180, 8
      %v2250 = vpop.permute.xlu0 %2249
      %2251 = vrot.lane.b32.xlu0 %v2181, 8
      %v2252 = vpop.permute.xlu0 %2251
      %2253 = vrot.lane.b32.xlu0 %v2182, 8
      %v2254 = vpop.permute.xlu0 %2253
      %2255 = vrot.lane.b32.xlu0 %v2183, 8
      %v2256 = vpop.permute.xlu0 %2255
      %2257 = vrot.lane.b32.xlu0 %v2184, 8
      %v2258 = vpop.permute.xlu0 %2257
      %2259 = vrot.lane.b32.xlu0 %v2185, 8
      %v2260 = vpop.permute.xlu0 %2259
      %2261 = vrot.lane.b32.xlu0 %v2186, 8
      %v2262 = vpop.permute.xlu0 %2261
      %2263 = vrot.lane.b32.xlu0 %v2187, 8
      %v2264 = vpop.permute.xlu0 %2263
      %2265 = vrot.lane.b32.xlu0 %v2188, 8
      %v2266 = vpop.permute.xlu0 %2265
      %2267 = vrot.lane.b32.xlu0 %v2189, 8
      %v2268 = vpop.permute.xlu0 %2267
      %2269 = vrot.lane.b32.xlu0 %v2190, 8
      %v2270 = vpop.permute.xlu0 %2269
      %2271 = vrot.lane.b32.xlu0 %v2191, 8
      %v2272 = vpop.permute.xlu0 %2271
      %2273 = vrot.lane.b32.xlu0 %v2192, 8
      %v2274 = vpop.permute.xlu0 %2273
      %2275 = vrot.lane.b32.xlu0 %v2193, 8
      %v2276 = vpop.permute.xlu0 %2275
      %2277 = vrot.lane.b32.xlu0 %v2194, 8
      %v2278 = vpop.permute.xlu0 %2277
      %2279 = vrot.lane.b32.xlu0 %v2195, 8
      %v2280 = vpop.permute.xlu0 %2279
      %2281 = vrot.lane.b32.xlu0 %v2196, 8
      %v2282 = vpop.permute.xlu0 %2281
      %2283 = vrot.lane.b32.xlu0 %v2197, 8
      %v2284 = vpop.permute.xlu0 %2283
      %2285 = vrot.lane.b32.xlu0 %v2198, 8
      %v2286 = vpop.permute.xlu0 %2285
      %2287 = vrot.lane.b32.xlu0 %v2199, 8
      %v2288 = vpop.permute.xlu0 %2287
      %2289 = vrot.lane.b32.xlu0 %v2200, 8
      %v2290 = vpop.permute.xlu0 %2289
      %2291 = vrot.lane.b32.xlu0 %v2201, 8
      %v2292 = vpop.permute.xlu0 %2291
      %2293 = vrot.lane.b32.xlu0 %v2202, 8
      %v2294 = vpop.permute.xlu0 %2293
      %2295 = vrot.lane.b32.xlu0 %v2203, 8
      %v2296 = vpop.permute.xlu0 %2295
      %2297 = vrot.lane.b32.xlu0 %v2204, 8
      %v2298 = vpop.permute.xlu0 %2297
      %2299 = vrot.lane.b32.xlu0 %v2205, 8
      %v2300 = vpop.permute.xlu0 %2299
      %2301 = vrot.lane.b32.xlu0 %v2206, 8
      %v2302 = vpop.permute.xlu0 %2301
      %vm2335 = vcmask 97344
      %2336 = vst.msk [vmem:[%s368 + $0x1] sm:$0xff] %vm2335, %v2240
      %2337 = vst.msk [vmem:[%s368 + $0x9] sm:$0xff] %vm2335, %v2242
      %2338 = vst.msk [vmem:[%s368 + $0x19] sm:$0xff] %vm2335, %v2244
      %2339 = vst.msk [vmem:[%s368 + $0x21] sm:$0xff] %vm2335, %v2246
      %2340 = vst.msk [vmem:[%s368 + $0x31] sm:$0xff] %vm2335, %v2248
      %2341 = vst.msk [vmem:[%s368 + $0x39] sm:$0xff] %vm2335, %v2250
      %2342 = vst.msk [vmem:[%s368 + $0x49] sm:$0xff] %vm2335, %v2252
      %2343 = vst.msk [vmem:[%s368 + $0x51] sm:$0xff] %vm2335, %v2254
      %2344 = vst.msk [vmem:[%s368 + $0x61] sm:$0xff] %vm2335, %v2256
      %2345 = vst.msk [vmem:[%s368 + $0x69] sm:$0xff] %vm2335, %v2258
      %2346 = vst.msk [vmem:[%s368 + $0x79] sm:$0xff] %vm2335, %v2260
      %2347 = vst.msk [vmem:[%s368 + $0x81] sm:$0xff] %vm2335, %v2262
      %2348 = vst.msk [vmem:[%s368 + $0x91] sm:$0xff] %vm2335, %v2264
      %2349 = vst.msk [vmem:[%s368 + $0x99] sm:$0xff] %vm2335, %v2266
      %2350 = vst.msk [vmem:[%s368 + $0xa9] sm:$0xff] %vm2335, %v2268
      %2351 = vst.msk [vmem:[%s368 + $0xb1] sm:$0xff] %vm2335, %v2270
      %2352 = vst.msk [vmem:[%s368 + $0xc1] sm:$0xff] %vm2335, %v2272
      %2353 = vst.msk [vmem:[%s368 + $0xc9] sm:$0xff] %vm2335, %v2274
      %2354 = vst.msk [vmem:[%s368 + $0xd9] sm:$0xff] %vm2335, %v2276
      %2355 = vst.msk [vmem:[%s368 + $0xe1] sm:$0xff] %vm2335, %v2278
      %2356 = vst.msk [vmem:[%s368 + $0xf1] sm:$0xff] %vm2335, %v2280
      %2357 = vst.msk [vmem:[%s368 + $0xf9] sm:$0xff] %vm2335, %v2282
      %2358 = vst.msk [vmem:[%s368 + $0x109] sm:$0xff] %vm2335, %v2284
      %2359 = vst.msk [vmem:[%s368 + $0x111] sm:$0xff] %vm2335, %v2286
      %2360 = vst.msk [vmem:[%s368 + $0x121] sm:$0xff] %vm2335, %v2288
      %2361 = vst.msk [vmem:[%s368 + $0x129] sm:$0xff] %vm2335, %v2290
      %2362 = vst.msk [vmem:[%s368 + $0x139] sm:$0xff] %vm2335, %v2292
      %2363 = vst.msk [vmem:[%s368 + $0x141] sm:$0xff] %vm2335, %v2294
      %2364 = vst.msk [vmem:[%s368 + $0x151] sm:$0xff] %vm2335, %v2296
      %2365 = vst.msk [vmem:[%s368 + $0x159] sm:$0xff] %vm2335, %v2298
      %2366 = vst.msk [vmem:[%s368 + $0x169] sm:$0xff] %vm2335, %v2300
      %2367 = vst.msk [vmem:[%s368 + $0x171] sm:$0xff] %vm2335, %v2302
      %v2368 = vld [vmem:[#allocation2] sm:$0xff]
      %v2369 = vld [vmem:[#allocation2 + $0x8] sm:$0xff]
      %v2370 = vld [vmem:[#allocation2 + $0x18] sm:$0xff]
      %v2371 = vld [vmem:[#allocation2 + $0x20] sm:$0xff]
      %v2372 = vld [vmem:[#allocation2 + $0x30] sm:$0xff]
      %v2373 = vld [vmem:[#allocation2 + $0x38] sm:$0xff]
      %v2374 = vld [vmem:[#allocation2 + $0x48] sm:$0xff]
      %v2375 = vld [vmem:[#allocation2 + $0x50] sm:$0xff]
      %v2376 = vld [vmem:[#allocation2 + $0x60] sm:$0xff]
      %v2377 = vld [vmem:[#allocation2 + $0x68] sm:$0xff]
      %v2378 = vld [vmem:[#allocation2 + $0x78] sm:$0xff]
      %v2379 = vld [vmem:[#allocation2 + $0x80] sm:$0xff]
      %v2380 = vld [vmem:[#allocation2 + $0x90] sm:$0xff]
      %v2381 = vld [vmem:[#allocation2 + $0x98] sm:$0xff]
      %v2382 = vld [vmem:[#allocation2 + $0xa8] sm:$0xff]
      %v2383 = vld [vmem:[#allocation2 + $0xb0] sm:$0xff]
      %v2384 = vld [vmem:[#allocation2 + $0xc0] sm:$0xff]
      %v2385 = vld [vmem:[#allocation2 + $0xc8] sm:$0xff]
      %v2386 = vld [vmem:[#allocation2 + $0xd8] sm:$0xff]
      %v2387 = vld [vmem:[#allocation2 + $0xe0] sm:$0xff]
      %v2388 = vld [vmem:[#allocation2 + $0xf0] sm:$0xff]
      %v2389 = vld [vmem:[#allocation2 + $0xf8] sm:$0xff]
      %v2390 = vld [vmem:[#allocation2 + $0x108] sm:$0xff]
      %v2391 = vld [vmem:[#allocation2 + $0x110] sm:$0xff]
      %v2392 = vld [vmem:[#allocation2 + $0x120] sm:$0xff]
      %v2393 = vld [vmem:[#allocation2 + $0x128] sm:$0xff]
      %v2394 = vld [vmem:[#allocation2 + $0x138] sm:$0xff]
      %v2395 = vld [vmem:[#allocation2 + $0x140] sm:$0xff]
      %v2396 = vld [vmem:[#allocation2 + $0x150] sm:$0xff]
      %v2397 = vld [vmem:[#allocation2 + $0x158] sm:$0xff]
      %v2398 = vld [vmem:[#allocation2 + $0x168] sm:$0xff]
      %v2399 = vld [vmem:[#allocation2 + $0x170] sm:$0xff]
      %v2400 = vld [vmem:[#allocation2 + $0x1] sm:$0xff]
      %v2401 = vld [vmem:[#allocation2 + $0x9] sm:$0xff]
      %v2402 = vld [vmem:[#allocation2 + $0x19] sm:$0xff]
      %v2403 = vld [vmem:[#allocation2 + $0x21] sm:$0xff]
      %v2404 = vld [vmem:[#allocation2 + $0x31] sm:$0xff]
      %v2405 = vld [vmem:[#allocation2 + $0x39] sm:$0xff]
      %v2406 = vld [vmem:[#allocation2 + $0x49] sm:$0xff]
      %v2407 = vld [vmem:[#allocation2 + $0x51] sm:$0xff]
      %v2408 = vld [vmem:[#allocation2 + $0x61] sm:$0xff]
      %v2409 = vld [vmem:[#allocation2 + $0x69] sm:$0xff]
      %v2410 = vld [vmem:[#allocation2 + $0x79] sm:$0xff]
      %v2411 = vld [vmem:[#allocation2 + $0x81] sm:$0xff]
      %v2412 = vld [vmem:[#allocation2 + $0x91] sm:$0xff]
      %v2413 = vld [vmem:[#allocation2 + $0x99] sm:$0xff]
      %v2414 = vld [vmem:[#allocation2 + $0xa9] sm:$0xff]
      %v2415 = vld [vmem:[#allocation2 + $0xb1] sm:$0xff]
      %v2416 = vld [vmem:[#allocation2 + $0xc1] sm:$0xff]
      %v2417 = vld [vmem:[#allocation2 + $0xc9] sm:$0xff]
      %v2418 = vld [vmem:[#allocation2 + $0xd9] sm:$0xff]
      %v2419 = vld [vmem:[#allocation2 + $0xe1] sm:$0xff]
      %v2420 = vld [vmem:[#allocation2 + $0xf1] sm:$0xff]
      %v2421 = vld [vmem:[#allocation2 + $0xf9] sm:$0xff]
      %v2422 = vld [vmem:[#allocation2 + $0x109] sm:$0xff]
      %v2423 = vld [vmem:[#allocation2 + $0x111] sm:$0xff]
      %v2424 = vld [vmem:[#allocation2 + $0x121] sm:$0xff]
      %v2425 = vld [vmem:[#allocation2 + $0x129] sm:$0xff]
      %v2426 = vld [vmem:[#allocation2 + $0x139] sm:$0xff]
      %v2427 = vld [vmem:[#allocation2 + $0x141] sm:$0xff]
      %v2428 = vld [vmem:[#allocation2 + $0x151] sm:$0xff]
      %v2429 = vld [vmem:[#allocation2 + $0x159] sm:$0xff]
      %v2430 = vld [vmem:[#allocation2 + $0x169] sm:$0xff]
      %v2431 = vld [vmem:[#allocation2 + $0x171] sm:$0xff]
      %v2432 = vld [vmem:[#allocation2 + $0x2] sm:$0xff]
      %v2433 = vld [vmem:[#allocation2 + $0xa] sm:$0xff]
      %v2434 = vld [vmem:[#allocation2 + $0x1a] sm:$0xff]
      %v2435 = vld [vmem:[#allocation2 + $0x22] sm:$0xff]
      %v2436 = vld [vmem:[#allocation2 + $0x32] sm:$0xff]
      %v2437 = vld [vmem:[#allocation2 + $0x3a] sm:$0xff]
      %v2438 = vld [vmem:[#allocation2 + $0x4a] sm:$0xff]
      %v2439 = vld [vmem:[#allocation2 + $0x52] sm:$0xff]
      %v2440 = vld [vmem:[#allocation2 + $0x62] sm:$0xff]
      %v2441 = vld [vmem:[#allocation2 + $0x6a] sm:$0xff]
      %v2442 = vld [vmem:[#allocation2 + $0x7a] sm:$0xff]
      %v2443 = vld [vmem:[#allocation2 + $0x82] sm:$0xff]
      %v2444 = vld [vmem:[#allocation2 + $0x92] sm:$0xff]
      %v2445 = vld [vmem:[#allocation2 + $0x9a] sm:$0xff]
      %v2446 = vld [vmem:[#allocation2 + $0xaa] sm:$0xff]
      %v2447 = vld [vmem:[#allocation2 + $0xb2] sm:$0xff]
      %v2448 = vld [vmem:[#allocation2 + $0xc2] sm:$0xff]
      %v2449 = vld [vmem:[#allocation2 + $0xca] sm:$0xff]
      %v2450 = vld [vmem:[#allocation2 + $0xda] sm:$0xff]
      %v2451 = vld [vmem:[#allocation2 + $0xe2] sm:$0xff]
      %v2452 = vld [vmem:[#allocation2 + $0xf2] sm:$0xff]
      %v2453 = vld [vmem:[#allocation2 + $0xfa] sm:$0xff]
      %v2454 = vld [vmem:[#allocation2 + $0x10a] sm:$0xff]
      %v2455 = vld [vmem:[#allocation2 + $0x112] sm:$0xff]
      %v2456 = vld [vmem:[#allocation2 + $0x122] sm:$0xff]
      %v2457 = vld [vmem:[#allocation2 + $0x12a] sm:$0xff]
      %v2458 = vld [vmem:[#allocation2 + $0x13a] sm:$0xff]
      %v2459 = vld [vmem:[#allocation2 + $0x142] sm:$0xff]
      %v2460 = vld [vmem:[#allocation2 + $0x152] sm:$0xff]
      %v2461 = vld [vmem:[#allocation2 + $0x15a] sm:$0xff]
      %v2462 = vld [vmem:[#allocation2 + $0x16a] sm:$0xff]
      %v2463 = vld [vmem:[#allocation2 + $0x172] sm:$0xff]
      %v2464 = vld [vmem:[%s368] sm:$0xff]
      %v2465 = vld [vmem:[%s368 + $0x8] sm:$0xff]
      %v2466 = vld [vmem:[%s368 + $0x18] sm:$0xff]
      %v2467 = vld [vmem:[%s368 + $0x20] sm:$0xff]
      %v2468 = vld [vmem:[%s368 + $0x30] sm:$0xff]
      %v2469 = vld [vmem:[%s368 + $0x38] sm:$0xff]
      %v2470 = vld [vmem:[%s368 + $0x48] sm:$0xff]
      %v2471 = vld [vmem:[%s368 + $0x50] sm:$0xff]
      %v2472 = vld [vmem:[%s368 + $0x60] sm:$0xff]
      %v2473 = vld [vmem:[%s368 + $0x68] sm:$0xff]
      %v2474 = vld [vmem:[%s368 + $0x78] sm:$0xff]
      %v2475 = vld [vmem:[%s368 + $0x80] sm:$0xff]
      %v2476 = vld [vmem:[%s368 + $0x90] sm:$0xff]
      %v2477 = vld [vmem:[%s368 + $0x98] sm:$0xff]
      %v2478 = vld [vmem:[%s368 + $0xa8] sm:$0xff]
      %v2479 = vld [vmem:[%s368 + $0xb0] sm:$0xff]
      %v2480 = vld [vmem:[%s368 + $0xc0] sm:$0xff]
      %v2481 = vld [vmem:[%s368 + $0xc8] sm:$0xff]
      %v2482 = vld [vmem:[%s368 + $0xd8] sm:$0xff]
      %v2483 = vld [vmem:[%s368 + $0xe0] sm:$0xff]
      %v2484 = vld [vmem:[%s368 + $0xf0] sm:$0xff]
      %v2485 = vld [vmem:[%s368 + $0xf8] sm:$0xff]
      %v2486 = vld [vmem:[%s368 + $0x108] sm:$0xff]
      %v2487 = vld [vmem:[%s368 + $0x110] sm:$0xff]
      %v2488 = vld [vmem:[%s368 + $0x120] sm:$0xff]
      %v2489 = vld [vmem:[%s368 + $0x128] sm:$0xff]
      %v2490 = vld [vmem:[%s368 + $0x138] sm:$0xff]
      %v2491 = vld [vmem:[%s368 + $0x140] sm:$0xff]
      %v2492 = vld [vmem:[%s368 + $0x150] sm:$0xff]
      %v2493 = vld [vmem:[%s368 + $0x158] sm:$0xff]
      %v2494 = vld [vmem:[%s368 + $0x168] sm:$0xff]
      %v2495 = vld [vmem:[%s368 + $0x170] sm:$0xff]
      %v2496 = vld [vmem:[%s368 + $0x1] sm:$0xff]
      %v2497 = vld [vmem:[%s368 + $0x9] sm:$0xff]
      %v2498 = vld [vmem:[%s368 + $0x19] sm:$0xff]
      %v2499 = vld [vmem:[%s368 + $0x21] sm:$0xff]
      %v2500 = vld [vmem:[%s368 + $0x31] sm:$0xff]
      %v2501 = vld [vmem:[%s368 + $0x39] sm:$0xff]
      %v2502 = vld [vmem:[%s368 + $0x49] sm:$0xff]
      %v2503 = vld [vmem:[%s368 + $0x51] sm:$0xff]
      %v2504 = vld [vmem:[%s368 + $0x61] sm:$0xff]
      %v2505 = vld [vmem:[%s368 + $0x69] sm:$0xff]
      %v2506 = vld [vmem:[%s368 + $0x79] sm:$0xff]
      %v2507 = vld [vmem:[%s368 + $0x81] sm:$0xff]
      %v2508 = vld [vmem:[%s368 + $0x91] sm:$0xff]
      %v2509 = vld [vmem:[%s368 + $0x99] sm:$0xff]
      %v2510 = vld [vmem:[%s368 + $0xa9] sm:$0xff]
      %v2511 = vld [vmem:[%s368 + $0xb1] sm:$0xff]
      %v2512 = vld [vmem:[%s368 + $0xc1] sm:$0xff]
      %v2513 = vld [vmem:[%s368 + $0xc9] sm:$0xff]
      %v2514 = vld [vmem:[%s368 + $0xd9] sm:$0xff]
      %v2515 = vld [vmem:[%s368 + $0xe1] sm:$0xff]
      %v2516 = vld [vmem:[%s368 + $0xf1] sm:$0xff]
      %v2517 = vld [vmem:[%s368 + $0xf9] sm:$0xff]
      %v2518 = vld [vmem:[%s368 + $0x109] sm:$0xff]
      %v2519 = vld [vmem:[%s368 + $0x111] sm:$0xff]
      %v2520 = vld [vmem:[%s368 + $0x121] sm:$0xff]
      %v2521 = vld [vmem:[%s368 + $0x129] sm:$0xff]
      %v2522 = vld [vmem:[%s368 + $0x139] sm:$0xff]
      %v2523 = vld [vmem:[%s368 + $0x141] sm:$0xff]
      %v2524 = vld [vmem:[%s368 + $0x151] sm:$0xff]
      %v2525 = vld [vmem:[%s368 + $0x159] sm:$0xff]
      %v2526 = vld [vmem:[%s368 + $0x169] sm:$0xff]
      %v2527 = vld [vmem:[%s368 + $0x171] sm:$0xff]
      %v2528 = vld [vmem:[%s368 + $0x2] sm:$0xff]
      %v2529 = vld [vmem:[%s368 + $0xa] sm:$0xff]
      %v2530 = vld [vmem:[%s368 + $0x1a] sm:$0xff]
      %v2531 = vld [vmem:[%s368 + $0x22] sm:$0xff]
      %v2532 = vld [vmem:[%s368 + $0x32] sm:$0xff]
      %v2533 = vld [vmem:[%s368 + $0x3a] sm:$0xff]
      %v2534 = vld [vmem:[%s368 + $0x4a] sm:$0xff]
      %v2535 = vld [vmem:[%s368 + $0x52] sm:$0xff]
      %v2536 = vld [vmem:[%s368 + $0x62] sm:$0xff]
      %v2537 = vld [vmem:[%s368 + $0x6a] sm:$0xff]
      %v2538 = vld [vmem:[%s368 + $0x7a] sm:$0xff]
      %v2539 = vld [vmem:[%s368 + $0x82] sm:$0xff]
      %v2540 = vld [vmem:[%s368 + $0x92] sm:$0xff]
      %v2541 = vld [vmem:[%s368 + $0x9a] sm:$0xff]
      %v2542 = vld [vmem:[%s368 + $0xaa] sm:$0xff]
      %v2543 = vld [vmem:[%s368 + $0xb2] sm:$0xff]
      %v2544 = vld [vmem:[%s368 + $0xc2] sm:$0xff]
      %v2545 = vld [vmem:[%s368 + $0xca] sm:$0xff]
      %v2546 = vld [vmem:[%s368 + $0xda] sm:$0xff]
      %v2547 = vld [vmem:[%s368 + $0xe2] sm:$0xff]
      %v2548 = vld [vmem:[%s368 + $0xf2] sm:$0xff]
      %v2549 = vld [vmem:[%s368 + $0xfa] sm:$0xff]
      %v2550 = vld [vmem:[%s368 + $0x10a] sm:$0xff]
      %v2551 = vld [vmem:[%s368 + $0x112] sm:$0xff]
      %v2552 = vld [vmem:[%s368 + $0x122] sm:$0xff]
      %v2553 = vld [vmem:[%s368 + $0x12a] sm:$0xff]
      %v2554 = vld [vmem:[%s368 + $0x13a] sm:$0xff]
      %v2555 = vld [vmem:[%s368 + $0x142] sm:$0xff]
      %v2556 = vld [vmem:[%s368 + $0x152] sm:$0xff]
      %v2557 = vld [vmem:[%s368 + $0x15a] sm:$0xff]
      %v2558 = vld [vmem:[%s368 + $0x16a] sm:$0xff]
      %v2559 = vld [vmem:[%s368 + $0x172] sm:$0xff]
      %v2560 = vld [vmem:[%s594] sm:$0xff]
      %v2561 = vld [vmem:[%s594 + $0x8] sm:$0xff]
      %v2562 = vld [vmem:[%s594 + $0x18] sm:$0xff]
      %v2563 = vld [vmem:[%s594 + $0x20] sm:$0xff]
      %v2564 = vld [vmem:[%s594 + $0x30] sm:$0xff]
      %v2565 = vld [vmem:[%s594 + $0x38] sm:$0xff]
      %v2566 = vld [vmem:[%s594 + $0x48] sm:$0xff]
      %v2567 = vld [vmem:[%s594 + $0x50] sm:$0xff]
      %v2568 = vld [vmem:[%s594 + $0x60] sm:$0xff]
      %v2569 = vld [vmem:[%s594 + $0x68] sm:$0xff]
      %v2570 = vld [vmem:[%s594 + $0x78] sm:$0xff]
      %v2571 = vld [vmem:[%s594 + $0x80] sm:$0xff]
      %v2572 = vld [vmem:[%s594 + $0x90] sm:$0xff]
      %v2573 = vld [vmem:[%s594 + $0x98] sm:$0xff]
      %v2574 = vld [vmem:[%s594 + $0xa8] sm:$0xff]
      %v2575 = vld [vmem:[%s594 + $0xb0] sm:$0xff]
      %v2576 = vld [vmem:[%s594 + $0xc0] sm:$0xff]
      %v2577 = vld [vmem:[%s594 + $0xc8] sm:$0xff]
      %v2578 = vld [vmem:[%s594 + $0xd8] sm:$0xff]
      %v2579 = vld [vmem:[%s594 + $0xe0] sm:$0xff]
      %v2580 = vld [vmem:[%s594 + $0xf0] sm:$0xff]
      %v2581 = vld [vmem:[%s594 + $0xf8] sm:$0xff]
      %v2582 = vld [vmem:[%s594 + $0x108] sm:$0xff]
      %v2583 = vld [vmem:[%s594 + $0x110] sm:$0xff]
      %v2584 = vld [vmem:[%s594 + $0x120] sm:$0xff]
      %v2585 = vld [vmem:[%s594 + $0x128] sm:$0xff]
      %v2586 = vld [vmem:[%s594 + $0x138] sm:$0xff]
      %v2587 = vld [vmem:[%s594 + $0x140] sm:$0xff]
      %v2588 = vld [vmem:[%s594 + $0x150] sm:$0xff]
      %v2589 = vld [vmem:[%s594 + $0x158] sm:$0xff]
      %v2590 = vld [vmem:[%s594 + $0x168] sm:$0xff]
      %v2591 = vld [vmem:[%s594 + $0x170] sm:$0xff]
      %v2592 = vld [vmem:[%s594 + $0x1] sm:$0xff]
      %v2593 = vld [vmem:[%s594 + $0x9] sm:$0xff]
      %v2594 = vld [vmem:[%s594 + $0x19] sm:$0xff]
      %v2595 = vld [vmem:[%s594 + $0x21] sm:$0xff]
      %v2596 = vld [vmem:[%s594 + $0x31] sm:$0xff]
      %v2597 = vld [vmem:[%s594 + $0x39] sm:$0xff]
      %v2598 = vld [vmem:[%s594 + $0x49] sm:$0xff]
      %v2599 = vld [vmem:[%s594 + $0x51] sm:$0xff]
      %v2600 = vld [vmem:[%s594 + $0x61] sm:$0xff]
      %v2601 = vld [vmem:[%s594 + $0x69] sm:$0xff]
      %v2602 = vld [vmem:[%s594 + $0x79] sm:$0xff]
      %v2603 = vld [vmem:[%s594 + $0x81] sm:$0xff]
      %v2604 = vld [vmem:[%s594 + $0x91] sm:$0xff]
      %v2605 = vld [vmem:[%s594 + $0x99] sm:$0xff]
      %v2606 = vld [vmem:[%s594 + $0xa9] sm:$0xff]
      %v2607 = vld [vmem:[%s594 + $0xb1] sm:$0xff]
      %v2608 = vld [vmem:[%s594 + $0xc1] sm:$0xff]
      %v2609 = vld [vmem:[%s594 + $0xc9] sm:$0xff]
      %v2610 = vld [vmem:[%s594 + $0xd9] sm:$0xff]
      %v2611 = vld [vmem:[%s594 + $0xe1] sm:$0xff]
      %v2612 = vld [vmem:[%s594 + $0xf1] sm:$0xff]
      %v2613 = vld [vmem:[%s594 + $0xf9] sm:$0xff]
      %v2614 = vld [vmem:[%s594 + $0x109] sm:$0xff]
      %v2615 = vld [vmem:[%s594 + $0x111] sm:$0xff]
      %v2616 = vld [vmem:[%s594 + $0x121] sm:$0xff]
      %v2617 = vld [vmem:[%s594 + $0x129] sm:$0xff]
      %v2618 = vld [vmem:[%s594 + $0x139] sm:$0xff]
      %v2619 = vld [vmem:[%s594 + $0x141] sm:$0xff]
      %v2620 = vld [vmem:[%s594 + $0x151] sm:$0xff]
      %v2621 = vld [vmem:[%s594 + $0x159] sm:$0xff]
      %v2622 = vld [vmem:[%s594 + $0x169] sm:$0xff]
      %v2623 = vld [vmem:[%s594 + $0x171] sm:$0xff]
      %v2624 = vld [vmem:[%s594 + $0x2] sm:$0xff]
      %v2625 = vld [vmem:[%s594 + $0xa] sm:$0xff]
      %v2626 = vld [vmem:[%s594 + $0x1a] sm:$0xff]
      %v2627 = vld [vmem:[%s594 + $0x22] sm:$0xff]
      %v2628 = vld [vmem:[%s594 + $0x32] sm:$0xff]
      %v2629 = vld [vmem:[%s594 + $0x3a] sm:$0xff]
      %v2630 = vld [vmem:[%s594 + $0x4a] sm:$0xff]
      %v2631 = vld [vmem:[%s594 + $0x52] sm:$0xff]
      %v2632 = vld [vmem:[%s594 + $0x62] sm:$0xff]
      %v2633 = vld [vmem:[%s594 + $0x6a] sm:$0xff]
      %v2634 = vld [vmem:[%s594 + $0x7a] sm:$0xff]
      %v2635 = vld [vmem:[%s594 + $0x82] sm:$0xff]
      %v2636 = vld [vmem:[%s594 + $0x92] sm:$0xff]
      %v2637 = vld [vmem:[%s594 + $0x9a] sm:$0xff]
      %v2638 = vld [vmem:[%s594 + $0xaa] sm:$0xff]
      %v2639 = vld [vmem:[%s594 + $0xb2] sm:$0xff]
      %v2640 = vld [vmem:[%s594 + $0xc2] sm:$0xff]
      %v2641 = vld [vmem:[%s594 + $0xca] sm:$0xff]
      %v2642 = vld [vmem:[%s594 + $0xda] sm:$0xff]
      %v2643 = vld [vmem:[%s594 + $0xe2] sm:$0xff]
      %v2644 = vld [vmem:[%s594 + $0xf2] sm:$0xff]
      %v2645 = vld [vmem:[%s594 + $0xfa] sm:$0xff]
      %v2646 = vld [vmem:[%s594 + $0x10a] sm:$0xff]
      %v2647 = vld [vmem:[%s594 + $0x112] sm:$0xff]
      %v2648 = vld [vmem:[%s594 + $0x122] sm:$0xff]
      %v2649 = vld [vmem:[%s594 + $0x12a] sm:$0xff]
      %v2650 = vld [vmem:[%s594 + $0x13a] sm:$0xff]
      %v2651 = vld [vmem:[%s594 + $0x142] sm:$0xff]
      %v2652 = vld [vmem:[%s594 + $0x152] sm:$0xff]
      %v2653 = vld [vmem:[%s594 + $0x15a] sm:$0xff]
      %v2654 = vld [vmem:[%s594 + $0x16a] sm:$0xff]
      %v2655 = vld [vmem:[%s594 + $0x172] sm:$0xff]
      %2688 = vrot.lane.b32.xlu0 %v2400, 12
      %v2689 = vpop.permute.xlu0 %2688
      %2690 = vrot.lane.b32.xlu0 %v2401, 12
      %v2691 = vpop.permute.xlu0 %2690
      %2692 = vrot.lane.b32.xlu0 %v2402, 12
      %v2693 = vpop.permute.xlu0 %2692
      %2694 = vrot.lane.b32.xlu0 %v2403, 12
      %v2695 = vpop.permute.xlu0 %2694
      %2696 = vrot.lane.b32.xlu0 %v2404, 12
      %v2697 = vpop.permute.xlu0 %2696
      %2698 = vrot.lane.b32.xlu0 %v2405, 12
      %v2699 = vpop.permute.xlu0 %2698
      %2700 = vrot.lane.b32.xlu0 %v2406, 12
      %v2701 = vpop.permute.xlu0 %2700
      %2702 = vrot.lane.b32.xlu0 %v2407, 12
      %v2703 = vpop.permute.xlu0 %2702
      %2704 = vrot.lane.b32.xlu0 %v2408, 12
      %v2705 = vpop.permute.xlu0 %2704
      %2706 = vrot.lane.b32.xlu0 %v2409, 12
      %v2707 = vpop.permute.xlu0 %2706
      %2708 = vrot.lane.b32.xlu0 %v2410, 12
      %v2709 = vpop.permute.xlu0 %2708
      %2710 = vrot.lane.b32.xlu0 %v2411, 12
      %v2711 = vpop.permute.xlu0 %2710
      %2712 = vrot.lane.b32.xlu0 %v2412, 12
      %v2713 = vpop.permute.xlu0 %2712
      %2714 = vrot.lane.b32.xlu0 %v2413, 12
      %v2715 = vpop.permute.xlu0 %2714
      %2716 = vrot.lane.b32.xlu0 %v2414, 12
      %v2717 = vpop.permute.xlu0 %2716
      %2718 = vrot.lane.b32.xlu0 %v2415, 12
      %v2719 = vpop.permute.xlu0 %2718
      %2720 = vrot.lane.b32.xlu0 %v2416, 12
      %v2721 = vpop.permute.xlu0 %2720
      %2722 = vrot.lane.b32.xlu0 %v2417, 12
      %v2723 = vpop.permute.xlu0 %2722
      %2724 = vrot.lane.b32.xlu0 %v2418, 12
      %v2725 = vpop.permute.xlu0 %2724
      %2726 = vrot.lane.b32.xlu0 %v2419, 12
      %v2727 = vpop.permute.xlu0 %2726
      %2728 = vrot.lane.b32.xlu0 %v2420, 12
      %v2729 = vpop.permute.xlu0 %2728
      %2730 = vrot.lane.b32.xlu0 %v2421, 12
      %v2731 = vpop.permute.xlu0 %2730
      %2732 = vrot.lane.b32.xlu0 %v2422, 12
      %v2733 = vpop.permute.xlu0 %2732
      %2734 = vrot.lane.b32.xlu0 %v2423, 12
      %v2735 = vpop.permute.xlu0 %2734
      %2736 = vrot.lane.b32.xlu0 %v2424, 12
      %v2737 = vpop.permute.xlu0 %2736
      %2738 = vrot.lane.b32.xlu0 %v2425, 12
      %v2739 = vpop.permute.xlu0 %2738
      %2740 = vrot.lane.b32.xlu0 %v2426, 12
      %v2741 = vpop.permute.xlu0 %2740
      %2742 = vrot.lane.b32.xlu0 %v2427, 12
      %v2743 = vpop.permute.xlu0 %2742
      %2744 = vrot.lane.b32.xlu0 %v2428, 12
      %v2745 = vpop.permute.xlu0 %2744
      %2746 = vrot.lane.b32.xlu0 %v2429, 12
      %v2747 = vpop.permute.xlu0 %2746
      %2748 = vrot.lane.b32.xlu0 %v2430, 12
      %v2749 = vpop.permute.xlu0 %2748
      %2750 = vrot.lane.b32.xlu0 %v2431, 12
      %v2751 = vpop.permute.xlu0 %2750
      %2816 = vrot.lane.b32.xlu0 %v2432, 24
      %v2817 = vpop.permute.xlu0 %2816
      %2818 = vrot.lane.b32.xlu0 %v2433, 24
      %v2819 = vpop.permute.xlu0 %2818
      %2820 = vrot.lane.b32.xlu0 %v2434, 24
      %v2821 = vpop.permute.xlu0 %2820
      %2822 = vrot.lane.b32.xlu0 %v2435, 24
      %v2823 = vpop.permute.xlu0 %2822
      %2824 = vrot.lane.b32.xlu0 %v2436, 24
      %v2825 = vpop.permute.xlu0 %2824
      %2826 = vrot.lane.b32.xlu0 %v2437, 24
      %v2827 = vpop.permute.xlu0 %2826
      %2828 = vrot.lane.b32.xlu0 %v2438, 24
      %v2829 = vpop.permute.xlu0 %2828
      %2830 = vrot.lane.b32.xlu0 %v2439, 24
      %v2831 = vpop.permute.xlu0 %2830
      %2832 = vrot.lane.b32.xlu0 %v2440, 24
      %v2833 = vpop.permute.xlu0 %2832
      %2834 = vrot.lane.b32.xlu0 %v2441, 24
      %v2835 = vpop.permute.xlu0 %2834
      %2836 = vrot.lane.b32.xlu0 %v2442, 24
      %v2837 = vpop.permute.xlu0 %2836
      %2838 = vrot.lane.b32.xlu0 %v2443, 24
      %v2839 = vpop.permute.xlu0 %2838
      %2840 = vrot.lane.b32.xlu0 %v2444, 24
      %v2841 = vpop.permute.xlu0 %2840
      %2842 = vrot.lane.b32.xlu0 %v2445, 24
      %v2843 = vpop.permute.xlu0 %2842
      %2844 = vrot.lane.b32.xlu0 %v2446, 24
      %v2845 = vpop.permute.xlu0 %2844
      %2846 = vrot.lane.b32.xlu0 %v2447, 24
      %v2847 = vpop.permute.xlu0 %2846
      %2848 = vrot.lane.b32.xlu0 %v2448, 24
      %v2849 = vpop.permute.xlu0 %2848
      %2850 = vrot.lane.b32.xlu0 %v2449, 24
      %v2851 = vpop.permute.xlu0 %2850
      %2852 = vrot.lane.b32.xlu0 %v2450, 24
      %v2853 = vpop.permute.xlu0 %2852
      %2854 = vrot.lane.b32.xlu0 %v2451, 24
      %v2855 = vpop.permute.xlu0 %2854
      %2856 = vrot.lane.b32.xlu0 %v2452, 24
      %v2857 = vpop.permute.xlu0 %2856
      %2858 = vrot.lane.b32.xlu0 %v2453, 24
      %v2859 = vpop.permute.xlu0 %2858
      %2860 = vrot.lane.b32.xlu0 %v2454, 24
      %v2861 = vpop.permute.xlu0 %2860
      %2862 = vrot.lane.b32.xlu0 %v2455, 24
      %v2863 = vpop.permute.xlu0 %2862
      %2864 = vrot.lane.b32.xlu0 %v2456, 24
      %v2865 = vpop.permute.xlu0 %2864
      %2866 = vrot.lane.b32.xlu0 %v2457, 24
      %v2867 = vpop.permute.xlu0 %2866
      %2868 = vrot.lane.b32.xlu0 %v2458, 24
      %v2869 = vpop.permute.xlu0 %2868
      %2870 = vrot.lane.b32.xlu0 %v2459, 24
      %v2871 = vpop.permute.xlu0 %2870
      %2872 = vrot.lane.b32.xlu0 %v2460, 24
      %v2873 = vpop.permute.xlu0 %2872
      %2874 = vrot.lane.b32.xlu0 %v2461, 24
      %v2875 = vpop.permute.xlu0 %2874
      %2876 = vrot.lane.b32.xlu0 %v2462, 24
      %v2877 = vpop.permute.xlu0 %2876
      %2878 = vrot.lane.b32.xlu0 %v2463, 24
      %v2879 = vpop.permute.xlu0 %2878
      %2944 = vrot.lane.b32.xlu0 %v2464, 36
      %v2945 = vpop.permute.xlu0 %2944
      %2946 = vrot.lane.b32.xlu0 %v2465, 36
      %v2947 = vpop.permute.xlu0 %2946
      %2948 = vrot.lane.b32.xlu0 %v2466, 36
      %v2949 = vpop.permute.xlu0 %2948
      %2950 = vrot.lane.b32.xlu0 %v2467, 36
      %v2951 = vpop.permute.xlu0 %2950
      %2952 = vrot.lane.b32.xlu0 %v2468, 36
      %v2953 = vpop.permute.xlu0 %2952
      %2954 = vrot.lane.b32.xlu0 %v2469, 36
      %v2955 = vpop.permute.xlu0 %2954
      %2956 = vrot.lane.b32.xlu0 %v2470, 36
      %v2957 = vpop.permute.xlu0 %2956
      %2958 = vrot.lane.b32.xlu0 %v2471, 36
      %v2959 = vpop.permute.xlu0 %2958
      %2960 = vrot.lane.b32.xlu0 %v2472, 36
      %v2961 = vpop.permute.xlu0 %2960
      %2962 = vrot.lane.b32.xlu0 %v2473, 36
      %v2963 = vpop.permute.xlu0 %2962
      %2964 = vrot.lane.b32.xlu0 %v2474, 36
      %v2965 = vpop.permute.xlu0 %2964
      %2966 = vrot.lane.b32.xlu0 %v2475, 36
      %v2967 = vpop.permute.xlu0 %2966
      %2968 = vrot.lane.b32.xlu0 %v2476, 36
      %v2969 = vpop.permute.xlu0 %2968
      %2970 = vrot.lane.b32.xlu0 %v2477, 36
      %v2971 = vpop.permute.xlu0 %2970
      %2972 = vrot.lane.b32.xlu0 %v2478, 36
      %v2973 = vpop.permute.xlu0 %2972
      %2974 = vrot.lane.b32.xlu0 %v2479, 36
      %v2975 = vpop.permute.xlu0 %2974
      %2976 = vrot.lane.b32.xlu0 %v2480, 36
      %v2977 = vpop.permute.xlu0 %2976
      %2978 = vrot.lane.b32.xlu0 %v2481, 36
      %v2979 = vpop.permute.xlu0 %2978
      %2980 = vrot.lane.b32.xlu0 %v2482, 36
      %v2981 = vpop.permute.xlu0 %2980
      %2982 = vrot.lane.b32.xlu0 %v2483, 36
      %v2983 = vpop.permute.xlu0 %2982
      %2984 = vrot.lane.b32.xlu0 %v2484, 36
      %v2985 = vpop.permute.xlu0 %2984
      %2986 = vrot.lane.b32.xlu0 %v2485, 36
      %v2987 = vpop.permute.xlu0 %2986
      %2988 = vrot.lane.b32.xlu0 %v2486, 36
      %v2989 = vpop.permute.xlu0 %2988
      %2990 = vrot.lane.b32.xlu0 %v2487, 36
      %v2991 = vpop.permute.xlu0 %2990
      %2992 = vrot.lane.b32.xlu0 %v2488, 36
      %v2993 = vpop.permute.xlu0 %2992
      %2994 = vrot.lane.b32.xlu0 %v2489, 36
      %v2995 = vpop.permute.xlu0 %2994
      %2996 = vrot.lane.b32.xlu0 %v2490, 36
      %v2997 = vpop.permute.xlu0 %2996
      %2998 = vrot.lane.b32.xlu0 %v2491, 36
      %v2999 = vpop.permute.xlu0 %2998
      %3000 = vrot.lane.b32.xlu0 %v2492, 36
      %v3001 = vpop.permute.xlu0 %3000
      %3002 = vrot.lane.b32.xlu0 %v2493, 36
      %v3003 = vpop.permute.xlu0 %3002
      %3004 = vrot.lane.b32.xlu0 %v2494, 36
      %v3005 = vpop.permute.xlu0 %3004
      %3006 = vrot.lane.b32.xlu0 %v2495, 36
      %v3007 = vpop.permute.xlu0 %3006
      %3072 = vrot.lane.b32.xlu0 %v2496, 48
      %v3073 = vpop.permute.xlu0 %3072
      %3074 = vrot.lane.b32.xlu0 %v2497, 48
      %v3075 = vpop.permute.xlu0 %3074
      %3076 = vrot.lane.b32.xlu0 %v2498, 48
      %v3077 = vpop.permute.xlu0 %3076
      %3078 = vrot.lane.b32.xlu0 %v2499, 48
      %v3079 = vpop.permute.xlu0 %3078
      %3080 = vrot.lane.b32.xlu0 %v2500, 48
      %v3081 = vpop.permute.xlu0 %3080
      %3082 = vrot.lane.b32.xlu0 %v2501, 48
      %v3083 = vpop.permute.xlu0 %3082
      %3084 = vrot.lane.b32.xlu0 %v2502, 48
      %v3085 = vpop.permute.xlu0 %3084
      %3086 = vrot.lane.b32.xlu0 %v2503, 48
      %v3087 = vpop.permute.xlu0 %3086
      %3088 = vrot.lane.b32.xlu0 %v2504, 48
      %v3089 = vpop.permute.xlu0 %3088
      %3090 = vrot.lane.b32.xlu0 %v2505, 48
      %v3091 = vpop.permute.xlu0 %3090
      %3092 = vrot.lane.b32.xlu0 %v2506, 48
      %v3093 = vpop.permute.xlu0 %3092
      %3094 = vrot.lane.b32.xlu0 %v2507, 48
      %v3095 = vpop.permute.xlu0 %3094
      %3096 = vrot.lane.b32.xlu0 %v2508, 48
      %v3097 = vpop.permute.xlu0 %3096
      %3098 = vrot.lane.b32.xlu0 %v2509, 48
      %v3099 = vpop.permute.xlu0 %3098
      %3100 = vrot.lane.b32.xlu0 %v2510, 48
      %v3101 = vpop.permute.xlu0 %3100
      %3102 = vrot.lane.b32.xlu0 %v2511, 48
      %v3103 = vpop.permute.xlu0 %3102
      %3104 = vrot.lane.b32.xlu0 %v2512, 48
      %v3105 = vpop.permute.xlu0 %3104
      %3106 = vrot.lane.b32.xlu0 %v2513, 48
      %v3107 = vpop.permute.xlu0 %3106
      %3108 = vrot.lane.b32.xlu0 %v2514, 48
      %v3109 = vpop.permute.xlu0 %3108
      %3110 = vrot.lane.b32.xlu0 %v2515, 48
      %v3111 = vpop.permute.xlu0 %3110
      %3112 = vrot.lane.b32.xlu0 %v2516, 48
      %v3113 = vpop.permute.xlu0 %3112
      %3114 = vrot.lane.b32.xlu0 %v2517, 48
      %v3115 = vpop.permute.xlu0 %3114
      %3116 = vrot.lane.b32.xlu0 %v2518, 48
      %v3117 = vpop.permute.xlu0 %3116
      %3118 = vrot.lane.b32.xlu0 %v2519, 48
      %v3119 = vpop.permute.xlu0 %3118
      %3120 = vrot.lane.b32.xlu0 %v2520, 48
      %v3121 = vpop.permute.xlu0 %3120
      %3122 = vrot.lane.b32.xlu0 %v2521, 48
      %v3123 = vpop.permute.xlu0 %3122
      %3124 = vrot.lane.b32.xlu0 %v2522, 48
      %v3125 = vpop.permute.xlu0 %3124
      %3126 = vrot.lane.b32.xlu0 %v2523, 48
      %v3127 = vpop.permute.xlu0 %3126
      %3128 = vrot.lane.b32.xlu0 %v2524, 48
      %v3129 = vpop.permute.xlu0 %3128
      %3130 = vrot.lane.b32.xlu0 %v2525, 48
      %v3131 = vpop.permute.xlu0 %3130
      %3132 = vrot.lane.b32.xlu0 %v2526, 48
      %v3133 = vpop.permute.xlu0 %3132
      %3134 = vrot.lane.b32.xlu0 %v2527, 48
      %v3135 = vpop.permute.xlu0 %3134
      %3200 = vrot.lane.b32.xlu0 %v2528, 60
      %v3201 = vpop.permute.xlu0 %3200
      %3202 = vrot.lane.b32.xlu0 %v2529, 60
      %v3203 = vpop.permute.xlu0 %3202
      %3204 = vrot.lane.b32.xlu0 %v2530, 60
      %v3205 = vpop.permute.xlu0 %3204
      %3206 = vrot.lane.b32.xlu0 %v2531, 60
      %v3207 = vpop.permute.xlu0 %3206
      %3208 = vrot.lane.b32.xlu0 %v2532, 60
      %v3209 = vpop.permute.xlu0 %3208
      %3210 = vrot.lane.b32.xlu0 %v2533, 60
      %v3211 = vpop.permute.xlu0 %3210
      %3212 = vrot.lane.b32.xlu0 %v2534, 60
      %v3213 = vpop.permute.xlu0 %3212
      %3214 = vrot.lane.b32.xlu0 %v2535, 60
      %v3215 = vpop.permute.xlu0 %3214
      %3216 = vrot.lane.b32.xlu0 %v2536, 60
      %v3217 = vpop.permute.xlu0 %3216
      %3218 = vrot.lane.b32.xlu0 %v2537, 60
      %v3219 = vpop.permute.xlu0 %3218
      %3220 = vrot.lane.b32.xlu0 %v2538, 60
      %v3221 = vpop.permute.xlu0 %3220
      %3222 = vrot.lane.b32.xlu0 %v2539, 60
      %v3223 = vpop.permute.xlu0 %3222
      %3224 = vrot.lane.b32.xlu0 %v2540, 60
      %v3225 = vpop.permute.xlu0 %3224
      %3226 = vrot.lane.b32.xlu0 %v2541, 60
      %v3227 = vpop.permute.xlu0 %3226
      %3228 = vrot.lane.b32.xlu0 %v2542, 60
      %v3229 = vpop.permute.xlu0 %3228
      %3230 = vrot.lane.b32.xlu0 %v2543, 60
      %v3231 = vpop.permute.xlu0 %3230
      %3232 = vrot.lane.b32.xlu0 %v2544, 60
      %v3233 = vpop.permute.xlu0 %3232
      %3234 = vrot.lane.b32.xlu0 %v2545, 60
      %v3235 = vpop.permute.xlu0 %3234
      %3236 = vrot.lane.b32.xlu0 %v2546, 60
      %v3237 = vpop.permute.xlu0 %3236
      %3238 = vrot.lane.b32.xlu0 %v2547, 60
      %v3239 = vpop.permute.xlu0 %3238
      %3240 = vrot.lane.b32.xlu0 %v2548, 60
      %v3241 = vpop.permute.xlu0 %3240
      %3242 = vrot.lane.b32.xlu0 %v2549, 60
      %v3243 = vpop.permute.xlu0 %3242
      %3244 = vrot.lane.b32.xlu0 %v2550, 60
      %v3245 = vpop.permute.xlu0 %3244
      %3246 = vrot.lane.b32.xlu0 %v2551, 60
      %v3247 = vpop.permute.xlu0 %3246
      %3248 = vrot.lane.b32.xlu0 %v2552, 60
      %v3249 = vpop.permute.xlu0 %3248
      %3250 = vrot.lane.b32.xlu0 %v2553, 60
      %v3251 = vpop.permute.xlu0 %3250
      %3252 = vrot.lane.b32.xlu0 %v2554, 60
      %v3253 = vpop.permute.xlu0 %3252
      %3254 = vrot.lane.b32.xlu0 %v2555, 60
      %v3255 = vpop.permute.xlu0 %3254
      %3256 = vrot.lane.b32.xlu0 %v2556, 60
      %v3257 = vpop.permute.xlu0 %3256
      %3258 = vrot.lane.b32.xlu0 %v2557, 60
      %v3259 = vpop.permute.xlu0 %3258
      %3260 = vrot.lane.b32.xlu0 %v2558, 60
      %v3261 = vpop.permute.xlu0 %3260
      %3262 = vrot.lane.b32.xlu0 %v2559, 60
      %v3263 = vpop.permute.xlu0 %3262
      %3328 = vrot.lane.b32.xlu0 %v2560, 72
      %v3329 = vpop.permute.xlu0 %3328
      %3330 = vrot.lane.b32.xlu0 %v2561, 72
      %v3331 = vpop.permute.xlu0 %3330
      %3332 = vrot.lane.b32.xlu0 %v2562, 72
      %v3333 = vpop.permute.xlu0 %3332
      %3334 = vrot.lane.b32.xlu0 %v2563, 72
      %v3335 = vpop.permute.xlu0 %3334
      %3336 = vrot.lane.b32.xlu0 %v2564, 72
      %v3337 = vpop.permute.xlu0 %3336
      %3338 = vrot.lane.b32.xlu0 %v2565, 72
      %v3339 = vpop.permute.xlu0 %3338
      %3340 = vrot.lane.b32.xlu0 %v2566, 72
      %v3341 = vpop.permute.xlu0 %3340
      %3342 = vrot.lane.b32.xlu0 %v2567, 72
      %v3343 = vpop.permute.xlu0 %3342
      %3344 = vrot.lane.b32.xlu0 %v2568, 72
      %v3345 = vpop.permute.xlu0 %3344
      %3346 = vrot.lane.b32.xlu0 %v2569, 72
      %v3347 = vpop.permute.xlu0 %3346
      %3348 = vrot.lane.b32.xlu0 %v2570, 72
      %v3349 = vpop.permute.xlu0 %3348
      %3350 = vrot.lane.b32.xlu0 %v2571, 72
      %v3351 = vpop.permute.xlu0 %3350
      %3352 = vrot.lane.b32.xlu0 %v2572, 72
      %v3353 = vpop.permute.xlu0 %3352
      %3354 = vrot.lane.b32.xlu0 %v2573, 72
      %v3355 = vpop.permute.xlu0 %3354
      %3356 = vrot.lane.b32.xlu0 %v2574, 72
      %v3357 = vpop.permute.xlu0 %3356
      %3358 = vrot.lane.b32.xlu0 %v2575, 72
      %v3359 = vpop.permute.xlu0 %3358
      %3360 = vrot.lane.b32.xlu0 %v2576, 72
      %v3361 = vpop.permute.xlu0 %3360
      %3362 = vrot.lane.b32.xlu0 %v2577, 72
      %v3363 = vpop.permute.xlu0 %3362
      %3364 = vrot.lane.b32.xlu0 %v2578, 72
      %v3365 = vpop.permute.xlu0 %3364
      %3366 = vrot.lane.b32.xlu0 %v2579, 72
      %v3367 = vpop.permute.xlu0 %3366
      %3368 = vrot.lane.b32.xlu0 %v2580, 72
      %v3369 = vpop.permute.xlu0 %3368
      %3370 = vrot.lane.b32.xlu0 %v2581, 72
      %v3371 = vpop.permute.xlu0 %3370
      %3372 = vrot.lane.b32.xlu0 %v2582, 72
      %v3373 = vpop.permute.xlu0 %3372
      %3374 = vrot.lane.b32.xlu0 %v2583, 72
      %v3375 = vpop.permute.xlu0 %3374
      %3376 = vrot.lane.b32.xlu0 %v2584, 72
      %v3377 = vpop.permute.xlu0 %3376
      %3378 = vrot.lane.b32.xlu0 %v2585, 72
      %v3379 = vpop.permute.xlu0 %3378
      %3380 = vrot.lane.b32.xlu0 %v2586, 72
      %v3381 = vpop.permute.xlu0 %3380
      %3382 = vrot.lane.b32.xlu0 %v2587, 72
      %v3383 = vpop.permute.xlu0 %3382
      %3384 = vrot.lane.b32.xlu0 %v2588, 72
      %v3385 = vpop.permute.xlu0 %3384
      %3386 = vrot.lane.b32.xlu0 %v2589, 72
      %v3387 = vpop.permute.xlu0 %3386
      %3388 = vrot.lane.b32.xlu0 %v2590, 72
      %v3389 = vpop.permute.xlu0 %3388
      %3390 = vrot.lane.b32.xlu0 %v2591, 72
      %v3391 = vpop.permute.xlu0 %3390
      %3456 = vrot.lane.b32.xlu0 %v2592, 84
      %v3457 = vpop.permute.xlu0 %3456
      %3458 = vrot.lane.b32.xlu0 %v2593, 84
      %v3459 = vpop.permute.xlu0 %3458
      %3460 = vrot.lane.b32.xlu0 %v2594, 84
      %v3461 = vpop.permute.xlu0 %3460
      %3462 = vrot.lane.b32.xlu0 %v2595, 84
      %v3463 = vpop.permute.xlu0 %3462
      %3464 = vrot.lane.b32.xlu0 %v2596, 84
      %v3465 = vpop.permute.xlu0 %3464
      %3466 = vrot.lane.b32.xlu0 %v2597, 84
      %v3467 = vpop.permute.xlu0 %3466
      %3468 = vrot.lane.b32.xlu0 %v2598, 84
      %v3469 = vpop.permute.xlu0 %3468
      %3470 = vrot.lane.b32.xlu0 %v2599, 84
      %v3471 = vpop.permute.xlu0 %3470
      %3472 = vrot.lane.b32.xlu0 %v2600, 84
      %v3473 = vpop.permute.xlu0 %3472
      %3474 = vrot.lane.b32.xlu0 %v2601, 84
      %v3475 = vpop.permute.xlu0 %3474
      %3476 = vrot.lane.b32.xlu0 %v2602, 84
      %v3477 = vpop.permute.xlu0 %3476
      %3478 = vrot.lane.b32.xlu0 %v2603, 84
      %v3479 = vpop.permute.xlu0 %3478
      %3480 = vrot.lane.b32.xlu0 %v2604, 84
      %v3481 = vpop.permute.xlu0 %3480
      %3482 = vrot.lane.b32.xlu0 %v2605, 84
      %v3483 = vpop.permute.xlu0 %3482
      %3484 = vrot.lane.b32.xlu0 %v2606, 84
      %v3485 = vpop.permute.xlu0 %3484
      %3486 = vrot.lane.b32.xlu0 %v2607, 84
      %v3487 = vpop.permute.xlu0 %3486
      %3488 = vrot.lane.b32.xlu0 %v2608, 84
      %v3489 = vpop.permute.xlu0 %3488
      %3490 = vrot.lane.b32.xlu0 %v2609, 84
      %v3491 = vpop.permute.xlu0 %3490
      %3492 = vrot.lane.b32.xlu0 %v2610, 84
      %v3493 = vpop.permute.xlu0 %3492
      %3494 = vrot.lane.b32.xlu0 %v2611, 84
      %v3495 = vpop.permute.xlu0 %3494
      %3496 = vrot.lane.b32.xlu0 %v2612, 84
      %v3497 = vpop.permute.xlu0 %3496
      %3498 = vrot.lane.b32.xlu0 %v2613, 84
      %v3499 = vpop.permute.xlu0 %3498
      %3500 = vrot.lane.b32.xlu0 %v2614, 84
      %v3501 = vpop.permute.xlu0 %3500
      %3502 = vrot.lane.b32.xlu0 %v2615, 84
      %v3503 = vpop.permute.xlu0 %3502
      %3504 = vrot.lane.b32.xlu0 %v2616, 84
      %v3505 = vpop.permute.xlu0 %3504
      %3506 = vrot.lane.b32.xlu0 %v2617, 84
      %v3507 = vpop.permute.xlu0 %3506
      %3508 = vrot.lane.b32.xlu0 %v2618, 84
      %v3509 = vpop.permute.xlu0 %3508
      %3510 = vrot.lane.b32.xlu0 %v2619, 84
      %v3511 = vpop.permute.xlu0 %3510
      %3512 = vrot.lane.b32.xlu0 %v2620, 84
      %v3513 = vpop.permute.xlu0 %3512
      %3514 = vrot.lane.b32.xlu0 %v2621, 84
      %v3515 = vpop.permute.xlu0 %3514
      %3516 = vrot.lane.b32.xlu0 %v2622, 84
      %v3517 = vpop.permute.xlu0 %3516
      %3518 = vrot.lane.b32.xlu0 %v2623, 84
      %v3519 = vpop.permute.xlu0 %3518
      %3584 = vrot.lane.b32.xlu0 %v2624, 96
      %v3585 = vpop.permute.xlu0 %3584
      %3586 = vrot.lane.b32.xlu0 %v2625, 96
      %v3587 = vpop.permute.xlu0 %3586
      %3588 = vrot.lane.b32.xlu0 %v2626, 96
      %v3589 = vpop.permute.xlu0 %3588
      %3590 = vrot.lane.b32.xlu0 %v2627, 96
      %v3591 = vpop.permute.xlu0 %3590
      %3592 = vrot.lane.b32.xlu0 %v2628, 96
      %v3593 = vpop.permute.xlu0 %3592
      %3594 = vrot.lane.b32.xlu0 %v2629, 96
      %v3595 = vpop.permute.xlu0 %3594
      %3596 = vrot.lane.b32.xlu0 %v2630, 96
      %v3597 = vpop.permute.xlu0 %3596
      %3598 = vrot.lane.b32.xlu0 %v2631, 96
      %v3599 = vpop.permute.xlu0 %3598
      %3600 = vrot.lane.b32.xlu0 %v2632, 96
      %v3601 = vpop.permute.xlu0 %3600
      %3602 = vrot.lane.b32.xlu0 %v2633, 96
      %v3603 = vpop.permute.xlu0 %3602
      %3604 = vrot.lane.b32.xlu0 %v2634, 96
      %v3605 = vpop.permute.xlu0 %3604
      %3606 = vrot.lane.b32.xlu0 %v2635, 96
      %v3607 = vpop.permute.xlu0 %3606
      %3608 = vrot.lane.b32.xlu0 %v2636, 96
      %v3609 = vpop.permute.xlu0 %3608
      %3610 = vrot.lane.b32.xlu0 %v2637, 96
      %v3611 = vpop.permute.xlu0 %3610
      %3612 = vrot.lane.b32.xlu0 %v2638, 96
      %v3613 = vpop.permute.xlu0 %3612
      %3614 = vrot.lane.b32.xlu0 %v2639, 96
      %v3615 = vpop.permute.xlu0 %3614
      %3616 = vrot.lane.b32.xlu0 %v2640, 96
      %v3617 = vpop.permute.xlu0 %3616
      %3618 = vrot.lane.b32.xlu0 %v2641, 96
      %v3619 = vpop.permute.xlu0 %3618
      %3620 = vrot.lane.b32.xlu0 %v2642, 96
      %v3621 = vpop.permute.xlu0 %3620
      %3622 = vrot.lane.b32.xlu0 %v2643, 96
      %v3623 = vpop.permute.xlu0 %3622
      %3624 = vrot.lane.b32.xlu0 %v2644, 96
      %v3625 = vpop.permute.xlu0 %3624
      %3626 = vrot.lane.b32.xlu0 %v2645, 96
      %v3627 = vpop.permute.xlu0 %3626
      %3628 = vrot.lane.b32.xlu0 %v2646, 96
      %v3629 = vpop.permute.xlu0 %3628
      %3630 = vrot.lane.b32.xlu0 %v2647, 96
      %v3631 = vpop.permute.xlu0 %3630
      %3632 = vrot.lane.b32.xlu0 %v2648, 96
      %v3633 = vpop.permute.xlu0 %3632
      %3634 = vrot.lane.b32.xlu0 %v2649, 96
      %v3635 = vpop.permute.xlu0 %3634
      %3636 = vrot.lane.b32.xlu0 %v2650, 96
      %v3637 = vpop.permute.xlu0 %3636
      %3638 = vrot.lane.b32.xlu0 %v2651, 96
      %v3639 = vpop.permute.xlu0 %3638
      %3640 = vrot.lane.b32.xlu0 %v2652, 96
      %v3641 = vpop.permute.xlu0 %3640
      %3642 = vrot.lane.b32.xlu0 %v2653, 96
      %v3643 = vpop.permute.xlu0 %3642
      %3644 = vrot.lane.b32.xlu0 %v2654, 96
      %v3645 = vpop.permute.xlu0 %3644
      %3646 = vrot.lane.b32.xlu0 %v2655, 96
      %v3647 = vpop.permute.xlu0 %3646
      %vm3680 = vcmask 97280
      %v3681 = vsel %vm3680, %v2368, %v2689
      %v3682 = vsel %vm3680, %v2369, %v2691
      %v3683 = vsel %vm3680, %v2370, %v2693
      %v3684 = vsel %vm3680, %v2371, %v2695
      %v3685 = vsel %vm3680, %v2372, %v2697
      %v3686 = vsel %vm3680, %v2373, %v2699
      %v3687 = vsel %vm3680, %v2374, %v2701
      %v3688 = vsel %vm3680, %v2375, %v2703
      %v3689 = vsel %vm3680, %v2376, %v2705
      %v3690 = vsel %vm3680, %v2377, %v2707
      %v3691 = vsel %vm3680, %v2378, %v2709
      %v3692 = vsel %vm3680, %v2379, %v2711
      %v3693 = vsel %vm3680, %v2380, %v2713
      %v3694 = vsel %vm3680, %v2381, %v2715
      %v3695 = vsel %vm3680, %v2382, %v2717
      %v3696 = vsel %vm3680, %v2383, %v2719
      %v3697 = vsel %vm3680, %v2384, %v2721
      %v3698 = vsel %vm3680, %v2385, %v2723
      %v3699 = vsel %vm3680, %v2386, %v2725
      %v3700 = vsel %vm3680, %v2387, %v2727
      %v3701 = vsel %vm3680, %v2388, %v2729
      %v3702 = vsel %vm3680, %v2389, %v2731
      %v3703 = vsel %vm3680, %v2390, %v2733
      %v3704 = vsel %vm3680, %v2391, %v2735
      %v3705 = vsel %vm3680, %v2392, %v2737
      %v3706 = vsel %vm3680, %v2393, %v2739
      %v3707 = vsel %vm3680, %v2394, %v2741
      %v3708 = vsel %vm3680, %v2395, %v2743
      %v3709 = vsel %vm3680, %v2396, %v2745
      %v3710 = vsel %vm3680, %v2397, %v2747
      %v3711 = vsel %vm3680, %v2398, %v2749
      %v3712 = vsel %vm3680, %v2399, %v2751
      %v3713 = vsel %vm1779, %v3681, %v2817
      %v3714 = vsel %vm1779, %v3682, %v2819
      %v3715 = vsel %vm1779, %v3683, %v2821
      %v3716 = vsel %vm1779, %v3684, %v2823
      %v3717 = vsel %vm1779, %v3685, %v2825
      %v3718 = vsel %vm1779, %v3686, %v2827
      %v3719 = vsel %vm1779, %v3687, %v2829
      %v3720 = vsel %vm1779, %v3688, %v2831
      %v3721 = vsel %vm1779, %v3689, %v2833
      %v3722 = vsel %vm1779, %v3690, %v2835
      %v3723 = vsel %vm1779, %v3691, %v2837
      %v3724 = vsel %vm1779, %v3692, %v2839
      %v3725 = vsel %vm1779, %v3693, %v2841
      %v3726 = vsel %vm1779, %v3694, %v2843
      %v3727 = vsel %vm1779, %v3695, %v2845
      %v3728 = vsel %vm1779, %v3696, %v2847
      %v3729 = vsel %vm1779, %v3697, %v2849
      %v3730 = vsel %vm1779, %v3698, %v2851
      %v3731 = vsel %vm1779, %v3699, %v2853
      %v3732 = vsel %vm1779, %v3700, %v2855
      %v3733 = vsel %vm1779, %v3701, %v2857
      %v3734 = vsel %vm1779, %v3702, %v2859
      %v3735 = vsel %vm1779, %v3703, %v2861
      %v3736 = vsel %vm1779, %v3704, %v2863
      %v3737 = vsel %vm1779, %v3705, %v2865
      %v3738 = vsel %vm1779, %v3706, %v2867
      %v3739 = vsel %vm1779, %v3707, %v2869
      %v3740 = vsel %vm1779, %v3708, %v2871
      %v3741 = vsel %vm1779, %v3709, %v2873
      %v3742 = vsel %vm1779, %v3710, %v2875
      %v3743 = vsel %vm1779, %v3711, %v2877
      %v3744 = vsel %vm1779, %v3712, %v2879
      %vm3745 = vcmask 293888
      %v3746 = vsel %vm3745, %v3713, %v2945
      %v3747 = vsel %vm3745, %v3714, %v2947
      %v3748 = vsel %vm3745, %v3715, %v2949
      %v3749 = vsel %vm3745, %v3716, %v2951
      %v3750 = vsel %vm3745, %v3717, %v2953
      %v3751 = vsel %vm3745, %v3718, %v2955
      %v3752 = vsel %vm3745, %v3719, %v2957
      %v3753 = vsel %vm3745, %v3720, %v2959
      %v3754 = vsel %vm3745, %v3721, %v2961
      %v3755 = vsel %vm3745, %v3722, %v2963
      %v3756 = vsel %vm3745, %v3723, %v2965
      %v3757 = vsel %vm3745, %v3724, %v2967
      %v3758 = vsel %vm3745, %v3725, %v2969
      %v3759 = vsel %vm3745, %v3726, %v2971
      %v3760 = vsel %vm3745, %v3727, %v2973
      %v3761 = vsel %vm3745, %v3728, %v2975
      %v3762 = vsel %vm3745, %v3729, %v2977
      %v3763 = vsel %vm3745, %v3730, %v2979
      %v3764 = vsel %vm3745, %v3731, %v2981
      %v3765 = vsel %vm3745, %v3732, %v2983
      %v3766 = vsel %vm3745, %v3733, %v2985
      %v3767 = vsel %vm3745, %v3734, %v2987
      %v3768 = vsel %vm3745, %v3735, %v2989
      %v3769 = vsel %vm3745, %v3736, %v2991
      %v3770 = vsel %vm3745, %v3737, %v2993
      %v3771 = vsel %vm3745, %v3738, %v2995
      %v3772 = vsel %vm3745, %v3739, %v2997
      %v3773 = vsel %vm3745, %v3740, %v2999
      %v3774 = vsel %vm3745, %v3741, %v3001
      %v3775 = vsel %vm3745, %v3742, %v3003
      %v3776 = vsel %vm3745, %v3743, %v3005
      %v3777 = vsel %vm3745, %v3744, %v3007
      %v3778 = vsel %vm1878, %v3746, %v3073
      %v3779 = vsel %vm1878, %v3747, %v3075
      %v3780 = vsel %vm1878, %v3748, %v3077
      %v3781 = vsel %vm1878, %v3749, %v3079
      %v3782 = vsel %vm1878, %v3750, %v3081
      %v3783 = vsel %vm1878, %v3751, %v3083
      %v3784 = vsel %vm1878, %v3752, %v3085
      %v3785 = vsel %vm1878, %v3753, %v3087
      %v3786 = vsel %vm1878, %v3754, %v3089
      %v3787 = vsel %vm1878, %v3755, %v3091
      %v3788 = vsel %vm1878, %v3756, %v3093
      %v3789 = vsel %vm1878, %v3757, %v3095
      %v3790 = vsel %vm1878, %v3758, %v3097
      %v3791 = vsel %vm1878, %v3759, %v3099
      %v3792 = vsel %vm1878, %v3760, %v3101
      %v3793 = vsel %vm1878, %v3761, %v3103
      %v3794 = vsel %vm1878, %v3762, %v3105
      %v3795 = vsel %vm1878, %v3763, %v3107
      %v3796 = vsel %vm1878, %v3764, %v3109
      %v3797 = vsel %vm1878, %v3765, %v3111
      %v3798 = vsel %vm1878, %v3766, %v3113
      %v3799 = vsel %vm1878, %v3767, %v3115
      %v3800 = vsel %vm1878, %v3768, %v3117
      %v3801 = vsel %vm1878, %v3769, %v3119
      %v3802 = vsel %vm1878, %v3770, %v3121
      %v3803 = vsel %vm1878, %v3771, %v3123
      %v3804 = vsel %vm1878, %v3772, %v3125
      %v3805 = vsel %vm1878, %v3773, %v3127
      %v3806 = vsel %vm1878, %v3774, %v3129
      %v3807 = vsel %vm1878, %v3775, %v3131
      %v3808 = vsel %vm1878, %v3776, %v3133
      %v3809 = vsel %vm1878, %v3777, %v3135
      %vm3810 = vcmask 490496
      %v3811 = vsel %vm3810, %v3778, %v3201
      %v3812 = vsel %vm3810, %v3779, %v3203
      %v3813 = vsel %vm3810, %v3780, %v3205
      %v3814 = vsel %vm3810, %v3781, %v3207
      %v3815 = vsel %vm3810, %v3782, %v3209
      %v3816 = vsel %vm3810, %v3783, %v3211
      %v3817 = vsel %vm3810, %v3784, %v3213
      %v3818 = vsel %vm3810, %v3785, %v3215
      %v3819 = vsel %vm3810, %v3786, %v3217
      %v3820 = vsel %vm3810, %v3787, %v3219
      %v3821 = vsel %vm3810, %v3788, %v3221
      %v3822 = vsel %vm3810, %v3789, %v3223
      %v3823 = vsel %vm3810, %v3790, %v3225
      %v3824 = vsel %vm3810, %v3791, %v3227
      %v3825 = vsel %vm3810, %v3792, %v3229
      %v3826 = vsel %vm3810, %v3793, %v3231
      %v3827 = vsel %vm3810, %v3794, %v3233
      %v3828 = vsel %vm3810, %v3795, %v3235
      %v3829 = vsel %vm3810, %v3796, %v3237
      %v3830 = vsel %vm3810, %v3797, %v3239
      %v3831 = vsel %vm3810, %v3798, %v3241
      %v3832 = vsel %vm3810, %v3799, %v3243
      %v3833 = vsel %vm3810, %v3800, %v3245
      %v3834 = vsel %vm3810, %v3801, %v3247
      %v3835 = vsel %vm3810, %v3802, %v3249
      %v3836 = vsel %vm3810, %v3803, %v3251
      %v3837 = vsel %vm3810, %v3804, %v3253
      %v3838 = vsel %vm3810, %v3805, %v3255
      %v3839 = vsel %vm3810, %v3806, %v3257
      %v3840 = vsel %vm3810, %v3807, %v3259
      %v3841 = vsel %vm3810, %v3808, %v3261
      %v3842 = vsel %vm3810, %v3809, %v3263
      %v3843 = vsel %vm2033, %v3811, %v3329
      %v3844 = vsel %vm2033, %v3812, %v3331
      %v3845 = vsel %vm2033, %v3813, %v3333
      %v3846 = vsel %vm2033, %v3814, %v3335
      %v3847 = vsel %vm2033, %v3815, %v3337
      %v3848 = vsel %vm2033, %v3816, %v3339
      %v3849 = vsel %vm2033, %v3817, %v3341
      %v3850 = vsel %vm2033, %v3818, %v3343
      %v3851 = vsel %vm2033, %v3819, %v3345
      %v3852 = vsel %vm2033, %v3820, %v3347
      %v3853 = vsel %vm2033, %v3821, %v3349
      %v3854 = vsel %vm2033, %v3822, %v3351
      %v3855 = vsel %vm2033, %v3823, %v3353
      %v3856 = vsel %vm2033, %v3824, %v3355
      %v3857 = vsel %vm2033, %v3825, %v3357
      %v3858 = vsel %vm2033, %v3826, %v3359
      %v3859 = vsel %vm2033, %v3827, %v3361
      %v3860 = vsel %vm2033, %v3828, %v3363
      %v3861 = vsel %vm2033, %v3829, %v3365
      %v3862 = vsel %vm2033, %v3830, %v3367
      %v3863 = vsel %vm2033, %v3831, %v3369
      %v3864 = vsel %vm2033, %v3832, %v3371
      %v3865 = vsel %vm2033, %v3833, %v3373
      %v3866 = vsel %vm2033, %v3834, %v3375
      %v3867 = vsel %vm2033, %v3835, %v3377
      %v3868 = vsel %vm2033, %v3836, %v3379
      %v3869 = vsel %vm2033, %v3837, %v3381
      %v3870 = vsel %vm2033, %v3838, %v3383
      %v3871 = vsel %vm2033, %v3839, %v3385
      %v3872 = vsel %vm2033, %v3840, %v3387
      %v3873 = vsel %vm2033, %v3841, %v3389
      %v3874 = vsel %vm2033, %v3842, %v3391
      %vm3875 = vcmask 687104
      %v3876 = vsel %vm3875, %v3843, %v3457
      %v3877 = vsel %vm3875, %v3844, %v3459
      %v3878 = vsel %vm3875, %v3845, %v3461
      %v3879 = vsel %vm3875, %v3846, %v3463
      %v3880 = vsel %vm3875, %v3847, %v3465
      %v3881 = vsel %vm3875, %v3848, %v3467
      %v3882 = vsel %vm3875, %v3849, %v3469
      %v3883 = vsel %vm3875, %v3850, %v3471
      %v3884 = vsel %vm3875, %v3851, %v3473
      %v3885 = vsel %vm3875, %v3852, %v3475
      %v3886 = vsel %vm3875, %v3853, %v3477
      %v3887 = vsel %vm3875, %v3854, %v3479
      %v3888 = vsel %vm3875, %v3855, %v3481
      %v3889 = vsel %vm3875, %v3856, %v3483
      %v3890 = vsel %vm3875, %v3857, %v3485
      %v3891 = vsel %vm3875, %v3858, %v3487
      %v3892 = vsel %vm3875, %v3859, %v3489
      %v3893 = vsel %vm3875, %v3860, %v3491
      %v3894 = vsel %vm3875, %v3861, %v3493
      %v3895 = vsel %vm3875, %v3862, %v3495
      %v3896 = vsel %vm3875, %v3863, %v3497
      %v3897 = vsel %vm3875, %v3864, %v3499
      %v3898 = vsel %vm3875, %v3865, %v3501
      %v3899 = vsel %vm3875, %v3866, %v3503
      %v3900 = vsel %vm3875, %v3867, %v3505
      %v3901 = vsel %vm3875, %v3868, %v3507
      %v3902 = vsel %vm3875, %v3869, %v3509
      %v3903 = vsel %vm3875, %v3870, %v3511
      %v3904 = vsel %vm3875, %v3871, %v3513
      %v3905 = vsel %vm3875, %v3872, %v3515
      %v3906 = vsel %vm3875, %v3873, %v3517
      %v3907 = vsel %vm3875, %v3874, %v3519
      %vm3908 = vcmask 785408
      %v3909 = vsel %vm3908, %v3876, %v3585
      %v3910 = vsel %vm3908, %v3877, %v3587
      %v3911 = vsel %vm3908, %v3878, %v3589
      %v3912 = vsel %vm3908, %v3879, %v3591
      %v3913 = vsel %vm3908, %v3880, %v3593
      %v3914 = vsel %vm3908, %v3881, %v3595
      %v3915 = vsel %vm3908, %v3882, %v3597
      %v3916 = vsel %vm3908, %v3883, %v3599
      %v3917 = vsel %vm3908, %v3884, %v3601
      %v3918 = vsel %vm3908, %v3885, %v3603
      %v3919 = vsel %vm3908, %v3886, %v3605
      %v3920 = vsel %vm3908, %v3887, %v3607
      %v3921 = vsel %vm3908, %v3888, %v3609
      %v3922 = vsel %vm3908, %v3889, %v3611
      %v3923 = vsel %vm3908, %v3890, %v3613
      %v3924 = vsel %vm3908, %v3891, %v3615
      %v3925 = vsel %vm3908, %v3892, %v3617
      %v3926 = vsel %vm3908, %v3893, %v3619
      %v3927 = vsel %vm3908, %v3894, %v3621
      %v3928 = vsel %vm3908, %v3895, %v3623
      %v3929 = vsel %vm3908, %v3896, %v3625
      %v3930 = vsel %vm3908, %v3897, %v3627
      %v3931 = vsel %vm3908, %v3898, %v3629
      %v3932 = vsel %vm3908, %v3899, %v3631
      %v3933 = vsel %vm3908, %v3900, %v3633
      %v3934 = vsel %vm3908, %v3901, %v3635
      %v3935 = vsel %vm3908, %v3902, %v3637
      %v3936 = vsel %vm3908, %v3903, %v3639
      %v3937 = vsel %vm3908, %v3904, %v3641
      %v3938 = vsel %vm3908, %v3905, %v3643
      %v3939 = vsel %vm3908, %v3906, %v3645
      %v3940 = vsel %vm3908, %v3907, %v3647
      %v3941 = vpack.c.bf16 %v3910, %v3909
      %v3942 = vpack.c.bf16 %v3912, %v3911
      %v3943 = vpack.c.bf16 %v3914, %v3913
      %v3944 = vpack.c.bf16 %v3916, %v3915
      %v3945 = vpack.c.bf16 %v3918, %v3917
      %v3946 = vpack.c.bf16 %v3920, %v3919
      %v3947 = vpack.c.bf16 %v3922, %v3921
      %v3948 = vpack.c.bf16 %v3924, %v3923
      %v3949 = vpack.c.bf16 %v3926, %v3925
      %v3950 = vpack.c.bf16 %v3928, %v3927
      %v3951 = vpack.c.bf16 %v3930, %v3929
      %v3952 = vpack.c.bf16 %v3932, %v3931
      %v3953 = vpack.c.bf16 %v3934, %v3933
      %v3954 = vpack.c.bf16 %v3936, %v3935
      %v3955 = vpack.c.bf16 %v3938, %v3937
      %v3956 = vpack.c.bf16 %v3940, %v3939
      %v3957 = vld [vmem:[%s2] sm:$0xf]
      %v3958 = vld [vmem:[%s2 + $0x4] sm:$0xf]
      %v3959 = vld [vmem:[%s2 + $0x8] sm:$0xf]
      %v3960 = vld [vmem:[%s2 + $0xc] sm:$0xf]
      %v3961 = vld [vmem:[%s2 + $0x10] sm:$0xf]
      %v3962 = vld [vmem:[%s2 + $0x14] sm:$0xf]
      %v3963 = vld [vmem:[%s2 + $0x18] sm:$0xf]
      %v3964 = vld [vmem:[%s2 + $0x1c] sm:$0xf]
      %v3965 = vld [vmem:[%s2 + $0x20] sm:$0xf]
      %v3966 = vld [vmem:[%s2 + $0x24] sm:$0xf]
      %v3967 = vld [vmem:[%s2 + $0x28] sm:$0xf]
      %v3968 = vld [vmem:[%s2 + $0x2c] sm:$0xf]
      %v3969 = vld [vmem:[%s2 + $0x30] sm:$0xf]
      %v3970 = vld [vmem:[%s2 + $0x34] sm:$0x3]
      %v3971 = vld [vmem:[%s4] sm:$0x1]
      %v3973 = vperm.slane %v3971, 0
      %v3989 = vunpack.c.l.b16 %v3957
      %v3990 = vunpack.c.l.b16 %v3958
      %v3991 = vunpack.c.l.b16 %v3959
      %v3992 = vunpack.c.l.b16 %v3960
      %v3993 = vunpack.c.l.b16 %v3961
      %v3994 = vunpack.c.l.b16 %v3962
      %v3995 = vunpack.c.l.b16 %v3963
      %v3996 = vunpack.c.l.b16 %v3964
      %v3997 = vunpack.c.l.b16 %v3965
      %v3998 = vunpack.c.l.b16 %v3966
      %v3999 = vunpack.c.l.b16 %v3967
      %v4000 = vunpack.c.l.b16 %v3968
      %v4001 = vunpack.c.l.b16 %v3969
      %v4002 = vunpack.c.l.b16 %v3970
      %v4003 = vpack.c.b16 %v3990, %v3989
      %v4004 = vpack.c.b16 %v3992, %v3991
      %v4005 = vpack.c.b16 %v3994, %v3993
      %v4006 = vpack.c.b16 %v3996, %v3995
      %v4007 = vpack.c.b16 %v3998, %v3997
      %v4008 = vpack.c.b16 %v4000, %v3999
      %v4009 = vpack.c.b16 %v4002, %v4001
      %vm4016 = vcmask 883712
      %v4018 = vsel %vm4016, %v3941, 0
      %v4021 = vsel %vm4016, %v3942, 0
      %v4024 = vsel %vm4016, %v3943, 0
      %v4027 = vsel %vm4016, %v3944, 0
      %v4030 = vsel %vm4016, %v3945, 0
      %v4033 = vsel %vm4016, %v3946, 0
      %v4036 = vsel %vm4016, %v3947, 0
      %v4039 = vsel %vm4016, %v3948, 0
      %v4042 = vsel %vm4016, %v3949, 0
      %v4045 = vsel %vm4016, %v3950, 0
      %v4048 = vsel %vm4016, %v3951, 0
      %v4051 = vsel %vm4016, %v3952, 0
      %v4054 = vsel %vm4016, %v3953, 0
      %v4057 = vsel %vm4016, %v3954, 0
      %v4060 = vsel %vm4016, %v3955, 0
      %v4063 = vsel %vm4016, %v3956, 0
      %vm4065 = vcmask 1045504
      %v4067 = vsel %vm4065, %v4009, 0
      %4069 = vmatpush.bf16.msra.mxu0 0
      %4070 = vmatpush.bf16.msra.mxu0 %v4067
      %4071 = vmatpush.bf16.msra.mxu0 %v4008
      %4072 = vmatpush.bf16.msra.mxu0 %v4007
      %4073 = vmatpush.bf16.msra.mxu0 %v4006
      %4074 = vmatpush.bf16.msra.mxu0 %v4005
      %4075 = vmatpush.bf16.msra.mxu0 %v4004
      %4076 = vmatpush.bf16.msra.mxu0 %v4003
      %4077 = vmatmul.bf16.gmra.mxu0 %v4018
      %v4078 = vpop.f32.mrf.mxu0
      %v4079 = vadd.f32 %v3973, %v4078
      %v4080 = vpop.f32.mrf.mxu0
      %v4081 = vadd.f32 %v3973, %v4080
      %4082 = vmatmul.bf16.gmra.mxu0 %v4021
      %v4083 = vpop.f32.mrf.mxu0
      %v4084 = vadd.f32 %v3973, %v4083
      %v4085 = vpop.f32.mrf.mxu0
      %v4086 = vadd.f32 %v3973, %v4085
      %4087 = vmatmul.bf16.gmra.mxu0 %v4024
      %v4088 = vpop.f32.mrf.mxu0
      %v4089 = vadd.f32 %v3973, %v4088
      %v4090 = vpop.f32.mrf.mxu0
      %v4091 = vadd.f32 %v3973, %v4090
      %4092 = vmatmul.bf16.gmra.mxu0 %v4027
      %v4093 = vpop.f32.mrf.mxu0
      %v4094 = vadd.f32 %v3973, %v4093
      %v4095 = vpop.f32.mrf.mxu0
      %v4096 = vadd.f32 %v3973, %v4095
      %4097 = vmatmul.bf16.gmra.mxu0 %v4030
      %v4098 = vpop.f32.mrf.mxu0
      %v4099 = vadd.f32 %v3973, %v4098
      %v4100 = vpop.f32.mrf.mxu0
      %v4101 = vadd.f32 %v3973, %v4100
      %4102 = vmatmul.bf16.gmra.mxu0 %v4033
      %v4103 = vpop.f32.mrf.mxu0
      %v4104 = vadd.f32 %v3973, %v4103
      %v4105 = vpop.f32.mrf.mxu0
      %v4106 = vadd.f32 %v3973, %v4105
      %4107 = vmatmul.bf16.gmra.mxu0 %v4036
      %v4108 = vpop.f32.mrf.mxu0
      %v4109 = vadd.f32 %v3973, %v4108
      %v4110 = vpop.f32.mrf.mxu0
      %v4111 = vadd.f32 %v3973, %v4110
      %4112 = vmatmul.bf16.gmra.mxu0 %v4039
      %v4113 = vpop.f32.mrf.mxu0
      %v4114 = vadd.f32 %v3973, %v4113
      %v4115 = vpop.f32.mrf.mxu0
      %v4116 = vadd.f32 %v3973, %v4115
      %4117 = vmatmul.bf16.gmra.mxu0 %v4042
      %v4118 = vpop.f32.mrf.mxu0
      %v4119 = vadd.f32 %v3973, %v4118
      %v4120 = vpop.f32.mrf.mxu0
      %v4121 = vadd.f32 %v3973, %v4120
      %4122 = vmatmul.bf16.gmra.mxu0 %v4045
      %v4123 = vpop.f32.mrf.mxu0
      %v4124 = vadd.f32 %v3973, %v4123
      %v4125 = vpop.f32.mrf.mxu0
      %v4126 = vadd.f32 %v3973, %v4125
      %4127 = vmatmul.bf16.gmra.mxu0 %v4048
      %v4128 = vpop.f32.mrf.mxu0
      %v4129 = vadd.f32 %v3973, %v4128
      %v4130 = vpop.f32.mrf.mxu0
      %v4131 = vadd.f32 %v3973, %v4130
      %4132 = vmatmul.bf16.gmra.mxu0 %v4051
      %v4133 = vpop.f32.mrf.mxu0
      %v4134 = vadd.f32 %v3973, %v4133
      %v4135 = vpop.f32.mrf.mxu0
      %v4136 = vadd.f32 %v3973, %v4135
      %4137 = vmatmul.bf16.gmra.mxu0 %v4054
      %v4138 = vpop.f32.mrf.mxu0
      %v4139 = vadd.f32 %v3973, %v4138
      %v4140 = vpop.f32.mrf.mxu0
      %v4141 = vadd.f32 %v3973, %v4140
      %4142 = vmatmul.bf16.gmra.mxu0 %v4057
      %v4143 = vpop.f32.mrf.mxu0
      %v4144 = vadd.f32 %v3973, %v4143
      %v4145 = vpop.f32.mrf.mxu0
      %v4146 = vadd.f32 %v3973, %v4145
      %4147 = vmatmul.bf16.gmra.mxu0 %v4060
      %v4148 = vpop.f32.mrf.mxu0
      %v4149 = vadd.f32 %v3973, %v4148
      %v4150 = vpop.f32.mrf.mxu0
      %v4151 = vadd.f32 %v3973, %v4150
      %4152 = vmatmul.bf16.gmra.mxu0 %v4063
      %v4153 = vpop.f32.mrf.mxu0
      %v4154 = vadd.f32 %v3973, %v4153
      %v4155 = vpop.f32.mrf.mxu0
      %v4156 = vadd.f32 %v3973, %v4155
      %4157 = vdwg.mxu0
      %v4158 = vmax.f32 %v4079, 0.0
      %v4159 = vmax.f32 %v4081, 0.0
      %v4160 = vmax.f32 %v4084, 0.0
      %v4161 = vmax.f32 %v4086, 0.0
      %v4162 = vmax.f32 %v4089, 0.0
      %v4163 = vmax.f32 %v4091, 0.0
      %v4164 = vmax.f32 %v4094, 0.0
      %v4165 = vmax.f32 %v4096, 0.0
      %v4166 = vmax.f32 %v4099, 0.0
      %v4167 = vmax.f32 %v4101, 0.0
      %v4168 = vmax.f32 %v4104, 0.0
      %v4169 = vmax.f32 %v4106, 0.0
      %v4170 = vmax.f32 %v4109, 0.0
      %v4171 = vmax.f32 %v4111, 0.0
      %v4172 = vmax.f32 %v4114, 0.0
      %v4173 = vmax.f32 %v4116, 0.0
      %v4174 = vmax.f32 %v4119, 0.0
      %v4175 = vmax.f32 %v4121, 0.0
      %v4176 = vmax.f32 %v4124, 0.0
      %v4177 = vmax.f32 %v4126, 0.0
      %v4178 = vmax.f32 %v4129, 0.0
      %v4179 = vmax.f32 %v4131, 0.0
      %v4180 = vmax.f32 %v4134, 0.0
      %v4181 = vmax.f32 %v4136, 0.0
      %v4182 = vmax.f32 %v4139, 0.0
      %v4183 = vmax.f32 %v4141, 0.0
      %v4184 = vmax.f32 %v4144, 0.0
      %v4185 = vmax.f32 %v4146, 0.0
      %v4186 = vmax.f32 %v4149, 0.0
      %v4187 = vmax.f32 %v4151, 0.0
      %v4188 = vmax.f32 %v4154, 0.0
      %v4189 = vmax.f32 %v4156, 0.0
      %4222 = vrot.lane.b32.xlu0 %v4158, 12
      %v4223 = vpop.permute.xlu0 %4222
      %4224 = vrot.lane.b32.xlu0 %v4159, 12
      %v4225 = vpop.permute.xlu0 %4224
      %4226 = vrot.lane.b32.xlu0 %v4160, 12
      %v4227 = vpop.permute.xlu0 %4226
      %4228 = vrot.lane.b32.xlu0 %v4161, 12
      %v4229 = vpop.permute.xlu0 %4228
      %4230 = vrot.lane.b32.xlu0 %v4162, 12
      %v4231 = vpop.permute.xlu0 %4230
      %4232 = vrot.lane.b32.xlu0 %v4163, 12
      %v4233 = vpop.permute.xlu0 %4232
      %4234 = vrot.lane.b32.xlu0 %v4164, 12
      %v4235 = vpop.permute.xlu0 %4234
      %4236 = vrot.lane.b32.xlu0 %v4165, 12
      %v4237 = vpop.permute.xlu0 %4236
      %4238 = vrot.lane.b32.xlu0 %v4166, 12
      %v4239 = vpop.permute.xlu0 %4238
      %4240 = vrot.lane.b32.xlu0 %v4167, 12
      %v4241 = vpop.permute.xlu0 %4240
      %4242 = vrot.lane.b32.xlu0 %v4168, 12
      %v4243 = vpop.permute.xlu0 %4242
      %4244 = vrot.lane.b32.xlu0 %v4169, 12
      %v4245 = vpop.permute.xlu0 %4244
      %4246 = vrot.lane.b32.xlu0 %v4170, 12
      %v4247 = vpop.permute.xlu0 %4246
      %4248 = vrot.lane.b32.xlu0 %v4171, 12
      %v4249 = vpop.permute.xlu0 %4248
      %4250 = vrot.lane.b32.xlu0 %v4172, 12
      %v4251 = vpop.permute.xlu0 %4250
      %4252 = vrot.lane.b32.xlu0 %v4173, 12
      %v4253 = vpop.permute.xlu0 %4252
      %4254 = vrot.lane.b32.xlu0 %v4174, 12
      %v4255 = vpop.permute.xlu0 %4254
      %4256 = vrot.lane.b32.xlu0 %v4175, 12
      %v4257 = vpop.permute.xlu0 %4256
      %4258 = vrot.lane.b32.xlu0 %v4176, 12
      %v4259 = vpop.permute.xlu0 %4258
      %4260 = vrot.lane.b32.xlu0 %v4177, 12
      %v4261 = vpop.permute.xlu0 %4260
      %4262 = vrot.lane.b32.xlu0 %v4178, 12
      %v4263 = vpop.permute.xlu0 %4262
      %4264 = vrot.lane.b32.xlu0 %v4179, 12
      %v4265 = vpop.permute.xlu0 %4264
      %4266 = vrot.lane.b32.xlu0 %v4180, 12
      %v4267 = vpop.permute.xlu0 %4266
      %4268 = vrot.lane.b32.xlu0 %v4181, 12
      %v4269 = vpop.permute.xlu0 %4268
      %4270 = vrot.lane.b32.xlu0 %v4182, 12
      %v4271 = vpop.permute.xlu0 %4270
      %4272 = vrot.lane.b32.xlu0 %v4183, 12
      %v4273 = vpop.permute.xlu0 %4272
      %4274 = vrot.lane.b32.xlu0 %v4184, 12
      %v4275 = vpop.permute.xlu0 %4274
      %4276 = vrot.lane.b32.xlu0 %v4185, 12
      %v4277 = vpop.permute.xlu0 %4276
      %4278 = vrot.lane.b32.xlu0 %v4186, 12
      %v4279 = vpop.permute.xlu0 %4278
      %4280 = vrot.lane.b32.xlu0 %v4187, 12
      %v4281 = vpop.permute.xlu0 %4280
      %4282 = vrot.lane.b32.xlu0 %v4188, 12
      %v4283 = vpop.permute.xlu0 %4282
      %4284 = vrot.lane.b32.xlu0 %v4189, 12
      %v4285 = vpop.permute.xlu0 %4284
      %vm4318 = vcmask 130144
      %4319 = vst.msk [vmem:[%s368 + $0x1] sm:$0xff] %vm4318, %v4223
      %4320 = vst.msk [vmem:[%s368 + $0x9] sm:$0xff] %vm4318, %v4225
      %4321 = vst.msk [vmem:[%s368 + $0x19] sm:$0xff] %vm4318, %v4227
      %4322 = vst.msk [vmem:[%s368 + $0x21] sm:$0xff] %vm4318, %v4229
      %4323 = vst.msk [vmem:[%s368 + $0x31] sm:$0xff] %vm4318, %v4231
      %4324 = vst.msk [vmem:[%s368 + $0x39] sm:$0xff] %vm4318, %v4233
      %4325 = vst.msk [vmem:[%s368 + $0x49] sm:$0xff] %vm4318, %v4235
      %4326 = vst.msk [vmem:[%s368 + $0x51] sm:$0xff] %vm4318, %v4237
      %4327 = vst.msk [vmem:[%s368 + $0x61] sm:$0xff] %vm4318, %v4239
      %4328 = vst.msk [vmem:[%s368 + $0x69] sm:$0xff] %vm4318, %v4241
      %4329 = vst.msk [vmem:[%s368 + $0x79] sm:$0xff] %vm4318, %v4243
      %4330 = vst.msk [vmem:[%s368 + $0x81] sm:$0xff] %vm4318, %v4245
      %4331 = vst.msk [vmem:[%s368 + $0x91] sm:$0xff] %vm4318, %v4247
      %4332 = vst.msk [vmem:[%s368 + $0x99] sm:$0xff] %vm4318, %v4249
      %4333 = vst.msk [vmem:[%s368 + $0xa9] sm:$0xff] %vm4318, %v4251
      %4334 = vst.msk [vmem:[%s368 + $0xb1] sm:$0xff] %vm4318, %v4253
      %4335 = vst.msk [vmem:[%s368 + $0xc1] sm:$0xff] %vm4318, %v4255
      %4336 = vst.msk [vmem:[%s368 + $0xc9] sm:$0xff] %vm4318, %v4257
      %4337 = vst.msk [vmem:[%s368 + $0xd9] sm:$0xff] %vm4318, %v4259
      %4338 = vst.msk [vmem:[%s368 + $0xe1] sm:$0xff] %vm4318, %v4261
      %4339 = vst.msk [vmem:[%s368 + $0xf1] sm:$0xff] %vm4318, %v4263
      %4340 = vst.msk [vmem:[%s368 + $0xf9] sm:$0xff] %vm4318, %v4265
      %4341 = vst.msk [vmem:[%s368 + $0x109] sm:$0xff] %vm4318, %v4267
      %4342 = vst.msk [vmem:[%s368 + $0x111] sm:$0xff] %vm4318, %v4269
      %4343 = vst.msk [vmem:[%s368 + $0x121] sm:$0xff] %vm4318, %v4271
      %4344 = vst.msk [vmem:[%s368 + $0x129] sm:$0xff] %vm4318, %v4273
      %4345 = vst.msk [vmem:[%s368 + $0x139] sm:$0xff] %vm4318, %v4275
      %4346 = vst.msk [vmem:[%s368 + $0x141] sm:$0xff] %vm4318, %v4277
      %4347 = vst.msk [vmem:[%s368 + $0x151] sm:$0xff] %vm4318, %v4279
      %4348 = vst.msk [vmem:[%s368 + $0x159] sm:$0xff] %vm4318, %v4281
      %4349 = vst.msk [vmem:[%s368 + $0x169] sm:$0xff] %vm4318, %v4283
      %4350 = vst.msk [vmem:[%s368 + $0x171] sm:$0xff] %vm4318, %v4285
      %v4351 = vld [vmem:[%s368 + $0x1] sm:$0xff]
      %v4352 = vld [vmem:[%s368 + $0x9] sm:$0xff]
      %v4353 = vld [vmem:[%s368 + $0x19] sm:$0xff]
      %v4354 = vld [vmem:[%s368 + $0x21] sm:$0xff]
      %v4355 = vld [vmem:[%s368 + $0x31] sm:$0xff]
      %v4356 = vld [vmem:[%s368 + $0x39] sm:$0xff]
      %v4357 = vld [vmem:[%s368 + $0x49] sm:$0xff]
      %v4358 = vld [vmem:[%s368 + $0x51] sm:$0xff]
      %v4359 = vld [vmem:[%s368 + $0x61] sm:$0xff]
      %v4360 = vld [vmem:[%s368 + $0x69] sm:$0xff]
      %v4361 = vld [vmem:[%s368 + $0x79] sm:$0xff]
      %v4362 = vld [vmem:[%s368 + $0x81] sm:$0xff]
      %v4363 = vld [vmem:[%s368 + $0x91] sm:$0xff]
      %v4364 = vld [vmem:[%s368 + $0x99] sm:$0xff]
      %v4365 = vld [vmem:[%s368 + $0xa9] sm:$0xff]
      %v4366 = vld [vmem:[%s368 + $0xb1] sm:$0xff]
      %v4367 = vld [vmem:[%s368 + $0xc1] sm:$0xff]
      %v4368 = vld [vmem:[%s368 + $0xc9] sm:$0xff]
      %v4369 = vld [vmem:[%s368 + $0xd9] sm:$0xff]
      %v4370 = vld [vmem:[%s368 + $0xe1] sm:$0xff]
      %v4371 = vld [vmem:[%s368 + $0xf1] sm:$0xff]
      %v4372 = vld [vmem:[%s368 + $0xf9] sm:$0xff]
      %v4373 = vld [vmem:[%s368 + $0x109] sm:$0xff]
      %v4374 = vld [vmem:[%s368 + $0x111] sm:$0xff]
      %v4375 = vld [vmem:[%s368 + $0x121] sm:$0xff]
      %v4376 = vld [vmem:[%s368 + $0x129] sm:$0xff]
      %v4377 = vld [vmem:[%s368 + $0x139] sm:$0xff]
      %v4378 = vld [vmem:[%s368 + $0x141] sm:$0xff]
      %v4379 = vld [vmem:[%s368 + $0x151] sm:$0xff]
      %v4380 = vld [vmem:[%s368 + $0x159] sm:$0xff]
      %v4381 = vld [vmem:[%s368 + $0x169] sm:$0xff]
      %v4382 = vld [vmem:[%s368 + $0x171] sm:$0xff]
      %v4383 = vpack.c.bf16 %v4352, %v4351
      %v4384 = vpack.c.bf16 %v4354, %v4353
      %v4385 = vpack.c.bf16 %v4356, %v4355
      %v4386 = vpack.c.bf16 %v4358, %v4357
      %v4387 = vpack.c.bf16 %v4360, %v4359
      %v4388 = vpack.c.bf16 %v4362, %v4361
      %v4389 = vpack.c.bf16 %v4364, %v4363
      %v4390 = vpack.c.bf16 %v4366, %v4365
      %v4391 = vpack.c.bf16 %v4368, %v4367
      %v4392 = vpack.c.bf16 %v4370, %v4369
      %v4393 = vpack.c.bf16 %v4372, %v4371
      %v4394 = vpack.c.bf16 %v4374, %v4373
      %v4395 = vpack.c.bf16 %v4376, %v4375
      %v4396 = vpack.c.bf16 %v4378, %v4377
      %v4397 = vpack.c.bf16 %v4380, %v4379
      %v4398 = vpack.c.bf16 %v4382, %v4381
      %v4399 = vld [vmem:[%s5] sm:$0xf]
      %v4400 = vld [vmem:[%s5 + $0x4] sm:$0xf]
      %v4401 = vld [vmem:[%s6] sm:$0x1]
      %v4403 = vperm.slane %v4401, 0
      %v4407 = vunpack.c.l.b16 %v4399
      %v4408 = vunpack.c.l.b16 %v4400
      %v4409 = vpack.c.b16 %v4408, %v4407
      %v4412 = vsel %vm280, %v4383, 0
      %v4415 = vsel %vm280, %v4384, 0
      %v4418 = vsel %vm280, %v4385, 0
      %v4421 = vsel %vm280, %v4386, 0
      %v4424 = vsel %vm280, %v4387, 0
      %v4427 = vsel %vm280, %v4388, 0
      %v4430 = vsel %vm280, %v4389, 0
      %v4433 = vsel %vm280, %v4390, 0
      %v4436 = vsel %vm280, %v4391, 0
      %v4439 = vsel %vm280, %v4392, 0
      %v4442 = vsel %vm280, %v4393, 0
      %v4445 = vsel %vm280, %v4394, 0
      %v4448 = vsel %vm280, %v4395, 0
      %v4451 = vsel %vm280, %v4396, 0
      %v4454 = vsel %vm280, %v4397, 0
      %v4457 = vsel %vm280, %v4398, 0
      %4459 = vmatpush.bf16.msra.mxu0 0
      %4460 = vmatpush.bf16.msra.mxu0 0
      %4461 = vmatpush.bf16.msra.mxu0 0
      %4462 = vmatpush.bf16.msra.mxu0 0
      %4463 = vmatpush.bf16.msra.mxu0 0
      %4464 = vmatpush.bf16.msra.mxu0 0
      %4465 = vmatpush.bf16.msra.mxu0 0
      %4466 = vmatpush.bf16.msra.mxu0 %v4409
      %4467 = vmatmul.bf16.gmra.mxu0 %v4412
      %v4468 = vpop.f32.mrf.mxu0
      %v4469 = vadd.f32 %v4403, %v4468
      %v4470 = vpop.f32.mrf.mxu0
      %v4471 = vadd.f32 %v4403, %v4470
      %4472 = vmatmul.bf16.gmra.mxu0 %v4415
      %v4473 = vpop.f32.mrf.mxu0
      %v4474 = vadd.f32 %v4403, %v4473
      %v4475 = vpop.f32.mrf.mxu0
      %v4476 = vadd.f32 %v4403, %v4475
      %4477 = vmatmul.bf16.gmra.mxu0 %v4418
      %v4478 = vpop.f32.mrf.mxu0
      %v4479 = vadd.f32 %v4403, %v4478
      %v4480 = vpop.f32.mrf.mxu0
      %v4481 = vadd.f32 %v4403, %v4480
      %4482 = vmatmul.bf16.gmra.mxu0 %v4421
      %v4483 = vpop.f32.mrf.mxu0
      %v4484 = vadd.f32 %v4403, %v4483
      %v4485 = vpop.f32.mrf.mxu0
      %v4486 = vadd.f32 %v4403, %v4485
      %4487 = vmatmul.bf16.gmra.mxu0 %v4424
      %v4488 = vpop.f32.mrf.mxu0
      %v4489 = vadd.f32 %v4403, %v4488
      %v4490 = vpop.f32.mrf.mxu0
      %v4491 = vadd.f32 %v4403, %v4490
      %4492 = vmatmul.bf16.gmra.mxu0 %v4427
      %v4493 = vpop.f32.mrf.mxu0
      %v4494 = vadd.f32 %v4403, %v4493
      %v4495 = vpop.f32.mrf.mxu0
      %v4496 = vadd.f32 %v4403, %v4495
      %4497 = vmatmul.bf16.gmra.mxu0 %v4430
      %v4498 = vpop.f32.mrf.mxu0
      %v4499 = vadd.f32 %v4403, %v4498
      %v4500 = vpop.f32.mrf.mxu0
      %v4501 = vadd.f32 %v4403, %v4500
      %4502 = vmatmul.bf16.gmra.mxu0 %v4433
      %v4503 = vpop.f32.mrf.mxu0
      %v4504 = vadd.f32 %v4403, %v4503
      %v4505 = vpop.f32.mrf.mxu0
      %v4506 = vadd.f32 %v4403, %v4505
      %4507 = vmatmul.bf16.gmra.mxu0 %v4436
      %v4508 = vpop.f32.mrf.mxu0
      %v4509 = vadd.f32 %v4403, %v4508
      %v4510 = vpop.f32.mrf.mxu0
      %v4511 = vadd.f32 %v4403, %v4510
      %4512 = vmatmul.bf16.gmra.mxu0 %v4439
      %v4513 = vpop.f32.mrf.mxu0
      %v4514 = vadd.f32 %v4403, %v4513
      %v4515 = vpop.f32.mrf.mxu0
      %v4516 = vadd.f32 %v4403, %v4515
      %4517 = vmatmul.bf16.gmra.mxu0 %v4442
      %v4518 = vpop.f32.mrf.mxu0
      %v4519 = vadd.f32 %v4403, %v4518
      %v4520 = vpop.f32.mrf.mxu0
      %v4521 = vadd.f32 %v4403, %v4520
      %4522 = vmatmul.bf16.gmra.mxu0 %v4445
      %v4523 = vpop.f32.mrf.mxu0
      %v4524 = vadd.f32 %v4403, %v4523
      %v4525 = vpop.f32.mrf.mxu0
      %v4526 = vadd.f32 %v4403, %v4525
      %4527 = vmatmul.bf16.gmra.mxu0 %v4448
      %v4528 = vpop.f32.mrf.mxu0
      %v4529 = vadd.f32 %v4403, %v4528
      %v4530 = vpop.f32.mrf.mxu0
      %v4531 = vadd.f32 %v4403, %v4530
      %4532 = vmatmul.bf16.gmra.mxu0 %v4451
      %v4533 = vpop.f32.mrf.mxu0
      %v4534 = vadd.f32 %v4403, %v4533
      %v4535 = vpop.f32.mrf.mxu0
      %v4536 = vadd.f32 %v4403, %v4535
      %4537 = vmatmul.bf16.gmra.mxu0 %v4454
      %v4538 = vpop.f32.mrf.mxu0
      %v4539 = vadd.f32 %v4403, %v4538
      %v4540 = vpop.f32.mrf.mxu0
      %v4541 = vadd.f32 %v4403, %v4540
      %4542 = vmatmul.bf16.gmra.mxu0 %v4457
      %v4543 = vpop.f32.mrf.mxu0
      %v4544 = vadd.f32 %v4403, %v4543
      %v4545 = vpop.f32.mrf.mxu0
      %v4546 = vadd.f32 %v4403, %v4545
      %4547 = vdwg.mxu0
      %v4548 = vadd.f32 %v4469, %v336
      %v4549 = vadd.f32 %v4471, %v337
      %v4550 = vadd.f32 %v4474, %v338
      %v4551 = vadd.f32 %v4476, %v339
      %v4552 = vadd.f32 %v4479, %v340
      %v4553 = vadd.f32 %v4481, %v341
      %v4554 = vadd.f32 %v4484, %v342
      %v4555 = vadd.f32 %v4486, %v343
      %v4556 = vadd.f32 %v4489, %v344
      %v4557 = vadd.f32 %v4491, %v345
      %v4558 = vadd.f32 %v4494, %v346
      %v4559 = vadd.f32 %v4496, %v347
      %v4560 = vadd.f32 %v4499, %v348
      %v4561 = vadd.f32 %v4501, %v349
      %v4562 = vadd.f32 %v4504, %v350
      %v4563 = vadd.f32 %v4506, %v351
      %v4564 = vadd.f32 %v4509, %v352
      %v4565 = vadd.f32 %v4511, %v353
      %v4566 = vadd.f32 %v4514, %v354
      %v4567 = vadd.f32 %v4516, %v355
      %v4568 = vadd.f32 %v4519, %v356
      %v4569 = vadd.f32 %v4521, %v357
      %v4570 = vadd.f32 %v4524, %v358
      %v4571 = vadd.f32 %v4526, %v359
      %v4572 = vadd.f32 %v4529, %v360
      %v4573 = vadd.f32 %v4531, %v361
      %v4574 = vadd.f32 %v4534, %v362
      %v4575 = vadd.f32 %v4536, %v363
      %v4576 = vadd.f32 %v4539, %v364
      %v4577 = vadd.f32 %v4541, %v365
      %v4578 = vadd.f32 %v4544, %v366
      %v4579 = vadd.f32 %v4546, %v367
      %4580 = vst.msk [vmem:[%s278] sm:$0xff] %vm369, %v4548
      %4581 = vst.msk [vmem:[%s278 + $0x8] sm:$0xff] %vm369, %v4549
      %4582 = vst.msk [vmem:[%s278 + $0x10] sm:$0xff] %vm369, %v4550
      %4583 = vst.msk [vmem:[%s278 + $0x18] sm:$0xff] %vm369, %v4551
      %4584 = vst.msk [vmem:[%s278 + $0x20] sm:$0xff] %vm369, %v4552
      %4585 = vst.msk [vmem:[%s278 + $0x28] sm:$0xff] %vm369, %v4553
      %4586 = vst.msk [vmem:[%s278 + $0x30] sm:$0xff] %vm369, %v4554
      %4587 = vst.msk [vmem:[%s278 + $0x38] sm:$0xff] %vm369, %v4555
      %4588 = vst.msk [vmem:[%s278 + $0x40] sm:$0xff] %vm369, %v4556
      %4589 = vst.msk [vmem:[%s278 + $0x48] sm:$0xff] %vm369, %v4557
      %4590 = vst.msk [vmem:[%s278 + $0x50] sm:$0xff] %vm369, %v4558
      %4591 = vst.msk [vmem:[%s278 + $0x58] sm:$0xff] %vm369, %v4559
      %4592 = vst.msk [vmem:[%s278 + $0x60] sm:$0xff] %vm369, %v4560
      %4593 = vst.msk [vmem:[%s278 + $0x68] sm:$0xff] %vm369, %v4561
      %4594 = vst.msk [vmem:[%s278 + $0x70] sm:$0xff] %vm369, %v4562
      %4595 = vst.msk [vmem:[%s278 + $0x78] sm:$0xff] %vm369, %v4563
      %4596 = vst.msk [vmem:[%s278 + $0x80] sm:$0xff] %vm369, %v4564
      %4597 = vst.msk [vmem:[%s278 + $0x88] sm:$0xff] %vm369, %v4565
      %4598 = vst.msk [vmem:[%s278 + $0x90] sm:$0xff] %vm369, %v4566
      %4599 = vst.msk [vmem:[%s278 + $0x98] sm:$0xff] %vm369, %v4567
      %4600 = vst.msk [vmem:[%s278 + $0xa0] sm:$0xff] %vm369, %v4568
      %4601 = vst.msk [vmem:[%s278 + $0xa8] sm:$0xff] %vm369, %v4569
      %4602 = vst.msk [vmem:[%s278 + $0xb0] sm:$0xff] %vm369, %v4570
      %4603 = vst.msk [vmem:[%s278 + $0xb8] sm:$0xff] %vm369, %v4571
      %4604 = vst.msk [vmem:[%s278 + $0xc0] sm:$0xff] %vm369, %v4572
      %4605 = vst.msk [vmem:[%s278 + $0xc8] sm:$0xff] %vm369, %v4573
      %4606 = vst.msk [vmem:[%s278 + $0xd0] sm:$0xff] %vm369, %v4574
      %4607 = vst.msk [vmem:[%s278 + $0xd8] sm:$0xff] %vm369, %v4575
      %4608 = vst.msk [vmem:[%s278 + $0xe0] sm:$0xff] %vm369, %v4576
      %4609 = vst.msk [vmem:[%s278 + $0xe8] sm:$0xff] %vm369, %v4577
      %4610 = vst.msk [vmem:[%s278 + $0xf0] sm:$0xff] %vm369, %v4578
      %4611 = vst.msk [vmem:[%s278 + $0xf8] sm:$0xff] %vm369, %v4579
      %p4612 = scmp.lt.s32.totalorder %s18, 1
      %s4613 = scalar_select %p4612, %s18, 1
      %s4614 = smul.addr %s4613, 32
      %s4615 = smul.addr %s4614, 8
      %s4616 = scalar_lea.vmem %s7, %s4615
      // Predicated region
      $region49: #{rdnet_forward.3} parent=47 // pred_check
        %p4617 = pneg %p188
      $region50: #{rdnet_forward.3} parent=47 // pred_check_branch
        %4619 = sbr.rel (%p4617) target = $region52
      $region51: #{rdnet_forward.3} parent=47 // pred_region
        _
      $region52: #{rdnet_forward.3} parent=47 // pred_fallthru
        _
    $region48: #{rdnet_forward.3} parent=5 // pred_fallthru
      _
    %p4620 = scmp.le.s32.totalorder 2, %s13
    // Predicated region
    $region53: #{rdnet_forward.3} parent=5 // pred_check
      %p4621 = pneg %p4620
    $region54: #{rdnet_forward.3} parent=5 // pred_check_branch
      %4623 = sbr.rel (%p4621) target = $region56
    $region55: #{rdnet_forward.3} parent=5 // pred_region
      %s4624 = ssub.s32 %s13, 2
      // Predicated region
      $region57: #{rdnet_forward.3} parent=55 // pred_check
        %p4625 = pneg %p194
      $region58: #{rdnet_forward.3} parent=55 // pred_check_branch
        %4627 = sbr.rel (%p4625) target = $region60
      $region59: #{rdnet_forward.3} parent=55 // pred_region
        %p4628 = scmp.lt.s32.totalorder %s19, 1
        %s4629 = scalar_select %p4628, %s19, 1
        %s4630 = smul.addr %s4629, 32
        %s4631 = smul.addr %s4630, 8
        %s4632 = scalar_lea.vmem %s7, %s4631
      $region60: #{rdnet_forward.3} parent=55 // pred_fallthru
        _
    $region56: #{rdnet_forward.3} parent=5 // pred_fallthru
      _
  $region6: #{rdnet_forward.3} parent=0 // loop_footer
    %s17 = sadd.s32 1, %s13
  $region7: #{rdnet_forward.3} parent=0 // loop_footer_branch
    %12 = sbr.rel target = $region3
  $region8: #{rdnet_forward.3} parent=0 // loop_exit
    _

</llo_original>
